<compile_context>
chip_gen: v5e
topology: v5e:2x2
jax: 0.10.0
libtpu: 0.0.40
codegen_flags: <defaults>
</compile_context>

<pallas_src>
import functools
import math

import jax
import jax.numpy as jnp
from jax.experimental import pallas as pl
from jax.experimental.pallas import tpu as pltpu


def _elu(y):
    # ELU(alpha=1); exp argument clamped so the dead branch never overflows.
    return jnp.where(y > 0, y, jnp.exp(jnp.minimum(y, 0.0)) - 1.0)


# ----------------------------------------------------------------------------
# Single fused kernel: pow_tensor + all attention layers + final scorer.
# ----------------------------------------------------------------------------

def _fused_forward_kernel(*refs, B, N, H, n_edge, n_final, layer_meta):
    """Whole HScoreNetworkA forward for the full batch in one invocation.

    layer_meta: tuple of (C_in, attn_dim, conv_out, c_out) per layer (static).
    """
    it = iter(refs)
    xb_ref = next(it)        # (B*N, F0)  node features, batch folded into rows
    adj_ref = next(it)       # (B, N, N)
    eye_ref = next(it)       # (N, N)
    fcol_ref = next(it)      # (B*N, 1)   flags per (batch, node) row
    emask_ref = next(it)     # (B*N, N)   flags_i * flags_j   (mask_adjs)
    fmask_ref = next(it)     # (B*N, N)   emask * (1 - I)     (final score mask)

    layer_params = []
    for _ in layer_meta:
        wqkv = next(it)                      # (Fin, C*(2A+V))
        bqkv = next(it)                      # (1,   C*(2A+V))
        mc_w = [next(it), next(it)]
        mc_b = [next(it), next(it)]
        e_w = [next(it) for _ in range(n_edge)]
        e_b = [next(it) for _ in range(n_edge)]
        layer_params.append((wqkv, bqkv, mc_w, mc_b, e_w, e_b))
    f_w = [next(it) for _ in range(n_final)]
    f_b = [next(it) for _ in range(n_final)]
    out_ref = next(it)       # (B*N, N)

    eye = eye_ref[...]
    not_eye = 1.0 - eye
    fcol_all = fcol_ref[...]
    emask_all = emask_ref[...]

    # head-mean matrix: (H*N, N) stacked identities / H -> head sum on the MXU
    jsum = jnp.concatenate([eye] * H, axis=0) * (1.0 / H)

    # ---- pow_tensor: adj, adj^2, ..., adj^c_init  (stays in VMEM) ----------
    c_init = layer_meta[0][0]
    adjc = []
    for b in range(B):
        a0 = adj_ref[b]
        chans = [a0]
        cur = a0
        for _ in range(1, c_init):
            cur = jnp.dot(cur, a0, preferred_element_type=jnp.float32)
            chans.append(cur)
        adjc.append(chans)

    # running channel list feeding the final scorer (torch.cat(adj_list) order)
    final_feats = [list(chs) for chs in adjc]

    xb = xb_ref[...]

    for (C, A, V, c_out), (wqkv_ref, bqkv_ref, mc_w, mc_b, e_w, e_b) in zip(
            layer_meta, layer_params):
        blk = 2 * A + V
        dh = A // H
        scale = 1.0 / math.sqrt(V)      # reference Attention scales by sqrt(out_dim)

        # ONE fused (B*N, Fin) @ (Fin, C*(2A+V)) matmul for all channels' Q|K|V
        qkv_all = jnp.dot(xb, wqkv_ref[...], preferred_element_type=jnp.float32)
        bqkv = bqkv_ref[...]

        # per-head column masks over attn_dim lanes (built once per layer)
        lane = jax.lax.broadcasted_iota(jnp.int32, (1, A), 1)
        hmasks = [((lane >= h * dh) & (lane < (h + 1) * dh)).astype(jnp.float32)
                  for h in range(H)]

        v_rows, edge_rows = [], []
        for b in range(B):
            a_maps, v_cols = [], []
            for c in range(C):
                a = adjc[b][c]
                # DenseGCNConv: diag <- 1, symmetric normalisation (deg clamp 1)
                a_sl = a * not_eye + eye
                deg = jnp.sum(a_sl, axis=-1, keepdims=True)
                dis = jax.lax.rsqrt(jnp.maximum(deg, 1.0))
                xw = qkv_all[b * N:(b + 1) * N, c * blk:(c + 1) * blk]
                prop = jnp.dot(a_sl, xw * dis, preferred_element_type=jnp.float32)
                qkv = prop * dis + bqkv[:, c * blk:(c + 1) * blk]
                q = qkv[:, :A]
                k = qkv[:, A:2 * A]
                v_cols.append(qkv[:, 2 * A:])

                # all heads in one matmul vs. head-masked, head-tiled K;
                # per-head tanh; head mean via the MXU (jsum); symmetrize.
                k_exp = jnp.concatenate([k * m for m in hmasks], axis=0)  # (H*N, A)
                s = jax.lax.dot_general(q, k_exp, (((1,), (1,)), ((), ())),
                                        preferred_element_type=jnp.float32)
                s = jnp.tanh(s * scale)                                   # (N, H*N)
                a_m = jnp.dot(s, jsum, preferred_element_type=jnp.float32)
                a_maps.append(0.5 * (a_m + a_m.T))

            v_rows.append(jnp.concatenate(v_cols, axis=1))                # (N, C*V)
            edge_rows.append(jnp.concatenate(a_maps + adjc[b], axis=1))   # (N, 2C*N)

        # node update: multi_channel MLP -> mask_x -> tanh   (batch in rows)
        h = jnp.concatenate(v_rows, axis=0)                               # (B*N, C*V)
        h = _elu(jnp.dot(h, mc_w[0][...], preferred_element_type=jnp.float32)
                 + mc_b[0][...])
        h = jnp.dot(h, mc_w[1][...], preferred_element_type=jnp.float32) + mc_b[1][...]
        xb = jnp.tanh(h * fcol_all)

        # edge update: lane-blocked per-edge MLP (kron-expanded weights)
        he = jnp.concatenate(edge_rows, axis=0)                           # (B*N, 2C*N)
        for l in range(n_edge - 1):
            he = _elu(jnp.dot(he, e_w[l][...], preferred_element_type=jnp.float32)
                      + e_b[l][...])
        he = jnp.dot(he, e_w[n_edge - 1][...],
                     preferred_element_type=jnp.float32) + e_b[n_edge - 1][...]

        new_adjc = []
        for b in range(B):
            emask_b = emask_all[b * N:(b + 1) * N, :]
            maps = []
            for o in range(c_out):
                m = he[b * N:(b + 1) * N, o * N:(o + 1) * N]
                m = (m + m.T) * emask_b              # _adj + _adj^T, mask_adjs
                maps.append(m)
            new_adjc.append(maps)
            final_feats[b].extend(maps)
        adjc = new_adjc

    # ---- final scorer: cat of every adjacency channel -> 3-layer edge MLP ---
    hf = jnp.concatenate(
        [jnp.concatenate(final_feats[b], axis=1) for b in range(B)], axis=0)
    for l in range(n_final - 1):
        hf = _elu(jnp.dot(hf, f_w[l][...], preferred_element_type=jnp.float32)
                  + f_b[l][...])
    hf = jnp.dot(hf, f_w[n_final - 1][...],
                 preferred_element_type=jnp.float32) + f_b[n_final - 1][...]

    out_ref[...] = (hf * fmask_ref[...]).astype(out_ref.dtype)   # zero diag + mask


# ----------------------------------------------------------------------------
# Forward wrapper
# ----------------------------------------------------------------------------

def hscore_network_a_forward(params, x, adj, flags, t, cfg):
    # `t` is accepted for API parity with the PyTorch module but unused there
    # (manifold=None, temb_net never invoked in forward).
    del t
    B, N, F = x.shape
    flags = flags.astype(jnp.float32)
    eye_n = jnp.eye(N, dtype=jnp.float32)

    xb = x.reshape(B * N, F).astype(jnp.float32)
    fcol_all = flags.reshape(B * N, 1)
    lane_all = jnp.repeat(flags, N, axis=0)                 # row b*N+i = flags[b,:]
    emask_all = fcol_all * lane_all                         # flags_i * flags_j
    fmask_all = emask_all * jnp.tile(1.0 - eye_n, (B, 1))   # + zero diagonal

    nL = cfg["num_layers"]
    layer_meta = []
    for i in range(nL):
        if i == 0:
            layer_meta.append((cfg["c_init"], cfg["nhid"], cfg["nhid"], cfg["c_hid"]))
        elif i == nL - 1:
            layer_meta.append((cfg["c_hid"], cfg["adim"], cfg["nhid"], cfg["c_final"]))
        else:
            layer_meta.append((cfg["c_hid"], cfg["adim"], cfg["nhid"], cfg["c_hid"]))
    layer_meta = tuple(layer_meta)
    n_edge = len(params["layers"][0]["edge_w"])
    n_final = len(params["final_w"])

    inputs = [xb, adj.astype(jnp.float32), eye_n, fcol_all, emask_all, fmask_all]
    for lp in params["layers"]:
        inputs += [lp["wqkv"], lp["bqkv"]]
        inputs += lp["mc_w"] + lp["mc_b"]
        inputs += lp["edge_w"] + lp["edge_b"]
    inputs += params["final_w"] + params["final_b"]

    kernel = functools.partial(
        _fused_forward_kernel, B=B, N=N, H=cfg["num_heads"],
        n_edge=n_edge, n_final=n_final, layer_meta=layer_meta)

    score = pl.pallas_call(
        kernel,
        out_shape=jax.ShapeDtypeStruct((B * N, N), jnp.float32),
        compiler_params=pltpu.CompilerParams(vmem_limit_bytes=32 * 1024 * 1024),
    )(*inputs)
    return score.reshape(B, N, N)


# ----------------------------------------------------------------------------
# Host-side helpers / parameter initialisation
# ----------------------------------------------------------------------------

def mask_x(x, flags):
    return x * flags[:, :, None]


def mask_adjs(adjs, flags):
    f = flags[:, None, :] if adjs.ndim == 4 else flags
    adjs = adjs * f[..., None]
    adjs = adjs * f[..., None, :]
    return adjs


def init_linear(key, din, dout):
    k1, k2 = jax.random.split(key)
    lim = 1.0 / math.sqrt(din)
    w = jax.random.uniform(k1, (din, dout), jnp.float32, -lim, lim)
    b = jax.random.uniform(k2, (dout,), jnp.float32, -lim, lim)
    return w, b


def init_mlp(key, num_layers, din, dhid, dout):
    dims = [din, dout] if num_layers == 1 else \
        [din] + [dhid] * (num_layers - 1) + [dout]
    keys = jax.random.split(key, len(dims) - 1)
    ws, bs = [], []
    for i in range(len(dims) - 1):
        w, b = init_linear(keys[i], dims[i], dims[i + 1])
        ws.append(w)
        bs.append(b)
    return ws, bs


def init_attention_layer(key, num_linears, conv_in, attn_dim, conv_out,
                         c_in, c_out, N):
    keys = jax.random.split(key, c_in + 2)
    w_cols, b_cols = [], []
    for i in range(c_in):
        ks = jax.random.split(keys[i], 3)
        wq, bq = init_linear(ks[0], conv_in, attn_dim)
        wk, bk = init_linear(ks[1], conv_in, attn_dim)
        wv, bv = init_linear(ks[2], conv_in, conv_out)
        w_cols.append(jnp.concatenate([wq, wk, wv], axis=1))
        b_cols.append(jnp.concatenate([bq, bk, bv], axis=0))
    wqkv = jnp.concatenate(w_cols, axis=1)              # (conv_in, c_in*(2A+V))
    bqkv = jnp.concatenate(b_cols, axis=0)[None, :]     # (1, c_in*(2A+V))

    hidden = 2 * max(c_in, c_out)
    mc_w, mc_b = init_mlp(keys[c_in], 2, c_in * conv_out, hidden, conv_out)
    e_w, e_b = init_mlp(keys[c_in + 1], num_linears, 2 * c_in, hidden, c_out)

    eye_n = jnp.eye(N, dtype=jnp.float32)
    # TODO(synk): the Kronecker expansion of the per-edge MLP weights is O(N^2)
    # per weight; for max_node_num >> 128 (v7x: 64 MiB VMEM) reformulate the
    # per-edge channel mix as a row-major (N*N, fdim) matmul or a VPU weighted
    # map-sum before scaling N.
    return {
        "wqkv": wqkv, "bqkv": bqkv,
        "mc_w": mc_w, "mc_b": [b[None, :] for b in mc_b],
        "edge_w": [jnp.kron(w, eye_n) for w in e_w],     # lane-blocked layout
        "edge_b": [jnp.repeat(b, N)[None, :] for b in e_b],
    }


def init_model(key, cfg):
    nL = cfg["num_layers"]
    N = cfg["max_node_num"]
    keys = jax.random.split(key, nL + 1)
    layers = []
    for i in range(nL):
        if i == 0:
            layers.append(init_attention_layer(
                keys[i], cfg["num_linears"], cfg["nfeat"], cfg["nhid"],
                cfg["nhid"], cfg["c_init"], cfg["c_hid"], N))
        elif i == nL - 1:
            layers.append(init_attention_layer(
                keys[i], cfg["num_linears"], cfg["nhid"], cfg["adim"],
                cfg["nhid"], cfg["c_hid"], cfg["c_final"], N))
        else:
            layers.append(init_attention_layer(
                keys[i], cfg["num_linears"], cfg["nhid"], cfg["adim"],
                cfg["nhid"], cfg["c_hid"], cfg["c_hid"], N))
    fdim = cfg["c_hid"] * (nL - 1) + cfg["c_final"] + cfg["c_init"]
    f_w, f_b = init_mlp(keys[nL], 3, fdim, 2 * fdim, 1)
    eye_n = jnp.eye(N, dtype=jnp.float32)
    # temb_net exists in the PyTorch module but is never used in forward().
    return {
        "layers": layers,
        "final_w": [jnp.kron(w, eye_n) for w in f_w],
        "final_b": [jnp.repeat(b, N)[None, :] for b in f_b],
    }


# ----------------------------------------------------------------------------
# main
# ----------------------------------------------------------------------------

if __name__ == "__main__":
    cfg = dict(nfeat=4, max_node_num=16, nhid=8, num_layers=3, num_linears=2,
               c_init=2, c_hid=4, c_final=2, adim=8, num_heads=4)

    key = jax.random.PRNGKey(0)
    kp, kx, ka, kt = jax.random.split(key, 4)

    B, N, F = 2, cfg["max_node_num"], cfg["nfeat"]
    params = init_model(kp, cfg)

    x = jax.random.normal(kx, (B, N, F), jnp.float32)
    a = jax.random.uniform(ka, (B, N, N), jnp.float32)
    a = ((a + jnp.swapaxes(a, -1, -2)) > 1.0).astype(jnp.float32)
    a = a * (1.0 - jnp.eye(N))[None]
    # node flags: batch 0 has 16 valid nodes, batch 1 has 12
    lens = jnp.array([16, 12])
    flags = (jnp.arange(N)[None, :] < lens[:, None]).astype(jnp.float32)
    a = mask_adjs(a, flags)
    x = mask_x(x, flags)
    t = jax.random.uniform(kt, (B,), jnp.float32) * 999.0

    fwd = jax.jit(lambda p, x_, a_, f_, t_:
                  hscore_network_a_forward(p, x_, a_, f_, t_, cfg))
    score = fwd(params, x, a, flags, t)
    score = jax.block_until_ready(score)

    assert score.shape == (B, N, N)
    assert bool(jnp.all(jnp.isfinite(score)))
    # structural checks (exact): flagged-out rows/cols and the diagonal are 0
    assert float(jnp.max(jnp.abs(score[1, 12:, :]))) == 0.0
    assert float(jnp.max(jnp.abs(score[1, :, 12:]))) == 0.0
    assert float(jnp.max(jnp.abs(jnp.diagonal(score, axis1=1, axis2=2)))) == 0.0
    print("KERNEL_OK")
</pallas_src>

<mosaic_0001>
module attributes {stable_mosaic.version = 11 : i64} {
  func.func @_fused_forward_kernel(%arg0: memref<32x4xf32, #tpu.memory_space<vmem>>, %arg1: memref<2x16x16xf32, #tpu.memory_space<vmem>>, %arg2: memref<16x16xf32, #tpu.memory_space<vmem>>, %arg3: memref<32x1xf32, #tpu.memory_space<vmem>>, %arg4: memref<32x16xf32, #tpu.memory_space<vmem>>, %arg5: memref<32x16xf32, #tpu.memory_space<vmem>>, %arg6: memref<4x48xf32, #tpu.memory_space<vmem>>, %arg7: memref<1x48xf32, #tpu.memory_space<vmem>>, %arg8: memref<16x8xf32, #tpu.memory_space<vmem>>, %arg9: memref<8x8xf32, #tpu.memory_space<vmem>>, %arg10: memref<1x8xf32, #tpu.memory_space<vmem>>, %arg11: memref<1x8xf32, #tpu.memory_space<vmem>>, %arg12: memref<64x128xf32, #tpu.memory_space<vmem>>, %arg13: memref<128x64xf32, #tpu.memory_space<vmem>>, %arg14: memref<1x128xf32, #tpu.memory_space<vmem>>, %arg15: memref<1x64xf32, #tpu.memory_space<vmem>>, %arg16: memref<8x96xf32, #tpu.memory_space<vmem>>, %arg17: memref<1x96xf32, #tpu.memory_space<vmem>>, %arg18: memref<32x8xf32, #tpu.memory_space<vmem>>, %arg19: memref<8x8xf32, #tpu.memory_space<vmem>>, %arg20: memref<1x8xf32, #tpu.memory_space<vmem>>, %arg21: memref<1x8xf32, #tpu.memory_space<vmem>>, %arg22: memref<128x128xf32, #tpu.memory_space<vmem>>, %arg23: memref<128x64xf32, #tpu.memory_space<vmem>>, %arg24: memref<1x128xf32, #tpu.memory_space<vmem>>, %arg25: memref<1x64xf32, #tpu.memory_space<vmem>>, %arg26: memref<8x96xf32, #tpu.memory_space<vmem>>, %arg27: memref<1x96xf32, #tpu.memory_space<vmem>>, %arg28: memref<32x8xf32, #tpu.memory_space<vmem>>, %arg29: memref<8x8xf32, #tpu.memory_space<vmem>>, %arg30: memref<1x8xf32, #tpu.memory_space<vmem>>, %arg31: memref<1x8xf32, #tpu.memory_space<vmem>>, %arg32: memref<128x128xf32, #tpu.memory_space<vmem>>, %arg33: memref<128x32xf32, #tpu.memory_space<vmem>>, %arg34: memref<1x128xf32, #tpu.memory_space<vmem>>, %arg35: memref<1x32xf32, #tpu.memory_space<vmem>>, %arg36: memref<192x384xf32, #tpu.memory_space<vmem>>, %arg37: memref<384x384xf32, #tpu.memory_space<vmem>>, %arg38: memref<384x16xf32, #tpu.memory_space<vmem>>, %arg39: memref<1x384xf32, #tpu.memory_space<vmem>>, %arg40: memref<1x384xf32, #tpu.memory_space<vmem>>, %arg41: memref<1x16xf32, #tpu.memory_space<vmem>>, %arg42: memref<32x16xf32, #tpu.memory_space<vmem>>) attributes {dimension_semantics = [], scalar_prefetch = 0 : i64, scratch_operands = 0 : i64, tpu.core_type = #tpu.core_type<tc>} {
    %c0 = arith.constant 0 : index
    %c0_0 = arith.constant 0 : index
    %0 = vector.load %arg2[%c0, %c0_0] : memref<16x16xf32, #tpu.memory_space<vmem>>, vector<16x16xf32>
    %cst = arith.constant 1.000000e+00 : f32
    %1 = vector.broadcast %cst : f32 to vector<16x16xf32>
    %2 = arith.subf %1, %0 : vector<16x16xf32>
    %c0_1 = arith.constant 0 : index
    %c0_2 = arith.constant 0 : index
    %3 = vector.load %arg3[%c0_1, %c0_2] : memref<32x1xf32, #tpu.memory_space<vmem>>, vector<32x1xf32>
    %c0_3 = arith.constant 0 : index
    %c0_4 = arith.constant 0 : index
    %4 = vector.load %arg4[%c0_3, %c0_4] : memref<32x16xf32, #tpu.memory_space<vmem>>, vector<32x16xf32>
    %5 = tpu.concatenate %0, %0, %0, %0 in 0 : vector<16x16xf32>, vector<16x16xf32>, vector<16x16xf32>, vector<16x16xf32> -> vector<64x16xf32>
    %cst_5 = arith.constant 2.500000e-01 : f32
    %6 = vector.broadcast %cst_5 : f32 to vector<64x16xf32>
    %7 = arith.mulf %5, %6 : vector<64x16xf32>
    %c0_6 = arith.constant 0 : index
    %c0_7 = arith.constant 0 : index
    %c0_8 = arith.constant 0 : index
    %8 = vector.load %arg1[%c0_6, %c0_7, %c0_8] : memref<2x16x16xf32, #tpu.memory_space<vmem>>, vector<1x16x16xf32>
    %9 = vector.shape_cast %8 : vector<1x16x16xf32> to vector<16x16xf32>
    %cst_9 = arith.constant dense<0.000000e+00> : vector<16x16xf32>
    %10 = tpu.matmul %9, %9, %cst_9 {dimension_numbers = #tpu.dot_dimension_numbers<[1], [0], [0], [1], [0, 0, 1, 1], [], []>} : vector<16x16xf32>, vector<16x16xf32>, vector<16x16xf32> -> vector<16x16xf32>
    %c1 = arith.constant 1 : index
    %c0_10 = arith.constant 0 : index
    %c0_11 = arith.constant 0 : index
    %11 = vector.load %arg1[%c1, %c0_10, %c0_11] : memref<2x16x16xf32, #tpu.memory_space<vmem>>, vector<1x16x16xf32>
    %12 = vector.shape_cast %11 : vector<1x16x16xf32> to vector<16x16xf32>
    %cst_12 = arith.constant dense<0.000000e+00> : vector<16x16xf32>
    %13 = tpu.matmul %12, %12, %cst_12 {dimension_numbers = #tpu.dot_dimension_numbers<[1], [0], [0], [1], [0, 0, 1, 1], [], []>} : vector<16x16xf32>, vector<16x16xf32>, vector<16x16xf32> -> vector<16x16xf32>
    %c0_13 = arith.constant 0 : index
    %c0_14 = arith.constant 0 : index
    %14 = vector.load %arg0[%c0_13, %c0_14] : memref<32x4xf32, #tpu.memory_space<vmem>>, vector<32x4xf32>
    %c0_15 = arith.constant 0 : index
    %c0_16 = arith.constant 0 : index
    %15 = vector.load %arg6[%c0_15, %c0_16] : memref<4x48xf32, #tpu.memory_space<vmem>>, vector<4x48xf32>
    %cst_17 = arith.constant dense<0.000000e+00> : vector<32x48xf32>
    %16 = tpu.matmul %14, %15, %cst_17 {dimension_numbers = #tpu.dot_dimension_numbers<[1], [0], [0], [1], [0, 0, 1, 1], [], []>} : vector<32x4xf32>, vector<4x48xf32>, vector<32x48xf32> -> vector<32x48xf32>
    %c0_18 = arith.constant 0 : index
    %c0_19 = arith.constant 0 : index
    %17 = vector.load %arg7[%c0_18, %c0_19] : memref<1x48xf32, #tpu.memory_space<vmem>>, vector<1x48xf32>
    %18 = tpu.iota {dimensions = array<i32: 1>} : vector<1x8xi32>
    %c0_i32 = arith.constant 0 : i32
    %19 = vector.broadcast %c0_i32 : i32 to vector<1x8xi32>
    %20 = arith.cmpi sge, %18, %19 : vector<1x8xi32>
    %c2_i32 = arith.constant 2 : i32
    %21 = vector.broadcast %c2_i32 : i32 to vector<1x8xi32>
    %22 = arith.cmpi slt, %18, %21 : vector<1x8xi32>
    %23 = arith.andi %20, %22 : vector<1x8xi1>
    %24 = arith.extui %23 : vector<1x8xi1> to vector<1x8xi32>
    %25 = arith.sitofp %24 : vector<1x8xi32> to vector<1x8xf32>
    %c2_i32_20 = arith.constant 2 : i32
    %26 = vector.broadcast %c2_i32_20 : i32 to vector<1x8xi32>
    %27 = arith.cmpi sge, %18, %26 : vector<1x8xi32>
    %c4_i32 = arith.constant 4 : i32
    %28 = vector.broadcast %c4_i32 : i32 to vector<1x8xi32>
    %29 = arith.cmpi slt, %18, %28 : vector<1x8xi32>
    %30 = arith.andi %27, %29 : vector<1x8xi1>
    %31 = arith.extui %30 : vector<1x8xi1> to vector<1x8xi32>
    %32 = arith.sitofp %31 : vector<1x8xi32> to vector<1x8xf32>
    %c4_i32_21 = arith.constant 4 : i32
    %33 = vector.broadcast %c4_i32_21 : i32 to vector<1x8xi32>
    %34 = arith.cmpi sge, %18, %33 : vector<1x8xi32>
    %c6_i32 = arith.constant 6 : i32
    %35 = vector.broadcast %c6_i32 : i32 to vector<1x8xi32>
    %36 = arith.cmpi slt, %18, %35 : vector<1x8xi32>
    %37 = arith.andi %34, %36 : vector<1x8xi1>
    %38 = arith.extui %37 : vector<1x8xi1> to vector<1x8xi32>
    %39 = arith.sitofp %38 : vector<1x8xi32> to vector<1x8xf32>
    %c6_i32_22 = arith.constant 6 : i32
    %40 = vector.broadcast %c6_i32_22 : i32 to vector<1x8xi32>
    %41 = arith.cmpi sge, %18, %40 : vector<1x8xi32>
    %c8_i32 = arith.constant 8 : i32
    %42 = vector.broadcast %c8_i32 : i32 to vector<1x8xi32>
    %43 = arith.cmpi slt, %18, %42 : vector<1x8xi32>
    %44 = arith.andi %41, %43 : vector<1x8xi1>
    %45 = arith.extui %44 : vector<1x8xi1> to vector<1x8xi32>
    %46 = arith.sitofp %45 : vector<1x8xi32> to vector<1x8xf32>
    %47 = arith.mulf %9, %2 : vector<16x16xf32>
    %48 = arith.addf %47, %0 : vector<16x16xf32>
    %cst_23 = arith.constant dense<0.000000e+00> : vector<16xf32>
    %49 = vector.multi_reduction <add>, %48, %cst_23 [1] : vector<16x16xf32> to vector<16xf32>
    %50 = vector.shape_cast %49 : vector<16xf32> to vector<16x1xf32>
    %cst_24 = arith.constant 1.000000e+00 : f32
    %51 = vector.broadcast %cst_24 : f32 to vector<16x1xf32>
    %52 = arith.maximumf %50, %51 : vector<16x1xf32>
    %53 = math.rsqrt %52 : vector<16x1xf32>
    %54 = vector.extract_strided_slice %16 {offsets = [0, 0], sizes = [16, 24], strides = [1, 1]} : vector<32x48xf32> to vector<16x24xf32>
    %55 = vector.broadcast %53 : vector<16x1xf32> to vector<16x24xf32>
    %56 = arith.mulf %54, %55 : vector<16x24xf32>
    %cst_25 = arith.constant dense<0.000000e+00> : vector<16x24xf32>
    %57 = tpu.matmul %48, %56, %cst_25 {dimension_numbers = #tpu.dot_dimension_numbers<[1], [0], [0], [1], [0, 0, 1, 1], [], []>} : vector<16x16xf32>, vector<16x24xf32>, vector<16x24xf32> -> vector<16x24xf32>
    %58 = vector.broadcast %53 : vector<16x1xf32> to vector<16x24xf32>
    %59 = arith.mulf %57, %58 : vector<16x24xf32>
    %60 = vector.extract_strided_slice %17 {offsets = [0, 0], sizes = [1, 24], strides = [1, 1]} : vector<1x48xf32> to vector<1x24xf32>
    %61 = vector.broadcast %60 : vector<1x24xf32> to vector<16x24xf32>
    %62 = arith.addf %59, %61 : vector<16x24xf32>
    %63 = vector.extract_strided_slice %62 {offsets = [0, 0], sizes = [16, 8], strides = [1, 1]} : vector<16x24xf32> to vector<16x8xf32>
    %64 = vector.extract_strided_slice %62 {offsets = [0, 8], sizes = [16, 8], strides = [1, 1]} : vector<16x24xf32> to vector<16x8xf32>
    %65 = vector.extract_strided_slice %62 {offsets = [0, 16], sizes = [16, 8], strides = [1, 1]} : vector<16x24xf32> to vector<16x8xf32>
    %66 = vector.broadcast %25 : vector<1x8xf32> to vector<16x8xf32>
    %67 = arith.mulf %64, %66 : vector<16x8xf32>
    %68 = vector.broadcast %32 : vector<1x8xf32> to vector<16x8xf32>
    %69 = arith.mulf %64, %68 : vector<16x8xf32>
    %70 = vector.broadcast %39 : vector<1x8xf32> to vector<16x8xf32>
    %71 = arith.mulf %64, %70 : vector<16x8xf32>
    %72 = vector.broadcast %46 : vector<1x8xf32> to vector<16x8xf32>
    %73 = arith.mulf %64, %72 : vector<16x8xf32>
    %74 = tpu.concatenate %67, %69, %71, %73 in 0 : vector<16x8xf32>, vector<16x8xf32>, vector<16x8xf32>, vector<16x8xf32> -> vector<64x8xf32>
    %cst_26 = arith.constant dense<0.000000e+00> : vector<16x64xf32>
    %75 = tpu.matmul %63, %74, %cst_26 {dimension_numbers = #tpu.dot_dimension_numbers<[1], [1], [0], [0], [0, 0, 1, 0], [], []>} : vector<16x8xf32>, vector<64x8xf32>, vector<16x64xf32> -> vector<16x64xf32>
    %cst_27 = arith.constant 0.353553385 : f32
    %76 = vector.broadcast %cst_27 : f32 to vector<16x64xf32>
    %77 = arith.mulf %75, %76 : vector<16x64xf32>
    %78 = math.tanh %77 : vector<16x64xf32>
    %cst_28 = arith.constant dense<0.000000e+00> : vector<16x16xf32>
    %79 = tpu.matmul %78, %7, %cst_28 {dimension_numbers = #tpu.dot_dimension_numbers<[1], [0], [0], [1], [0, 0, 1, 1], [], []>} : vector<16x64xf32>, vector<64x16xf32>, vector<16x16xf32> -> vector<16x16xf32>
    %80 = tpu.transpose %79, [1, 0] : vector<16x16xf32> -> vector<16x16xf32>
    %81 = arith.addf %79, %80 : vector<16x16xf32>
    %cst_29 = arith.constant 5.000000e-01 : f32
    %82 = vector.broadcast %cst_29 : f32 to vector<16x16xf32>
    %83 = arith.mulf %82, %81 : vector<16x16xf32>
    %84 = arith.mulf %10, %2 : vector<16x16xf32>
    %85 = arith.addf %84, %0 : vector<16x16xf32>
    %cst_30 = arith.constant dense<0.000000e+00> : vector<16xf32>
    %86 = vector.multi_reduction <add>, %85, %cst_30 [1] : vector<16x16xf32> to vector<16xf32>
    %87 = vector.shape_cast %86 : vector<16xf32> to vector<16x1xf32>
    %cst_31 = arith.constant 1.000000e+00 : f32
    %88 = vector.broadcast %cst_31 : f32 to vector<16x1xf32>
    %89 = arith.maximumf %87, %88 : vector<16x1xf32>
    %90 = math.rsqrt %89 : vector<16x1xf32>
    %91 = vector.extract_strided_slice %16 {offsets = [0, 24], sizes = [16, 24], strides = [1, 1]} : vector<32x48xf32> to vector<16x24xf32>
    %92 = vector.broadcast %90 : vector<16x1xf32> to vector<16x24xf32>
    %93 = arith.mulf %91, %92 : vector<16x24xf32>
    %cst_32 = arith.constant dense<0.000000e+00> : vector<16x24xf32>
    %94 = tpu.matmul %85, %93, %cst_32 {dimension_numbers = #tpu.dot_dimension_numbers<[1], [0], [0], [1], [0, 0, 1, 1], [], []>} : vector<16x16xf32>, vector<16x24xf32>, vector<16x24xf32> -> vector<16x24xf32>
    %95 = vector.broadcast %90 : vector<16x1xf32> to vector<16x24xf32>
    %96 = arith.mulf %94, %95 : vector<16x24xf32>
    %97 = vector.extract_strided_slice %17 {offsets = [0, 24], sizes = [1, 24], strides = [1, 1]} : vector<1x48xf32> to vector<1x24xf32>
    %98 = vector.broadcast %97 : vector<1x24xf32> to vector<16x24xf32>
    %99 = arith.addf %96, %98 : vector<16x24xf32>
    %100 = vector.extract_strided_slice %99 {offsets = [0, 0], sizes = [16, 8], strides = [1, 1]} : vector<16x24xf32> to vector<16x8xf32>
    %101 = vector.extract_strided_slice %99 {offsets = [0, 8], sizes = [16, 8], strides = [1, 1]} : vector<16x24xf32> to vector<16x8xf32>
    %102 = vector.extract_strided_slice %99 {offsets = [0, 16], sizes = [16, 8], strides = [1, 1]} : vector<16x24xf32> to vector<16x8xf32>
    %103 = vector.broadcast %25 : vector<1x8xf32> to vector<16x8xf32>
    %104 = arith.mulf %101, %103 : vector<16x8xf32>
    %105 = vector.broadcast %32 : vector<1x8xf32> to vector<16x8xf32>
    %106 = arith.mulf %101, %105 : vector<16x8xf32>
    %107 = vector.broadcast %39 : vector<1x8xf32> to vector<16x8xf32>
    %108 = arith.mulf %101, %107 : vector<16x8xf32>
    %109 = vector.broadcast %46 : vector<1x8xf32> to vector<16x8xf32>
    %110 = arith.mulf %101, %109 : vector<16x8xf32>
    %111 = tpu.concatenate %104, %106, %108, %110 in 0 : vector<16x8xf32>, vector<16x8xf32>, vector<16x8xf32>, vector<16x8xf32> -> vector<64x8xf32>
    %cst_33 = arith.constant dense<0.000000e+00> : vector<16x64xf32>
    %112 = tpu.matmul %100, %111, %cst_33 {dimension_numbers = #tpu.dot_dimension_numbers<[1], [1], [0], [0], [0, 0, 1, 0], [], []>} : vector<16x8xf32>, vector<64x8xf32>, vector<16x64xf32> -> vector<16x64xf32>
    %cst_34 = arith.constant 0.353553385 : f32
    %113 = vector.broadcast %cst_34 : f32 to vector<16x64xf32>
    %114 = arith.mulf %112, %113 : vector<16x64xf32>
    %115 = math.tanh %114 : vector<16x64xf32>
    %cst_35 = arith.constant dense<0.000000e+00> : vector<16x16xf32>
    %116 = tpu.matmul %115, %7, %cst_35 {dimension_numbers = #tpu.dot_dimension_numbers<[1], [0], [0], [1], [0, 0, 1, 1], [], []>} : vector<16x64xf32>, vector<64x16xf32>, vector<16x16xf32> -> vector<16x16xf32>
    %117 = tpu.transpose %116, [1, 0] : vector<16x16xf32> -> vector<16x16xf32>
    %118 = arith.addf %116, %117 : vector<16x16xf32>
    %cst_36 = arith.constant 5.000000e-01 : f32
    %119 = vector.broadcast %cst_36 : f32 to vector<16x16xf32>
    %120 = arith.mulf %119, %118 : vector<16x16xf32>
    %121 = tpu.concatenate %65, %102 in 1 : vector<16x8xf32>, vector<16x8xf32> -> vector<16x16xf32>
    %122 = tpu.concatenate %83, %120, %9, %10 in 1 : vector<16x16xf32>, vector<16x16xf32>, vector<16x16xf32>, vector<16x16xf32> -> vector<16x64xf32>
    %123 = arith.mulf %12, %2 : vector<16x16xf32>
    %124 = arith.addf %123, %0 : vector<16x16xf32>
    %cst_37 = arith.constant dense<0.000000e+00> : vector<16xf32>
    %125 = vector.multi_reduction <add>, %124, %cst_37 [1] : vector<16x16xf32> to vector<16xf32>
    %126 = vector.shape_cast %125 : vector<16xf32> to vector<16x1xf32>
    %cst_38 = arith.constant 1.000000e+00 : f32
    %127 = vector.broadcast %cst_38 : f32 to vector<16x1xf32>
    %128 = arith.maximumf %126, %127 : vector<16x1xf32>
    %129 = math.rsqrt %128 : vector<16x1xf32>
    %130 = vector.extract_strided_slice %16 {offsets = [16, 0], sizes = [16, 24], strides = [1, 1]} : vector<32x48xf32> to vector<16x24xf32>
    %131 = vector.broadcast %129 : vector<16x1xf32> to vector<16x24xf32>
    %132 = arith.mulf %130, %131 : vector<16x24xf32>
    %cst_39 = arith.constant dense<0.000000e+00> : vector<16x24xf32>
    %133 = tpu.matmul %124, %132, %cst_39 {dimension_numbers = #tpu.dot_dimension_numbers<[1], [0], [0], [1], [0, 0, 1, 1], [], []>} : vector<16x16xf32>, vector<16x24xf32>, vector<16x24xf32> -> vector<16x24xf32>
    %134 = vector.broadcast %129 : vector<16x1xf32> to vector<16x24xf32>
    %135 = arith.mulf %133, %134 : vector<16x24xf32>
    %136 = vector.extract_strided_slice %17 {offsets = [0, 0], sizes = [1, 24], strides = [1, 1]} : vector<1x48xf32> to vector<1x24xf32>
    %137 = vector.broadcast %136 : vector<1x24xf32> to vector<16x24xf32>
    %138 = arith.addf %135, %137 : vector<16x24xf32>
    %139 = vector.extract_strided_slice %138 {offsets = [0, 0], sizes = [16, 8], strides = [1, 1]} : vector<16x24xf32> to vector<16x8xf32>
    %140 = vector.extract_strided_slice %138 {offsets = [0, 8], sizes = [16, 8], strides = [1, 1]} : vector<16x24xf32> to vector<16x8xf32>
    %141 = vector.extract_strided_slice %138 {offsets = [0, 16], sizes = [16, 8], strides = [1, 1]} : vector<16x24xf32> to vector<16x8xf32>
    %142 = vector.broadcast %25 : vector<1x8xf32> to vector<16x8xf32>
    %143 = arith.mulf %140, %142 : vector<16x8xf32>
    %144 = vector.broadcast %32 : vector<1x8xf32> to vector<16x8xf32>
    %145 = arith.mulf %140, %144 : vector<16x8xf32>
    %146 = vector.broadcast %39 : vector<1x8xf32> to vector<16x8xf32>
    %147 = arith.mulf %140, %146 : vector<16x8xf32>
    %148 = vector.broadcast %46 : vector<1x8xf32> to vector<16x8xf32>
    %149 = arith.mulf %140, %148 : vector<16x8xf32>
    %150 = tpu.concatenate %143, %145, %147, %149 in 0 : vector<16x8xf32>, vector<16x8xf32>, vector<16x8xf32>, vector<16x8xf32> -> vector<64x8xf32>
    %cst_40 = arith.constant dense<0.000000e+00> : vector<16x64xf32>
    %151 = tpu.matmul %139, %150, %cst_40 {dimension_numbers = #tpu.dot_dimension_numbers<[1], [1], [0], [0], [0, 0, 1, 0], [], []>} : vector<16x8xf32>, vector<64x8xf32>, vector<16x64xf32> -> vector<16x64xf32>
    %cst_41 = arith.constant 0.353553385 : f32
    %152 = vector.broadcast %cst_41 : f32 to vector<16x64xf32>
    %153 = arith.mulf %151, %152 : vector<16x64xf32>
    %154 = math.tanh %153 : vector<16x64xf32>
    %cst_42 = arith.constant dense<0.000000e+00> : vector<16x16xf32>
    %155 = tpu.matmul %154, %7, %cst_42 {dimension_numbers = #tpu.dot_dimension_numbers<[1], [0], [0], [1], [0, 0, 1, 1], [], []>} : vector<16x64xf32>, vector<64x16xf32>, vector<16x16xf32> -> vector<16x16xf32>
    %156 = tpu.transpose %155, [1, 0] : vector<16x16xf32> -> vector<16x16xf32>
    %157 = arith.addf %155, %156 : vector<16x16xf32>
    %cst_43 = arith.constant 5.000000e-01 : f32
    %158 = vector.broadcast %cst_43 : f32 to vector<16x16xf32>
    %159 = arith.mulf %158, %157 : vector<16x16xf32>
    %160 = arith.mulf %13, %2 : vector<16x16xf32>
    %161 = arith.addf %160, %0 : vector<16x16xf32>
    %cst_44 = arith.constant dense<0.000000e+00> : vector<16xf32>
    %162 = vector.multi_reduction <add>, %161, %cst_44 [1] : vector<16x16xf32> to vector<16xf32>
    %163 = vector.shape_cast %162 : vector<16xf32> to vector<16x1xf32>
    %cst_45 = arith.constant 1.000000e+00 : f32
    %164 = vector.broadcast %cst_45 : f32 to vector<16x1xf32>
    %165 = arith.maximumf %163, %164 : vector<16x1xf32>
    %166 = math.rsqrt %165 : vector<16x1xf32>
    %167 = vector.extract_strided_slice %16 {offsets = [16, 24], sizes = [16, 24], strides = [1, 1]} : vector<32x48xf32> to vector<16x24xf32>
    %168 = vector.broadcast %166 : vector<16x1xf32> to vector<16x24xf32>
    %169 = arith.mulf %167, %168 : vector<16x24xf32>
    %cst_46 = arith.constant dense<0.000000e+00> : vector<16x24xf32>
    %170 = tpu.matmul %161, %169, %cst_46 {dimension_numbers = #tpu.dot_dimension_numbers<[1], [0], [0], [1], [0, 0, 1, 1], [], []>} : vector<16x16xf32>, vector<16x24xf32>, vector<16x24xf32> -> vector<16x24xf32>
    %171 = vector.broadcast %166 : vector<16x1xf32> to vector<16x24xf32>
    %172 = arith.mulf %170, %171 : vector<16x24xf32>
    %173 = vector.extract_strided_slice %17 {offsets = [0, 24], sizes = [1, 24], strides = [1, 1]} : vector<1x48xf32> to vector<1x24xf32>
    %174 = vector.broadcast %173 : vector<1x24xf32> to vector<16x24xf32>
    %175 = arith.addf %172, %174 : vector<16x24xf32>
    %176 = vector.extract_strided_slice %175 {offsets = [0, 0], sizes = [16, 8], strides = [1, 1]} : vector<16x24xf32> to vector<16x8xf32>
    %177 = vector.extract_strided_slice %175 {offsets = [0, 8], sizes = [16, 8], strides = [1, 1]} : vector<16x24xf32> to vector<16x8xf32>
    %178 = vector.extract_strided_slice %175 {offsets = [0, 16], sizes = [16, 8], strides = [1, 1]} : vector<16x24xf32> to vector<16x8xf32>
    %179 = vector.broadcast %25 : vector<1x8xf32> to vector<16x8xf32>
    %180 = arith.mulf %177, %179 : vector<16x8xf32>
    %181 = vector.broadcast %32 : vector<1x8xf32> to vector<16x8xf32>
    %182 = arith.mulf %177, %181 : vector<16x8xf32>
    %183 = vector.broadcast %39 : vector<1x8xf32> to vector<16x8xf32>
    %184 = arith.mulf %177, %183 : vector<16x8xf32>
    %185 = vector.broadcast %46 : vector<1x8xf32> to vector<16x8xf32>
    %186 = arith.mulf %177, %185 : vector<16x8xf32>
    %187 = tpu.concatenate %180, %182, %184, %186 in 0 : vector<16x8xf32>, vector<16x8xf32>, vector<16x8xf32>, vector<16x8xf32> -> vector<64x8xf32>
    %cst_47 = arith.constant dense<0.000000e+00> : vector<16x64xf32>
    %188 = tpu.matmul %176, %187, %cst_47 {dimension_numbers = #tpu.dot_dimension_numbers<[1], [1], [0], [0], [0, 0, 1, 0], [], []>} : vector<16x8xf32>, vector<64x8xf32>, vector<16x64xf32> -> vector<16x64xf32>
    %cst_48 = arith.constant 0.353553385 : f32
    %189 = vector.broadcast %cst_48 : f32 to vector<16x64xf32>
    %190 = arith.mulf %188, %189 : vector<16x64xf32>
    %191 = math.tanh %190 : vector<16x64xf32>
    %cst_49 = arith.constant dense<0.000000e+00> : vector<16x16xf32>
    %192 = tpu.matmul %191, %7, %cst_49 {dimension_numbers = #tpu.dot_dimension_numbers<[1], [0], [0], [1], [0, 0, 1, 1], [], []>} : vector<16x64xf32>, vector<64x16xf32>, vector<16x16xf32> -> vector<16x16xf32>
    %193 = tpu.transpose %192, [1, 0] : vector<16x16xf32> -> vector<16x16xf32>
    %194 = arith.addf %192, %193 : vector<16x16xf32>
    %cst_50 = arith.constant 5.000000e-01 : f32
    %195 = vector.broadcast %cst_50 : f32 to vector<16x16xf32>
    %196 = arith.mulf %195, %194 : vector<16x16xf32>
    %197 = tpu.concatenate %141, %178 in 1 : vector<16x8xf32>, vector<16x8xf32> -> vector<16x16xf32>
    %198 = tpu.concatenate %159, %196, %12, %13 in 1 : vector<16x16xf32>, vector<16x16xf32>, vector<16x16xf32>, vector<16x16xf32> -> vector<16x64xf32>
    %199 = tpu.concatenate %121, %197 in 0 : vector<16x16xf32>, vector<16x16xf32> -> vector<32x16xf32>
    %c0_51 = arith.constant 0 : index
    %c0_52 = arith.constant 0 : index
    %200 = vector.load %arg8[%c0_51, %c0_52] : memref<16x8xf32, #tpu.memory_space<vmem>>, vector<16x8xf32>
    %cst_53 = arith.constant dense<0.000000e+00> : vector<32x8xf32>
    %201 = tpu.matmul %199, %200, %cst_53 {dimension_numbers = #tpu.dot_dimension_numbers<[1], [0], [0], [1], [0, 0, 1, 1], [], []>} : vector<32x16xf32>, vector<16x8xf32>, vector<32x8xf32> -> vector<32x8xf32>
    %c0_54 = arith.constant 0 : index
    %c0_55 = arith.constant 0 : index
    %202 = vector.load %arg10[%c0_54, %c0_55] : memref<1x8xf32, #tpu.memory_space<vmem>>, vector<1x8xf32>
    %203 = vector.broadcast %202 : vector<1x8xf32> to vector<32x8xf32>
    %204 = arith.addf %201, %203 : vector<32x8xf32>
    %cst_56 = arith.constant 0.000000e+00 : f32
    %205 = vector.broadcast %cst_56 : f32 to vector<32x8xf32>
    %206 = arith.cmpf ogt, %204, %205 : vector<32x8xf32>
    %cst_57 = arith.constant 0.000000e+00 : f32
    %207 = vector.broadcast %cst_57 : f32 to vector<32x8xf32>
    %208 = arith.minimumf %204, %207 : vector<32x8xf32>
    %209 = math.exp %208 : vector<32x8xf32>
    %cst_58 = arith.constant 1.000000e+00 : f32
    %210 = vector.broadcast %cst_58 : f32 to vector<32x8xf32>
    %211 = arith.subf %209, %210 : vector<32x8xf32>
    %212 = arith.select %206, %204, %211 : vector<32x8xi1>, vector<32x8xf32>
    %c0_59 = arith.constant 0 : index
    %c0_60 = arith.constant 0 : index
    %213 = vector.load %arg9[%c0_59, %c0_60] : memref<8x8xf32, #tpu.memory_space<vmem>>, vector<8x8xf32>
    %cst_61 = arith.constant dense<0.000000e+00> : vector<32x8xf32>
    %214 = tpu.matmul %212, %213, %cst_61 {dimension_numbers = #tpu.dot_dimension_numbers<[1], [0], [0], [1], [0, 0, 1, 1], [], []>} : vector<32x8xf32>, vector<8x8xf32>, vector<32x8xf32> -> vector<32x8xf32>
    %c0_62 = arith.constant 0 : index
    %c0_63 = arith.constant 0 : index
    %215 = vector.load %arg11[%c0_62, %c0_63] : memref<1x8xf32, #tpu.memory_space<vmem>>, vector<1x8xf32>
    %216 = vector.broadcast %215 : vector<1x8xf32> to vector<32x8xf32>
    %217 = arith.addf %214, %216 : vector<32x8xf32>
    %218 = vector.broadcast %3 : vector<32x1xf32> to vector<32x8xf32>
    %219 = arith.mulf %217, %218 : vector<32x8xf32>
    %220 = math.tanh %219 : vector<32x8xf32>
    %221 = tpu.concatenate %122, %198 in 0 : vector<16x64xf32>, vector<16x64xf32> -> vector<32x64xf32>
    %c0_64 = arith.constant 0 : index
    %c0_65 = arith.constant 0 : index
    %222 = vector.load %arg12[%c0_64, %c0_65] : memref<64x128xf32, #tpu.memory_space<vmem>>, vector<64x128xf32>
    %cst_66 = arith.constant dense<0.000000e+00> : vector<32x128xf32>
    %223 = tpu.matmul %221, %222, %cst_66 {dimension_numbers = #tpu.dot_dimension_numbers<[1], [0], [0], [1], [0, 0, 1, 1], [], []>} : vector<32x64xf32>, vector<64x128xf32>, vector<32x128xf32> -> vector<32x128xf32>
    %c0_67 = arith.constant 0 : index
    %c0_68 = arith.constant 0 : index
    %224 = vector.load %arg14[%c0_67, %c0_68] : memref<1x128xf32, #tpu.memory_space<vmem>>, vector<1x128xf32>
    %225 = vector.broadcast %224 : vector<1x128xf32> to vector<32x128xf32>
    %226 = arith.addf %223, %225 : vector<32x128xf32>
    %cst_69 = arith.constant 0.000000e+00 : f32
    %227 = vector.broadcast %cst_69 : f32 to vector<32x128xf32>
    %228 = arith.cmpf ogt, %226, %227 : vector<32x128xf32>
    %cst_70 = arith.constant 0.000000e+00 : f32
    %229 = vector.broadcast %cst_70 : f32 to vector<32x128xf32>
    %230 = arith.minimumf %226, %229 : vector<32x128xf32>
    %231 = math.exp %230 : vector<32x128xf32>
    %cst_71 = arith.constant 1.000000e+00 : f32
    %232 = vector.broadcast %cst_71 : f32 to vector<32x128xf32>
    %233 = arith.subf %231, %232 : vector<32x128xf32>
    %234 = arith.select %228, %226, %233 : vector<32x128xi1>, vector<32x128xf32>
    %c0_72 = arith.constant 0 : index
    %c0_73 = arith.constant 0 : index
    %235 = vector.load %arg13[%c0_72, %c0_73] : memref<128x64xf32, #tpu.memory_space<vmem>>, vector<128x64xf32>
    %cst_74 = arith.constant dense<0.000000e+00> : vector<32x64xf32>
    %236 = tpu.matmul %234, %235, %cst_74 {dimension_numbers = #tpu.dot_dimension_numbers<[1], [0], [0], [1], [0, 0, 1, 1], [], []>} : vector<32x128xf32>, vector<128x64xf32>, vector<32x64xf32> -> vector<32x64xf32>
    %c0_75 = arith.constant 0 : index
    %c0_76 = arith.constant 0 : index
    %237 = vector.load %arg15[%c0_75, %c0_76] : memref<1x64xf32, #tpu.memory_space<vmem>>, vector<1x64xf32>
    %238 = vector.broadcast %237 : vector<1x64xf32> to vector<32x64xf32>
    %239 = arith.addf %236, %238 : vector<32x64xf32>
    %240 = vector.extract_strided_slice %4 {offsets = [0, 0], sizes = [16, 16], strides = [1, 1]} : vector<32x16xf32> to vector<16x16xf32>
    %241 = vector.extract_strided_slice %239 {offsets = [0, 0], sizes = [16, 16], strides = [1, 1]} : vector<32x64xf32> to vector<16x16xf32>
    %242 = tpu.transpose %241, [1, 0] : vector<16x16xf32> -> vector<16x16xf32>
    %243 = arith.addf %241, %242 : vector<16x16xf32>
    %244 = arith.mulf %243, %240 : vector<16x16xf32>
    %245 = vector.extract_strided_slice %239 {offsets = [0, 16], sizes = [16, 16], strides = [1, 1]} : vector<32x64xf32> to vector<16x16xf32>
    %246 = tpu.transpose %245, [1, 0] : vector<16x16xf32> -> vector<16x16xf32>
    %247 = arith.addf %245, %246 : vector<16x16xf32>
    %248 = arith.mulf %247, %240 : vector<16x16xf32>
    %249 = vector.extract_strided_slice %239 {offsets = [0, 32], sizes = [16, 16], strides = [1, 1]} : vector<32x64xf32> to vector<16x16xf32>
    %250 = tpu.transpose %249, [1, 0] : vector<16x16xf32> -> vector<16x16xf32>
    %251 = arith.addf %249, %250 : vector<16x16xf32>
    %252 = arith.mulf %251, %240 : vector<16x16xf32>
    %253 = vector.extract_strided_slice %239 {offsets = [0, 48], sizes = [16, 16], strides = [1, 1]} : vector<32x64xf32> to vector<16x16xf32>
    %254 = tpu.transpose %253, [1, 0] : vector<16x16xf32> -> vector<16x16xf32>
    %255 = arith.addf %253, %254 : vector<16x16xf32>
    %256 = arith.mulf %255, %240 : vector<16x16xf32>
    %257 = vector.extract_strided_slice %4 {offsets = [16, 0], sizes = [16, 16], strides = [1, 1]} : vector<32x16xf32> to vector<16x16xf32>
    %258 = vector.extract_strided_slice %239 {offsets = [16, 0], sizes = [16, 16], strides = [1, 1]} : vector<32x64xf32> to vector<16x16xf32>
    %259 = tpu.transpose %258, [1, 0] : vector<16x16xf32> -> vector<16x16xf32>
    %260 = arith.addf %258, %259 : vector<16x16xf32>
    %261 = arith.mulf %260, %257 : vector<16x16xf32>
    %262 = vector.extract_strided_slice %239 {offsets = [16, 16], sizes = [16, 16], strides = [1, 1]} : vector<32x64xf32> to vector<16x16xf32>
    %263 = tpu.transpose %262, [1, 0] : vector<16x16xf32> -> vector<16x16xf32>
    %264 = arith.addf %262, %263 : vector<16x16xf32>
    %265 = arith.mulf %264, %257 : vector<16x16xf32>
    %266 = vector.extract_strided_slice %239 {offsets = [16, 32], sizes = [16, 16], strides = [1, 1]} : vector<32x64xf32> to vector<16x16xf32>
    %267 = tpu.transpose %266, [1, 0] : vector<16x16xf32> -> vector<16x16xf32>
    %268 = arith.addf %266, %267 : vector<16x16xf32>
    %269 = arith.mulf %268, %257 : vector<16x16xf32>
    %270 = vector.extract_strided_slice %239 {offsets = [16, 48], sizes = [16, 16], strides = [1, 1]} : vector<32x64xf32> to vector<16x16xf32>
    %271 = tpu.transpose %270, [1, 0] : vector<16x16xf32> -> vector<16x16xf32>
    %272 = arith.addf %270, %271 : vector<16x16xf32>
    %273 = arith.mulf %272, %257 : vector<16x16xf32>
    %c0_77 = arith.constant 0 : index
    %c0_78 = arith.constant 0 : index
    %274 = vector.load %arg16[%c0_77, %c0_78] : memref<8x96xf32, #tpu.memory_space<vmem>>, vector<8x96xf32>
    %cst_79 = arith.constant dense<0.000000e+00> : vector<32x96xf32>
    %275 = tpu.matmul %220, %274, %cst_79 {dimension_numbers = #tpu.dot_dimension_numbers<[1], [0], [0], [1], [0, 0, 1, 1], [], []>} : vector<32x8xf32>, vector<8x96xf32>, vector<32x96xf32> -> vector<32x96xf32>
    %c0_80 = arith.constant 0 : index
    %c0_81 = arith.constant 0 : index
    %276 = vector.load %arg17[%c0_80, %c0_81] : memref<1x96xf32, #tpu.memory_space<vmem>>, vector<1x96xf32>
    %277 = tpu.iota {dimensions = array<i32: 1>} : vector<1x8xi32>
    %c0_i32_82 = arith.constant 0 : i32
    %278 = vector.broadcast %c0_i32_82 : i32 to vector<1x8xi32>
    %279 = arith.cmpi sge, %277, %278 : vector<1x8xi32>
    %c2_i32_83 = arith.constant 2 : i32
    %280 = vector.broadcast %c2_i32_83 : i32 to vector<1x8xi32>
    %281 = arith.cmpi slt, %277, %280 : vector<1x8xi32>
    %282 = arith.andi %279, %281 : vector<1x8xi1>
    %283 = arith.extui %282 : vector<1x8xi1> to vector<1x8xi32>
    %284 = arith.sitofp %283 : vector<1x8xi32> to vector<1x8xf32>
    %c2_i32_84 = arith.constant 2 : i32
    %285 = vector.broadcast %c2_i32_84 : i32 to vector<1x8xi32>
    %286 = arith.cmpi sge, %277, %285 : vector<1x8xi32>
    %c4_i32_85 = arith.constant 4 : i32
    %287 = vector.broadcast %c4_i32_85 : i32 to vector<1x8xi32>
    %288 = arith.cmpi slt, %277, %287 : vector<1x8xi32>
    %289 = arith.andi %286, %288 : vector<1x8xi1>
    %290 = arith.extui %289 : vector<1x8xi1> to vector<1x8xi32>
    %291 = arith.sitofp %290 : vector<1x8xi32> to vector<1x8xf32>
    %c4_i32_86 = arith.constant 4 : i32
    %292 = vector.broadcast %c4_i32_86 : i32 to vector<1x8xi32>
    %293 = arith.cmpi sge, %277, %292 : vector<1x8xi32>
    %c6_i32_87 = arith.constant 6 : i32
    %294 = vector.broadcast %c6_i32_87 : i32 to vector<1x8xi32>
    %295 = arith.cmpi slt, %277, %294 : vector<1x8xi32>
    %296 = arith.andi %293, %295 : vector<1x8xi1>
    %297 = arith.extui %296 : vector<1x8xi1> to vector<1x8xi32>
    %298 = arith.sitofp %297 : vector<1x8xi32> to vector<1x8xf32>
    %c6_i32_88 = arith.constant 6 : i32
    %299 = vector.broadcast %c6_i32_88 : i32 to vector<1x8xi32>
    %300 = arith.cmpi sge, %277, %299 : vector<1x8xi32>
    %c8_i32_89 = arith.constant 8 : i32
    %301 = vector.broadcast %c8_i32_89 : i32 to vector<1x8xi32>
    %302 = arith.cmpi slt, %277, %301 : vector<1x8xi32>
    %303 = arith.andi %300, %302 : vector<1x8xi1>
    %304 = arith.extui %303 : vector<1x8xi1> to vector<1x8xi32>
    %305 = arith.sitofp %304 : vector<1x8xi32> to vector<1x8xf32>
    %306 = arith.mulf %244, %2 : vector<16x16xf32>
    %307 = arith.addf %306, %0 : vector<16x16xf32>
    %cst_90 = arith.constant dense<0.000000e+00> : vector<16xf32>
    %308 = vector.multi_reduction <add>, %307, %cst_90 [1] : vector<16x16xf32> to vector<16xf32>
    %309 = vector.shape_cast %308 : vector<16xf32> to vector<16x1xf32>
    %cst_91 = arith.constant 1.000000e+00 : f32
    %310 = vector.broadcast %cst_91 : f32 to vector<16x1xf32>
    %311 = arith.maximumf %309, %310 : vector<16x1xf32>
    %312 = math.rsqrt %311 : vector<16x1xf32>
    %313 = vector.extract_strided_slice %275 {offsets = [0, 0], sizes = [16, 24], strides = [1, 1]} : vector<32x96xf32> to vector<16x24xf32>
    %314 = vector.broadcast %312 : vector<16x1xf32> to vector<16x24xf32>
    %315 = arith.mulf %313, %314 : vector<16x24xf32>
    %cst_92 = arith.constant dense<0.000000e+00> : vector<16x24xf32>
    %316 = tpu.matmul %307, %315, %cst_92 {dimension_numbers = #tpu.dot_dimension_numbers<[1], [0], [0], [1], [0, 0, 1, 1], [], []>} : vector<16x16xf32>, vector<16x24xf32>, vector<16x24xf32> -> vector<16x24xf32>
    %317 = vector.broadcast %312 : vector<16x1xf32> to vector<16x24xf32>
    %318 = arith.mulf %316, %317 : vector<16x24xf32>
    %319 = vector.extract_strided_slice %276 {offsets = [0, 0], sizes = [1, 24], strides = [1, 1]} : vector<1x96xf32> to vector<1x24xf32>
    %320 = vector.broadcast %319 : vector<1x24xf32> to vector<16x24xf32>
    %321 = arith.addf %318, %320 : vector<16x24xf32>
    %322 = vector.extract_strided_slice %321 {offsets = [0, 0], sizes = [16, 8], strides = [1, 1]} : vector<16x24xf32> to vector<16x8xf32>
    %323 = vector.extract_strided_slice %321 {offsets = [0, 8], sizes = [16, 8], strides = [1, 1]} : vector<16x24xf32> to vector<16x8xf32>
    %324 = vector.extract_strided_slice %321 {offsets = [0, 16], sizes = [16, 8], strides = [1, 1]} : vector<16x24xf32> to vector<16x8xf32>
    %325 = vector.broadcast %284 : vector<1x8xf32> to vector<16x8xf32>
    %326 = arith.mulf %323, %325 : vector<16x8xf32>
    %327 = vector.broadcast %291 : vector<1x8xf32> to vector<16x8xf32>
    %328 = arith.mulf %323, %327 : vector<16x8xf32>
    %329 = vector.broadcast %298 : vector<1x8xf32> to vector<16x8xf32>
    %330 = arith.mulf %323, %329 : vector<16x8xf32>
    %331 = vector.broadcast %305 : vector<1x8xf32> to vector<16x8xf32>
    %332 = arith.mulf %323, %331 : vector<16x8xf32>
    %333 = tpu.concatenate %326, %328, %330, %332 in 0 : vector<16x8xf32>, vector<16x8xf32>, vector<16x8xf32>, vector<16x8xf32> -> vector<64x8xf32>
    %cst_93 = arith.constant dense<0.000000e+00> : vector<16x64xf32>
    %334 = tpu.matmul %322, %333, %cst_93 {dimension_numbers = #tpu.dot_dimension_numbers<[1], [1], [0], [0], [0, 0, 1, 0], [], []>} : vector<16x8xf32>, vector<64x8xf32>, vector<16x64xf32> -> vector<16x64xf32>
    %cst_94 = arith.constant 0.353553385 : f32
    %335 = vector.broadcast %cst_94 : f32 to vector<16x64xf32>
    %336 = arith.mulf %334, %335 : vector<16x64xf32>
    %337 = math.tanh %336 : vector<16x64xf32>
    %cst_95 = arith.constant dense<0.000000e+00> : vector<16x16xf32>
    %338 = tpu.matmul %337, %7, %cst_95 {dimension_numbers = #tpu.dot_dimension_numbers<[1], [0], [0], [1], [0, 0, 1, 1], [], []>} : vector<16x64xf32>, vector<64x16xf32>, vector<16x16xf32> -> vector<16x16xf32>
    %339 = tpu.transpose %338, [1, 0] : vector<16x16xf32> -> vector<16x16xf32>
    %340 = arith.addf %338, %339 : vector<16x16xf32>
    %cst_96 = arith.constant 5.000000e-01 : f32
    %341 = vector.broadcast %cst_96 : f32 to vector<16x16xf32>
    %342 = arith.mulf %341, %340 : vector<16x16xf32>
    %343 = arith.mulf %248, %2 : vector<16x16xf32>
    %344 = arith.addf %343, %0 : vector<16x16xf32>
    %cst_97 = arith.constant dense<0.000000e+00> : vector<16xf32>
    %345 = vector.multi_reduction <add>, %344, %cst_97 [1] : vector<16x16xf32> to vector<16xf32>
    %346 = vector.shape_cast %345 : vector<16xf32> to vector<16x1xf32>
    %cst_98 = arith.constant 1.000000e+00 : f32
    %347 = vector.broadcast %cst_98 : f32 to vector<16x1xf32>
    %348 = arith.maximumf %346, %347 : vector<16x1xf32>
    %349 = math.rsqrt %348 : vector<16x1xf32>
    %350 = vector.extract_strided_slice %275 {offsets = [0, 24], sizes = [16, 24], strides = [1, 1]} : vector<32x96xf32> to vector<16x24xf32>
    %351 = vector.broadcast %349 : vector<16x1xf32> to vector<16x24xf32>
    %352 = arith.mulf %350, %351 : vector<16x24xf32>
    %cst_99 = arith.constant dense<0.000000e+00> : vector<16x24xf32>
    %353 = tpu.matmul %344, %352, %cst_99 {dimension_numbers = #tpu.dot_dimension_numbers<[1], [0], [0], [1], [0, 0, 1, 1], [], []>} : vector<16x16xf32>, vector<16x24xf32>, vector<16x24xf32> -> vector<16x24xf32>
    %354 = vector.broadcast %349 : vector<16x1xf32> to vector<16x24xf32>
    %355 = arith.mulf %353, %354 : vector<16x24xf32>
    %356 = vector.extract_strided_slice %276 {offsets = [0, 24], sizes = [1, 24], strides = [1, 1]} : vector<1x96xf32> to vector<1x24xf32>
    %357 = vector.broadcast %356 : vector<1x24xf32> to vector<16x24xf32>
    %358 = arith.addf %355, %357 : vector<16x24xf32>
    %359 = vector.extract_strided_slice %358 {offsets = [0, 0], sizes = [16, 8], strides = [1, 1]} : vector<16x24xf32> to vector<16x8xf32>
    %360 = vector.extract_strided_slice %358 {offsets = [0, 8], sizes = [16, 8], strides = [1, 1]} : vector<16x24xf32> to vector<16x8xf32>
    %361 = vector.extract_strided_slice %358 {offsets = [0, 16], sizes = [16, 8], strides = [1, 1]} : vector<16x24xf32> to vector<16x8xf32>
    %362 = vector.broadcast %284 : vector<1x8xf32> to vector<16x8xf32>
    %363 = arith.mulf %360, %362 : vector<16x8xf32>
    %364 = vector.broadcast %291 : vector<1x8xf32> to vector<16x8xf32>
    %365 = arith.mulf %360, %364 : vector<16x8xf32>
    %366 = vector.broadcast %298 : vector<1x8xf32> to vector<16x8xf32>
    %367 = arith.mulf %360, %366 : vector<16x8xf32>
    %368 = vector.broadcast %305 : vector<1x8xf32> to vector<16x8xf32>
    %369 = arith.mulf %360, %368 : vector<16x8xf32>
    %370 = tpu.concatenate %363, %365, %367, %369 in 0 : vector<16x8xf32>, vector<16x8xf32>, vector<16x8xf32>, vector<16x8xf32> -> vector<64x8xf32>
    %cst_100 = arith.constant dense<0.000000e+00> : vector<16x64xf32>
    %371 = tpu.matmul %359, %370, %cst_100 {dimension_numbers = #tpu.dot_dimension_numbers<[1], [1], [0], [0], [0, 0, 1, 0], [], []>} : vector<16x8xf32>, vector<64x8xf32>, vector<16x64xf32> -> vector<16x64xf32>
    %cst_101 = arith.constant 0.353553385 : f32
    %372 = vector.broadcast %cst_101 : f32 to vector<16x64xf32>
    %373 = arith.mulf %371, %372 : vector<16x64xf32>
    %374 = math.tanh %373 : vector<16x64xf32>
    %cst_102 = arith.constant dense<0.000000e+00> : vector<16x16xf32>
    %375 = tpu.matmul %374, %7, %cst_102 {dimension_numbers = #tpu.dot_dimension_numbers<[1], [0], [0], [1], [0, 0, 1, 1], [], []>} : vector<16x64xf32>, vector<64x16xf32>, vector<16x16xf32> -> vector<16x16xf32>
    %376 = tpu.transpose %375, [1, 0] : vector<16x16xf32> -> vector<16x16xf32>
    %377 = arith.addf %375, %376 : vector<16x16xf32>
    %cst_103 = arith.constant 5.000000e-01 : f32
    %378 = vector.broadcast %cst_103 : f32 to vector<16x16xf32>
    %379 = arith.mulf %378, %377 : vector<16x16xf32>
    %380 = arith.mulf %252, %2 : vector<16x16xf32>
    %381 = arith.addf %380, %0 : vector<16x16xf32>
    %cst_104 = arith.constant dense<0.000000e+00> : vector<16xf32>
    %382 = vector.multi_reduction <add>, %381, %cst_104 [1] : vector<16x16xf32> to vector<16xf32>
    %383 = vector.shape_cast %382 : vector<16xf32> to vector<16x1xf32>
    %cst_105 = arith.constant 1.000000e+00 : f32
    %384 = vector.broadcast %cst_105 : f32 to vector<16x1xf32>
    %385 = arith.maximumf %383, %384 : vector<16x1xf32>
    %386 = math.rsqrt %385 : vector<16x1xf32>
    %387 = vector.extract_strided_slice %275 {offsets = [0, 48], sizes = [16, 24], strides = [1, 1]} : vector<32x96xf32> to vector<16x24xf32>
    %388 = vector.broadcast %386 : vector<16x1xf32> to vector<16x24xf32>
    %389 = arith.mulf %387, %388 : vector<16x24xf32>
    %cst_106 = arith.constant dense<0.000000e+00> : vector<16x24xf32>
    %390 = tpu.matmul %381, %389, %cst_106 {dimension_numbers = #tpu.dot_dimension_numbers<[1], [0], [0], [1], [0, 0, 1, 1], [], []>} : vector<16x16xf32>, vector<16x24xf32>, vector<16x24xf32> -> vector<16x24xf32>
    %391 = vector.broadcast %386 : vector<16x1xf32> to vector<16x24xf32>
    %392 = arith.mulf %390, %391 : vector<16x24xf32>
    %393 = vector.extract_strided_slice %276 {offsets = [0, 48], sizes = [1, 24], strides = [1, 1]} : vector<1x96xf32> to vector<1x24xf32>
    %394 = vector.broadcast %393 : vector<1x24xf32> to vector<16x24xf32>
    %395 = arith.addf %392, %394 : vector<16x24xf32>
    %396 = vector.extract_strided_slice %395 {offsets = [0, 0], sizes = [16, 8], strides = [1, 1]} : vector<16x24xf32> to vector<16x8xf32>
    %397 = vector.extract_strided_slice %395 {offsets = [0, 8], sizes = [16, 8], strides = [1, 1]} : vector<16x24xf32> to vector<16x8xf32>
    %398 = vector.extract_strided_slice %395 {offsets = [0, 16], sizes = [16, 8], strides = [1, 1]} : vector<16x24xf32> to vector<16x8xf32>
    %399 = vector.broadcast %284 : vector<1x8xf32> to vector<16x8xf32>
    %400 = arith.mulf %397, %399 : vector<16x8xf32>
    %401 = vector.broadcast %291 : vector<1x8xf32> to vector<16x8xf32>
    %402 = arith.mulf %397, %401 : vector<16x8xf32>
    %403 = vector.broadcast %298 : vector<1x8xf32> to vector<16x8xf32>
    %404 = arith.mulf %397, %403 : vector<16x8xf32>
    %405 = vector.broadcast %305 : vector<1x8xf32> to vector<16x8xf32>
    %406 = arith.mulf %397, %405 : vector<16x8xf32>
    %407 = tpu.concatenate %400, %402, %404, %406 in 0 : vector<16x8xf32>, vector<16x8xf32>, vector<16x8xf32>, vector<16x8xf32> -> vector<64x8xf32>
    %cst_107 = arith.constant dense<0.000000e+00> : vector<16x64xf32>
    %408 = tpu.matmul %396, %407, %cst_107 {dimension_numbers = #tpu.dot_dimension_numbers<[1], [1], [0], [0], [0, 0, 1, 0], [], []>} : vector<16x8xf32>, vector<64x8xf32>, vector<16x64xf32> -> vector<16x64xf32>
    %cst_108 = arith.constant 0.353553385 : f32
    %409 = vector.broadcast %cst_108 : f32 to vector<16x64xf32>
    %410 = arith.mulf %408, %409 : vector<16x64xf32>
    %411 = math.tanh %410 : vector<16x64xf32>
    %cst_109 = arith.constant dense<0.000000e+00> : vector<16x16xf32>
    %412 = tpu.matmul %411, %7, %cst_109 {dimension_numbers = #tpu.dot_dimension_numbers<[1], [0], [0], [1], [0, 0, 1, 1], [], []>} : vector<16x64xf32>, vector<64x16xf32>, vector<16x16xf32> -> vector<16x16xf32>
    %413 = tpu.transpose %412, [1, 0] : vector<16x16xf32> -> vector<16x16xf32>
    %414 = arith.addf %412, %413 : vector<16x16xf32>
    %cst_110 = arith.constant 5.000000e-01 : f32
    %415 = vector.broadcast %cst_110 : f32 to vector<16x16xf32>
    %416 = arith.mulf %415, %414 : vector<16x16xf32>
    %417 = arith.mulf %256, %2 : vector<16x16xf32>
    %418 = arith.addf %417, %0 : vector<16x16xf32>
    %cst_111 = arith.constant dense<0.000000e+00> : vector<16xf32>
    %419 = vector.multi_reduction <add>, %418, %cst_111 [1] : vector<16x16xf32> to vector<16xf32>
    %420 = vector.shape_cast %419 : vector<16xf32> to vector<16x1xf32>
    %cst_112 = arith.constant 1.000000e+00 : f32
    %421 = vector.broadcast %cst_112 : f32 to vector<16x1xf32>
    %422 = arith.maximumf %420, %421 : vector<16x1xf32>
    %423 = math.rsqrt %422 : vector<16x1xf32>
    %424 = vector.extract_strided_slice %275 {offsets = [0, 72], sizes = [16, 24], strides = [1, 1]} : vector<32x96xf32> to vector<16x24xf32>
    %425 = vector.broadcast %423 : vector<16x1xf32> to vector<16x24xf32>
    %426 = arith.mulf %424, %425 : vector<16x24xf32>
    %cst_113 = arith.constant dense<0.000000e+00> : vector<16x24xf32>
    %427 = tpu.matmul %418, %426, %cst_113 {dimension_numbers = #tpu.dot_dimension_numbers<[1], [0], [0], [1], [0, 0, 1, 1], [], []>} : vector<16x16xf32>, vector<16x24xf32>, vector<16x24xf32> -> vector<16x24xf32>
    %428 = vector.broadcast %423 : vector<16x1xf32> to vector<16x24xf32>
    %429 = arith.mulf %427, %428 : vector<16x24xf32>
    %430 = vector.extract_strided_slice %276 {offsets = [0, 72], sizes = [1, 24], strides = [1, 1]} : vector<1x96xf32> to vector<1x24xf32>
    %431 = vector.broadcast %430 : vector<1x24xf32> to vector<16x24xf32>
    %432 = arith.addf %429, %431 : vector<16x24xf32>
    %433 = vector.extract_strided_slice %432 {offsets = [0, 0], sizes = [16, 8], strides = [1, 1]} : vector<16x24xf32> to vector<16x8xf32>
    %434 = vector.extract_strided_slice %432 {offsets = [0, 8], sizes = [16, 8], strides = [1, 1]} : vector<16x24xf32> to vector<16x8xf32>
    %435 = vector.extract_strided_slice %432 {offsets = [0, 16], sizes = [16, 8], strides = [1, 1]} : vector<16x24xf32> to vector<16x8xf32>
    %436 = vector.broadcast %284 : vector<1x8xf32> to vector<16x8xf32>
    %437 = arith.mulf %434, %436 : vector<16x8xf32>
    %438 = vector.broadcast %291 : vector<1x8xf32> to vector<16x8xf32>
    %439 = arith.mulf %434, %438 : vector<16x8xf32>
    %440 = vector.broadcast %298 : vector<1x8xf32> to vector<16x8xf32>
    %441 = arith.mulf %434, %440 : vector<16x8xf32>
    %442 = vector.broadcast %305 : vector<1x8xf32> to vector<16x8xf32>
    %443 = arith.mulf %434, %442 : vector<16x8xf32>
    %444 = tpu.concatenate %437, %439, %441, %443 in 0 : vector<16x8xf32>, vector<16x8xf32>, vector<16x8xf32>, vector<16x8xf32> -> vector<64x8xf32>
    %cst_114 = arith.constant dense<0.000000e+00> : vector<16x64xf32>
    %445 = tpu.matmul %433, %444, %cst_114 {dimension_numbers = #tpu.dot_dimension_numbers<[1], [1], [0], [0], [0, 0, 1, 0], [], []>} : vector<16x8xf32>, vector<64x8xf32>, vector<16x64xf32> -> vector<16x64xf32>
    %cst_115 = arith.constant 0.353553385 : f32
    %446 = vector.broadcast %cst_115 : f32 to vector<16x64xf32>
    %447 = arith.mulf %445, %446 : vector<16x64xf32>
    %448 = math.tanh %447 : vector<16x64xf32>
    %cst_116 = arith.constant dense<0.000000e+00> : vector<16x16xf32>
    %449 = tpu.matmul %448, %7, %cst_116 {dimension_numbers = #tpu.dot_dimension_numbers<[1], [0], [0], [1], [0, 0, 1, 1], [], []>} : vector<16x64xf32>, vector<64x16xf32>, vector<16x16xf32> -> vector<16x16xf32>
    %450 = tpu.transpose %449, [1, 0] : vector<16x16xf32> -> vector<16x16xf32>
    %451 = arith.addf %449, %450 : vector<16x16xf32>
    %cst_117 = arith.constant 5.000000e-01 : f32
    %452 = vector.broadcast %cst_117 : f32 to vector<16x16xf32>
    %453 = arith.mulf %452, %451 : vector<16x16xf32>
    %454 = tpu.concatenate %324, %361, %398, %435 in 1 : vector<16x8xf32>, vector<16x8xf32>, vector<16x8xf32>, vector<16x8xf32> -> vector<16x32xf32>
    %455 = tpu.concatenate %342, %379, %416, %453, %244, %248, %252, %256 in 1 : vector<16x16xf32>, vector<16x16xf32>, vector<16x16xf32>, vector<16x16xf32>, vector<16x16xf32>, vector<16x16xf32>, vector<16x16xf32>, vector<16x16xf32> -> vector<16x128xf32>
    %456 = arith.mulf %261, %2 : vector<16x16xf32>
    %457 = arith.addf %456, %0 : vector<16x16xf32>
    %cst_118 = arith.constant dense<0.000000e+00> : vector<16xf32>
    %458 = vector.multi_reduction <add>, %457, %cst_118 [1] : vector<16x16xf32> to vector<16xf32>
    %459 = vector.shape_cast %458 : vector<16xf32> to vector<16x1xf32>
    %cst_119 = arith.constant 1.000000e+00 : f32
    %460 = vector.broadcast %cst_119 : f32 to vector<16x1xf32>
    %461 = arith.maximumf %459, %460 : vector<16x1xf32>
    %462 = math.rsqrt %461 : vector<16x1xf32>
    %463 = vector.extract_strided_slice %275 {offsets = [16, 0], sizes = [16, 24], strides = [1, 1]} : vector<32x96xf32> to vector<16x24xf32>
    %464 = vector.broadcast %462 : vector<16x1xf32> to vector<16x24xf32>
    %465 = arith.mulf %463, %464 : vector<16x24xf32>
    %cst_120 = arith.constant dense<0.000000e+00> : vector<16x24xf32>
    %466 = tpu.matmul %457, %465, %cst_120 {dimension_numbers = #tpu.dot_dimension_numbers<[1], [0], [0], [1], [0, 0, 1, 1], [], []>} : vector<16x16xf32>, vector<16x24xf32>, vector<16x24xf32> -> vector<16x24xf32>
    %467 = vector.broadcast %462 : vector<16x1xf32> to vector<16x24xf32>
    %468 = arith.mulf %466, %467 : vector<16x24xf32>
    %469 = vector.extract_strided_slice %276 {offsets = [0, 0], sizes = [1, 24], strides = [1, 1]} : vector<1x96xf32> to vector<1x24xf32>
    %470 = vector.broadcast %469 : vector<1x24xf32> to vector<16x24xf32>
    %471 = arith.addf %468, %470 : vector<16x24xf32>
    %472 = vector.extract_strided_slice %471 {offsets = [0, 0], sizes = [16, 8], strides = [1, 1]} : vector<16x24xf32> to vector<16x8xf32>
    %473 = vector.extract_strided_slice %471 {offsets = [0, 8], sizes = [16, 8], strides = [1, 1]} : vector<16x24xf32> to vector<16x8xf32>
    %474 = vector.extract_strided_slice %471 {offsets = [0, 16], sizes = [16, 8], strides = [1, 1]} : vector<16x24xf32> to vector<16x8xf32>
    %475 = vector.broadcast %284 : vector<1x8xf32> to vector<16x8xf32>
    %476 = arith.mulf %473, %475 : vector<16x8xf32>
    %477 = vector.broadcast %291 : vector<1x8xf32> to vector<16x8xf32>
    %478 = arith.mulf %473, %477 : vector<16x8xf32>
    %479 = vector.broadcast %298 : vector<1x8xf32> to vector<16x8xf32>
    %480 = arith.mulf %473, %479 : vector<16x8xf32>
    %481 = vector.broadcast %305 : vector<1x8xf32> to vector<16x8xf32>
    %482 = arith.mulf %473, %481 : vector<16x8xf32>
    %483 = tpu.concatenate %476, %478, %480, %482 in 0 : vector<16x8xf32>, vector<16x8xf32>, vector<16x8xf32>, vector<16x8xf32> -> vector<64x8xf32>
    %cst_121 = arith.constant dense<0.000000e+00> : vector<16x64xf32>
    %484 = tpu.matmul %472, %483, %cst_121 {dimension_numbers = #tpu.dot_dimension_numbers<[1], [1], [0], [0], [0, 0, 1, 0], [], []>} : vector<16x8xf32>, vector<64x8xf32>, vector<16x64xf32> -> vector<16x64xf32>
    %cst_122 = arith.constant 0.353553385 : f32
    %485 = vector.broadcast %cst_122 : f32 to vector<16x64xf32>
    %486 = arith.mulf %484, %485 : vector<16x64xf32>
    %487 = math.tanh %486 : vector<16x64xf32>
    %cst_123 = arith.constant dense<0.000000e+00> : vector<16x16xf32>
    %488 = tpu.matmul %487, %7, %cst_123 {dimension_numbers = #tpu.dot_dimension_numbers<[1], [0], [0], [1], [0, 0, 1, 1], [], []>} : vector<16x64xf32>, vector<64x16xf32>, vector<16x16xf32> -> vector<16x16xf32>
    %489 = tpu.transpose %488, [1, 0] : vector<16x16xf32> -> vector<16x16xf32>
    %490 = arith.addf %488, %489 : vector<16x16xf32>
    %cst_124 = arith.constant 5.000000e-01 : f32
    %491 = vector.broadcast %cst_124 : f32 to vector<16x16xf32>
    %492 = arith.mulf %491, %490 : vector<16x16xf32>
    %493 = arith.mulf %265, %2 : vector<16x16xf32>
    %494 = arith.addf %493, %0 : vector<16x16xf32>
    %cst_125 = arith.constant dense<0.000000e+00> : vector<16xf32>
    %495 = vector.multi_reduction <add>, %494, %cst_125 [1] : vector<16x16xf32> to vector<16xf32>
    %496 = vector.shape_cast %495 : vector<16xf32> to vector<16x1xf32>
    %cst_126 = arith.constant 1.000000e+00 : f32
    %497 = vector.broadcast %cst_126 : f32 to vector<16x1xf32>
    %498 = arith.maximumf %496, %497 : vector<16x1xf32>
    %499 = math.rsqrt %498 : vector<16x1xf32>
    %500 = vector.extract_strided_slice %275 {offsets = [16, 24], sizes = [16, 24], strides = [1, 1]} : vector<32x96xf32> to vector<16x24xf32>
    %501 = vector.broadcast %499 : vector<16x1xf32> to vector<16x24xf32>
    %502 = arith.mulf %500, %501 : vector<16x24xf32>
    %cst_127 = arith.constant dense<0.000000e+00> : vector<16x24xf32>
    %503 = tpu.matmul %494, %502, %cst_127 {dimension_numbers = #tpu.dot_dimension_numbers<[1], [0], [0], [1], [0, 0, 1, 1], [], []>} : vector<16x16xf32>, vector<16x24xf32>, vector<16x24xf32> -> vector<16x24xf32>
    %504 = vector.broadcast %499 : vector<16x1xf32> to vector<16x24xf32>
    %505 = arith.mulf %503, %504 : vector<16x24xf32>
    %506 = vector.extract_strided_slice %276 {offsets = [0, 24], sizes = [1, 24], strides = [1, 1]} : vector<1x96xf32> to vector<1x24xf32>
    %507 = vector.broadcast %506 : vector<1x24xf32> to vector<16x24xf32>
    %508 = arith.addf %505, %507 : vector<16x24xf32>
    %509 = vector.extract_strided_slice %508 {offsets = [0, 0], sizes = [16, 8], strides = [1, 1]} : vector<16x24xf32> to vector<16x8xf32>
    %510 = vector.extract_strided_slice %508 {offsets = [0, 8], sizes = [16, 8], strides = [1, 1]} : vector<16x24xf32> to vector<16x8xf32>
    %511 = vector.extract_strided_slice %508 {offsets = [0, 16], sizes = [16, 8], strides = [1, 1]} : vector<16x24xf32> to vector<16x8xf32>
    %512 = vector.broadcast %284 : vector<1x8xf32> to vector<16x8xf32>
    %513 = arith.mulf %510, %512 : vector<16x8xf32>
    %514 = vector.broadcast %291 : vector<1x8xf32> to vector<16x8xf32>
    %515 = arith.mulf %510, %514 : vector<16x8xf32>
    %516 = vector.broadcast %298 : vector<1x8xf32> to vector<16x8xf32>
    %517 = arith.mulf %510, %516 : vector<16x8xf32>
    %518 = vector.broadcast %305 : vector<1x8xf32> to vector<16x8xf32>
    %519 = arith.mulf %510, %518 : vector<16x8xf32>
    %520 = tpu.concatenate %513, %515, %517, %519 in 0 : vector<16x8xf32>, vector<16x8xf32>, vector<16x8xf32>, vector<16x8xf32> -> vector<64x8xf32>
    %cst_128 = arith.constant dense<0.000000e+00> : vector<16x64xf32>
    %521 = tpu.matmul %509, %520, %cst_128 {dimension_numbers = #tpu.dot_dimension_numbers<[1], [1], [0], [0], [0, 0, 1, 0], [], []>} : vector<16x8xf32>, vector<64x8xf32>, vector<16x64xf32> -> vector<16x64xf32>
    %cst_129 = arith.constant 0.353553385 : f32
    %522 = vector.broadcast %cst_129 : f32 to vector<16x64xf32>
    %523 = arith.mulf %521, %522 : vector<16x64xf32>
    %524 = math.tanh %523 : vector<16x64xf32>
    %cst_130 = arith.constant dense<0.000000e+00> : vector<16x16xf32>
    %525 = tpu.matmul %524, %7, %cst_130 {dimension_numbers = #tpu.dot_dimension_numbers<[1], [0], [0], [1], [0, 0, 1, 1], [], []>} : vector<16x64xf32>, vector<64x16xf32>, vector<16x16xf32> -> vector<16x16xf32>
    %526 = tpu.transpose %525, [1, 0] : vector<16x16xf32> -> vector<16x16xf32>
    %527 = arith.addf %525, %526 : vector<16x16xf32>
    %cst_131 = arith.constant 5.000000e-01 : f32
    %528 = vector.broadcast %cst_131 : f32 to vector<16x16xf32>
    %529 = arith.mulf %528, %527 : vector<16x16xf32>
    %530 = arith.mulf %269, %2 : vector<16x16xf32>
    %531 = arith.addf %530, %0 : vector<16x16xf32>
    %cst_132 = arith.constant dense<0.000000e+00> : vector<16xf32>
    %532 = vector.multi_reduction <add>, %531, %cst_132 [1] : vector<16x16xf32> to vector<16xf32>
    %533 = vector.shape_cast %532 : vector<16xf32> to vector<16x1xf32>
    %cst_133 = arith.constant 1.000000e+00 : f32
    %534 = vector.broadcast %cst_133 : f32 to vector<16x1xf32>
    %535 = arith.maximumf %533, %534 : vector<16x1xf32>
    %536 = math.rsqrt %535 : vector<16x1xf32>
    %537 = vector.extract_strided_slice %275 {offsets = [16, 48], sizes = [16, 24], strides = [1, 1]} : vector<32x96xf32> to vector<16x24xf32>
    %538 = vector.broadcast %536 : vector<16x1xf32> to vector<16x24xf32>
    %539 = arith.mulf %537, %538 : vector<16x24xf32>
    %cst_134 = arith.constant dense<0.000000e+00> : vector<16x24xf32>
    %540 = tpu.matmul %531, %539, %cst_134 {dimension_numbers = #tpu.dot_dimension_numbers<[1], [0], [0], [1], [0, 0, 1, 1], [], []>} : vector<16x16xf32>, vector<16x24xf32>, vector<16x24xf32> -> vector<16x24xf32>
    %541 = vector.broadcast %536 : vector<16x1xf32> to vector<16x24xf32>
    %542 = arith.mulf %540, %541 : vector<16x24xf32>
    %543 = vector.extract_strided_slice %276 {offsets = [0, 48], sizes = [1, 24], strides = [1, 1]} : vector<1x96xf32> to vector<1x24xf32>
    %544 = vector.broadcast %543 : vector<1x24xf32> to vector<16x24xf32>
    %545 = arith.addf %542, %544 : vector<16x24xf32>
    %546 = vector.extract_strided_slice %545 {offsets = [0, 0], sizes = [16, 8], strides = [1, 1]} : vector<16x24xf32> to vector<16x8xf32>
    %547 = vector.extract_strided_slice %545 {offsets = [0, 8], sizes = [16, 8], strides = [1, 1]} : vector<16x24xf32> to vector<16x8xf32>
    %548 = vector.extract_strided_slice %545 {offsets = [0, 16], sizes = [16, 8], strides = [1, 1]} : vector<16x24xf32> to vector<16x8xf32>
    %549 = vector.broadcast %284 : vector<1x8xf32> to vector<16x8xf32>
    %550 = arith.mulf %547, %549 : vector<16x8xf32>
    %551 = vector.broadcast %291 : vector<1x8xf32> to vector<16x8xf32>
    %552 = arith.mulf %547, %551 : vector<16x8xf32>
    %553 = vector.broadcast %298 : vector<1x8xf32> to vector<16x8xf32>
    %554 = arith.mulf %547, %553 : vector<16x8xf32>
    %555 = vector.broadcast %305 : vector<1x8xf32> to vector<16x8xf32>
    %556 = arith.mulf %547, %555 : vector<16x8xf32>
    %557 = tpu.concatenate %550, %552, %554, %556 in 0 : vector<16x8xf32>, vector<16x8xf32>, vector<16x8xf32>, vector<16x8xf32> -> vector<64x8xf32>
    %cst_135 = arith.constant dense<0.000000e+00> : vector<16x64xf32>
    %558 = tpu.matmul %546, %557, %cst_135 {dimension_numbers = #tpu.dot_dimension_numbers<[1], [1], [0], [0], [0, 0, 1, 0], [], []>} : vector<16x8xf32>, vector<64x8xf32>, vector<16x64xf32> -> vector<16x64xf32>
    %cst_136 = arith.constant 0.353553385 : f32
    %559 = vector.broadcast %cst_136 : f32 to vector<16x64xf32>
    %560 = arith.mulf %558, %559 : vector<16x64xf32>
    %561 = math.tanh %560 : vector<16x64xf32>
    %cst_137 = arith.constant dense<0.000000e+00> : vector<16x16xf32>
    %562 = tpu.matmul %561, %7, %cst_137 {dimension_numbers = #tpu.dot_dimension_numbers<[1], [0], [0], [1], [0, 0, 1, 1], [], []>} : vector<16x64xf32>, vector<64x16xf32>, vector<16x16xf32> -> vector<16x16xf32>
    %563 = tpu.transpose %562, [1, 0] : vector<16x16xf32> -> vector<16x16xf32>
    %564 = arith.addf %562, %563 : vector<16x16xf32>
    %cst_138 = arith.constant 5.000000e-01 : f32
    %565 = vector.broadcast %cst_138 : f32 to vector<16x16xf32>
    %566 = arith.mulf %565, %564 : vector<16x16xf32>
    %567 = arith.mulf %273, %2 : vector<16x16xf32>
    %568 = arith.addf %567, %0 : vector<16x16xf32>
    %cst_139 = arith.constant dense<0.000000e+00> : vector<16xf32>
    %569 = vector.multi_reduction <add>, %568, %cst_139 [1] : vector<16x16xf32> to vector<16xf32>
    %570 = vector.shape_cast %569 : vector<16xf32> to vector<16x1xf32>
    %cst_140 = arith.constant 1.000000e+00 : f32
    %571 = vector.broadcast %cst_140 : f32 to vector<16x1xf32>
    %572 = arith.maximumf %570, %571 : vector<16x1xf32>
    %573 = math.rsqrt %572 : vector<16x1xf32>
    %574 = vector.extract_strided_slice %275 {offsets = [16, 72], sizes = [16, 24], strides = [1, 1]} : vector<32x96xf32> to vector<16x24xf32>
    %575 = vector.broadcast %573 : vector<16x1xf32> to vector<16x24xf32>
    %576 = arith.mulf %574, %575 : vector<16x24xf32>
    %cst_141 = arith.constant dense<0.000000e+00> : vector<16x24xf32>
    %577 = tpu.matmul %568, %576, %cst_141 {dimension_numbers = #tpu.dot_dimension_numbers<[1], [0], [0], [1], [0, 0, 1, 1], [], []>} : vector<16x16xf32>, vector<16x24xf32>, vector<16x24xf32> -> vector<16x24xf32>
    %578 = vector.broadcast %573 : vector<16x1xf32> to vector<16x24xf32>
    %579 = arith.mulf %577, %578 : vector<16x24xf32>
    %580 = vector.extract_strided_slice %276 {offsets = [0, 72], sizes = [1, 24], strides = [1, 1]} : vector<1x96xf32> to vector<1x24xf32>
    %581 = vector.broadcast %580 : vector<1x24xf32> to vector<16x24xf32>
    %582 = arith.addf %579, %581 : vector<16x24xf32>
    %583 = vector.extract_strided_slice %582 {offsets = [0, 0], sizes = [16, 8], strides = [1, 1]} : vector<16x24xf32> to vector<16x8xf32>
    %584 = vector.extract_strided_slice %582 {offsets = [0, 8], sizes = [16, 8], strides = [1, 1]} : vector<16x24xf32> to vector<16x8xf32>
    %585 = vector.extract_strided_slice %582 {offsets = [0, 16], sizes = [16, 8], strides = [1, 1]} : vector<16x24xf32> to vector<16x8xf32>
    %586 = vector.broadcast %284 : vector<1x8xf32> to vector<16x8xf32>
    %587 = arith.mulf %584, %586 : vector<16x8xf32>
    %588 = vector.broadcast %291 : vector<1x8xf32> to vector<16x8xf32>
    %589 = arith.mulf %584, %588 : vector<16x8xf32>
    %590 = vector.broadcast %298 : vector<1x8xf32> to vector<16x8xf32>
    %591 = arith.mulf %584, %590 : vector<16x8xf32>
    %592 = vector.broadcast %305 : vector<1x8xf32> to vector<16x8xf32>
    %593 = arith.mulf %584, %592 : vector<16x8xf32>
    %594 = tpu.concatenate %587, %589, %591, %593 in 0 : vector<16x8xf32>, vector<16x8xf32>, vector<16x8xf32>, vector<16x8xf32> -> vector<64x8xf32>
    %cst_142 = arith.constant dense<0.000000e+00> : vector<16x64xf32>
    %595 = tpu.matmul %583, %594, %cst_142 {dimension_numbers = #tpu.dot_dimension_numbers<[1], [1], [0], [0], [0, 0, 1, 0], [], []>} : vector<16x8xf32>, vector<64x8xf32>, vector<16x64xf32> -> vector<16x64xf32>
    %cst_143 = arith.constant 0.353553385 : f32
    %596 = vector.broadcast %cst_143 : f32 to vector<16x64xf32>
    %597 = arith.mulf %595, %596 : vector<16x64xf32>
    %598 = math.tanh %597 : vector<16x64xf32>
    %cst_144 = arith.constant dense<0.000000e+00> : vector<16x16xf32>
    %599 = tpu.matmul %598, %7, %cst_144 {dimension_numbers = #tpu.dot_dimension_numbers<[1], [0], [0], [1], [0, 0, 1, 1], [], []>} : vector<16x64xf32>, vector<64x16xf32>, vector<16x16xf32> -> vector<16x16xf32>
    %600 = tpu.transpose %599, [1, 0] : vector<16x16xf32> -> vector<16x16xf32>
    %601 = arith.addf %599, %600 : vector<16x16xf32>
    %cst_145 = arith.constant 5.000000e-01 : f32
    %602 = vector.broadcast %cst_145 : f32 to vector<16x16xf32>
    %603 = arith.mulf %602, %601 : vector<16x16xf32>
    %604 = tpu.concatenate %474, %511, %548, %585 in 1 : vector<16x8xf32>, vector<16x8xf32>, vector<16x8xf32>, vector<16x8xf32> -> vector<16x32xf32>
    %605 = tpu.concatenate %492, %529, %566, %603, %261, %265, %269, %273 in 1 : vector<16x16xf32>, vector<16x16xf32>, vector<16x16xf32>, vector<16x16xf32>, vector<16x16xf32>, vector<16x16xf32>, vector<16x16xf32>, vector<16x16xf32> -> vector<16x128xf32>
    %606 = tpu.concatenate %454, %604 in 0 : vector<16x32xf32>, vector<16x32xf32> -> vector<32x32xf32>
    %c0_146 = arith.constant 0 : index
    %c0_147 = arith.constant 0 : index
    %607 = vector.load %arg18[%c0_146, %c0_147] : memref<32x8xf32, #tpu.memory_space<vmem>>, vector<32x8xf32>
    %cst_148 = arith.constant dense<0.000000e+00> : vector<32x8xf32>
    %608 = tpu.matmul %606, %607, %cst_148 {dimension_numbers = #tpu.dot_dimension_numbers<[1], [0], [0], [1], [0, 0, 1, 1], [], []>} : vector<32x32xf32>, vector<32x8xf32>, vector<32x8xf32> -> vector<32x8xf32>
    %c0_149 = arith.constant 0 : index
    %c0_150 = arith.constant 0 : index
    %609 = vector.load %arg20[%c0_149, %c0_150] : memref<1x8xf32, #tpu.memory_space<vmem>>, vector<1x8xf32>
    %610 = vector.broadcast %609 : vector<1x8xf32> to vector<32x8xf32>
    %611 = arith.addf %608, %610 : vector<32x8xf32>
    %cst_151 = arith.constant 0.000000e+00 : f32
    %612 = vector.broadcast %cst_151 : f32 to vector<32x8xf32>
    %613 = arith.cmpf ogt, %611, %612 : vector<32x8xf32>
    %cst_152 = arith.constant 0.000000e+00 : f32
    %614 = vector.broadcast %cst_152 : f32 to vector<32x8xf32>
    %615 = arith.minimumf %611, %614 : vector<32x8xf32>
    %616 = math.exp %615 : vector<32x8xf32>
    %cst_153 = arith.constant 1.000000e+00 : f32
    %617 = vector.broadcast %cst_153 : f32 to vector<32x8xf32>
    %618 = arith.subf %616, %617 : vector<32x8xf32>
    %619 = arith.select %613, %611, %618 : vector<32x8xi1>, vector<32x8xf32>
    %c0_154 = arith.constant 0 : index
    %c0_155 = arith.constant 0 : index
    %620 = vector.load %arg19[%c0_154, %c0_155] : memref<8x8xf32, #tpu.memory_space<vmem>>, vector<8x8xf32>
    %cst_156 = arith.constant dense<0.000000e+00> : vector<32x8xf32>
    %621 = tpu.matmul %619, %620, %cst_156 {dimension_numbers = #tpu.dot_dimension_numbers<[1], [0], [0], [1], [0, 0, 1, 1], [], []>} : vector<32x8xf32>, vector<8x8xf32>, vector<32x8xf32> -> vector<32x8xf32>
    %c0_157 = arith.constant 0 : index
    %c0_158 = arith.constant 0 : index
    %622 = vector.load %arg21[%c0_157, %c0_158] : memref<1x8xf32, #tpu.memory_space<vmem>>, vector<1x8xf32>
    %623 = vector.broadcast %622 : vector<1x8xf32> to vector<32x8xf32>
    %624 = arith.addf %621, %623 : vector<32x8xf32>
    %625 = vector.broadcast %3 : vector<32x1xf32> to vector<32x8xf32>
    %626 = arith.mulf %624, %625 : vector<32x8xf32>
    %627 = math.tanh %626 : vector<32x8xf32>
    %628 = tpu.concatenate %455, %605 in 0 : vector<16x128xf32>, vector<16x128xf32> -> vector<32x128xf32>
    %c0_159 = arith.constant 0 : index
    %c0_160 = arith.constant 0 : index
    %629 = vector.load %arg22[%c0_159, %c0_160] : memref<128x128xf32, #tpu.memory_space<vmem>>, vector<128x128xf32>
    %cst_161 = arith.constant dense<0.000000e+00> : vector<32x128xf32>
    %630 = tpu.matmul %628, %629, %cst_161 {dimension_numbers = #tpu.dot_dimension_numbers<[1], [0], [0], [1], [0, 0, 1, 1], [], []>} : vector<32x128xf32>, vector<128x128xf32>, vector<32x128xf32> -> vector<32x128xf32>
    %c0_162 = arith.constant 0 : index
    %c0_163 = arith.constant 0 : index
    %631 = vector.load %arg24[%c0_162, %c0_163] : memref<1x128xf32, #tpu.memory_space<vmem>>, vector<1x128xf32>
    %632 = vector.broadcast %631 : vector<1x128xf32> to vector<32x128xf32>
    %633 = arith.addf %630, %632 : vector<32x128xf32>
    %cst_164 = arith.constant 0.000000e+00 : f32
    %634 = vector.broadcast %cst_164 : f32 to vector<32x128xf32>
    %635 = arith.cmpf ogt, %633, %634 : vector<32x128xf32>
    %cst_165 = arith.constant 0.000000e+00 : f32
    %636 = vector.broadcast %cst_165 : f32 to vector<32x128xf32>
    %637 = arith.minimumf %633, %636 : vector<32x128xf32>
    %638 = math.exp %637 : vector<32x128xf32>
    %cst_166 = arith.constant 1.000000e+00 : f32
    %639 = vector.broadcast %cst_166 : f32 to vector<32x128xf32>
    %640 = arith.subf %638, %639 : vector<32x128xf32>
    %641 = arith.select %635, %633, %640 : vector<32x128xi1>, vector<32x128xf32>
    %c0_167 = arith.constant 0 : index
    %c0_168 = arith.constant 0 : index
    %642 = vector.load %arg23[%c0_167, %c0_168] : memref<128x64xf32, #tpu.memory_space<vmem>>, vector<128x64xf32>
    %cst_169 = arith.constant dense<0.000000e+00> : vector<32x64xf32>
    %643 = tpu.matmul %641, %642, %cst_169 {dimension_numbers = #tpu.dot_dimension_numbers<[1], [0], [0], [1], [0, 0, 1, 1], [], []>} : vector<32x128xf32>, vector<128x64xf32>, vector<32x64xf32> -> vector<32x64xf32>
    %c0_170 = arith.constant 0 : index
    %c0_171 = arith.constant 0 : index
    %644 = vector.load %arg25[%c0_170, %c0_171] : memref<1x64xf32, #tpu.memory_space<vmem>>, vector<1x64xf32>
    %645 = vector.broadcast %644 : vector<1x64xf32> to vector<32x64xf32>
    %646 = arith.addf %643, %645 : vector<32x64xf32>
    %647 = vector.extract_strided_slice %4 {offsets = [0, 0], sizes = [16, 16], strides = [1, 1]} : vector<32x16xf32> to vector<16x16xf32>
    %648 = vector.extract_strided_slice %646 {offsets = [0, 0], sizes = [16, 16], strides = [1, 1]} : vector<32x64xf32> to vector<16x16xf32>
    %649 = tpu.transpose %648, [1, 0] : vector<16x16xf32> -> vector<16x16xf32>
    %650 = arith.addf %648, %649 : vector<16x16xf32>
    %651 = arith.mulf %650, %647 : vector<16x16xf32>
    %652 = vector.extract_strided_slice %646 {offsets = [0, 16], sizes = [16, 16], strides = [1, 1]} : vector<32x64xf32> to vector<16x16xf32>
    %653 = tpu.transpose %652, [1, 0] : vector<16x16xf32> -> vector<16x16xf32>
    %654 = arith.addf %652, %653 : vector<16x16xf32>
    %655 = arith.mulf %654, %647 : vector<16x16xf32>
    %656 = vector.extract_strided_slice %646 {offsets = [0, 32], sizes = [16, 16], strides = [1, 1]} : vector<32x64xf32> to vector<16x16xf32>
    %657 = tpu.transpose %656, [1, 0] : vector<16x16xf32> -> vector<16x16xf32>
    %658 = arith.addf %656, %657 : vector<16x16xf32>
    %659 = arith.mulf %658, %647 : vector<16x16xf32>
    %660 = vector.extract_strided_slice %646 {offsets = [0, 48], sizes = [16, 16], strides = [1, 1]} : vector<32x64xf32> to vector<16x16xf32>
    %661 = tpu.transpose %660, [1, 0] : vector<16x16xf32> -> vector<16x16xf32>
    %662 = arith.addf %660, %661 : vector<16x16xf32>
    %663 = arith.mulf %662, %647 : vector<16x16xf32>
    %664 = vector.extract_strided_slice %4 {offsets = [16, 0], sizes = [16, 16], strides = [1, 1]} : vector<32x16xf32> to vector<16x16xf32>
    %665 = vector.extract_strided_slice %646 {offsets = [16, 0], sizes = [16, 16], strides = [1, 1]} : vector<32x64xf32> to vector<16x16xf32>
    %666 = tpu.transpose %665, [1, 0] : vector<16x16xf32> -> vector<16x16xf32>
    %667 = arith.addf %665, %666 : vector<16x16xf32>
    %668 = arith.mulf %667, %664 : vector<16x16xf32>
    %669 = vector.extract_strided_slice %646 {offsets = [16, 16], sizes = [16, 16], strides = [1, 1]} : vector<32x64xf32> to vector<16x16xf32>
    %670 = tpu.transpose %669, [1, 0] : vector<16x16xf32> -> vector<16x16xf32>
    %671 = arith.addf %669, %670 : vector<16x16xf32>
    %672 = arith.mulf %671, %664 : vector<16x16xf32>
    %673 = vector.extract_strided_slice %646 {offsets = [16, 32], sizes = [16, 16], strides = [1, 1]} : vector<32x64xf32> to vector<16x16xf32>
    %674 = tpu.transpose %673, [1, 0] : vector<16x16xf32> -> vector<16x16xf32>
    %675 = arith.addf %673, %674 : vector<16x16xf32>
    %676 = arith.mulf %675, %664 : vector<16x16xf32>
    %677 = vector.extract_strided_slice %646 {offsets = [16, 48], sizes = [16, 16], strides = [1, 1]} : vector<32x64xf32> to vector<16x16xf32>
    %678 = tpu.transpose %677, [1, 0] : vector<16x16xf32> -> vector<16x16xf32>
    %679 = arith.addf %677, %678 : vector<16x16xf32>
    %680 = arith.mulf %679, %664 : vector<16x16xf32>
    %c0_172 = arith.constant 0 : index
    %c0_173 = arith.constant 0 : index
    %681 = vector.load %arg26[%c0_172, %c0_173] : memref<8x96xf32, #tpu.memory_space<vmem>>, vector<8x96xf32>
    %cst_174 = arith.constant dense<0.000000e+00> : vector<32x96xf32>
    %682 = tpu.matmul %627, %681, %cst_174 {dimension_numbers = #tpu.dot_dimension_numbers<[1], [0], [0], [1], [0, 0, 1, 1], [], []>} : vector<32x8xf32>, vector<8x96xf32>, vector<32x96xf32> -> vector<32x96xf32>
    %c0_175 = arith.constant 0 : index
    %c0_176 = arith.constant 0 : index
    %683 = vector.load %arg27[%c0_175, %c0_176] : memref<1x96xf32, #tpu.memory_space<vmem>>, vector<1x96xf32>
    %684 = tpu.iota {dimensions = array<i32: 1>} : vector<1x8xi32>
    %c0_i32_177 = arith.constant 0 : i32
    %685 = vector.broadcast %c0_i32_177 : i32 to vector<1x8xi32>
    %686 = arith.cmpi sge, %684, %685 : vector<1x8xi32>
    %c2_i32_178 = arith.constant 2 : i32
    %687 = vector.broadcast %c2_i32_178 : i32 to vector<1x8xi32>
    %688 = arith.cmpi slt, %684, %687 : vector<1x8xi32>
    %689 = arith.andi %686, %688 : vector<1x8xi1>
    %690 = arith.extui %689 : vector<1x8xi1> to vector<1x8xi32>
    %691 = arith.sitofp %690 : vector<1x8xi32> to vector<1x8xf32>
    %c2_i32_179 = arith.constant 2 : i32
    %692 = vector.broadcast %c2_i32_179 : i32 to vector<1x8xi32>
    %693 = arith.cmpi sge, %684, %692 : vector<1x8xi32>
    %c4_i32_180 = arith.constant 4 : i32
    %694 = vector.broadcast %c4_i32_180 : i32 to vector<1x8xi32>
    %695 = arith.cmpi slt, %684, %694 : vector<1x8xi32>
    %696 = arith.andi %693, %695 : vector<1x8xi1>
    %697 = arith.extui %696 : vector<1x8xi1> to vector<1x8xi32>
    %698 = arith.sitofp %697 : vector<1x8xi32> to vector<1x8xf32>
    %c4_i32_181 = arith.constant 4 : i32
    %699 = vector.broadcast %c4_i32_181 : i32 to vector<1x8xi32>
    %700 = arith.cmpi sge, %684, %699 : vector<1x8xi32>
    %c6_i32_182 = arith.constant 6 : i32
    %701 = vector.broadcast %c6_i32_182 : i32 to vector<1x8xi32>
    %702 = arith.cmpi slt, %684, %701 : vector<1x8xi32>
    %703 = arith.andi %700, %702 : vector<1x8xi1>
    %704 = arith.extui %703 : vector<1x8xi1> to vector<1x8xi32>
    %705 = arith.sitofp %704 : vector<1x8xi32> to vector<1x8xf32>
    %c6_i32_183 = arith.constant 6 : i32
    %706 = vector.broadcast %c6_i32_183 : i32 to vector<1x8xi32>
    %707 = arith.cmpi sge, %684, %706 : vector<1x8xi32>
    %c8_i32_184 = arith.constant 8 : i32
    %708 = vector.broadcast %c8_i32_184 : i32 to vector<1x8xi32>
    %709 = arith.cmpi slt, %684, %708 : vector<1x8xi32>
    %710 = arith.andi %707, %709 : vector<1x8xi1>
    %711 = arith.extui %710 : vector<1x8xi1> to vector<1x8xi32>
    %712 = arith.sitofp %711 : vector<1x8xi32> to vector<1x8xf32>
    %713 = arith.mulf %651, %2 : vector<16x16xf32>
    %714 = arith.addf %713, %0 : vector<16x16xf32>
    %cst_185 = arith.constant dense<0.000000e+00> : vector<16xf32>
    %715 = vector.multi_reduction <add>, %714, %cst_185 [1] : vector<16x16xf32> to vector<16xf32>
    %716 = vector.shape_cast %715 : vector<16xf32> to vector<16x1xf32>
    %cst_186 = arith.constant 1.000000e+00 : f32
    %717 = vector.broadcast %cst_186 : f32 to vector<16x1xf32>
    %718 = arith.maximumf %716, %717 : vector<16x1xf32>
    %719 = math.rsqrt %718 : vector<16x1xf32>
    %720 = vector.extract_strided_slice %682 {offsets = [0, 0], sizes = [16, 24], strides = [1, 1]} : vector<32x96xf32> to vector<16x24xf32>
    %721 = vector.broadcast %719 : vector<16x1xf32> to vector<16x24xf32>
    %722 = arith.mulf %720, %721 : vector<16x24xf32>
    %cst_187 = arith.constant dense<0.000000e+00> : vector<16x24xf32>
    %723 = tpu.matmul %714, %722, %cst_187 {dimension_numbers = #tpu.dot_dimension_numbers<[1], [0], [0], [1], [0, 0, 1, 1], [], []>} : vector<16x16xf32>, vector<16x24xf32>, vector<16x24xf32> -> vector<16x24xf32>
    %724 = vector.broadcast %719 : vector<16x1xf32> to vector<16x24xf32>
    %725 = arith.mulf %723, %724 : vector<16x24xf32>
    %726 = vector.extract_strided_slice %683 {offsets = [0, 0], sizes = [1, 24], strides = [1, 1]} : vector<1x96xf32> to vector<1x24xf32>
    %727 = vector.broadcast %726 : vector<1x24xf32> to vector<16x24xf32>
    %728 = arith.addf %725, %727 : vector<16x24xf32>
    %729 = vector.extract_strided_slice %728 {offsets = [0, 0], sizes = [16, 8], strides = [1, 1]} : vector<16x24xf32> to vector<16x8xf32>
    %730 = vector.extract_strided_slice %728 {offsets = [0, 8], sizes = [16, 8], strides = [1, 1]} : vector<16x24xf32> to vector<16x8xf32>
    %731 = vector.broadcast %691 : vector<1x8xf32> to vector<16x8xf32>
    %732 = arith.mulf %730, %731 : vector<16x8xf32>
    %733 = vector.broadcast %698 : vector<1x8xf32> to vector<16x8xf32>
    %734 = arith.mulf %730, %733 : vector<16x8xf32>
    %735 = vector.broadcast %705 : vector<1x8xf32> to vector<16x8xf32>
    %736 = arith.mulf %730, %735 : vector<16x8xf32>
    %737 = vector.broadcast %712 : vector<1x8xf32> to vector<16x8xf32>
    %738 = arith.mulf %730, %737 : vector<16x8xf32>
    %739 = tpu.concatenate %732, %734, %736, %738 in 0 : vector<16x8xf32>, vector<16x8xf32>, vector<16x8xf32>, vector<16x8xf32> -> vector<64x8xf32>
    %cst_188 = arith.constant dense<0.000000e+00> : vector<16x64xf32>
    %740 = tpu.matmul %729, %739, %cst_188 {dimension_numbers = #tpu.dot_dimension_numbers<[1], [1], [0], [0], [0, 0, 1, 0], [], []>} : vector<16x8xf32>, vector<64x8xf32>, vector<16x64xf32> -> vector<16x64xf32>
    %cst_189 = arith.constant 0.353553385 : f32
    %741 = vector.broadcast %cst_189 : f32 to vector<16x64xf32>
    %742 = arith.mulf %740, %741 : vector<16x64xf32>
    %743 = math.tanh %742 : vector<16x64xf32>
    %cst_190 = arith.constant dense<0.000000e+00> : vector<16x16xf32>
    %744 = tpu.matmul %743, %7, %cst_190 {dimension_numbers = #tpu.dot_dimension_numbers<[1], [0], [0], [1], [0, 0, 1, 1], [], []>} : vector<16x64xf32>, vector<64x16xf32>, vector<16x16xf32> -> vector<16x16xf32>
    %745 = tpu.transpose %744, [1, 0] : vector<16x16xf32> -> vector<16x16xf32>
    %746 = arith.addf %744, %745 : vector<16x16xf32>
    %cst_191 = arith.constant 5.000000e-01 : f32
    %747 = vector.broadcast %cst_191 : f32 to vector<16x16xf32>
    %748 = arith.mulf %747, %746 : vector<16x16xf32>
    %749 = arith.mulf %655, %2 : vector<16x16xf32>
    %750 = arith.addf %749, %0 : vector<16x16xf32>
    %cst_192 = arith.constant dense<0.000000e+00> : vector<16xf32>
    %751 = vector.multi_reduction <add>, %750, %cst_192 [1] : vector<16x16xf32> to vector<16xf32>
    %752 = vector.shape_cast %751 : vector<16xf32> to vector<16x1xf32>
    %cst_193 = arith.constant 1.000000e+00 : f32
    %753 = vector.broadcast %cst_193 : f32 to vector<16x1xf32>
    %754 = arith.maximumf %752, %753 : vector<16x1xf32>
    %755 = math.rsqrt %754 : vector<16x1xf32>
    %756 = vector.extract_strided_slice %682 {offsets = [0, 24], sizes = [16, 24], strides = [1, 1]} : vector<32x96xf32> to vector<16x24xf32>
    %757 = vector.broadcast %755 : vector<16x1xf32> to vector<16x24xf32>
    %758 = arith.mulf %756, %757 : vector<16x24xf32>
    %cst_194 = arith.constant dense<0.000000e+00> : vector<16x24xf32>
    %759 = tpu.matmul %750, %758, %cst_194 {dimension_numbers = #tpu.dot_dimension_numbers<[1], [0], [0], [1], [0, 0, 1, 1], [], []>} : vector<16x16xf32>, vector<16x24xf32>, vector<16x24xf32> -> vector<16x24xf32>
    %760 = vector.broadcast %755 : vector<16x1xf32> to vector<16x24xf32>
    %761 = arith.mulf %759, %760 : vector<16x24xf32>
    %762 = vector.extract_strided_slice %683 {offsets = [0, 24], sizes = [1, 24], strides = [1, 1]} : vector<1x96xf32> to vector<1x24xf32>
    %763 = vector.broadcast %762 : vector<1x24xf32> to vector<16x24xf32>
    %764 = arith.addf %761, %763 : vector<16x24xf32>
    %765 = vector.extract_strided_slice %764 {offsets = [0, 0], sizes = [16, 8], strides = [1, 1]} : vector<16x24xf32> to vector<16x8xf32>
    %766 = vector.extract_strided_slice %764 {offsets = [0, 8], sizes = [16, 8], strides = [1, 1]} : vector<16x24xf32> to vector<16x8xf32>
    %767 = vector.broadcast %691 : vector<1x8xf32> to vector<16x8xf32>
    %768 = arith.mulf %766, %767 : vector<16x8xf32>
    %769 = vector.broadcast %698 : vector<1x8xf32> to vector<16x8xf32>
    %770 = arith.mulf %766, %769 : vector<16x8xf32>
    %771 = vector.broadcast %705 : vector<1x8xf32> to vector<16x8xf32>
    %772 = arith.mulf %766, %771 : vector<16x8xf32>
    %773 = vector.broadcast %712 : vector<1x8xf32> to vector<16x8xf32>
    %774 = arith.mulf %766, %773 : vector<16x8xf32>
    %775 = tpu.concatenate %768, %770, %772, %774 in 0 : vector<16x8xf32>, vector<16x8xf32>, vector<16x8xf32>, vector<16x8xf32> -> vector<64x8xf32>
    %cst_195 = arith.constant dense<0.000000e+00> : vector<16x64xf32>
    %776 = tpu.matmul %765, %775, %cst_195 {dimension_numbers = #tpu.dot_dimension_numbers<[1], [1], [0], [0], [0, 0, 1, 0], [], []>} : vector<16x8xf32>, vector<64x8xf32>, vector<16x64xf32> -> vector<16x64xf32>
    %cst_196 = arith.constant 0.353553385 : f32
    %777 = vector.broadcast %cst_196 : f32 to vector<16x64xf32>
    %778 = arith.mulf %776, %777 : vector<16x64xf32>
    %779 = math.tanh %778 : vector<16x64xf32>
    %cst_197 = arith.constant dense<0.000000e+00> : vector<16x16xf32>
    %780 = tpu.matmul %779, %7, %cst_197 {dimension_numbers = #tpu.dot_dimension_numbers<[1], [0], [0], [1], [0, 0, 1, 1], [], []>} : vector<16x64xf32>, vector<64x16xf32>, vector<16x16xf32> -> vector<16x16xf32>
    %781 = tpu.transpose %780, [1, 0] : vector<16x16xf32> -> vector<16x16xf32>
    %782 = arith.addf %780, %781 : vector<16x16xf32>
    %cst_198 = arith.constant 5.000000e-01 : f32
    %783 = vector.broadcast %cst_198 : f32 to vector<16x16xf32>
    %784 = arith.mulf %783, %782 : vector<16x16xf32>
    %785 = arith.mulf %659, %2 : vector<16x16xf32>
    %786 = arith.addf %785, %0 : vector<16x16xf32>
    %cst_199 = arith.constant dense<0.000000e+00> : vector<16xf32>
    %787 = vector.multi_reduction <add>, %786, %cst_199 [1] : vector<16x16xf32> to vector<16xf32>
    %788 = vector.shape_cast %787 : vector<16xf32> to vector<16x1xf32>
    %cst_200 = arith.constant 1.000000e+00 : f32
    %789 = vector.broadcast %cst_200 : f32 to vector<16x1xf32>
    %790 = arith.maximumf %788, %789 : vector<16x1xf32>
    %791 = math.rsqrt %790 : vector<16x1xf32>
    %792 = vector.extract_strided_slice %682 {offsets = [0, 48], sizes = [16, 24], strides = [1, 1]} : vector<32x96xf32> to vector<16x24xf32>
    %793 = vector.broadcast %791 : vector<16x1xf32> to vector<16x24xf32>
    %794 = arith.mulf %792, %793 : vector<16x24xf32>
    %cst_201 = arith.constant dense<0.000000e+00> : vector<16x24xf32>
    %795 = tpu.matmul %786, %794, %cst_201 {dimension_numbers = #tpu.dot_dimension_numbers<[1], [0], [0], [1], [0, 0, 1, 1], [], []>} : vector<16x16xf32>, vector<16x24xf32>, vector<16x24xf32> -> vector<16x24xf32>
    %796 = vector.broadcast %791 : vector<16x1xf32> to vector<16x24xf32>
    %797 = arith.mulf %795, %796 : vector<16x24xf32>
    %798 = vector.extract_strided_slice %683 {offsets = [0, 48], sizes = [1, 24], strides = [1, 1]} : vector<1x96xf32> to vector<1x24xf32>
    %799 = vector.broadcast %798 : vector<1x24xf32> to vector<16x24xf32>
    %800 = arith.addf %797, %799 : vector<16x24xf32>
    %801 = vector.extract_strided_slice %800 {offsets = [0, 0], sizes = [16, 8], strides = [1, 1]} : vector<16x24xf32> to vector<16x8xf32>
    %802 = vector.extract_strided_slice %800 {offsets = [0, 8], sizes = [16, 8], strides = [1, 1]} : vector<16x24xf32> to vector<16x8xf32>
    %803 = vector.broadcast %691 : vector<1x8xf32> to vector<16x8xf32>
    %804 = arith.mulf %802, %803 : vector<16x8xf32>
    %805 = vector.broadcast %698 : vector<1x8xf32> to vector<16x8xf32>
    %806 = arith.mulf %802, %805 : vector<16x8xf32>
    %807 = vector.broadcast %705 : vector<1x8xf32> to vector<16x8xf32>
    %808 = arith.mulf %802, %807 : vector<16x8xf32>
    %809 = vector.broadcast %712 : vector<1x8xf32> to vector<16x8xf32>
    %810 = arith.mulf %802, %809 : vector<16x8xf32>
    %811 = tpu.concatenate %804, %806, %808, %810 in 0 : vector<16x8xf32>, vector<16x8xf32>, vector<16x8xf32>, vector<16x8xf32> -> vector<64x8xf32>
    %cst_202 = arith.constant dense<0.000000e+00> : vector<16x64xf32>
    %812 = tpu.matmul %801, %811, %cst_202 {dimension_numbers = #tpu.dot_dimension_numbers<[1], [1], [0], [0], [0, 0, 1, 0], [], []>} : vector<16x8xf32>, vector<64x8xf32>, vector<16x64xf32> -> vector<16x64xf32>
    %cst_203 = arith.constant 0.353553385 : f32
    %813 = vector.broadcast %cst_203 : f32 to vector<16x64xf32>
    %814 = arith.mulf %812, %813 : vector<16x64xf32>
    %815 = math.tanh %814 : vector<16x64xf32>
    %cst_204 = arith.constant dense<0.000000e+00> : vector<16x16xf32>
    %816 = tpu.matmul %815, %7, %cst_204 {dimension_numbers = #tpu.dot_dimension_numbers<[1], [0], [0], [1], [0, 0, 1, 1], [], []>} : vector<16x64xf32>, vector<64x16xf32>, vector<16x16xf32> -> vector<16x16xf32>
    %817 = tpu.transpose %816, [1, 0] : vector<16x16xf32> -> vector<16x16xf32>
    %818 = arith.addf %816, %817 : vector<16x16xf32>
    %cst_205 = arith.constant 5.000000e-01 : f32
    %819 = vector.broadcast %cst_205 : f32 to vector<16x16xf32>
    %820 = arith.mulf %819, %818 : vector<16x16xf32>
    %821 = arith.mulf %663, %2 : vector<16x16xf32>
    %822 = arith.addf %821, %0 : vector<16x16xf32>
    %cst_206 = arith.constant dense<0.000000e+00> : vector<16xf32>
    %823 = vector.multi_reduction <add>, %822, %cst_206 [1] : vector<16x16xf32> to vector<16xf32>
    %824 = vector.shape_cast %823 : vector<16xf32> to vector<16x1xf32>
    %cst_207 = arith.constant 1.000000e+00 : f32
    %825 = vector.broadcast %cst_207 : f32 to vector<16x1xf32>
    %826 = arith.maximumf %824, %825 : vector<16x1xf32>
    %827 = math.rsqrt %826 : vector<16x1xf32>
    %828 = vector.extract_strided_slice %682 {offsets = [0, 72], sizes = [16, 24], strides = [1, 1]} : vector<32x96xf32> to vector<16x24xf32>
    %829 = vector.broadcast %827 : vector<16x1xf32> to vector<16x24xf32>
    %830 = arith.mulf %828, %829 : vector<16x24xf32>
    %cst_208 = arith.constant dense<0.000000e+00> : vector<16x24xf32>
    %831 = tpu.matmul %822, %830, %cst_208 {dimension_numbers = #tpu.dot_dimension_numbers<[1], [0], [0], [1], [0, 0, 1, 1], [], []>} : vector<16x16xf32>, vector<16x24xf32>, vector<16x24xf32> -> vector<16x24xf32>
    %832 = vector.broadcast %827 : vector<16x1xf32> to vector<16x24xf32>
    %833 = arith.mulf %831, %832 : vector<16x24xf32>
    %834 = vector.extract_strided_slice %683 {offsets = [0, 72], sizes = [1, 24], strides = [1, 1]} : vector<1x96xf32> to vector<1x24xf32>
    %835 = vector.broadcast %834 : vector<1x24xf32> to vector<16x24xf32>
    %836 = arith.addf %833, %835 : vector<16x24xf32>
    %837 = vector.extract_strided_slice %836 {offsets = [0, 0], sizes = [16, 8], strides = [1, 1]} : vector<16x24xf32> to vector<16x8xf32>
    %838 = vector.extract_strided_slice %836 {offsets = [0, 8], sizes = [16, 8], strides = [1, 1]} : vector<16x24xf32> to vector<16x8xf32>
    %839 = vector.broadcast %691 : vector<1x8xf32> to vector<16x8xf32>
    %840 = arith.mulf %838, %839 : vector<16x8xf32>
    %841 = vector.broadcast %698 : vector<1x8xf32> to vector<16x8xf32>
    %842 = arith.mulf %838, %841 : vector<16x8xf32>
    %843 = vector.broadcast %705 : vector<1x8xf32> to vector<16x8xf32>
    %844 = arith.mulf %838, %843 : vector<16x8xf32>
    %845 = vector.broadcast %712 : vector<1x8xf32> to vector<16x8xf32>
    %846 = arith.mulf %838, %845 : vector<16x8xf32>
    %847 = tpu.concatenate %840, %842, %844, %846 in 0 : vector<16x8xf32>, vector<16x8xf32>, vector<16x8xf32>, vector<16x8xf32> -> vector<64x8xf32>
    %cst_209 = arith.constant dense<0.000000e+00> : vector<16x64xf32>
    %848 = tpu.matmul %837, %847, %cst_209 {dimension_numbers = #tpu.dot_dimension_numbers<[1], [1], [0], [0], [0, 0, 1, 0], [], []>} : vector<16x8xf32>, vector<64x8xf32>, vector<16x64xf32> -> vector<16x64xf32>
    %cst_210 = arith.constant 0.353553385 : f32
    %849 = vector.broadcast %cst_210 : f32 to vector<16x64xf32>
    %850 = arith.mulf %848, %849 : vector<16x64xf32>
    %851 = math.tanh %850 : vector<16x64xf32>
    %cst_211 = arith.constant dense<0.000000e+00> : vector<16x16xf32>
    %852 = tpu.matmul %851, %7, %cst_211 {dimension_numbers = #tpu.dot_dimension_numbers<[1], [0], [0], [1], [0, 0, 1, 1], [], []>} : vector<16x64xf32>, vector<64x16xf32>, vector<16x16xf32> -> vector<16x16xf32>
    %853 = tpu.transpose %852, [1, 0] : vector<16x16xf32> -> vector<16x16xf32>
    %854 = arith.addf %852, %853 : vector<16x16xf32>
    %cst_212 = arith.constant 5.000000e-01 : f32
    %855 = vector.broadcast %cst_212 : f32 to vector<16x16xf32>
    %856 = arith.mulf %855, %854 : vector<16x16xf32>
    %857 = tpu.concatenate %748, %784, %820, %856, %651, %655, %659, %663 in 1 : vector<16x16xf32>, vector<16x16xf32>, vector<16x16xf32>, vector<16x16xf32>, vector<16x16xf32>, vector<16x16xf32>, vector<16x16xf32>, vector<16x16xf32> -> vector<16x128xf32>
    %858 = arith.mulf %668, %2 : vector<16x16xf32>
    %859 = arith.addf %858, %0 : vector<16x16xf32>
    %cst_213 = arith.constant dense<0.000000e+00> : vector<16xf32>
    %860 = vector.multi_reduction <add>, %859, %cst_213 [1] : vector<16x16xf32> to vector<16xf32>
    %861 = vector.shape_cast %860 : vector<16xf32> to vector<16x1xf32>
    %cst_214 = arith.constant 1.000000e+00 : f32
    %862 = vector.broadcast %cst_214 : f32 to vector<16x1xf32>
    %863 = arith.maximumf %861, %862 : vector<16x1xf32>
    %864 = math.rsqrt %863 : vector<16x1xf32>
    %865 = vector.extract_strided_slice %682 {offsets = [16, 0], sizes = [16, 24], strides = [1, 1]} : vector<32x96xf32> to vector<16x24xf32>
    %866 = vector.broadcast %864 : vector<16x1xf32> to vector<16x24xf32>
    %867 = arith.mulf %865, %866 : vector<16x24xf32>
    %cst_215 = arith.constant dense<0.000000e+00> : vector<16x24xf32>
    %868 = tpu.matmul %859, %867, %cst_215 {dimension_numbers = #tpu.dot_dimension_numbers<[1], [0], [0], [1], [0, 0, 1, 1], [], []>} : vector<16x16xf32>, vector<16x24xf32>, vector<16x24xf32> -> vector<16x24xf32>
    %869 = vector.broadcast %864 : vector<16x1xf32> to vector<16x24xf32>
    %870 = arith.mulf %868, %869 : vector<16x24xf32>
    %871 = vector.extract_strided_slice %683 {offsets = [0, 0], sizes = [1, 24], strides = [1, 1]} : vector<1x96xf32> to vector<1x24xf32>
    %872 = vector.broadcast %871 : vector<1x24xf32> to vector<16x24xf32>
    %873 = arith.addf %870, %872 : vector<16x24xf32>
    %874 = vector.extract_strided_slice %873 {offsets = [0, 0], sizes = [16, 8], strides = [1, 1]} : vector<16x24xf32> to vector<16x8xf32>
    %875 = vector.extract_strided_slice %873 {offsets = [0, 8], sizes = [16, 8], strides = [1, 1]} : vector<16x24xf32> to vector<16x8xf32>
    %876 = vector.broadcast %691 : vector<1x8xf32> to vector<16x8xf32>
    %877 = arith.mulf %875, %876 : vector<16x8xf32>
    %878 = vector.broadcast %698 : vector<1x8xf32> to vector<16x8xf32>
    %879 = arith.mulf %875, %878 : vector<16x8xf32>
    %880 = vector.broadcast %705 : vector<1x8xf32> to vector<16x8xf32>
    %881 = arith.mulf %875, %880 : vector<16x8xf32>
    %882 = vector.broadcast %712 : vector<1x8xf32> to vector<16x8xf32>
    %883 = arith.mulf %875, %882 : vector<16x8xf32>
    %884 = tpu.concatenate %877, %879, %881, %883 in 0 : vector<16x8xf32>, vector<16x8xf32>, vector<16x8xf32>, vector<16x8xf32> -> vector<64x8xf32>
    %cst_216 = arith.constant dense<0.000000e+00> : vector<16x64xf32>
    %885 = tpu.matmul %874, %884, %cst_216 {dimension_numbers = #tpu.dot_dimension_numbers<[1], [1], [0], [0], [0, 0, 1, 0], [], []>} : vector<16x8xf32>, vector<64x8xf32>, vector<16x64xf32> -> vector<16x64xf32>
    %cst_217 = arith.constant 0.353553385 : f32
    %886 = vector.broadcast %cst_217 : f32 to vector<16x64xf32>
    %887 = arith.mulf %885, %886 : vector<16x64xf32>
    %888 = math.tanh %887 : vector<16x64xf32>
    %cst_218 = arith.constant dense<0.000000e+00> : vector<16x16xf32>
    %889 = tpu.matmul %888, %7, %cst_218 {dimension_numbers = #tpu.dot_dimension_numbers<[1], [0], [0], [1], [0, 0, 1, 1], [], []>} : vector<16x64xf32>, vector<64x16xf32>, vector<16x16xf32> -> vector<16x16xf32>
    %890 = tpu.transpose %889, [1, 0] : vector<16x16xf32> -> vector<16x16xf32>
    %891 = arith.addf %889, %890 : vector<16x16xf32>
    %cst_219 = arith.constant 5.000000e-01 : f32
    %892 = vector.broadcast %cst_219 : f32 to vector<16x16xf32>
    %893 = arith.mulf %892, %891 : vector<16x16xf32>
    %894 = arith.mulf %672, %2 : vector<16x16xf32>
    %895 = arith.addf %894, %0 : vector<16x16xf32>
    %cst_220 = arith.constant dense<0.000000e+00> : vector<16xf32>
    %896 = vector.multi_reduction <add>, %895, %cst_220 [1] : vector<16x16xf32> to vector<16xf32>
    %897 = vector.shape_cast %896 : vector<16xf32> to vector<16x1xf32>
    %cst_221 = arith.constant 1.000000e+00 : f32
    %898 = vector.broadcast %cst_221 : f32 to vector<16x1xf32>
    %899 = arith.maximumf %897, %898 : vector<16x1xf32>
    %900 = math.rsqrt %899 : vector<16x1xf32>
    %901 = vector.extract_strided_slice %682 {offsets = [16, 24], sizes = [16, 24], strides = [1, 1]} : vector<32x96xf32> to vector<16x24xf32>
    %902 = vector.broadcast %900 : vector<16x1xf32> to vector<16x24xf32>
    %903 = arith.mulf %901, %902 : vector<16x24xf32>
    %cst_222 = arith.constant dense<0.000000e+00> : vector<16x24xf32>
    %904 = tpu.matmul %895, %903, %cst_222 {dimension_numbers = #tpu.dot_dimension_numbers<[1], [0], [0], [1], [0, 0, 1, 1], [], []>} : vector<16x16xf32>, vector<16x24xf32>, vector<16x24xf32> -> vector<16x24xf32>
    %905 = vector.broadcast %900 : vector<16x1xf32> to vector<16x24xf32>
    %906 = arith.mulf %904, %905 : vector<16x24xf32>
    %907 = vector.extract_strided_slice %683 {offsets = [0, 24], sizes = [1, 24], strides = [1, 1]} : vector<1x96xf32> to vector<1x24xf32>
    %908 = vector.broadcast %907 : vector<1x24xf32> to vector<16x24xf32>
    %909 = arith.addf %906, %908 : vector<16x24xf32>
    %910 = vector.extract_strided_slice %909 {offsets = [0, 0], sizes = [16, 8], strides = [1, 1]} : vector<16x24xf32> to vector<16x8xf32>
    %911 = vector.extract_strided_slice %909 {offsets = [0, 8], sizes = [16, 8], strides = [1, 1]} : vector<16x24xf32> to vector<16x8xf32>
    %912 = vector.broadcast %691 : vector<1x8xf32> to vector<16x8xf32>
    %913 = arith.mulf %911, %912 : vector<16x8xf32>
    %914 = vector.broadcast %698 : vector<1x8xf32> to vector<16x8xf32>
    %915 = arith.mulf %911, %914 : vector<16x8xf32>
    %916 = vector.broadcast %705 : vector<1x8xf32> to vector<16x8xf32>
    %917 = arith.mulf %911, %916 : vector<16x8xf32>
    %918 = vector.broadcast %712 : vector<1x8xf32> to vector<16x8xf32>
    %919 = arith.mulf %911, %918 : vector<16x8xf32>
    %920 = tpu.concatenate %913, %915, %917, %919 in 0 : vector<16x8xf32>, vector<16x8xf32>, vector<16x8xf32>, vector<16x8xf32> -> vector<64x8xf32>
    %cst_223 = arith.constant dense<0.000000e+00> : vector<16x64xf32>
    %921 = tpu.matmul %910, %920, %cst_223 {dimension_numbers = #tpu.dot_dimension_numbers<[1], [1], [0], [0], [0, 0, 1, 0], [], []>} : vector<16x8xf32>, vector<64x8xf32>, vector<16x64xf32> -> vector<16x64xf32>
    %cst_224 = arith.constant 0.353553385 : f32
    %922 = vector.broadcast %cst_224 : f32 to vector<16x64xf32>
    %923 = arith.mulf %921, %922 : vector<16x64xf32>
    %924 = math.tanh %923 : vector<16x64xf32>
    %cst_225 = arith.constant dense<0.000000e+00> : vector<16x16xf32>
    %925 = tpu.matmul %924, %7, %cst_225 {dimension_numbers = #tpu.dot_dimension_numbers<[1], [0], [0], [1], [0, 0, 1, 1], [], []>} : vector<16x64xf32>, vector<64x16xf32>, vector<16x16xf32> -> vector<16x16xf32>
    %926 = tpu.transpose %925, [1, 0] : vector<16x16xf32> -> vector<16x16xf32>
    %927 = arith.addf %925, %926 : vector<16x16xf32>
    %cst_226 = arith.constant 5.000000e-01 : f32
    %928 = vector.broadcast %cst_226 : f32 to vector<16x16xf32>
    %929 = arith.mulf %928, %927 : vector<16x16xf32>
    %930 = arith.mulf %676, %2 : vector<16x16xf32>
    %931 = arith.addf %930, %0 : vector<16x16xf32>
    %cst_227 = arith.constant dense<0.000000e+00> : vector<16xf32>
    %932 = vector.multi_reduction <add>, %931, %cst_227 [1] : vector<16x16xf32> to vector<16xf32>
    %933 = vector.shape_cast %932 : vector<16xf32> to vector<16x1xf32>
    %cst_228 = arith.constant 1.000000e+00 : f32
    %934 = vector.broadcast %cst_228 : f32 to vector<16x1xf32>
    %935 = arith.maximumf %933, %934 : vector<16x1xf32>
    %936 = math.rsqrt %935 : vector<16x1xf32>
    %937 = vector.extract_strided_slice %682 {offsets = [16, 48], sizes = [16, 24], strides = [1, 1]} : vector<32x96xf32> to vector<16x24xf32>
    %938 = vector.broadcast %936 : vector<16x1xf32> to vector<16x24xf32>
    %939 = arith.mulf %937, %938 : vector<16x24xf32>
    %cst_229 = arith.constant dense<0.000000e+00> : vector<16x24xf32>
    %940 = tpu.matmul %931, %939, %cst_229 {dimension_numbers = #tpu.dot_dimension_numbers<[1], [0], [0], [1], [0, 0, 1, 1], [], []>} : vector<16x16xf32>, vector<16x24xf32>, vector<16x24xf32> -> vector<16x24xf32>
    %941 = vector.broadcast %936 : vector<16x1xf32> to vector<16x24xf32>
    %942 = arith.mulf %940, %941 : vector<16x24xf32>
    %943 = vector.extract_strided_slice %683 {offsets = [0, 48], sizes = [1, 24], strides = [1, 1]} : vector<1x96xf32> to vector<1x24xf32>
    %944 = vector.broadcast %943 : vector<1x24xf32> to vector<16x24xf32>
    %945 = arith.addf %942, %944 : vector<16x24xf32>
    %946 = vector.extract_strided_slice %945 {offsets = [0, 0], sizes = [16, 8], strides = [1, 1]} : vector<16x24xf32> to vector<16x8xf32>
    %947 = vector.extract_strided_slice %945 {offsets = [0, 8], sizes = [16, 8], strides = [1, 1]} : vector<16x24xf32> to vector<16x8xf32>
    %948 = vector.broadcast %691 : vector<1x8xf32> to vector<16x8xf32>
    %949 = arith.mulf %947, %948 : vector<16x8xf32>
    %950 = vector.broadcast %698 : vector<1x8xf32> to vector<16x8xf32>
    %951 = arith.mulf %947, %950 : vector<16x8xf32>
    %952 = vector.broadcast %705 : vector<1x8xf32> to vector<16x8xf32>
    %953 = arith.mulf %947, %952 : vector<16x8xf32>
    %954 = vector.broadcast %712 : vector<1x8xf32> to vector<16x8xf32>
    %955 = arith.mulf %947, %954 : vector<16x8xf32>
    %956 = tpu.concatenate %949, %951, %953, %955 in 0 : vector<16x8xf32>, vector<16x8xf32>, vector<16x8xf32>, vector<16x8xf32> -> vector<64x8xf32>
    %cst_230 = arith.constant dense<0.000000e+00> : vector<16x64xf32>
    %957 = tpu.matmul %946, %956, %cst_230 {dimension_numbers = #tpu.dot_dimension_numbers<[1], [1], [0], [0], [0, 0, 1, 0], [], []>} : vector<16x8xf32>, vector<64x8xf32>, vector<16x64xf32> -> vector<16x64xf32>
    %cst_231 = arith.constant 0.353553385 : f32
    %958 = vector.broadcast %cst_231 : f32 to vector<16x64xf32>
    %959 = arith.mulf %957, %958 : vector<16x64xf32>
    %960 = math.tanh %959 : vector<16x64xf32>
    %cst_232 = arith.constant dense<0.000000e+00> : vector<16x16xf32>
    %961 = tpu.matmul %960, %7, %cst_232 {dimension_numbers = #tpu.dot_dimension_numbers<[1], [0], [0], [1], [0, 0, 1, 1], [], []>} : vector<16x64xf32>, vector<64x16xf32>, vector<16x16xf32> -> vector<16x16xf32>
    %962 = tpu.transpose %961, [1, 0] : vector<16x16xf32> -> vector<16x16xf32>
    %963 = arith.addf %961, %962 : vector<16x16xf32>
    %cst_233 = arith.constant 5.000000e-01 : f32
    %964 = vector.broadcast %cst_233 : f32 to vector<16x16xf32>
    %965 = arith.mulf %964, %963 : vector<16x16xf32>
    %966 = arith.mulf %680, %2 : vector<16x16xf32>
    %967 = arith.addf %966, %0 : vector<16x16xf32>
    %cst_234 = arith.constant dense<0.000000e+00> : vector<16xf32>
    %968 = vector.multi_reduction <add>, %967, %cst_234 [1] : vector<16x16xf32> to vector<16xf32>
    %969 = vector.shape_cast %968 : vector<16xf32> to vector<16x1xf32>
    %cst_235 = arith.constant 1.000000e+00 : f32
    %970 = vector.broadcast %cst_235 : f32 to vector<16x1xf32>
    %971 = arith.maximumf %969, %970 : vector<16x1xf32>
    %972 = math.rsqrt %971 : vector<16x1xf32>
    %973 = vector.extract_strided_slice %682 {offsets = [16, 72], sizes = [16, 24], strides = [1, 1]} : vector<32x96xf32> to vector<16x24xf32>
    %974 = vector.broadcast %972 : vector<16x1xf32> to vector<16x24xf32>
    %975 = arith.mulf %973, %974 : vector<16x24xf32>
    %cst_236 = arith.constant dense<0.000000e+00> : vector<16x24xf32>
    %976 = tpu.matmul %967, %975, %cst_236 {dimension_numbers = #tpu.dot_dimension_numbers<[1], [0], [0], [1], [0, 0, 1, 1], [], []>} : vector<16x16xf32>, vector<16x24xf32>, vector<16x24xf32> -> vector<16x24xf32>
    %977 = vector.broadcast %972 : vector<16x1xf32> to vector<16x24xf32>
    %978 = arith.mulf %976, %977 : vector<16x24xf32>
    %979 = vector.extract_strided_slice %683 {offsets = [0, 72], sizes = [1, 24], strides = [1, 1]} : vector<1x96xf32> to vector<1x24xf32>
    %980 = vector.broadcast %979 : vector<1x24xf32> to vector<16x24xf32>
    %981 = arith.addf %978, %980 : vector<16x24xf32>
    %982 = vector.extract_strided_slice %981 {offsets = [0, 0], sizes = [16, 8], strides = [1, 1]} : vector<16x24xf32> to vector<16x8xf32>
    %983 = vector.extract_strided_slice %981 {offsets = [0, 8], sizes = [16, 8], strides = [1, 1]} : vector<16x24xf32> to vector<16x8xf32>
    %984 = vector.broadcast %691 : vector<1x8xf32> to vector<16x8xf32>
    %985 = arith.mulf %983, %984 : vector<16x8xf32>
    %986 = vector.broadcast %698 : vector<1x8xf32> to vector<16x8xf32>
    %987 = arith.mulf %983, %986 : vector<16x8xf32>
    %988 = vector.broadcast %705 : vector<1x8xf32> to vector<16x8xf32>
    %989 = arith.mulf %983, %988 : vector<16x8xf32>
    %990 = vector.broadcast %712 : vector<1x8xf32> to vector<16x8xf32>
    %991 = arith.mulf %983, %990 : vector<16x8xf32>
    %992 = tpu.concatenate %985, %987, %989, %991 in 0 : vector<16x8xf32>, vector<16x8xf32>, vector<16x8xf32>, vector<16x8xf32> -> vector<64x8xf32>
    %cst_237 = arith.constant dense<0.000000e+00> : vector<16x64xf32>
    %993 = tpu.matmul %982, %992, %cst_237 {dimension_numbers = #tpu.dot_dimension_numbers<[1], [1], [0], [0], [0, 0, 1, 0], [], []>} : vector<16x8xf32>, vector<64x8xf32>, vector<16x64xf32> -> vector<16x64xf32>
    %cst_238 = arith.constant 0.353553385 : f32
    %994 = vector.broadcast %cst_238 : f32 to vector<16x64xf32>
    %995 = arith.mulf %993, %994 : vector<16x64xf32>
    %996 = math.tanh %995 : vector<16x64xf32>
    %cst_239 = arith.constant dense<0.000000e+00> : vector<16x16xf32>
    %997 = tpu.matmul %996, %7, %cst_239 {dimension_numbers = #tpu.dot_dimension_numbers<[1], [0], [0], [1], [0, 0, 1, 1], [], []>} : vector<16x64xf32>, vector<64x16xf32>, vector<16x16xf32> -> vector<16x16xf32>
    %998 = tpu.transpose %997, [1, 0] : vector<16x16xf32> -> vector<16x16xf32>
    %999 = arith.addf %997, %998 : vector<16x16xf32>
    %cst_240 = arith.constant 5.000000e-01 : f32
    %1000 = vector.broadcast %cst_240 : f32 to vector<16x16xf32>
    %1001 = arith.mulf %1000, %999 : vector<16x16xf32>
    %1002 = tpu.concatenate %893, %929, %965, %1001, %668, %672, %676, %680 in 1 : vector<16x16xf32>, vector<16x16xf32>, vector<16x16xf32>, vector<16x16xf32>, vector<16x16xf32>, vector<16x16xf32>, vector<16x16xf32>, vector<16x16xf32> -> vector<16x128xf32>
    %1003 = tpu.concatenate %857, %1002 in 0 : vector<16x128xf32>, vector<16x128xf32> -> vector<32x128xf32>
    %c0_241 = arith.constant 0 : index
    %c0_242 = arith.constant 0 : index
    %1004 = vector.load %arg32[%c0_241, %c0_242] : memref<128x128xf32, #tpu.memory_space<vmem>>, vector<128x128xf32>
    %cst_243 = arith.constant dense<0.000000e+00> : vector<32x128xf32>
    %1005 = tpu.matmul %1003, %1004, %cst_243 {dimension_numbers = #tpu.dot_dimension_numbers<[1], [0], [0], [1], [0, 0, 1, 1], [], []>} : vector<32x128xf32>, vector<128x128xf32>, vector<32x128xf32> -> vector<32x128xf32>
    %c0_244 = arith.constant 0 : index
    %c0_245 = arith.constant 0 : index
    %1006 = vector.load %arg34[%c0_244, %c0_245] : memref<1x128xf32, #tpu.memory_space<vmem>>, vector<1x128xf32>
    %1007 = vector.broadcast %1006 : vector<1x128xf32> to vector<32x128xf32>
    %1008 = arith.addf %1005, %1007 : vector<32x128xf32>
    %cst_246 = arith.constant 0.000000e+00 : f32
    %1009 = vector.broadcast %cst_246 : f32 to vector<32x128xf32>
    %1010 = arith.cmpf ogt, %1008, %1009 : vector<32x128xf32>
    %cst_247 = arith.constant 0.000000e+00 : f32
    %1011 = vector.broadcast %cst_247 : f32 to vector<32x128xf32>
    %1012 = arith.minimumf %1008, %1011 : vector<32x128xf32>
    %1013 = math.exp %1012 : vector<32x128xf32>
    %cst_248 = arith.constant 1.000000e+00 : f32
    %1014 = vector.broadcast %cst_248 : f32 to vector<32x128xf32>
    %1015 = arith.subf %1013, %1014 : vector<32x128xf32>
    %1016 = arith.select %1010, %1008, %1015 : vector<32x128xi1>, vector<32x128xf32>
    %c0_249 = arith.constant 0 : index
    %c0_250 = arith.constant 0 : index
    %1017 = vector.load %arg33[%c0_249, %c0_250] : memref<128x32xf32, #tpu.memory_space<vmem>>, vector<128x32xf32>
    %cst_251 = arith.constant dense<0.000000e+00> : vector<32x32xf32>
    %1018 = tpu.matmul %1016, %1017, %cst_251 {dimension_numbers = #tpu.dot_dimension_numbers<[1], [0], [0], [1], [0, 0, 1, 1], [], []>} : vector<32x128xf32>, vector<128x32xf32>, vector<32x32xf32> -> vector<32x32xf32>
    %c0_252 = arith.constant 0 : index
    %c0_253 = arith.constant 0 : index
    %1019 = vector.load %arg35[%c0_252, %c0_253] : memref<1x32xf32, #tpu.memory_space<vmem>>, vector<1x32xf32>
    %1020 = vector.broadcast %1019 : vector<1x32xf32> to vector<32x32xf32>
    %1021 = arith.addf %1018, %1020 : vector<32x32xf32>
    %1022 = vector.extract_strided_slice %4 {offsets = [0, 0], sizes = [16, 16], strides = [1, 1]} : vector<32x16xf32> to vector<16x16xf32>
    %1023 = vector.extract_strided_slice %1021 {offsets = [0, 0], sizes = [16, 16], strides = [1, 1]} : vector<32x32xf32> to vector<16x16xf32>
    %1024 = tpu.transpose %1023, [1, 0] : vector<16x16xf32> -> vector<16x16xf32>
    %1025 = arith.addf %1023, %1024 : vector<16x16xf32>
    %1026 = arith.mulf %1025, %1022 : vector<16x16xf32>
    %1027 = vector.extract_strided_slice %1021 {offsets = [0, 16], sizes = [16, 16], strides = [1, 1]} : vector<32x32xf32> to vector<16x16xf32>
    %1028 = tpu.transpose %1027, [1, 0] : vector<16x16xf32> -> vector<16x16xf32>
    %1029 = arith.addf %1027, %1028 : vector<16x16xf32>
    %1030 = arith.mulf %1029, %1022 : vector<16x16xf32>
    %1031 = vector.extract_strided_slice %4 {offsets = [16, 0], sizes = [16, 16], strides = [1, 1]} : vector<32x16xf32> to vector<16x16xf32>
    %1032 = vector.extract_strided_slice %1021 {offsets = [16, 0], sizes = [16, 16], strides = [1, 1]} : vector<32x32xf32> to vector<16x16xf32>
    %1033 = tpu.transpose %1032, [1, 0] : vector<16x16xf32> -> vector<16x16xf32>
    %1034 = arith.addf %1032, %1033 : vector<16x16xf32>
    %1035 = arith.mulf %1034, %1031 : vector<16x16xf32>
    %1036 = vector.extract_strided_slice %1021 {offsets = [16, 16], sizes = [16, 16], strides = [1, 1]} : vector<32x32xf32> to vector<16x16xf32>
    %1037 = tpu.transpose %1036, [1, 0] : vector<16x16xf32> -> vector<16x16xf32>
    %1038 = arith.addf %1036, %1037 : vector<16x16xf32>
    %1039 = arith.mulf %1038, %1031 : vector<16x16xf32>
    %1040 = tpu.concatenate %9, %10, %244, %248, %252, %256, %651, %655, %659, %663, %1026, %1030 in 1 : vector<16x16xf32>, vector<16x16xf32>, vector<16x16xf32>, vector<16x16xf32>, vector<16x16xf32>, vector<16x16xf32>, vector<16x16xf32>, vector<16x16xf32>, vector<16x16xf32>, vector<16x16xf32>, vector<16x16xf32>, vector<16x16xf32> -> vector<16x192xf32>
    %1041 = tpu.concatenate %12, %13, %261, %265, %269, %273, %668, %672, %676, %680, %1035, %1039 in 1 : vector<16x16xf32>, vector<16x16xf32>, vector<16x16xf32>, vector<16x16xf32>, vector<16x16xf32>, vector<16x16xf32>, vector<16x16xf32>, vector<16x16xf32>, vector<16x16xf32>, vector<16x16xf32>, vector<16x16xf32>, vector<16x16xf32> -> vector<16x192xf32>
    %1042 = tpu.concatenate %1040, %1041 in 0 : vector<16x192xf32>, vector<16x192xf32> -> vector<32x192xf32>
    %c0_254 = arith.constant 0 : index
    %c0_255 = arith.constant 0 : index
    %1043 = vector.load %arg36[%c0_254, %c0_255] : memref<192x384xf32, #tpu.memory_space<vmem>>, vector<192x384xf32>
    %cst_256 = arith.constant dense<0.000000e+00> : vector<32x384xf32>
    %1044 = tpu.matmul %1042, %1043, %cst_256 {dimension_numbers = #tpu.dot_dimension_numbers<[1], [0], [0], [1], [0, 0, 1, 1], [], []>} : vector<32x192xf32>, vector<192x384xf32>, vector<32x384xf32> -> vector<32x384xf32>
    %c0_257 = arith.constant 0 : index
    %c0_258 = arith.constant 0 : index
    %1045 = vector.load %arg39[%c0_257, %c0_258] : memref<1x384xf32, #tpu.memory_space<vmem>>, vector<1x384xf32>
    %1046 = vector.broadcast %1045 : vector<1x384xf32> to vector<32x384xf32>
    %1047 = arith.addf %1044, %1046 : vector<32x384xf32>
    %cst_259 = arith.constant 0.000000e+00 : f32
    %1048 = vector.broadcast %cst_259 : f32 to vector<32x384xf32>
    %1049 = arith.cmpf ogt, %1047, %1048 : vector<32x384xf32>
    %cst_260 = arith.constant 0.000000e+00 : f32
    %1050 = vector.broadcast %cst_260 : f32 to vector<32x384xf32>
    %1051 = arith.minimumf %1047, %1050 : vector<32x384xf32>
    %1052 = math.exp %1051 : vector<32x384xf32>
    %cst_261 = arith.constant 1.000000e+00 : f32
    %1053 = vector.broadcast %cst_261 : f32 to vector<32x384xf32>
    %1054 = arith.subf %1052, %1053 : vector<32x384xf32>
    %1055 = arith.select %1049, %1047, %1054 : vector<32x384xi1>, vector<32x384xf32>
    %c0_262 = arith.constant 0 : index
    %c0_263 = arith.constant 0 : index
    %1056 = vector.load %arg37[%c0_262, %c0_263] : memref<384x384xf32, #tpu.memory_space<vmem>>, vector<384x384xf32>
    %cst_264 = arith.constant dense<0.000000e+00> : vector<32x384xf32>
    %1057 = tpu.matmul %1055, %1056, %cst_264 {dimension_numbers = #tpu.dot_dimension_numbers<[1], [0], [0], [1], [0, 0, 1, 1], [], []>} : vector<32x384xf32>, vector<384x384xf32>, vector<32x384xf32> -> vector<32x384xf32>
    %c0_265 = arith.constant 0 : index
    %c0_266 = arith.constant 0 : index
    %1058 = vector.load %arg40[%c0_265, %c0_266] : memref<1x384xf32, #tpu.memory_space<vmem>>, vector<1x384xf32>
    %1059 = vector.broadcast %1058 : vector<1x384xf32> to vector<32x384xf32>
    %1060 = arith.addf %1057, %1059 : vector<32x384xf32>
    %cst_267 = arith.constant 0.000000e+00 : f32
    %1061 = vector.broadcast %cst_267 : f32 to vector<32x384xf32>
    %1062 = arith.cmpf ogt, %1060, %1061 : vector<32x384xf32>
    %cst_268 = arith.constant 0.000000e+00 : f32
    %1063 = vector.broadcast %cst_268 : f32 to vector<32x384xf32>
    %1064 = arith.minimumf %1060, %1063 : vector<32x384xf32>
    %1065 = math.exp %1064 : vector<32x384xf32>
    %cst_269 = arith.constant 1.000000e+00 : f32
    %1066 = vector.broadcast %cst_269 : f32 to vector<32x384xf32>
    %1067 = arith.subf %1065, %1066 : vector<32x384xf32>
    %1068 = arith.select %1062, %1060, %1067 : vector<32x384xi1>, vector<32x384xf32>
    %c0_270 = arith.constant 0 : index
    %c0_271 = arith.constant 0 : index
    %1069 = vector.load %arg38[%c0_270, %c0_271] : memref<384x16xf32, #tpu.memory_space<vmem>>, vector<384x16xf32>
    %cst_272 = arith.constant dense<0.000000e+00> : vector<32x16xf32>
    %1070 = tpu.matmul %1068, %1069, %cst_272 {dimension_numbers = #tpu.dot_dimension_numbers<[1], [0], [0], [1], [0, 0, 1, 1], [], []>} : vector<32x384xf32>, vector<384x16xf32>, vector<32x16xf32> -> vector<32x16xf32>
    %c0_273 = arith.constant 0 : index
    %c0_274 = arith.constant 0 : index
    %1071 = vector.load %arg41[%c0_273, %c0_274] : memref<1x16xf32, #tpu.memory_space<vmem>>, vector<1x16xf32>
    %1072 = vector.broadcast %1071 : vector<1x16xf32> to vector<32x16xf32>
    %1073 = arith.addf %1070, %1072 : vector<32x16xf32>
    %c0_275 = arith.constant 0 : index
    %c0_276 = arith.constant 0 : index
    %1074 = vector.load %arg5[%c0_275, %c0_276] : memref<32x16xf32, #tpu.memory_space<vmem>>, vector<32x16xf32>
    %1075 = arith.mulf %1073, %1074 : vector<32x16xf32>
    %c0_277 = arith.constant 0 : index
    %c0_278 = arith.constant 0 : index
    %1076 = vector.load %arg42[%c0_277, %c0_278] : memref<32x16xf32, #tpu.memory_space<vmem>>, vector<32x16xf32>
    tpu.vector_store %arg42[%c0_277, %c0_278], %1075 {strides = array<i32>} : memref<32x16xf32, #tpu.memory_space<vmem>>, vector<32x16xf32>,
    return
  }
}

</mosaic_0001>

<llo_original>
// kernel: mul.6
$region0: #{mul.6}
  %s0 = inlined_call_operand.vmem [shape: f32[2,16], index: 0, kind: input, shape index: {}]
  %s1 = inlined_call_operand.vmem [shape: f32[32], index: 1, kind: output, shape index: {}]
  $region1: #{mul.6} parent=0
    #allocation0 [shape = 'u8[4096]{0}', space=vmem, size = 0x1000, scoped, tag = 'scoped mem for output reshape']
    #allocation1 [shape = 'u8[4096]{0}', space=vmem, size = 0x1000, scoped, tag = 'scoped mem for input reshape']
    %s3 = ssub.s32 4, 1
    %v4 = vld [vmem:[%s0] sm:%s3]
    %5 = vst [vmem:[#allocation1] sm:%s3] %v4
    %v6 = vld [vmem:[#allocation1] sm:$0x1]
    %vm7 = vcmask 130048
    %8 = vst.msk [vmem:[#allocation0] sm:$0x1] %vm7, %v6
    %s9 = scalar_lea.vmem [#allocation1], 1
    %v10 = vld [vmem:[%s9] sm:$0x1]
    %11 = vrot.lane.b32.xlu0 %v10, 16
    %v12 = vpop.permute.xlu0 %11
    %vm13 = vcmask 261248
    %14 = vst.msk [vmem:[#allocation0] sm:$0x1] %vm13, %v12
    %s16 = ssub.s32 2, 1
    %v17 = vld [vmem:[#allocation0] sm:%s16]
    %s19 = ssub.s32 2, 1
    %20 = vst [vmem:[%s1] sm:%s19] %v17

// kernel: _lambda_.1
$region0: #{_lambda_.1}
  #allocation0 [shape = 'u32[]', space=smem, size = 0x4, offset = 0x4, fixed_abs, tag = 'smem constant byte address 0x4 - core index']
  #allocation1 [shape = 'u32[72,128]{1,0:T(1,128)}', space=vmem, size = 0x9000, scoped, tag = 'internal scratch']
  %s0 = inlined_call_operand.smem [shape: u32[43], index: -1, kind: input, shape index: {}]
  %s1 = sld [smem:[%s0]]
  %s2 = scalar_lea.smem %s0, 1
  %s3 = sld [smem:[%s2]]
  %s4 = scalar_lea.smem %s0, 2
  %s5 = sld [smem:[%s4]]
  %s6 = scalar_lea.smem %s0, 3
  %s7 = sld [smem:[%s6]]
  %s8 = scalar_lea.smem %s0, 4
  %s9 = sld [smem:[%s8]]
  %s10 = scalar_lea.smem %s0, 5
  %s11 = sld [smem:[%s10]]
  %s12 = scalar_lea.smem %s0, 6
  %s13 = sld [smem:[%s12]]
  %s14 = scalar_lea.smem %s0, 7
  %s15 = sld [smem:[%s14]]
  %s16 = scalar_lea.smem %s0, 8
  %s17 = sld [smem:[%s16]]
  %s18 = scalar_lea.smem %s0, 9
  %s19 = sld [smem:[%s18]]
  %s20 = scalar_lea.smem %s0, 10
  %s21 = sld [smem:[%s20]]
  %s22 = scalar_lea.smem %s0, 11
  %s23 = sld [smem:[%s22]]
  %s24 = scalar_lea.smem %s0, 12
  %s25 = sld [smem:[%s24]]
  %s26 = scalar_lea.smem %s0, 13
  %s27 = sld [smem:[%s26]]
  %s28 = scalar_lea.smem %s0, 14
  %s29 = sld [smem:[%s28]]
  %s30 = scalar_lea.smem %s0, 15
  %s31 = sld [smem:[%s30]]
  %s32 = scalar_lea.smem %s0, 16
  %s33 = sld [smem:[%s32]]
  %s34 = scalar_lea.smem %s0, 17
  %s35 = sld [smem:[%s34]]
  %s36 = scalar_lea.smem %s0, 18
  %s37 = sld [smem:[%s36]]
  %s38 = scalar_lea.smem %s0, 19
  %s39 = sld [smem:[%s38]]
  %s40 = scalar_lea.smem %s0, 20
  %s41 = sld [smem:[%s40]]
  %s42 = scalar_lea.smem %s0, 21
  %s43 = sld [smem:[%s42]]
  %s44 = scalar_lea.smem %s0, 22
  %s45 = sld [smem:[%s44]]
  %s46 = scalar_lea.smem %s0, 23
  %s47 = sld [smem:[%s46]]
  %s48 = scalar_lea.smem %s0, 24
  %s49 = sld [smem:[%s48]]
  %s50 = scalar_lea.smem %s0, 25
  %s51 = sld [smem:[%s50]]
  %s52 = scalar_lea.smem %s0, 26
  %s53 = sld [smem:[%s52]]
  %s54 = scalar_lea.smem %s0, 27
  %s55 = sld [smem:[%s54]]
  %s56 = scalar_lea.smem %s0, 28
  %s57 = sld [smem:[%s56]]
  %s58 = scalar_lea.smem %s0, 29
  %s59 = sld [smem:[%s58]]
  %s60 = scalar_lea.smem %s0, 30
  %s61 = sld [smem:[%s60]]
  %s62 = scalar_lea.smem %s0, 31
  %s63 = sld [smem:[%s62]]
  %s64 = scalar_lea.smem %s0, 32
  %s65 = sld [smem:[%s64]]
  %s66 = scalar_lea.smem %s0, 33
  %s67 = sld [smem:[%s66]]
  %s68 = scalar_lea.smem %s0, 34
  %s69 = sld [smem:[%s68]]
  %s70 = scalar_lea.smem %s0, 35
  %s71 = sld [smem:[%s70]]
  %s72 = scalar_lea.smem %s0, 36
  %s73 = sld [smem:[%s72]]
  %s74 = scalar_lea.smem %s0, 37
  %s75 = sld [smem:[%s74]]
  %s76 = scalar_lea.smem %s0, 38
  %s77 = sld [smem:[%s76]]
  %s78 = scalar_lea.smem %s0, 39
  %s79 = sld [smem:[%s78]]
  %s80 = scalar_lea.smem %s0, 40
  %s81 = sld [smem:[%s80]]
  %s82 = scalar_lea.smem %s0, 41
  %s83 = sld [smem:[%s82]]
  %s84 = scalar_lea.smem %s0, 42
  %s85 = sld [smem:[%s84]]
  %s86 = sld [smem:[#allocation0]]
  $region186: #{_lambda_.1} parent=0
    _
  %s88 = ssub.s32 1, %s86
  %s89 = scalar_select 0, %s88, %s86
  $region1: #{_lambda_.1} parent=0
    #allocation2 [shape = 'u8[294912]{0}', space=vmem, size = 0x48000, scoped, tag = 'input window, operand 36, single buffered']
    #allocation3 [shape = 's32[1]{0}', space=sflag, size = 0x4, scoped, tag = 'scoped memory for _lambda_.1']
    #allocation4 [shape = 's32[1]{0}', space=sflag, size = 0x4, scoped, tag = 'scoped memory for _lambda_.1']
    #allocation5 [shape = 'u8[589824]{0}', space=vmem, size = 0x90000, scoped, tag = 'input window, operand 37, single buffered']
    #allocation6 [shape = 's32[1]{0}', space=sflag, size = 0x4, scoped, tag = 'scoped memory for _lambda_.1']
    #allocation7 [shape = 'u8[16384]{0}', space=vmem, size = 0x4000, scoped, tag = 'output window, operand 0, single buffered']
    %90 = vsyncpa [#allocation3], 0
    %91 = vsyncpa [#allocation6], 0
    %92 = vsyncpa [#allocation4], 0
    // Predicated region
    $region2: #{_lambda_.1} parent=1 // pred_check
      _
    $region3: #{_lambda_.1} parent=1 // pred_check_branch
      %94 = sbr.rel (0) target = $region5
    $region4: #{_lambda_.1} parent=1 // pred_region
      _
    $region5: #{_lambda_.1} parent=1 // pred_fallthru
      _
    // Predicated region
    $region6: #{_lambda_.1} parent=1 // pred_check
      _
    $region7: #{_lambda_.1} parent=1 // pred_check_branch
      %96 = sbr.rel (0) target = $region9
    $region8: #{_lambda_.1} parent=1 // pred_region
      _
    $region9: #{_lambda_.1} parent=1 // pred_fallthru
      _
    // Predicated region
    $region10: #{_lambda_.1} parent=1 // pred_check
      _
    $region11: #{_lambda_.1} parent=1 // pred_check_branch
      %98 = sbr.rel (0) target = $region13
    $region12: #{_lambda_.1} parent=1 // pred_region
      _
    $region13: #{_lambda_.1} parent=1 // pred_fallthru
      _
    // Predicated region
    $region14: #{_lambda_.1} parent=1 // pred_check
      _
    $region15: #{_lambda_.1} parent=1 // pred_check_branch
      %100 = sbr.rel (0) target = $region17
    $region16: #{_lambda_.1} parent=1 // pred_region
      _
    $region17: #{_lambda_.1} parent=1 // pred_fallthru
      _
    // Predicated region
    $region18: #{_lambda_.1} parent=1 // pred_check
      _
    $region19: #{_lambda_.1} parent=1 // pred_check_branch
      %102 = sbr.rel (0) target = $region21
    $region20: #{_lambda_.1} parent=1 // pred_region
      _
    $region21: #{_lambda_.1} parent=1 // pred_fallthru
      _
    // Predicated region
    $region22: #{_lambda_.1} parent=1 // pred_check
      _
    $region23: #{_lambda_.1} parent=1 // pred_check_branch
      %104 = sbr.rel (0) target = $region25
    $region24: #{_lambda_.1} parent=1 // pred_region
      _
    $region25: #{_lambda_.1} parent=1 // pred_fallthru
      _
    // Predicated region
    $region26: #{_lambda_.1} parent=1 // pred_check
      _
    $region27: #{_lambda_.1} parent=1 // pred_check_branch
      %106 = sbr.rel (0) target = $region29
    $region28: #{_lambda_.1} parent=1 // pred_region
      _
    $region29: #{_lambda_.1} parent=1 // pred_fallthru
      _
    // Predicated region
    $region30: #{_lambda_.1} parent=1 // pred_check
      _
    $region31: #{_lambda_.1} parent=1 // pred_check_branch
      %108 = sbr.rel (0) target = $region33
    $region32: #{_lambda_.1} parent=1 // pred_region
      _
    $region33: #{_lambda_.1} parent=1 // pred_fallthru
      _
    // Predicated region
    $region34: #{_lambda_.1} parent=1 // pred_check
      _
    $region35: #{_lambda_.1} parent=1 // pred_check_branch
      %110 = sbr.rel (0) target = $region37
    $region36: #{_lambda_.1} parent=1 // pred_region
      _
    $region37: #{_lambda_.1} parent=1 // pred_fallthru
      _
    // Predicated region
    $region38: #{_lambda_.1} parent=1 // pred_check
      _
    $region39: #{_lambda_.1} parent=1 // pred_check_branch
      %112 = sbr.rel (0) target = $region41
    $region40: #{_lambda_.1} parent=1 // pred_region
      _
    $region41: #{_lambda_.1} parent=1 // pred_fallthru
      _
    // Predicated region
    $region42: #{_lambda_.1} parent=1 // pred_check
      _
    $region43: #{_lambda_.1} parent=1 // pred_check_branch
      %114 = sbr.rel (0) target = $region45
    $region44: #{_lambda_.1} parent=1 // pred_region
      _
    $region45: #{_lambda_.1} parent=1 // pred_fallthru
      _
    // Predicated region
    $region46: #{_lambda_.1} parent=1 // pred_check
      _
    $region47: #{_lambda_.1} parent=1 // pred_check_branch
      %116 = sbr.rel (0) target = $region49
    $region48: #{_lambda_.1} parent=1 // pred_region
      _
    $region49: #{_lambda_.1} parent=1 // pred_fallthru
      _
    // Predicated region
    $region50: #{_lambda_.1} parent=1 // pred_check
      _
    $region51: #{_lambda_.1} parent=1 // pred_check_branch
      %118 = sbr.rel (0) target = $region53
    $region52: #{_lambda_.1} parent=1 // pred_region
      _
    $region53: #{_lambda_.1} parent=1 // pred_fallthru
      _
    // Predicated region
    $region54: #{_lambda_.1} parent=1 // pred_check
      _
    $region55: #{_lambda_.1} parent=1 // pred_check_branch
      %120 = sbr.rel (0) target = $region57
    $region56: #{_lambda_.1} parent=1 // pred_region
      _
    $region57: #{_lambda_.1} parent=1 // pred_fallthru
      _
    // Predicated region
    $region58: #{_lambda_.1} parent=1 // pred_check
      _
    $region59: #{_lambda_.1} parent=1 // pred_check_branch
      %122 = sbr.rel (0) target = $region61
    $region60: #{_lambda_.1} parent=1 // pred_region
      _
    $region61: #{_lambda_.1} parent=1 // pred_fallthru
      _
    // Predicated region
    $region62: #{_lambda_.1} parent=1 // pred_check
      _
    $region63: #{_lambda_.1} parent=1 // pred_check_branch
      %124 = sbr.rel (0) target = $region65
    $region64: #{_lambda_.1} parent=1 // pred_region
      _
    $region65: #{_lambda_.1} parent=1 // pred_fallthru
      _
    // Predicated region
    $region66: #{_lambda_.1} parent=1 // pred_check
      _
    $region67: #{_lambda_.1} parent=1 // pred_check_branch
      %126 = sbr.rel (0) target = $region69
    $region68: #{_lambda_.1} parent=1 // pred_region
      _
    $region69: #{_lambda_.1} parent=1 // pred_fallthru
      _
    // Predicated region
    $region70: #{_lambda_.1} parent=1 // pred_check
      _
    $region71: #{_lambda_.1} parent=1 // pred_check_branch
      %128 = sbr.rel (0) target = $region73
    $region72: #{_lambda_.1} parent=1 // pred_region
      _
    $region73: #{_lambda_.1} parent=1 // pred_fallthru
      _
    // Predicated region
    $region74: #{_lambda_.1} parent=1 // pred_check
      _
    $region75: #{_lambda_.1} parent=1 // pred_check_branch
      %130 = sbr.rel (0) target = $region77
    $region76: #{_lambda_.1} parent=1 // pred_region
      _
    $region77: #{_lambda_.1} parent=1 // pred_fallthru
      _
    // Predicated region
    $region78: #{_lambda_.1} parent=1 // pred_check
      _
    $region79: #{_lambda_.1} parent=1 // pred_check_branch
      %132 = sbr.rel (0) target = $region81
    $region80: #{_lambda_.1} parent=1 // pred_region
      _
    $region81: #{_lambda_.1} parent=1 // pred_fallthru
      _
    // Predicated region
    $region82: #{_lambda_.1} parent=1 // pred_check
      _
    $region83: #{_lambda_.1} parent=1 // pred_check_branch
      %134 = sbr.rel (0) target = $region85
    $region84: #{_lambda_.1} parent=1 // pred_region
      _
    $region85: #{_lambda_.1} parent=1 // pred_fallthru
      _
    // Predicated region
    $region86: #{_lambda_.1} parent=1 // pred_check
      _
    $region87: #{_lambda_.1} parent=1 // pred_check_branch
      %136 = sbr.rel (0) target = $region89
    $region88: #{_lambda_.1} parent=1 // pred_region
      _
    $region89: #{_lambda_.1} parent=1 // pred_fallthru
      _
    // Predicated region
    $region90: #{_lambda_.1} parent=1 // pred_check
      _
    $region91: #{_lambda_.1} parent=1 // pred_check_branch
      %138 = sbr.rel (0) target = $region93
    $region92: #{_lambda_.1} parent=1 // pred_region
      _
    $region93: #{_lambda_.1} parent=1 // pred_fallthru
      _
    // Predicated region
    $region94: #{_lambda_.1} parent=1 // pred_check
      _
    $region95: #{_lambda_.1} parent=1 // pred_check_branch
      %140 = sbr.rel (0) target = $region97
    $region96: #{_lambda_.1} parent=1 // pred_region
      _
    $region97: #{_lambda_.1} parent=1 // pred_fallthru
      _
    // Predicated region
    $region98: #{_lambda_.1} parent=1 // pred_check
      _
    $region99: #{_lambda_.1} parent=1 // pred_check_branch
      %142 = sbr.rel (0) target = $region101
    $region100: #{_lambda_.1} parent=1 // pred_region
      _
    $region101: #{_lambda_.1} parent=1 // pred_fallthru
      _
    // Predicated region
    $region102: #{_lambda_.1} parent=1 // pred_check
      _
    $region103: #{_lambda_.1} parent=1 // pred_check_branch
      %144 = sbr.rel (0) target = $region105
    $region104: #{_lambda_.1} parent=1 // pred_region
      _
    $region105: #{_lambda_.1} parent=1 // pred_fallthru
      _
    // Predicated region
    $region106: #{_lambda_.1} parent=1 // pred_check
      _
    $region107: #{_lambda_.1} parent=1 // pred_check_branch
      %146 = sbr.rel (0) target = $region109
    $region108: #{_lambda_.1} parent=1 // pred_region
      _
    $region109: #{_lambda_.1} parent=1 // pred_fallthru
      _
    // Predicated region
    $region110: #{_lambda_.1} parent=1 // pred_check
      _
    $region111: #{_lambda_.1} parent=1 // pred_check_branch
      %148 = sbr.rel (0) target = $region113
    $region112: #{_lambda_.1} parent=1 // pred_region
      _
    $region113: #{_lambda_.1} parent=1 // pred_fallthru
      _
    // Predicated region
    $region114: #{_lambda_.1} parent=1 // pred_check
      _
    $region115: #{_lambda_.1} parent=1 // pred_check_branch
      %150 = sbr.rel (0) target = $region117
    $region116: #{_lambda_.1} parent=1 // pred_region
      _
    $region117: #{_lambda_.1} parent=1 // pred_fallthru
      _
    // Predicated region
    $region118: #{_lambda_.1} parent=1 // pred_check
      _
    $region119: #{_lambda_.1} parent=1 // pred_check_branch
      %152 = sbr.rel (0) target = $region121
    $region120: #{_lambda_.1} parent=1 // pred_region
      _
    $region121: #{_lambda_.1} parent=1 // pred_fallthru
      _
    // Predicated region
    $region122: #{_lambda_.1} parent=1 // pred_check
      _
    $region123: #{_lambda_.1} parent=1 // pred_check_branch
      %154 = sbr.rel (0) target = $region125
    $region124: #{_lambda_.1} parent=1 // pred_region
      _
    $region125: #{_lambda_.1} parent=1 // pred_fallthru
      _
    // Predicated region
    $region126: #{_lambda_.1} parent=1 // pred_check
      _
    $region127: #{_lambda_.1} parent=1 // pred_check_branch
      %156 = sbr.rel (0) target = $region129
    $region128: #{_lambda_.1} parent=1 // pred_region
      _
    $region129: #{_lambda_.1} parent=1 // pred_fallthru
      _
    // Predicated region
    $region130: #{_lambda_.1} parent=1 // pred_check
      _
    $region131: #{_lambda_.1} parent=1 // pred_check_branch
      %158 = sbr.rel (0) target = $region133
    $region132: #{_lambda_.1} parent=1 // pred_region
      _
    $region133: #{_lambda_.1} parent=1 // pred_fallthru
      _
    // Predicated region
    $region134: #{_lambda_.1} parent=1 // pred_check
      _
    $region135: #{_lambda_.1} parent=1 // pred_check_branch
      %160 = sbr.rel (0) target = $region137
    $region136: #{_lambda_.1} parent=1 // pred_region
      _
    $region137: #{_lambda_.1} parent=1 // pred_fallthru
      _
    // Predicated region
    $region138: #{_lambda_.1} parent=1 // pred_check
      _
    $region139: #{_lambda_.1} parent=1 // pred_check_branch
      %162 = sbr.rel (0) target = $region141
    $region140: #{_lambda_.1} parent=1 // pred_region
      _
    $region141: #{_lambda_.1} parent=1 // pred_fallthru
      _
    // Predicated region
    $region142: #{_lambda_.1} parent=1 // pred_check
      _
    $region143: #{_lambda_.1} parent=1 // pred_check_branch
      %164 = sbr.rel (0) target = $region145
    $region144: #{_lambda_.1} parent=1 // pred_region
      _
    $region145: #{_lambda_.1} parent=1 // pred_fallthru
      _
    // Predicated region
    $region146: #{_lambda_.1} parent=1 // pred_check
      _
    $region147: #{_lambda_.1} parent=1 // pred_check_branch
      %166 = sbr.rel (0) target = $region149
    $region148: #{_lambda_.1} parent=1 // pred_region
      %168 = vsyncadd [#allocation3], 0
      %s169 = sshll.u32 %s73, 4
      %s170 = int_to_ptr.hbm [resolvable:$true] %s169
      %s171 = sshll.u32 [#allocation2], 4
      %s172 = int_to_ptr.vmem [resolvable:$true] %s171
      %177 = dma.hbm_to_vmem [thread:$0]  %s170, 9216, %s172, [#allocation3], 384, 384, 24
    $region149: #{_lambda_.1} parent=1 // pred_fallthru
      _
    // Predicated region
    $region150: #{_lambda_.1} parent=1 // pred_check
      _
    $region151: #{_lambda_.1} parent=1 // pred_check_branch
      %179 = sbr.rel (0) target = $region153
    $region152: #{_lambda_.1} parent=1 // pred_region
      %181 = vsyncadd [#allocation6], 0
      %s182 = sshll.u32 %s75, 4
      %s183 = int_to_ptr.hbm [resolvable:$true] %s182
      %s184 = sshll.u32 [#allocation5], 4
      %s185 = int_to_ptr.vmem [resolvable:$true] %s184
      %190 = dma.hbm_to_vmem [thread:$0]  %s183, 18432, %s185, [#allocation6], 384, 384, 24
    $region153: #{_lambda_.1} parent=1 // pred_fallthru
      _
    // Predicated region
    $region154: #{_lambda_.1} parent=1 // pred_check
      _
    $region155: #{_lambda_.1} parent=1 // pred_check_branch
      %192 = sbr.rel (0) target = $region157
    $region156: #{_lambda_.1} parent=1 // pred_region
      _
    $region157: #{_lambda_.1} parent=1 // pred_fallthru
      _
    // Predicated region
    $region158: #{_lambda_.1} parent=1 // pred_check
      _
    $region159: #{_lambda_.1} parent=1 // pred_check_branch
      %194 = sbr.rel (0) target = $region161
    $region160: #{_lambda_.1} parent=1 // pred_region
      _
    $region161: #{_lambda_.1} parent=1 // pred_fallthru
      _
    // Predicated region
    $region162: #{_lambda_.1} parent=1 // pred_check
      _
    $region163: #{_lambda_.1} parent=1 // pred_check_branch
      %196 = sbr.rel (0) target = $region165
    $region164: #{_lambda_.1} parent=1 // pred_region
      _
    $region165: #{_lambda_.1} parent=1 // pred_fallthru
      _
    // Predicated region
    $region166: #{_lambda_.1} parent=1 // pred_check
      _
    $region167: #{_lambda_.1} parent=1 // pred_check_branch
      %198 = sbr.rel (0) target = $region169
    $region168: #{_lambda_.1} parent=1 // pred_region
      _
    $region169: #{_lambda_.1} parent=1 // pred_fallthru
      _
    // Predicated region
    $region170: #{_lambda_.1} parent=1 // pred_check
      _
    $region171: #{_lambda_.1} parent=1 // pred_check_branch
      %200 = sbr.rel (0) target = $region173
    $region172: #{_lambda_.1} parent=1 // pred_region
      %202 = dma.done [#allocation3], 9216
    $region173: #{_lambda_.1} parent=1 // pred_fallthru
      _
    // Predicated region
    $region174: #{_lambda_.1} parent=1 // pred_check
      _
    $region175: #{_lambda_.1} parent=1 // pred_check_branch
      %204 = sbr.rel (0) target = $region177
    $region176: #{_lambda_.1} parent=1 // pred_region
      %206 = dma.done [#allocation6], 18432
    $region177: #{_lambda_.1} parent=1 // pred_fallthru
      _
    %v207 = vld [vmem:[%s5] sm:$0xff]
    %v208 = vld [vmem:[%s5 + $0x8] sm:$0xff]
    %v209 = vsub.f32 1.0, %v207
    %v210 = vsub.f32 1.0, %v208
    %v211 = vld [vmem:[%s7] sm:$0xff]
    %v212 = vld [vmem:[%s7 + $0x8] sm:$0xff]
    %v213 = vld [vmem:[%s7 + $0x10] sm:$0xff]
    %v214 = vld [vmem:[%s7 + $0x18] sm:$0xff]
    %v215 = vld [vmem:[%s9] sm:$0xff]
    %v216 = vld [vmem:[%s9 + $0x8] sm:$0xff]
    %v217 = vld [vmem:[%s9 + $0x10] sm:$0xff]
    %v218 = vld [vmem:[%s9 + $0x18] sm:$0xff]
    %v219 = vmul.f32 %v207, 0.25
    %v220 = vmul.f32 %v208, 0.25
    %v221 = vld [vmem:[%s3] sm:$0xff]
    %v222 = vld [vmem:[%s3 + $0x8] sm:$0xff]
    %vm223 = vcmask 130048
    %v225 = vsel %vm223, %v221, 0
    %v228 = vsel %vm223, %v222, 0
    %230 = vmatpush.msra.mxu0 0.0
    %231 = vmatpush.msra.mxu0 0.0
    %232 = vmatpush.msra.mxu0 0.0
    %233 = vmatpush.msra.mxu0 0.0
    %234 = vmatpush.msra.mxu0 0.0
    %235 = vmatpush.msra.mxu0 0.0
    %236 = vmatpush.msra.mxu0 0.0
    %237 = vmatpush.msra.mxu0 0.0
    %238 = vmatpush.msra.mxu0 0.0
    %239 = vmatpush.msra.mxu0 0.0
    %240 = vmatpush.msra.mxu0 0.0
    %241 = vmatpush.msra.mxu0 0.0
    %242 = vmatpush.msra.mxu0 0.0
    %243 = vmatpush.msra.mxu0 0.0
    %244 = vmatpush.msra.mxu0 %v222
    %245 = vmatpush.msra.mxu0 %v221
    %246 = vmatmul.f32.gmra.mxu0 %v225
    %v247 = vpop.f32.mrf.mxu0
    %v248 = vadd.f32 0.0, %v247
    %249 = vmatmul.f32.gmra.mxu0 %v228
    %v250 = vpop.f32.mrf.mxu0
    %v251 = vadd.f32 0.0, %v250
    %252 = vdwg.mxu0
    %s253 = scalar_lea.vmem %s3, 16
    %v254 = vld [vmem:[%s253] sm:$0xff]
    %v255 = vld [vmem:[%s253 + $0x8] sm:$0xff]
    %v257 = vsel %vm223, %v254, 0
    %v260 = vsel %vm223, %v255, 0
    %262 = vmatpush.msra.mxu0 0.0
    %263 = vmatpush.msra.mxu0 0.0
    %264 = vmatpush.msra.mxu0 0.0
    %265 = vmatpush.msra.mxu0 0.0
    %266 = vmatpush.msra.mxu0 0.0
    %267 = vmatpush.msra.mxu0 0.0
    %268 = vmatpush.msra.mxu0 0.0
    %269 = vmatpush.msra.mxu0 0.0
    %270 = vmatpush.msra.mxu0 0.0
    %271 = vmatpush.msra.mxu0 0.0
    %272 = vmatpush.msra.mxu0 0.0
    %273 = vmatpush.msra.mxu0 0.0
    %274 = vmatpush.msra.mxu0 0.0
    %275 = vmatpush.msra.mxu0 0.0
    %276 = vmatpush.msra.mxu0 %v255
    %277 = vmatpush.msra.mxu0 %v254
    %278 = vmatmul.f32.gmra.mxu0 %v257
    %v279 = vpop.f32.mrf.mxu0
    %v280 = vadd.f32 0.0, %v279
    %281 = vmatmul.f32.gmra.mxu0 %v260
    %v282 = vpop.f32.mrf.mxu0
    %v283 = vadd.f32 0.0, %v282
    %284 = vdwg.mxu0
    %v285 = vld [vmem:[%s1] sm:$0xff]
    %v286 = vld [vmem:[%s1 + $0x8] sm:$0xff]
    %v287 = vld [vmem:[%s1 + $0x10] sm:$0xff]
    %v288 = vld [vmem:[%s1 + $0x18] sm:$0xff]
    %v289 = vld [vmem:[%s13] sm:$0xf]
    %vm290 = vcmask 31744
    %v292 = vsel %vm290, %v285, 0
    %v295 = vsel %vm290, %v286, 0
    %v298 = vsel %vm290, %v287, 0
    %v301 = vsel %vm290, %v288, 0
    %vm303 = vcmask 1043456
    %v305 = vsel %vm303, %v289, 0
    %307 = vmatpush.msra.mxu0 0.0
    %308 = vmatpush.msra.mxu0 0.0
    %309 = vmatpush.msra.mxu0 0.0
    %310 = vmatpush.msra.mxu0 0.0
    %311 = vmatpush.msra.mxu0 0.0
    %312 = vmatpush.msra.mxu0 0.0
    %313 = vmatpush.msra.mxu0 0.0
    %314 = vmatpush.msra.mxu0 0.0
    %315 = vmatpush.msra.mxu0 0.0
    %316 = vmatpush.msra.mxu0 0.0
    %317 = vmatpush.msra.mxu0 0.0
    %318 = vmatpush.msra.mxu0 0.0
    %319 = vmatpush.msra.mxu0 0.0
    %320 = vmatpush.msra.mxu0 0.0
    %321 = vmatpush.msra.mxu0 0.0
    %322 = vmatpush.msra.mxu0 %v305
    %323 = vmatmul.f32.gmra.mxu0 %v292
    %v324 = vpop.f32.mrf.mxu0
    %v325 = vadd.f32 0.0, %v324
    %326 = vmatmul.f32.gmra.mxu0 %v295
    %v327 = vpop.f32.mrf.mxu0
    %v328 = vadd.f32 0.0, %v327
    %329 = vmatmul.f32.gmra.mxu0 %v298
    %v330 = vpop.f32.mrf.mxu0
    %v331 = vadd.f32 0.0, %v330
    %332 = vmatmul.f32.gmra.mxu0 %v301
    %v333 = vpop.f32.mrf.mxu0
    %v334 = vadd.f32 0.0, %v333
    %335 = vdwg.mxu0
    %v336 = vld [vmem:[%s15] sm:$0x1]
    %v337 = vlaneseq
    %v338 = vand.u32 %v337, 127
    %vm339 = vcmp.ge.s32.totalorder %v338, 0
    %vm340 = vcmp.lt.s32.totalorder %v338, 2
    %vm341 = vmand %vm339, %vm340
    %v342 = vsel %vm341, 1, 0
    %v343 = vcvt.s32.f32 %v342
    %vm344 = vcmp.ge.s32.totalorder %v338, 2
    %vm345 = vcmp.lt.s32.totalorder %v338, 4
    %vm346 = vmand %vm344, %vm345
    %v347 = vsel %vm346, 1, 0
    %v348 = vcvt.s32.f32 %v347
    %vm349 = vcmp.ge.s32.totalorder %v338, 4
    %vm350 = vcmp.lt.s32.totalorder %v338, 6
    %vm351 = vmand %vm349, %vm350
    %v352 = vsel %vm351, 1, 0
    %v353 = vcvt.s32.f32 %v352
    %vm354 = vcmp.ge.s32.totalorder %v338, 6
    %vm355 = vcmp.lt.s32.totalorder %v338, 8
    %vm356 = vmand %vm354, %vm355
    %v357 = vsel %vm356, 1, 0
    %v358 = vcvt.s32.f32 %v357
    %v359 = vmul.f32 %v221, %v209
    %v360 = vmul.f32 %v222, %v210
    %v361 = vadd.f32 %v359, %v207
    %v362 = vadd.f32 %v360, %v208
    %v363 = vsel %vm223, %v361, 0.0
    %364 = vadd.xlane.f32.xlu0 %v363
    %v365 = vpop.xlane.xlu0 %364
    %v366 = vsel %vm223, %v362, 0.0
    %367 = vadd.xlane.f32.xlu0 %v366
    %v368 = vpop.xlane.xlu0 %367
    %v369 = vmax.f32 %v365, 1.0
    %v370 = vmax.f32 %v368, 1.0
    %v371 = vrsqrt.pop %v369
    %v372 = vmul.f32 %v371, %v369
    %v373 = vmul.f32 %v372, %v371
    %v374 = vmul.f32 0.5, %v373
    %v375 = vsub.f32 1.5, %v374
    %v376 = vmul.f32 %v371, %v375
    %vm377 = vweird.f32 %v369
    %vm378 = vweird.f32 %v371
    %vm379 = vmor %vm377, %vm378
    %v380 = vsel %vm379, %v371, %v376
    %v381 = vrsqrt.pop %v370
    %v382 = vmul.f32 %v381, %v370
    %v383 = vmul.f32 %v382, %v381
    %v384 = vmul.f32 0.5, %v383
    %v385 = vsub.f32 1.5, %v384
    %v386 = vmul.f32 %v381, %v385
    %vm387 = vweird.f32 %v370
    %vm388 = vweird.f32 %v381
    %vm389 = vmor %vm387, %vm388
    %v390 = vsel %vm389, %v381, %v386
    %v391 = vmul.f32 %v325, %v380
    %v392 = vmul.f32 %v328, %v390
    %v394 = vsel %vm223, %v361, 0
    %v397 = vsel %vm223, %v362, 0
    %399 = vmatpush.msra.mxu0 0.0
    %400 = vmatpush.msra.mxu0 0.0
    %401 = vmatpush.msra.mxu0 0.0
    %402 = vmatpush.msra.mxu0 0.0
    %403 = vmatpush.msra.mxu0 0.0
    %404 = vmatpush.msra.mxu0 0.0
    %405 = vmatpush.msra.mxu0 0.0
    %406 = vmatpush.msra.mxu0 0.0
    %407 = vmatpush.msra.mxu0 0.0
    %408 = vmatpush.msra.mxu0 0.0
    %409 = vmatpush.msra.mxu0 0.0
    %410 = vmatpush.msra.mxu0 0.0
    %411 = vmatpush.msra.mxu0 0.0
    %412 = vmatpush.msra.mxu0 0.0
    %413 = vmatpush.msra.mxu0 %v392
    %414 = vmatpush.msra.mxu0 %v391
    %415 = vmatmul.f32.gmra.mxu0 %v394
    %v416 = vpop.f32.mrf.mxu0
    %v417 = vadd.f32 0.0, %v416
    %418 = vmatmul.f32.gmra.mxu0 %v397
    %v419 = vpop.f32.mrf.mxu0
    %v420 = vadd.f32 0.0, %v419
    %421 = vdwg.mxu0
    %v422 = vmul.f32 %v417, %v380
    %v423 = vmul.f32 %v420, %v390
    %v425 = vperm.slane %v336, 0
    %v427 = vadd.f32 %v422, %v425
    %v428 = vadd.f32 %v423, %v425
    %430 = vrot.lane.b32.xlu0 %v343, 8
    %v431 = vpop.permute.xlu0 %430
    %v433 = vmul.f32 %v427, %v431
    %v434 = vmul.f32 %v428, %v431
    %436 = vrot.lane.b32.xlu0 %v348, 8
    %v437 = vpop.permute.xlu0 %436
    %v439 = vmul.f32 %v427, %v437
    %v440 = vmul.f32 %v428, %v437
    %442 = vrot.lane.b32.xlu0 %v353, 8
    %v443 = vpop.permute.xlu0 %442
    %v445 = vmul.f32 %v427, %v443
    %v446 = vmul.f32 %v428, %v443
    %448 = vrot.lane.b32.xlu0 %v358, 8
    %v449 = vpop.permute.xlu0 %448
    %v451 = vmul.f32 %v427, %v449
    %v452 = vmul.f32 %v428, %v449
    %461 = vrot.lane.b32.xlu0 %v433, 120
    %v462 = vpop.permute.xlu0 %461
    %463 = vrot.lane.b32.xlu0 %v434, 120
    %v464 = vpop.permute.xlu0 %463
    %465 = vrot.lane.b32.xlu0 %v439, 120
    %v466 = vpop.permute.xlu0 %465
    %467 = vrot.lane.b32.xlu0 %v440, 120
    %v468 = vpop.permute.xlu0 %467
    %469 = vrot.lane.b32.xlu0 %v445, 120
    %v470 = vpop.permute.xlu0 %469
    %471 = vrot.lane.b32.xlu0 %v446, 120
    %v472 = vpop.permute.xlu0 %471
    %473 = vrot.lane.b32.xlu0 %v451, 120
    %v474 = vpop.permute.xlu0 %473
    %475 = vrot.lane.b32.xlu0 %v452, 120
    %v476 = vpop.permute.xlu0 %475
    %vm477 = vcmask 64512
    %v479 = vsel %vm477, %v427, 0
    %v482 = vsel %vm477, %v428, 0
    %v484 = vsel %vm477, %v462, 0
    %v486 = vsel %vm477, %v464, 0
    %v488 = vsel %vm477, %v466, 0
    %v490 = vsel %vm477, %v468, 0
    %v492 = vsel %vm477, %v470, 0
    %v494 = vsel %vm477, %v472, 0
    %v496 = vsel %vm477, %v474, 0
    %v498 = vsel %vm477, %v476, 0
    %500 = vmatpush.xpose.msra.mxu0 0.0
    %501 = vmatpush.xpose.msra.mxu0 0.0
    %502 = vmatpush.xpose.msra.mxu0 0.0
    %503 = vmatpush.xpose.msra.mxu0 0.0
    %504 = vmatpush.xpose.msra.mxu0 0.0
    %505 = vmatpush.xpose.msra.mxu0 0.0
    %506 = vmatpush.xpose.msra.mxu0 0.0
    %507 = vmatpush.xpose.msra.mxu0 0.0
    %508 = vmatpush.xpose.msra.mxu0 %v498
    %509 = vmatpush.xpose.msra.mxu0 %v496
    %510 = vmatpush.xpose.msra.mxu0 %v494
    %511 = vmatpush.xpose.msra.mxu0 %v492
    %512 = vmatpush.xpose.msra.mxu0 %v490
    %513 = vmatpush.xpose.msra.mxu0 %v488
    %514 = vmatpush.xpose.msra.mxu0 %v486
    %515 = vmatpush.xpose.msra.mxu0 %v484
    %516 = vmatmul.f32.gmra.mxu0 %v479
    %v517 = vpop.f32.mrf.mxu0
    %v518 = vadd.f32 0.0, %v517
    %519 = vmatmul.f32.gmra.mxu0 %v482
    %v520 = vpop.f32.mrf.mxu0
    %v521 = vadd.f32 0.0, %v520
    %522 = vdwg.mxu0
    %v523 = vmul.f32 %v518, 0.35355338
    %v524 = vmul.f32 %v521, 0.35355338
    %v525 = vtanh.pop %v523
    %v526 = vtanh.pop %v524
    %vm527 = vcmask 523264
    %v529 = vsel %vm527, %v525, 0
    %v532 = vsel %vm527, %v526, 0
    %534 = vmatpush.msra.mxu0 0.0
    %535 = vmatpush.msra.mxu0 0.0
    %536 = vmatpush.msra.mxu0 0.0
    %537 = vmatpush.msra.mxu0 0.0
    %538 = vmatpush.msra.mxu0 0.0
    %539 = vmatpush.msra.mxu0 0.0
    %540 = vmatpush.msra.mxu0 0.0
    %541 = vmatpush.msra.mxu0 0.0
    %542 = vmatpush.msra.mxu0 %v220
    %543 = vmatpush.msra.mxu0 %v219
    %544 = vmatpush.msra.mxu0 %v220
    %545 = vmatpush.msra.mxu0 %v219
    %546 = vmatpush.msra.mxu0 %v220
    %547 = vmatpush.msra.mxu0 %v219
    %548 = vmatpush.msra.mxu0 %v220
    %549 = vmatpush.msra.mxu0 %v219
    %550 = vmatmul.f32.gmra.mxu0 %v529
    %v551 = vpop.f32.mrf.mxu0
    %v552 = vadd.f32 0.0, %v551
    %553 = vmatmul.f32.gmra.mxu0 %v532
    %v554 = vpop.f32.mrf.mxu0
    %v555 = vadd.f32 0.0, %v554
    %556 = vdwg.mxu0
    %557 = vxpose.xlu0.b32.start [1/16] %v552, 128
    %558 = vxpose.xlu0.b32.cont [2/16] %v555, 128
    %559 = vxpose.xlu0.b32.cont [3/16] 0.0, 128
    %560 = vxpose.xlu0.b32.cont [4/16] 0.0, 128
    %561 = vxpose.xlu0.b32.cont [5/16] 0.0, 128
    %562 = vxpose.xlu0.b32.cont [6/16] 0.0, 128
    %563 = vxpose.xlu0.b32.cont [7/16] 0.0, 128
    %564 = vxpose.xlu0.b32.cont [8/16] 0.0, 128
    %565 = vxpose.xlu0.b32.cont [9/16] 0.0, 128
    %566 = vxpose.xlu0.b32.cont [10/16] 0.0, 128
    %567 = vxpose.xlu0.b32.cont [11/16] 0.0, 128
    %568 = vxpose.xlu0.b32.cont [12/16] 0.0, 128
    %569 = vxpose.xlu0.b32.cont [13/16] 0.0, 128
    %570 = vxpose.xlu0.b32.cont [14/16] 0.0, 128
    %571 = vxpose.xlu0.b32.cont [15/16] 0.0, 128
    %572 = vxpose.xlu0.b32.end [16/16] 0.0, 128
    %v573 = vpop.trf.xlu0
    %v574 = vpop.trf.xlu0
    %v575 = vpop.trf.xlu0
    %v576 = vpop.trf.xlu0
    %v577 = vpop.trf.xlu0
    %v578 = vpop.trf.xlu0
    %v579 = vpop.trf.xlu0
    %v580 = vpop.trf.xlu0
    %v581 = vpop.trf.xlu0
    %v582 = vpop.trf.xlu0
    %v583 = vpop.trf.xlu0
    %v584 = vpop.trf.xlu0
    %v585 = vpop.trf.xlu0
    %v586 = vpop.trf.xlu0
    %v587 = vpop.trf.xlu0
    %v588 = vpop.trf.xlu0
    %v589 = vadd.f32 %v552, %v573
    %v590 = vadd.f32 %v555, %v574
    %v591 = vmul.f32 %v589, 0.5
    %v592 = vmul.f32 %v590, 0.5
    %v593 = vmul.f32 %v248, %v209
    %v594 = vmul.f32 %v251, %v210
    %v595 = vadd.f32 %v593, %v207
    %v596 = vadd.f32 %v594, %v208
    %v597 = vsel %vm223, %v595, 0.0
    %598 = vadd.xlane.f32.xlu0 %v597
    %v599 = vpop.xlane.xlu0 %598
    %v600 = vsel %vm223, %v596, 0.0
    %601 = vadd.xlane.f32.xlu0 %v600
    %v602 = vpop.xlane.xlu0 %601
    %v603 = vmax.f32 %v599, 1.0
    %v604 = vmax.f32 %v602, 1.0
    %v605 = vrsqrt.pop %v603
    %v606 = vmul.f32 %v605, %v603
    %v607 = vmul.f32 %v606, %v605
    %v608 = vmul.f32 0.5, %v607
    %v609 = vsub.f32 1.5, %v608
    %v610 = vmul.f32 %v605, %v609
    %vm611 = vweird.f32 %v603
    %vm612 = vweird.f32 %v605
    %vm613 = vmor %vm611, %vm612
    %v614 = vsel %vm613, %v605, %v610
    %v615 = vrsqrt.pop %v604
    %v616 = vmul.f32 %v615, %v604
    %v617 = vmul.f32 %v616, %v615
    %v618 = vmul.f32 0.5, %v617
    %v619 = vsub.f32 1.5, %v618
    %v620 = vmul.f32 %v615, %v619
    %vm621 = vweird.f32 %v604
    %vm622 = vweird.f32 %v615
    %vm623 = vmor %vm621, %vm622
    %v624 = vsel %vm623, %v615, %v620
    %v625 = vmul.f32 %v325, %v614
    %v626 = vmul.f32 %v328, %v624
    %629 = vrot.lane.b32.xlu0 %v625, 104
    %v630 = vpop.permute.xlu0 %629
    %631 = vrot.lane.b32.xlu0 %v626, 104
    %v632 = vpop.permute.xlu0 %631
    %v636 = vsel %vm223, %v595, 0
    %v639 = vsel %vm223, %v596, 0
    %641 = vmatpush.msra.mxu0 0.0
    %642 = vmatpush.msra.mxu0 0.0
    %643 = vmatpush.msra.mxu0 0.0
    %644 = vmatpush.msra.mxu0 0.0
    %645 = vmatpush.msra.mxu0 0.0
    %646 = vmatpush.msra.mxu0 0.0
    %647 = vmatpush.msra.mxu0 0.0
    %648 = vmatpush.msra.mxu0 0.0
    %649 = vmatpush.msra.mxu0 0.0
    %650 = vmatpush.msra.mxu0 0.0
    %651 = vmatpush.msra.mxu0 0.0
    %652 = vmatpush.msra.mxu0 0.0
    %653 = vmatpush.msra.mxu0 0.0
    %654 = vmatpush.msra.mxu0 0.0
    %655 = vmatpush.msra.mxu0 %v632
    %656 = vmatpush.msra.mxu0 %v630
    %657 = vmatmul.f32.gmra.mxu0 %v636
    %v658 = vpop.f32.mrf.mxu0
    %v659 = vadd.f32 0.0, %v658
    %660 = vmatmul.f32.gmra.mxu0 %v639
    %v661 = vpop.f32.mrf.mxu0
    %v662 = vadd.f32 0.0, %v661
    %663 = vdwg.mxu0
    %v664 = vmul.f32 %v659, %v614
    %v665 = vmul.f32 %v662, %v624
    %666 = vrot.lane.b32.xlu0 %v425, 104
    %v667 = vpop.permute.xlu0 %666
    %v669 = vadd.f32 %v664, %v667
    %v670 = vadd.f32 %v665, %v667
    %v671 = vmul.f32 %v669, %v431
    %v672 = vmul.f32 %v670, %v431
    %v673 = vmul.f32 %v669, %v437
    %v674 = vmul.f32 %v670, %v437
    %v675 = vmul.f32 %v669, %v443
    %v676 = vmul.f32 %v670, %v443
    %v677 = vmul.f32 %v669, %v449
    %v678 = vmul.f32 %v670, %v449
    %687 = vrot.lane.b32.xlu0 %v671, 120
    %v688 = vpop.permute.xlu0 %687
    %689 = vrot.lane.b32.xlu0 %v672, 120
    %v690 = vpop.permute.xlu0 %689
    %691 = vrot.lane.b32.xlu0 %v673, 120
    %v692 = vpop.permute.xlu0 %691
    %693 = vrot.lane.b32.xlu0 %v674, 120
    %v694 = vpop.permute.xlu0 %693
    %695 = vrot.lane.b32.xlu0 %v675, 120
    %v696 = vpop.permute.xlu0 %695
    %697 = vrot.lane.b32.xlu0 %v676, 120
    %v698 = vpop.permute.xlu0 %697
    %699 = vrot.lane.b32.xlu0 %v677, 120
    %v700 = vpop.permute.xlu0 %699
    %701 = vrot.lane.b32.xlu0 %v678, 120
    %v702 = vpop.permute.xlu0 %701
    %v704 = vsel %vm477, %v669, 0
    %v707 = vsel %vm477, %v670, 0
    %v709 = vsel %vm477, %v688, 0
    %v711 = vsel %vm477, %v690, 0
    %v713 = vsel %vm477, %v692, 0
    %v715 = vsel %vm477, %v694, 0
    %v717 = vsel %vm477, %v696, 0
    %v719 = vsel %vm477, %v698, 0
    %v721 = vsel %vm477, %v700, 0
    %v723 = vsel %vm477, %v702, 0
    %725 = vmatpush.xpose.msra.mxu0 0.0
    %726 = vmatpush.xpose.msra.mxu0 0.0
    %727 = vmatpush.xpose.msra.mxu0 0.0
    %728 = vmatpush.xpose.msra.mxu0 0.0
    %729 = vmatpush.xpose.msra.mxu0 0.0
    %730 = vmatpush.xpose.msra.mxu0 0.0
    %731 = vmatpush.xpose.msra.mxu0 0.0
    %732 = vmatpush.xpose.msra.mxu0 0.0
    %733 = vmatpush.xpose.msra.mxu0 %v723
    %734 = vmatpush.xpose.msra.mxu0 %v721
    %735 = vmatpush.xpose.msra.mxu0 %v719
    %736 = vmatpush.xpose.msra.mxu0 %v717
    %737 = vmatpush.xpose.msra.mxu0 %v715
    %738 = vmatpush.xpose.msra.mxu0 %v713
    %739 = vmatpush.xpose.msra.mxu0 %v711
    %740 = vmatpush.xpose.msra.mxu0 %v709
    %741 = vmatmul.f32.gmra.mxu0 %v704
    %v742 = vpop.f32.mrf.mxu0
    %v743 = vadd.f32 0.0, %v742
    %744 = vmatmul.f32.gmra.mxu0 %v707
    %v745 = vpop.f32.mrf.mxu0
    %v746 = vadd.f32 0.0, %v745
    %747 = vdwg.mxu0
    %v748 = vmul.f32 %v743, 0.35355338
    %v749 = vmul.f32 %v746, 0.35355338
    %v750 = vtanh.pop %v748
    %v751 = vtanh.pop %v749
    %v753 = vsel %vm527, %v750, 0
    %v756 = vsel %vm527, %v751, 0
    %758 = vmatpush.msra.mxu0 0.0
    %759 = vmatpush.msra.mxu0 0.0
    %760 = vmatpush.msra.mxu0 0.0
    %761 = vmatpush.msra.mxu0 0.0
    %762 = vmatpush.msra.mxu0 0.0
    %763 = vmatpush.msra.mxu0 0.0
    %764 = vmatpush.msra.mxu0 0.0
    %765 = vmatpush.msra.mxu0 0.0
    %766 = vmatpush.msra.mxu0 %v220
    %767 = vmatpush.msra.mxu0 %v219
    %768 = vmatpush.msra.mxu0 %v220
    %769 = vmatpush.msra.mxu0 %v219
    %770 = vmatpush.msra.mxu0 %v220
    %771 = vmatpush.msra.mxu0 %v219
    %772 = vmatpush.msra.mxu0 %v220
    %773 = vmatpush.msra.mxu0 %v219
    %774 = vmatmul.f32.gmra.mxu0 %v753
    %v775 = vpop.f32.mrf.mxu0
    %v776 = vadd.f32 0.0, %v775
    %777 = vmatmul.f32.gmra.mxu0 %v756
    %v778 = vpop.f32.mrf.mxu0
    %v779 = vadd.f32 0.0, %v778
    %780 = vdwg.mxu0
    %781 = vxpose.xlu0.b32.start [1/16] %v776, 128
    %782 = vxpose.xlu0.b32.cont [2/16] %v779, 128
    %783 = vxpose.xlu0.b32.cont [3/16] 0.0, 128
    %784 = vxpose.xlu0.b32.cont [4/16] 0.0, 128
    %785 = vxpose.xlu0.b32.cont [5/16] 0.0, 128
    %786 = vxpose.xlu0.b32.cont [6/16] 0.0, 128
    %787 = vxpose.xlu0.b32.cont [7/16] 0.0, 128
    %788 = vxpose.xlu0.b32.cont [8/16] 0.0, 128
    %789 = vxpose.xlu0.b32.cont [9/16] 0.0, 128
    %790 = vxpose.xlu0.b32.cont [10/16] 0.0, 128
    %791 = vxpose.xlu0.b32.cont [11/16] 0.0, 128
    %792 = vxpose.xlu0.b32.cont [12/16] 0.0, 128
    %793 = vxpose.xlu0.b32.cont [13/16] 0.0, 128
    %794 = vxpose.xlu0.b32.cont [14/16] 0.0, 128
    %795 = vxpose.xlu0.b32.cont [15/16] 0.0, 128
    %796 = vxpose.xlu0.b32.end [16/16] 0.0, 128
    %v797 = vpop.trf.xlu0
    %v798 = vpop.trf.xlu0
    %v799 = vpop.trf.xlu0
    %v800 = vpop.trf.xlu0
    %v801 = vpop.trf.xlu0
    %v802 = vpop.trf.xlu0
    %v803 = vpop.trf.xlu0
    %v804 = vpop.trf.xlu0
    %v805 = vpop.trf.xlu0
    %v806 = vpop.trf.xlu0
    %v807 = vpop.trf.xlu0
    %v808 = vpop.trf.xlu0
    %v809 = vpop.trf.xlu0
    %v810 = vpop.trf.xlu0
    %v811 = vpop.trf.xlu0
    %v812 = vpop.trf.xlu0
    %v813 = vadd.f32 %v776, %v797
    %v814 = vadd.f32 %v779, %v798
    %v815 = vmul.f32 %v813, 0.5
    %v816 = vmul.f32 %v814, 0.5
    %817 = vrot.lane.b32.xlu0 %v427, 112
    %v818 = vpop.permute.xlu0 %817
    %819 = vrot.lane.b32.xlu0 %v428, 112
    %v820 = vpop.permute.xlu0 %819
    %823 = vrot.lane.b32.xlu0 %v669, 120
    %v824 = vpop.permute.xlu0 %823
    %825 = vrot.lane.b32.xlu0 %v670, 120
    %v826 = vpop.permute.xlu0 %825
    %v829 = vsel %vm477, %v818, %v824
    %v830 = vsel %vm477, %v820, %v826
    %833 = vrot.lane.b32.xlu0 %v815, 16
    %v834 = vpop.permute.xlu0 %833
    %835 = vrot.lane.b32.xlu0 %v816, 16
    %v836 = vpop.permute.xlu0 %835
    %839 = vrot.lane.b32.xlu0 %v221, 32
    %v840 = vpop.permute.xlu0 %839
    %841 = vrot.lane.b32.xlu0 %v222, 32
    %v842 = vpop.permute.xlu0 %841
    %847 = vrot.lane.b32.xlu0 %v248, 48
    %v848 = vpop.permute.xlu0 %847
    %849 = vrot.lane.b32.xlu0 %v251, 48
    %v850 = vpop.permute.xlu0 %849
    %v853 = vsel %vm223, %v591, %v834
    %v854 = vsel %vm223, %v592, %v836
    %vm855 = vcmask 261120
    %v856 = vsel %vm855, %v853, %v840
    %v857 = vsel %vm855, %v854, %v842
    %vm858 = vcmask 392192
    %v859 = vsel %vm858, %v856, %v848
    %v860 = vsel %vm858, %v857, %v850
    %v861 = vmul.f32 %v254, %v209
    %v862 = vmul.f32 %v255, %v210
    %v863 = vadd.f32 %v861, %v207
    %v864 = vadd.f32 %v862, %v208
    %v865 = vsel %vm223, %v863, 0.0
    %866 = vadd.xlane.f32.xlu0 %v865
    %v867 = vpop.xlane.xlu0 %866
    %v868 = vsel %vm223, %v864, 0.0
    %869 = vadd.xlane.f32.xlu0 %v868
    %v870 = vpop.xlane.xlu0 %869
    %v871 = vmax.f32 %v867, 1.0
    %v872 = vmax.f32 %v870, 1.0
    %v873 = vrsqrt.pop %v871
    %v874 = vmul.f32 %v873, %v871
    %v875 = vmul.f32 %v874, %v873
    %v876 = vmul.f32 0.5, %v875
    %v877 = vsub.f32 1.5, %v876
    %v878 = vmul.f32 %v873, %v877
    %vm879 = vweird.f32 %v871
    %vm880 = vweird.f32 %v873
    %vm881 = vmor %vm879, %vm880
    %v882 = vsel %vm881, %v873, %v878
    %v883 = vrsqrt.pop %v872
    %v884 = vmul.f32 %v883, %v872
    %v885 = vmul.f32 %v884, %v883
    %v886 = vmul.f32 0.5, %v885
    %v887 = vsub.f32 1.5, %v886
    %v888 = vmul.f32 %v883, %v887
    %vm889 = vweird.f32 %v872
    %vm890 = vweird.f32 %v883
    %vm891 = vmor %vm889, %vm890
    %v892 = vsel %vm891, %v883, %v888
    %v893 = vmul.f32 %v331, %v882
    %v894 = vmul.f32 %v334, %v892
    %v896 = vsel %vm223, %v863, 0
    %v899 = vsel %vm223, %v864, 0
    %901 = vmatpush.msra.mxu0 0.0
    %902 = vmatpush.msra.mxu0 0.0
    %903 = vmatpush.msra.mxu0 0.0
    %904 = vmatpush.msra.mxu0 0.0
    %905 = vmatpush.msra.mxu0 0.0
    %906 = vmatpush.msra.mxu0 0.0
    %907 = vmatpush.msra.mxu0 0.0
    %908 = vmatpush.msra.mxu0 0.0
    %909 = vmatpush.msra.mxu0 0.0
    %910 = vmatpush.msra.mxu0 0.0
    %911 = vmatpush.msra.mxu0 0.0
    %912 = vmatpush.msra.mxu0 0.0
    %913 = vmatpush.msra.mxu0 0.0
    %914 = vmatpush.msra.mxu0 0.0
    %915 = vmatpush.msra.mxu0 %v894
    %916 = vmatpush.msra.mxu0 %v893
    %917 = vmatmul.f32.gmra.mxu0 %v896
    %v918 = vpop.f32.mrf.mxu0
    %v919 = vadd.f32 0.0, %v918
    %920 = vmatmul.f32.gmra.mxu0 %v899
    %v921 = vpop.f32.mrf.mxu0
    %v922 = vadd.f32 0.0, %v921
    %923 = vdwg.mxu0
    %v924 = vmul.f32 %v919, %v882
    %v925 = vmul.f32 %v922, %v892
    %v926 = vadd.f32 %v924, %v425
    %v927 = vadd.f32 %v925, %v425
    %v928 = vmul.f32 %v926, %v431
    %v929 = vmul.f32 %v927, %v431
    %v930 = vmul.f32 %v926, %v437
    %v931 = vmul.f32 %v927, %v437
    %v932 = vmul.f32 %v926, %v443
    %v933 = vmul.f32 %v927, %v443
    %v934 = vmul.f32 %v926, %v449
    %v935 = vmul.f32 %v927, %v449
    %944 = vrot.lane.b32.xlu0 %v928, 120
    %v945 = vpop.permute.xlu0 %944
    %946 = vrot.lane.b32.xlu0 %v929, 120
    %v947 = vpop.permute.xlu0 %946
    %948 = vrot.lane.b32.xlu0 %v930, 120
    %v949 = vpop.permute.xlu0 %948
    %950 = vrot.lane.b32.xlu0 %v931, 120
    %v951 = vpop.permute.xlu0 %950
    %952 = vrot.lane.b32.xlu0 %v932, 120
    %v953 = vpop.permute.xlu0 %952
    %954 = vrot.lane.b32.xlu0 %v933, 120
    %v955 = vpop.permute.xlu0 %954
    %956 = vrot.lane.b32.xlu0 %v934, 120
    %v957 = vpop.permute.xlu0 %956
    %958 = vrot.lane.b32.xlu0 %v935, 120
    %v959 = vpop.permute.xlu0 %958
    %v961 = vsel %vm477, %v926, 0
    %v964 = vsel %vm477, %v927, 0
    %v966 = vsel %vm477, %v945, 0
    %v968 = vsel %vm477, %v947, 0
    %v970 = vsel %vm477, %v949, 0
    %v972 = vsel %vm477, %v951, 0
    %v974 = vsel %vm477, %v953, 0
    %v976 = vsel %vm477, %v955, 0
    %v978 = vsel %vm477, %v957, 0
    %v980 = vsel %vm477, %v959, 0
    %982 = vmatpush.xpose.msra.mxu0 0.0
    %983 = vmatpush.xpose.msra.mxu0 0.0
    %984 = vmatpush.xpose.msra.mxu0 0.0
    %985 = vmatpush.xpose.msra.mxu0 0.0
    %986 = vmatpush.xpose.msra.mxu0 0.0
    %987 = vmatpush.xpose.msra.mxu0 0.0
    %988 = vmatpush.xpose.msra.mxu0 0.0
    %989 = vmatpush.xpose.msra.mxu0 0.0
    %990 = vmatpush.xpose.msra.mxu0 %v980
    %991 = vmatpush.xpose.msra.mxu0 %v978
    %992 = vmatpush.xpose.msra.mxu0 %v976
    %993 = vmatpush.xpose.msra.mxu0 %v974
    %994 = vmatpush.xpose.msra.mxu0 %v972
    %995 = vmatpush.xpose.msra.mxu0 %v970
    %996 = vmatpush.xpose.msra.mxu0 %v968
    %997 = vmatpush.xpose.msra.mxu0 %v966
    %998 = vmatmul.f32.gmra.mxu0 %v961
    %v999 = vpop.f32.mrf.mxu0
    %v1000 = vadd.f32 0.0, %v999
    %1001 = vmatmul.f32.gmra.mxu0 %v964
    %v1002 = vpop.f32.mrf.mxu0
    %v1003 = vadd.f32 0.0, %v1002
    %1004 = vdwg.mxu0
    %v1005 = vmul.f32 %v1000, 0.35355338
    %v1006 = vmul.f32 %v1003, 0.35355338
    %v1007 = vtanh.pop %v1005
    %v1008 = vtanh.pop %v1006
    %v1010 = vsel %vm527, %v1007, 0
    %v1013 = vsel %vm527, %v1008, 0
    %1015 = vmatpush.msra.mxu0 0.0
    %1016 = vmatpush.msra.mxu0 0.0
    %1017 = vmatpush.msra.mxu0 0.0
    %1018 = vmatpush.msra.mxu0 0.0
    %1019 = vmatpush.msra.mxu0 0.0
    %1020 = vmatpush.msra.mxu0 0.0
    %1021 = vmatpush.msra.mxu0 0.0
    %1022 = vmatpush.msra.mxu0 0.0
    %1023 = vmatpush.msra.mxu0 %v220
    %1024 = vmatpush.msra.mxu0 %v219
    %1025 = vmatpush.msra.mxu0 %v220
    %1026 = vmatpush.msra.mxu0 %v219
    %1027 = vmatpush.msra.mxu0 %v220
    %1028 = vmatpush.msra.mxu0 %v219
    %1029 = vmatpush.msra.mxu0 %v220
    %1030 = vmatpush.msra.mxu0 %v219
    %1031 = vmatmul.f32.gmra.mxu0 %v1010
    %v1032 = vpop.f32.mrf.mxu0
    %v1033 = vadd.f32 0.0, %v1032
    %1034 = vmatmul.f32.gmra.mxu0 %v1013
    %v1035 = vpop.f32.mrf.mxu0
    %v1036 = vadd.f32 0.0, %v1035
    %1037 = vdwg.mxu0
    %1038 = vxpose.xlu0.b32.start [1/16] %v1033, 128
    %1039 = vxpose.xlu0.b32.cont [2/16] %v1036, 128
    %1040 = vxpose.xlu0.b32.cont [3/16] 0.0, 128
    %1041 = vxpose.xlu0.b32.cont [4/16] 0.0, 128
    %1042 = vxpose.xlu0.b32.cont [5/16] 0.0, 128
    %1043 = vxpose.xlu0.b32.cont [6/16] 0.0, 128
    %1044 = vxpose.xlu0.b32.cont [7/16] 0.0, 128
    %1045 = vxpose.xlu0.b32.cont [8/16] 0.0, 128
    %1046 = vxpose.xlu0.b32.cont [9/16] 0.0, 128
    %1047 = vxpose.xlu0.b32.cont [10/16] 0.0, 128
    %1048 = vxpose.xlu0.b32.cont [11/16] 0.0, 128
    %1049 = vxpose.xlu0.b32.cont [12/16] 0.0, 128
    %1050 = vxpose.xlu0.b32.cont [13/16] 0.0, 128
    %1051 = vxpose.xlu0.b32.cont [14/16] 0.0, 128
    %1052 = vxpose.xlu0.b32.cont [15/16] 0.0, 128
    %1053 = vxpose.xlu0.b32.end [16/16] 0.0, 128
    %v1054 = vpop.trf.xlu0
    %v1055 = vpop.trf.xlu0
    %v1056 = vpop.trf.xlu0
    %v1057 = vpop.trf.xlu0
    %v1058 = vpop.trf.xlu0
    %v1059 = vpop.trf.xlu0
    %v1060 = vpop.trf.xlu0
    %v1061 = vpop.trf.xlu0
    %v1062 = vpop.trf.xlu0
    %v1063 = vpop.trf.xlu0
    %v1064 = vpop.trf.xlu0
    %v1065 = vpop.trf.xlu0
    %v1066 = vpop.trf.xlu0
    %v1067 = vpop.trf.xlu0
    %v1068 = vpop.trf.xlu0
    %v1069 = vpop.trf.xlu0
    %v1070 = vadd.f32 %v1033, %v1054
    %v1071 = vadd.f32 %v1036, %v1055
    %v1072 = vmul.f32 %v1070, 0.5
    %v1073 = vmul.f32 %v1071, 0.5
    %v1074 = vmul.f32 %v280, %v209
    %v1075 = vmul.f32 %v283, %v210
    %v1076 = vadd.f32 %v1074, %v207
    %v1077 = vadd.f32 %v1075, %v208
    %v1078 = vsel %vm223, %v1076, 0.0
    %1079 = vadd.xlane.f32.xlu0 %v1078
    %v1080 = vpop.xlane.xlu0 %1079
    %v1081 = vsel %vm223, %v1077, 0.0
    %1082 = vadd.xlane.f32.xlu0 %v1081
    %v1083 = vpop.xlane.xlu0 %1082
    %v1084 = vmax.f32 %v1080, 1.0
    %v1085 = vmax.f32 %v1083, 1.0
    %v1086 = vrsqrt.pop %v1084
    %v1087 = vmul.f32 %v1086, %v1084
    %v1088 = vmul.f32 %v1087, %v1086
    %v1089 = vmul.f32 0.5, %v1088
    %v1090 = vsub.f32 1.5, %v1089
    %v1091 = vmul.f32 %v1086, %v1090
    %vm1092 = vweird.f32 %v1084
    %vm1093 = vweird.f32 %v1086
    %vm1094 = vmor %vm1092, %vm1093
    %v1095 = vsel %vm1094, %v1086, %v1091
    %v1096 = vrsqrt.pop %v1085
    %v1097 = vmul.f32 %v1096, %v1085
    %v1098 = vmul.f32 %v1097, %v1096
    %v1099 = vmul.f32 0.5, %v1098
    %v1100 = vsub.f32 1.5, %v1099
    %v1101 = vmul.f32 %v1096, %v1100
    %vm1102 = vweird.f32 %v1085
    %vm1103 = vweird.f32 %v1096
    %vm1104 = vmor %vm1102, %vm1103
    %v1105 = vsel %vm1104, %v1096, %v1101
    %v1106 = vmul.f32 %v331, %v1095
    %v1107 = vmul.f32 %v334, %v1105
    %1110 = vrot.lane.b32.xlu0 %v1106, 104
    %v1111 = vpop.permute.xlu0 %1110
    %1112 = vrot.lane.b32.xlu0 %v1107, 104
    %v1113 = vpop.permute.xlu0 %1112
    %v1117 = vsel %vm223, %v1076, 0
    %v1120 = vsel %vm223, %v1077, 0
    %1122 = vmatpush.msra.mxu0 0.0
    %1123 = vmatpush.msra.mxu0 0.0
    %1124 = vmatpush.msra.mxu0 0.0
    %1125 = vmatpush.msra.mxu0 0.0
    %1126 = vmatpush.msra.mxu0 0.0
    %1127 = vmatpush.msra.mxu0 0.0
    %1128 = vmatpush.msra.mxu0 0.0
    %1129 = vmatpush.msra.mxu0 0.0
    %1130 = vmatpush.msra.mxu0 0.0
    %1131 = vmatpush.msra.mxu0 0.0
    %1132 = vmatpush.msra.mxu0 0.0
    %1133 = vmatpush.msra.mxu0 0.0
    %1134 = vmatpush.msra.mxu0 0.0
    %1135 = vmatpush.msra.mxu0 0.0
    %1136 = vmatpush.msra.mxu0 %v1113
    %1137 = vmatpush.msra.mxu0 %v1111
    %1138 = vmatmul.f32.gmra.mxu0 %v1117
    %v1139 = vpop.f32.mrf.mxu0
    %v1140 = vadd.f32 0.0, %v1139
    %1141 = vmatmul.f32.gmra.mxu0 %v1120
    %v1142 = vpop.f32.mrf.mxu0
    %v1143 = vadd.f32 0.0, %v1142
    %1144 = vdwg.mxu0
    %v1145 = vmul.f32 %v1140, %v1095
    %v1146 = vmul.f32 %v1143, %v1105
    %v1147 = vadd.f32 %v1145, %v667
    %v1148 = vadd.f32 %v1146, %v667
    %v1149 = vmul.f32 %v1147, %v431
    %v1150 = vmul.f32 %v1148, %v431
    %v1151 = vmul.f32 %v1147, %v437
    %v1152 = vmul.f32 %v1148, %v437
    %v1153 = vmul.f32 %v1147, %v443
    %v1154 = vmul.f32 %v1148, %v443
    %v1155 = vmul.f32 %v1147, %v449
    %v1156 = vmul.f32 %v1148, %v449
    %1165 = vrot.lane.b32.xlu0 %v1149, 120
    %v1166 = vpop.permute.xlu0 %1165
    %1167 = vrot.lane.b32.xlu0 %v1150, 120
    %v1168 = vpop.permute.xlu0 %1167
    %1169 = vrot.lane.b32.xlu0 %v1151, 120
    %v1170 = vpop.permute.xlu0 %1169
    %1171 = vrot.lane.b32.xlu0 %v1152, 120
    %v1172 = vpop.permute.xlu0 %1171
    %1173 = vrot.lane.b32.xlu0 %v1153, 120
    %v1174 = vpop.permute.xlu0 %1173
    %1175 = vrot.lane.b32.xlu0 %v1154, 120
    %v1176 = vpop.permute.xlu0 %1175
    %1177 = vrot.lane.b32.xlu0 %v1155, 120
    %v1178 = vpop.permute.xlu0 %1177
    %1179 = vrot.lane.b32.xlu0 %v1156, 120
    %v1180 = vpop.permute.xlu0 %1179
    %v1182 = vsel %vm477, %v1147, 0
    %v1185 = vsel %vm477, %v1148, 0
    %v1187 = vsel %vm477, %v1166, 0
    %v1189 = vsel %vm477, %v1168, 0
    %v1191 = vsel %vm477, %v1170, 0
    %v1193 = vsel %vm477, %v1172, 0
    %v1195 = vsel %vm477, %v1174, 0
    %v1197 = vsel %vm477, %v1176, 0
    %v1199 = vsel %vm477, %v1178, 0
    %v1201 = vsel %vm477, %v1180, 0
    %1203 = vmatpush.xpose.msra.mxu0 0.0
    %1204 = vmatpush.xpose.msra.mxu0 0.0
    %1205 = vmatpush.xpose.msra.mxu0 0.0
    %1206 = vmatpush.xpose.msra.mxu0 0.0
    %1207 = vmatpush.xpose.msra.mxu0 0.0
    %1208 = vmatpush.xpose.msra.mxu0 0.0
    %1209 = vmatpush.xpose.msra.mxu0 0.0
    %1210 = vmatpush.xpose.msra.mxu0 0.0
    %1211 = vmatpush.xpose.msra.mxu0 %v1201
    %1212 = vmatpush.xpose.msra.mxu0 %v1199
    %1213 = vmatpush.xpose.msra.mxu0 %v1197
    %1214 = vmatpush.xpose.msra.mxu0 %v1195
    %1215 = vmatpush.xpose.msra.mxu0 %v1193
    %1216 = vmatpush.xpose.msra.mxu0 %v1191
    %1217 = vmatpush.xpose.msra.mxu0 %v1189
    %1218 = vmatpush.xpose.msra.mxu0 %v1187
    %1219 = vmatmul.f32.gmra.mxu0 %v1182
    %v1220 = vpop.f32.mrf.mxu0
    %v1221 = vadd.f32 0.0, %v1220
    %1222 = vmatmul.f32.gmra.mxu0 %v1185
    %v1223 = vpop.f32.mrf.mxu0
    %v1224 = vadd.f32 0.0, %v1223
    %1225 = vdwg.mxu0
    %v1226 = vmul.f32 %v1221, 0.35355338
    %v1227 = vmul.f32 %v1224, 0.35355338
    %v1228 = vtanh.pop %v1226
    %v1229 = vtanh.pop %v1227
    %v1231 = vsel %vm527, %v1228, 0
    %v1234 = vsel %vm527, %v1229, 0
    %1236 = vmatpush.msra.mxu0 0.0
    %1237 = vmatpush.msra.mxu0 0.0
    %1238 = vmatpush.msra.mxu0 0.0
    %1239 = vmatpush.msra.mxu0 0.0
    %1240 = vmatpush.msra.mxu0 0.0
    %1241 = vmatpush.msra.mxu0 0.0
    %1242 = vmatpush.msra.mxu0 0.0
    %1243 = vmatpush.msra.mxu0 0.0
    %1244 = vmatpush.msra.mxu0 %v220
    %1245 = vmatpush.msra.mxu0 %v219
    %1246 = vmatpush.msra.mxu0 %v220
    %1247 = vmatpush.msra.mxu0 %v219
    %1248 = vmatpush.msra.mxu0 %v220
    %1249 = vmatpush.msra.mxu0 %v219
    %1250 = vmatpush.msra.mxu0 %v220
    %1251 = vmatpush.msra.mxu0 %v219
    %1252 = vmatmul.f32.gmra.mxu0 %v1231
    %v1253 = vpop.f32.mrf.mxu0
    %v1254 = vadd.f32 0.0, %v1253
    %1255 = vmatmul.f32.gmra.mxu0 %v1234
    %v1256 = vpop.f32.mrf.mxu0
    %v1257 = vadd.f32 0.0, %v1256
    %1258 = vdwg.mxu0
    %1259 = vxpose.xlu0.b32.start [1/16] %v1254, 128
    %1260 = vxpose.xlu0.b32.cont [2/16] %v1257, 128
    %1261 = vxpose.xlu0.b32.cont [3/16] 0.0, 128
    %1262 = vxpose.xlu0.b32.cont [4/16] 0.0, 128
    %1263 = vxpose.xlu0.b32.cont [5/16] 0.0, 128
    %1264 = vxpose.xlu0.b32.cont [6/16] 0.0, 128
    %1265 = vxpose.xlu0.b32.cont [7/16] 0.0, 128
    %1266 = vxpose.xlu0.b32.cont [8/16] 0.0, 128
    %1267 = vxpose.xlu0.b32.cont [9/16] 0.0, 128
    %1268 = vxpose.xlu0.b32.cont [10/16] 0.0, 128
    %1269 = vxpose.xlu0.b32.cont [11/16] 0.0, 128
    %1270 = vxpose.xlu0.b32.cont [12/16] 0.0, 128
    %1271 = vxpose.xlu0.b32.cont [13/16] 0.0, 128
    %1272 = vxpose.xlu0.b32.cont [14/16] 0.0, 128
    %1273 = vxpose.xlu0.b32.cont [15/16] 0.0, 128
    %1274 = vxpose.xlu0.b32.end [16/16] 0.0, 128
    %v1275 = vpop.trf.xlu0
    %v1276 = vpop.trf.xlu0
    %v1277 = vpop.trf.xlu0
    %v1278 = vpop.trf.xlu0
    %v1279 = vpop.trf.xlu0
    %v1280 = vpop.trf.xlu0
    %v1281 = vpop.trf.xlu0
    %v1282 = vpop.trf.xlu0
    %v1283 = vpop.trf.xlu0
    %v1284 = vpop.trf.xlu0
    %v1285 = vpop.trf.xlu0
    %v1286 = vpop.trf.xlu0
    %v1287 = vpop.trf.xlu0
    %v1288 = vpop.trf.xlu0
    %v1289 = vpop.trf.xlu0
    %v1290 = vpop.trf.xlu0
    %v1291 = vadd.f32 %v1254, %v1275
    %v1292 = vadd.f32 %v1257, %v1276
    %v1293 = vmul.f32 %v1291, 0.5
    %v1294 = vmul.f32 %v1292, 0.5
    %1295 = vrot.lane.b32.xlu0 %v926, 112
    %v1296 = vpop.permute.xlu0 %1295
    %1297 = vrot.lane.b32.xlu0 %v927, 112
    %v1298 = vpop.permute.xlu0 %1297
    %1301 = vrot.lane.b32.xlu0 %v1147, 120
    %v1302 = vpop.permute.xlu0 %1301
    %1303 = vrot.lane.b32.xlu0 %v1148, 120
    %v1304 = vpop.permute.xlu0 %1303
    %v1307 = vsel %vm477, %v1296, %v1302
    %v1308 = vsel %vm477, %v1298, %v1304
    %1311 = vrot.lane.b32.xlu0 %v1293, 16
    %v1312 = vpop.permute.xlu0 %1311
    %1313 = vrot.lane.b32.xlu0 %v1294, 16
    %v1314 = vpop.permute.xlu0 %1313
    %1317 = vrot.lane.b32.xlu0 %v254, 32
    %v1318 = vpop.permute.xlu0 %1317
    %1319 = vrot.lane.b32.xlu0 %v255, 32
    %v1320 = vpop.permute.xlu0 %1319
    %1325 = vrot.lane.b32.xlu0 %v280, 48
    %v1326 = vpop.permute.xlu0 %1325
    %1327 = vrot.lane.b32.xlu0 %v283, 48
    %v1328 = vpop.permute.xlu0 %1327
    %v1331 = vsel %vm223, %v1072, %v1312
    %v1332 = vsel %vm223, %v1073, %v1314
    %v1333 = vsel %vm855, %v1331, %v1318
    %v1334 = vsel %vm855, %v1332, %v1320
    %v1335 = vsel %vm858, %v1333, %v1326
    %v1336 = vsel %vm858, %v1334, %v1328
    %v1337 = vld [vmem:[%s17] sm:$0xff]
    %v1338 = vld [vmem:[%s17 + $0x8] sm:$0xff]
    %v1339 = vld [vmem:[%s21] sm:$0x1]
    %v1341 = vperm.slane %v1339, 0
    %v1344 = vsel %vm223, %v829, 0
    %v1347 = vsel %vm223, %v830, 0
    %v1350 = vsel %vm223, %v1307, 0
    %v1353 = vsel %vm223, %v1308, 0
    %1355 = vmatpush.msra.mxu0 0.0
    %1356 = vmatpush.msra.mxu0 0.0
    %1357 = vmatpush.msra.mxu0 0.0
    %1358 = vmatpush.msra.mxu0 0.0
    %1359 = vmatpush.msra.mxu0 0.0
    %1360 = vmatpush.msra.mxu0 0.0
    %1361 = vmatpush.msra.mxu0 0.0
    %1362 = vmatpush.msra.mxu0 0.0
    %1363 = vmatpush.msra.mxu0 0.0
    %1364 = vmatpush.msra.mxu0 0.0
    %1365 = vmatpush.msra.mxu0 0.0
    %1366 = vmatpush.msra.mxu0 0.0
    %1367 = vmatpush.msra.mxu0 0.0
    %1368 = vmatpush.msra.mxu0 0.0
    %1369 = vmatpush.msra.mxu0 %v1338
    %1370 = vmatpush.msra.mxu0 %v1337
    %1371 = vmatmul.f32.gmra.mxu0 %v1344
    %v1372 = vpop.f32.mrf.mxu0
    %v1373 = vadd.f32 %v1341, %v1372
    %1374 = vmatmul.f32.gmra.mxu0 %v1347
    %v1375 = vpop.f32.mrf.mxu0
    %v1376 = vadd.f32 %v1341, %v1375
    %1377 = vmatmul.f32.gmra.mxu0 %v1350
    %v1378 = vpop.f32.mrf.mxu0
    %v1379 = vadd.f32 %v1341, %v1378
    %1380 = vmatmul.f32.gmra.mxu0 %v1353
    %v1381 = vpop.f32.mrf.mxu0
    %v1382 = vadd.f32 %v1341, %v1381
    %1383 = vdwg.mxu0
    %vm1384 = vcmp.gt.f32.partialorder %v1373, 0.0
    %vm1385 = vcmp.gt.f32.partialorder %v1376, 0.0
    %vm1386 = vcmp.gt.f32.partialorder %v1379, 0.0
    %vm1387 = vcmp.gt.f32.partialorder %v1382, 0.0
    %v1388 = vmin.f32 %v1373, 0.0
    %v1389 = vmin.f32 %v1376, 0.0
    %v1390 = vmin.f32 %v1379, 0.0
    %v1391 = vmin.f32 %v1382, 0.0
    %v1392 = vmul.f32 %v1388, 1.442695
    %v1393 = vpow.pop %v1392
    %v1394 = vmul.f32 %v1389, 1.442695
    %v1395 = vpow.pop %v1394
    %v1396 = vmul.f32 %v1390, 1.442695
    %v1397 = vpow.pop %v1396
    %v1398 = vmul.f32 %v1391, 1.442695
    %v1399 = vpow.pop %v1398
    %v1400 = vsub.f32 %v1393, 1.0
    %v1401 = vsub.f32 %v1395, 1.0
    %v1402 = vsub.f32 %v1397, 1.0
    %v1403 = vsub.f32 %v1399, 1.0
    %v1404 = vsel %vm1384, %v1373, %v1400
    %v1405 = vsel %vm1385, %v1376, %v1401
    %v1406 = vsel %vm1386, %v1379, %v1402
    %v1407 = vsel %vm1387, %v1382, %v1403
    %v1408 = vld [vmem:[%s19] sm:$0xff]
    %v1409 = vld [vmem:[%s23] sm:$0x1]
    %v1411 = vperm.slane %v1409, 0
    %v1414 = vsel %vm477, %v1404, 0
    %v1417 = vsel %vm477, %v1405, 0
    %v1420 = vsel %vm477, %v1406, 0
    %v1423 = vsel %vm477, %v1407, 0
    %1425 = vmatpush.msra.mxu0 0.0
    %1426 = vmatpush.msra.mxu0 0.0
    %1427 = vmatpush.msra.mxu0 0.0
    %1428 = vmatpush.msra.mxu0 0.0
    %1429 = vmatpush.msra.mxu0 0.0
    %1430 = vmatpush.msra.mxu0 0.0
    %1431 = vmatpush.msra.mxu0 0.0
    %1432 = vmatpush.msra.mxu0 0.0
    %1433 = vmatpush.msra.mxu0 0.0
    %1434 = vmatpush.msra.mxu0 0.0
    %1435 = vmatpush.msra.mxu0 0.0
    %1436 = vmatpush.msra.mxu0 0.0
    %1437 = vmatpush.msra.mxu0 0.0
    %1438 = vmatpush.msra.mxu0 0.0
    %1439 = vmatpush.msra.mxu0 0.0
    %1440 = vmatpush.msra.mxu0 %v1408
    %1441 = vmatmul.f32.gmra.mxu0 %v1414
    %v1442 = vpop.f32.mrf.mxu0
    %v1443 = vadd.f32 %v1411, %v1442
    %1444 = vmatmul.f32.gmra.mxu0 %v1417
    %v1445 = vpop.f32.mrf.mxu0
    %v1446 = vadd.f32 %v1411, %v1445
    %1447 = vmatmul.f32.gmra.mxu0 %v1420
    %v1448 = vpop.f32.mrf.mxu0
    %v1449 = vadd.f32 %v1411, %v1448
    %1450 = vmatmul.f32.gmra.mxu0 %v1423
    %v1451 = vpop.f32.mrf.mxu0
    %v1452 = vadd.f32 %v1411, %v1451
    %1453 = vdwg.mxu0
    %1455 = vset.pattern.permute.xlu0 0
    %1456 = vperm.xlu0 %1455, %v211
    %v1457 = vpop.permute.xlu0 %1456
    %1460 = vset.pattern.permute.xlu0 0
    %1461 = vperm.xlu0 %1460, %v212
    %v1462 = vpop.permute.xlu0 %1461
    %1465 = vset.pattern.permute.xlu0 0
    %1466 = vperm.xlu0 %1465, %v213
    %v1467 = vpop.permute.xlu0 %1466
    %1470 = vset.pattern.permute.xlu0 0
    %1471 = vperm.xlu0 %1470, %v214
    %v1472 = vpop.permute.xlu0 %1471
    %v1474 = vmul.f32 %v1443, %v1457
    %v1475 = vmul.f32 %v1446, %v1462
    %v1476 = vmul.f32 %v1449, %v1467
    %v1477 = vmul.f32 %v1452, %v1472
    %v1478 = vtanh.pop %v1474
    %v1479 = vtanh.pop %v1475
    %v1480 = vtanh.pop %v1476
    %v1481 = vtanh.pop %v1477
    %v1482 = vld [vmem:[%s25] sm:$0xff]
    %v1483 = vld [vmem:[%s25 + $0x8] sm:$0xff]
    %v1484 = vld [vmem:[%s25 + $0x10] sm:$0xff]
    %v1485 = vld [vmem:[%s25 + $0x18] sm:$0xff]
    %v1486 = vld [vmem:[%s25 + $0x20] sm:$0xff]
    %v1487 = vld [vmem:[%s25 + $0x28] sm:$0xff]
    %v1488 = vld [vmem:[%s25 + $0x30] sm:$0xff]
    %v1489 = vld [vmem:[%s25 + $0x38] sm:$0xff]
    %v1490 = vld [vmem:[%s29] sm:$0x1]
    %v1492 = vperm.slane %v1490, 0
    %v1495 = vsel %vm527, %v859, 0
    %v1498 = vsel %vm527, %v860, 0
    %v1501 = vsel %vm527, %v1335, 0
    %v1504 = vsel %vm527, %v1336, 0
    %1506 = vmatpush.msra.mxu0 0.0
    %1507 = vmatpush.msra.mxu0 0.0
    %1508 = vmatpush.msra.mxu0 0.0
    %1509 = vmatpush.msra.mxu0 0.0
    %1510 = vmatpush.msra.mxu0 0.0
    %1511 = vmatpush.msra.mxu0 0.0
    %1512 = vmatpush.msra.mxu0 0.0
    %1513 = vmatpush.msra.mxu0 0.0
    %1514 = vmatpush.msra.mxu0 %v1489
    %1515 = vmatpush.msra.mxu0 %v1488
    %1516 = vmatpush.msra.mxu0 %v1487
    %1517 = vmatpush.msra.mxu0 %v1486
    %1518 = vmatpush.msra.mxu0 %v1485
    %1519 = vmatpush.msra.mxu0 %v1484
    %1520 = vmatpush.msra.mxu0 %v1483
    %1521 = vmatpush.msra.mxu0 %v1482
    %1522 = vmatmul.f32.gmra.mxu0 %v1495
    %v1523 = vpop.f32.mrf.mxu0
    %v1524 = vadd.f32 %v1492, %v1523
    %1525 = vmatmul.f32.gmra.mxu0 %v1498
    %v1526 = vpop.f32.mrf.mxu0
    %v1527 = vadd.f32 %v1492, %v1526
    %1528 = vmatmul.f32.gmra.mxu0 %v1501
    %v1529 = vpop.f32.mrf.mxu0
    %v1530 = vadd.f32 %v1492, %v1529
    %1531 = vmatmul.f32.gmra.mxu0 %v1504
    %v1532 = vpop.f32.mrf.mxu0
    %v1533 = vadd.f32 %v1492, %v1532
    %1534 = vdwg.mxu0
    %vm1535 = vcmp.gt.f32.partialorder %v1524, 0.0
    %vm1536 = vcmp.gt.f32.partialorder %v1527, 0.0
    %vm1537 = vcmp.gt.f32.partialorder %v1530, 0.0
    %vm1538 = vcmp.gt.f32.partialorder %v1533, 0.0
    %v1539 = vmin.f32 %v1524, 0.0
    %v1540 = vmin.f32 %v1527, 0.0
    %v1541 = vmin.f32 %v1530, 0.0
    %v1542 = vmin.f32 %v1533, 0.0
    %v1543 = vmul.f32 %v1539, 1.442695
    %v1544 = vpow.pop %v1543
    %v1545 = vmul.f32 %v1540, 1.442695
    %v1546 = vpow.pop %v1545
    %v1547 = vmul.f32 %v1541, 1.442695
    %v1548 = vpow.pop %v1547
    %v1549 = vmul.f32 %v1542, 1.442695
    %v1550 = vpow.pop %v1549
    %v1551 = vsub.f32 %v1544, 1.0
    %v1552 = vsub.f32 %v1546, 1.0
    %v1553 = vsub.f32 %v1548, 1.0
    %v1554 = vsub.f32 %v1550, 1.0
    %v1555 = vsel %vm1535, %v1524, %v1551
    %v1556 = vsel %vm1536, %v1527, %v1552
    %v1557 = vsel %vm1537, %v1530, %v1553
    %v1558 = vsel %vm1538, %v1533, %v1554
    %v1559 = vld [vmem:[%s27] sm:$0xff]
    %v1560 = vld [vmem:[%s27 + $0x8] sm:$0xff]
    %v1561 = vld [vmem:[%s27 + $0x10] sm:$0xff]
    %v1562 = vld [vmem:[%s27 + $0x18] sm:$0xff]
    %v1563 = vld [vmem:[%s27 + $0x20] sm:$0xff]
    %v1564 = vld [vmem:[%s27 + $0x28] sm:$0xff]
    %v1565 = vld [vmem:[%s27 + $0x30] sm:$0xff]
    %v1566 = vld [vmem:[%s27 + $0x38] sm:$0xff]
    %v1567 = vld [vmem:[%s27 + $0x40] sm:$0xff]
    %v1568 = vld [vmem:[%s27 + $0x48] sm:$0xff]
    %v1569 = vld [vmem:[%s27 + $0x50] sm:$0xff]
    %v1570 = vld [vmem:[%s27 + $0x58] sm:$0xff]
    %v1571 = vld [vmem:[%s27 + $0x60] sm:$0xff]
    %v1572 = vld [vmem:[%s27 + $0x68] sm:$0xff]
    %v1573 = vld [vmem:[%s27 + $0x70] sm:$0xff]
    %v1574 = vld [vmem:[%s27 + $0x78] sm:$0xff]
    %v1575 = vld [vmem:[%s31] sm:$0x1]
    %v1577 = vperm.slane %v1575, 0
    %1579 = vmatpush.msra.mxu0 %v1574
    %1580 = vmatpush.msra.mxu0 %v1573
    %1581 = vmatpush.msra.mxu0 %v1572
    %1582 = vmatpush.msra.mxu0 %v1571
    %1583 = vmatpush.msra.mxu0 %v1570
    %1584 = vmatpush.msra.mxu0 %v1569
    %1585 = vmatpush.msra.mxu0 %v1568
    %1586 = vmatpush.msra.mxu0 %v1567
    %1587 = vmatpush.msra.mxu0 %v1566
    %1588 = vmatpush.msra.mxu0 %v1565
    %1589 = vmatpush.msra.mxu0 %v1564
    %1590 = vmatpush.msra.mxu0 %v1563
    %1591 = vmatpush.msra.mxu0 %v1562
    %1592 = vmatpush.msra.mxu0 %v1561
    %1593 = vmatpush.msra.mxu0 %v1560
    %1594 = vmatpush.msra.mxu0 %v1559
    %1595 = vmatmul.f32.gmra.mxu0 %v1555
    %v1596 = vpop.f32.mrf.mxu0
    %v1597 = vadd.f32 %v1577, %v1596
    %1598 = vmatmul.f32.gmra.mxu0 %v1556
    %v1599 = vpop.f32.mrf.mxu0
    %v1600 = vadd.f32 %v1577, %v1599
    %1601 = vmatmul.f32.gmra.mxu0 %v1557
    %v1602 = vpop.f32.mrf.mxu0
    %v1603 = vadd.f32 %v1577, %v1602
    %1604 = vmatmul.f32.gmra.mxu0 %v1558
    %v1605 = vpop.f32.mrf.mxu0
    %v1606 = vadd.f32 %v1577, %v1605
    %1607 = vdwg.mxu0
    %1608 = vxpose.xlu0.b32.start [1/16] %v1597, 128
    %1609 = vxpose.xlu0.b32.cont [2/16] %v1600, 128
    %1610 = vxpose.xlu0.b32.cont [3/16] 0.0, 128
    %1611 = vxpose.xlu0.b32.cont [4/16] 0.0, 128
    %1612 = vxpose.xlu0.b32.cont [5/16] 0.0, 128
    %1613 = vxpose.xlu0.b32.cont [6/16] 0.0, 128
    %1614 = vxpose.xlu0.b32.cont [7/16] 0.0, 128
    %1615 = vxpose.xlu0.b32.cont [8/16] 0.0, 128
    %1616 = vxpose.xlu0.b32.cont [9/16] 0.0, 128
    %1617 = vxpose.xlu0.b32.cont [10/16] 0.0, 128
    %1618 = vxpose.xlu0.b32.cont [11/16] 0.0, 128
    %1619 = vxpose.xlu0.b32.cont [12/16] 0.0, 128
    %1620 = vxpose.xlu0.b32.cont [13/16] 0.0, 128
    %1621 = vxpose.xlu0.b32.cont [14/16] 0.0, 128
    %1622 = vxpose.xlu0.b32.cont [15/16] 0.0, 128
    %1623 = vxpose.xlu0.b32.end [16/16] 0.0, 128
    %v1624 = vpop.trf.xlu0
    %v1625 = vpop.trf.xlu0
    %v1626 = vpop.trf.xlu0
    %v1627 = vpop.trf.xlu0
    %v1628 = vpop.trf.xlu0
    %v1629 = vpop.trf.xlu0
    %v1630 = vpop.trf.xlu0
    %v1631 = vpop.trf.xlu0
    %v1632 = vpop.trf.xlu0
    %v1633 = vpop.trf.xlu0
    %v1634 = vpop.trf.xlu0
    %v1635 = vpop.trf.xlu0
    %v1636 = vpop.trf.xlu0
    %v1637 = vpop.trf.xlu0
    %v1638 = vpop.trf.xlu0
    %v1639 = vpop.trf.xlu0
    %v1640 = vadd.f32 %v1597, %v1624
    %v1641 = vadd.f32 %v1600, %v1625
    %v1642 = vmul.f32 %v1640, %v215
    %v1643 = vmul.f32 %v1641, %v216
    %1646 = vrot.lane.b32.xlu0 %v1597, 112
    %v1647 = vpop.permute.xlu0 %1646
    %1648 = vrot.lane.b32.xlu0 %v1600, 112
    %v1649 = vpop.permute.xlu0 %1648
    %1652 = vxpose.xlu0.b32.start [1/16] %v1647, 128
    %1653 = vxpose.xlu0.b32.cont [2/16] %v1649, 128
    %1654 = vxpose.xlu0.b32.cont [3/16] 0.0, 128
    %1655 = vxpose.xlu0.b32.cont [4/16] 0.0, 128
    %1656 = vxpose.xlu0.b32.cont [5/16] 0.0, 128
    %1657 = vxpose.xlu0.b32.cont [6/16] 0.0, 128
    %1658 = vxpose.xlu0.b32.cont [7/16] 0.0, 128
    %1659 = vxpose.xlu0.b32.cont [8/16] 0.0, 128
    %1660 = vxpose.xlu0.b32.cont [9/16] 0.0, 128
    %1661 = vxpose.xlu0.b32.cont [10/16] 0.0, 128
    %1662 = vxpose.xlu0.b32.cont [11/16] 0.0, 128
    %1663 = vxpose.xlu0.b32.cont [12/16] 0.0, 128
    %1664 = vxpose.xlu0.b32.cont [13/16] 0.0, 128
    %1665 = vxpose.xlu0.b32.cont [14/16] 0.0, 128
    %1666 = vxpose.xlu0.b32.cont [15/16] 0.0, 128
    %1667 = vxpose.xlu0.b32.end [16/16] 0.0, 128
    %v1668 = vpop.trf.xlu0
    %v1669 = vpop.trf.xlu0
    %v1670 = vpop.trf.xlu0
    %v1671 = vpop.trf.xlu0
    %v1672 = vpop.trf.xlu0
    %v1673 = vpop.trf.xlu0
    %v1674 = vpop.trf.xlu0
    %v1675 = vpop.trf.xlu0
    %v1676 = vpop.trf.xlu0
    %v1677 = vpop.trf.xlu0
    %v1678 = vpop.trf.xlu0
    %v1679 = vpop.trf.xlu0
    %v1680 = vpop.trf.xlu0
    %v1681 = vpop.trf.xlu0
    %v1682 = vpop.trf.xlu0
    %v1683 = vpop.trf.xlu0
    %1686 = vrot.lane.b32.xlu0 %v1668, 16
    %v1687 = vpop.permute.xlu0 %1686
    %1688 = vrot.lane.b32.xlu0 %v1669, 16
    %v1689 = vpop.permute.xlu0 %1688
    %v1692 = vadd.f32 %v1597, %v1687
    %v1693 = vadd.f32 %v1600, %v1689
    %1696 = vrot.lane.b32.xlu0 %v215, 16
    %v1697 = vpop.permute.xlu0 %1696
    %1698 = vrot.lane.b32.xlu0 %v216, 16
    %v1699 = vpop.permute.xlu0 %1698
    %v1702 = vmul.f32 %v1692, %v1697
    %v1703 = vmul.f32 %v1693, %v1699
    %1704 = vrot.lane.b32.xlu0 %v1597, 96
    %v1705 = vpop.permute.xlu0 %1704
    %1706 = vrot.lane.b32.xlu0 %v1600, 96
    %v1707 = vpop.permute.xlu0 %1706
    %1710 = vxpose.xlu0.b32.start [1/16] %v1705, 128
    %1711 = vxpose.xlu0.b32.cont [2/16] %v1707, 128
    %1712 = vxpose.xlu0.b32.cont [3/16] 0.0, 128
    %1713 = vxpose.xlu0.b32.cont [4/16] 0.0, 128
    %1714 = vxpose.xlu0.b32.cont [5/16] 0.0, 128
    %1715 = vxpose.xlu0.b32.cont [6/16] 0.0, 128
    %1716 = vxpose.xlu0.b32.cont [7/16] 0.0, 128
    %1717 = vxpose.xlu0.b32.cont [8/16] 0.0, 128
    %1718 = vxpose.xlu0.b32.cont [9/16] 0.0, 128
    %1719 = vxpose.xlu0.b32.cont [10/16] 0.0, 128
    %1720 = vxpose.xlu0.b32.cont [11/16] 0.0, 128
    %1721 = vxpose.xlu0.b32.cont [12/16] 0.0, 128
    %1722 = vxpose.xlu0.b32.cont [13/16] 0.0, 128
    %1723 = vxpose.xlu0.b32.cont [14/16] 0.0, 128
    %1724 = vxpose.xlu0.b32.cont [15/16] 0.0, 128
    %1725 = vxpose.xlu0.b32.end [16/16] 0.0, 128
    %v1726 = vpop.trf.xlu0
    %v1727 = vpop.trf.xlu0
    %v1728 = vpop.trf.xlu0
    %v1729 = vpop.trf.xlu0
    %v1730 = vpop.trf.xlu0
    %v1731 = vpop.trf.xlu0
    %v1732 = vpop.trf.xlu0
    %v1733 = vpop.trf.xlu0
    %v1734 = vpop.trf.xlu0
    %v1735 = vpop.trf.xlu0
    %v1736 = vpop.trf.xlu0
    %v1737 = vpop.trf.xlu0
    %v1738 = vpop.trf.xlu0
    %v1739 = vpop.trf.xlu0
    %v1740 = vpop.trf.xlu0
    %v1741 = vpop.trf.xlu0
    %1744 = vrot.lane.b32.xlu0 %v1726, 32
    %v1745 = vpop.permute.xlu0 %1744
    %1746 = vrot.lane.b32.xlu0 %v1727, 32
    %v1747 = vpop.permute.xlu0 %1746
    %v1750 = vadd.f32 %v1597, %v1745
    %v1751 = vadd.f32 %v1600, %v1747
    %1752 = vrot.lane.b32.xlu0 %v215, 32
    %v1753 = vpop.permute.xlu0 %1752
    %1754 = vrot.lane.b32.xlu0 %v216, 32
    %v1755 = vpop.permute.xlu0 %1754
    %v1758 = vmul.f32 %v1750, %v1753
    %v1759 = vmul.f32 %v1751, %v1755
    %1760 = vrot.lane.b32.xlu0 %v1597, 80
    %v1761 = vpop.permute.xlu0 %1760
    %1762 = vrot.lane.b32.xlu0 %v1600, 80
    %v1763 = vpop.permute.xlu0 %1762
    %1766 = vxpose.xlu0.b32.start [1/16] %v1761, 128
    %1767 = vxpose.xlu0.b32.cont [2/16] %v1763, 128
    %1768 = vxpose.xlu0.b32.cont [3/16] 0.0, 128
    %1769 = vxpose.xlu0.b32.cont [4/16] 0.0, 128
    %1770 = vxpose.xlu0.b32.cont [5/16] 0.0, 128
    %1771 = vxpose.xlu0.b32.cont [6/16] 0.0, 128
    %1772 = vxpose.xlu0.b32.cont [7/16] 0.0, 128
    %1773 = vxpose.xlu0.b32.cont [8/16] 0.0, 128
    %1774 = vxpose.xlu0.b32.cont [9/16] 0.0, 128
    %1775 = vxpose.xlu0.b32.cont [10/16] 0.0, 128
    %1776 = vxpose.xlu0.b32.cont [11/16] 0.0, 128
    %1777 = vxpose.xlu0.b32.cont [12/16] 0.0, 128
    %1778 = vxpose.xlu0.b32.cont [13/16] 0.0, 128
    %1779 = vxpose.xlu0.b32.cont [14/16] 0.0, 128
    %1780 = vxpose.xlu0.b32.cont [15/16] 0.0, 128
    %1781 = vxpose.xlu0.b32.end [16/16] 0.0, 128
    %v1782 = vpop.trf.xlu0
    %v1783 = vpop.trf.xlu0
    %v1784 = vpop.trf.xlu0
    %v1785 = vpop.trf.xlu0
    %v1786 = vpop.trf.xlu0
    %v1787 = vpop.trf.xlu0
    %v1788 = vpop.trf.xlu0
    %v1789 = vpop.trf.xlu0
    %v1790 = vpop.trf.xlu0
    %v1791 = vpop.trf.xlu0
    %v1792 = vpop.trf.xlu0
    %v1793 = vpop.trf.xlu0
    %v1794 = vpop.trf.xlu0
    %v1795 = vpop.trf.xlu0
    %v1796 = vpop.trf.xlu0
    %v1797 = vpop.trf.xlu0
    %1800 = vrot.lane.b32.xlu0 %v1782, 48
    %v1801 = vpop.permute.xlu0 %1800
    %1802 = vrot.lane.b32.xlu0 %v1783, 48
    %v1803 = vpop.permute.xlu0 %1802
    %v1806 = vadd.f32 %v1597, %v1801
    %v1807 = vadd.f32 %v1600, %v1803
    %1808 = vrot.lane.b32.xlu0 %v215, 48
    %v1809 = vpop.permute.xlu0 %1808
    %1810 = vrot.lane.b32.xlu0 %v216, 48
    %v1811 = vpop.permute.xlu0 %1810
    %v1814 = vmul.f32 %v1806, %v1809
    %v1815 = vmul.f32 %v1807, %v1811
    %1816 = vxpose.xlu0.b32.start [1/16] %v1603, 128
    %1817 = vxpose.xlu0.b32.cont [2/16] %v1606, 128
    %1818 = vxpose.xlu0.b32.cont [3/16] 0.0, 128
    %1819 = vxpose.xlu0.b32.cont [4/16] 0.0, 128
    %1820 = vxpose.xlu0.b32.cont [5/16] 0.0, 128
    %1821 = vxpose.xlu0.b32.cont [6/16] 0.0, 128
    %1822 = vxpose.xlu0.b32.cont [7/16] 0.0, 128
    %1823 = vxpose.xlu0.b32.cont [8/16] 0.0, 128
    %1824 = vxpose.xlu0.b32.cont [9/16] 0.0, 128
    %1825 = vxpose.xlu0.b32.cont [10/16] 0.0, 128
    %1826 = vxpose.xlu0.b32.cont [11/16] 0.0, 128
    %1827 = vxpose.xlu0.b32.cont [12/16] 0.0, 128
    %1828 = vxpose.xlu0.b32.cont [13/16] 0.0, 128
    %1829 = vxpose.xlu0.b32.cont [14/16] 0.0, 128
    %1830 = vxpose.xlu0.b32.cont [15/16] 0.0, 128
    %1831 = vxpose.xlu0.b32.end [16/16] 0.0, 128
    %v1832 = vpop.trf.xlu0
    %v1833 = vpop.trf.xlu0
    %v1834 = vpop.trf.xlu0
    %v1835 = vpop.trf.xlu0
    %v1836 = vpop.trf.xlu0
    %v1837 = vpop.trf.xlu0
    %v1838 = vpop.trf.xlu0
    %v1839 = vpop.trf.xlu0
    %v1840 = vpop.trf.xlu0
    %v1841 = vpop.trf.xlu0
    %v1842 = vpop.trf.xlu0
    %v1843 = vpop.trf.xlu0
    %v1844 = vpop.trf.xlu0
    %v1845 = vpop.trf.xlu0
    %v1846 = vpop.trf.xlu0
    %v1847 = vpop.trf.xlu0
    %v1848 = vadd.f32 %v1603, %v1832
    %v1849 = vadd.f32 %v1606, %v1833
    %v1850 = vmul.f32 %v1848, %v217
    %v1851 = vmul.f32 %v1849, %v218
    %1854 = vrot.lane.b32.xlu0 %v1603, 112
    %v1855 = vpop.permute.xlu0 %1854
    %1856 = vrot.lane.b32.xlu0 %v1606, 112
    %v1857 = vpop.permute.xlu0 %1856
    %1860 = vxpose.xlu0.b32.start [1/16] %v1855, 128
    %1861 = vxpose.xlu0.b32.cont [2/16] %v1857, 128
    %1862 = vxpose.xlu0.b32.cont [3/16] 0.0, 128
    %1863 = vxpose.xlu0.b32.cont [4/16] 0.0, 128
    %1864 = vxpose.xlu0.b32.cont [5/16] 0.0, 128
    %1865 = vxpose.xlu0.b32.cont [6/16] 0.0, 128
    %1866 = vxpose.xlu0.b32.cont [7/16] 0.0, 128
    %1867 = vxpose.xlu0.b32.cont [8/16] 0.0, 128
    %1868 = vxpose.xlu0.b32.cont [9/16] 0.0, 128
    %1869 = vxpose.xlu0.b32.cont [10/16] 0.0, 128
    %1870 = vxpose.xlu0.b32.cont [11/16] 0.0, 128
    %1871 = vxpose.xlu0.b32.cont [12/16] 0.0, 128
    %1872 = vxpose.xlu0.b32.cont [13/16] 0.0, 128
    %1873 = vxpose.xlu0.b32.cont [14/16] 0.0, 128
    %1874 = vxpose.xlu0.b32.cont [15/16] 0.0, 128
    %1875 = vxpose.xlu0.b32.end [16/16] 0.0, 128
    %v1876 = vpop.trf.xlu0
    %v1877 = vpop.trf.xlu0
    %v1878 = vpop.trf.xlu0
    %v1879 = vpop.trf.xlu0
    %v1880 = vpop.trf.xlu0
    %v1881 = vpop.trf.xlu0
    %v1882 = vpop.trf.xlu0
    %v1883 = vpop.trf.xlu0
    %v1884 = vpop.trf.xlu0
    %v1885 = vpop.trf.xlu0
    %v1886 = vpop.trf.xlu0
    %v1887 = vpop.trf.xlu0
    %v1888 = vpop.trf.xlu0
    %v1889 = vpop.trf.xlu0
    %v1890 = vpop.trf.xlu0
    %v1891 = vpop.trf.xlu0
    %1894 = vrot.lane.b32.xlu0 %v1876, 16
    %v1895 = vpop.permute.xlu0 %1894
    %1896 = vrot.lane.b32.xlu0 %v1877, 16
    %v1897 = vpop.permute.xlu0 %1896
    %v1900 = vadd.f32 %v1603, %v1895
    %v1901 = vadd.f32 %v1606, %v1897
    %1904 = vrot.lane.b32.xlu0 %v217, 16
    %v1905 = vpop.permute.xlu0 %1904
    %1906 = vrot.lane.b32.xlu0 %v218, 16
    %v1907 = vpop.permute.xlu0 %1906
    %v1910 = vmul.f32 %v1900, %v1905
    %v1911 = vmul.f32 %v1901, %v1907
    %1912 = vrot.lane.b32.xlu0 %v1603, 96
    %v1913 = vpop.permute.xlu0 %1912
    %1914 = vrot.lane.b32.xlu0 %v1606, 96
    %v1915 = vpop.permute.xlu0 %1914
    %1918 = vxpose.xlu0.b32.start [1/16] %v1913, 128
    %1919 = vxpose.xlu0.b32.cont [2/16] %v1915, 128
    %1920 = vxpose.xlu0.b32.cont [3/16] 0.0, 128
    %1921 = vxpose.xlu0.b32.cont [4/16] 0.0, 128
    %1922 = vxpose.xlu0.b32.cont [5/16] 0.0, 128
    %1923 = vxpose.xlu0.b32.cont [6/16] 0.0, 128
    %1924 = vxpose.xlu0.b32.cont [7/16] 0.0, 128
    %1925 = vxpose.xlu0.b32.cont [8/16] 0.0, 128
    %1926 = vxpose.xlu0.b32.cont [9/16] 0.0, 128
    %1927 = vxpose.xlu0.b32.cont [10/16] 0.0, 128
    %1928 = vxpose.xlu0.b32.cont [11/16] 0.0, 128
    %1929 = vxpose.xlu0.b32.cont [12/16] 0.0, 128
    %1930 = vxpose.xlu0.b32.cont [13/16] 0.0, 128
    %1931 = vxpose.xlu0.b32.cont [14/16] 0.0, 128
    %1932 = vxpose.xlu0.b32.cont [15/16] 0.0, 128
    %1933 = vxpose.xlu0.b32.end [16/16] 0.0, 128
    %v1934 = vpop.trf.xlu0
    %v1935 = vpop.trf.xlu0
    %v1936 = vpop.trf.xlu0
    %v1937 = vpop.trf.xlu0
    %v1938 = vpop.trf.xlu0
    %v1939 = vpop.trf.xlu0
    %v1940 = vpop.trf.xlu0
    %v1941 = vpop.trf.xlu0
    %v1942 = vpop.trf.xlu0
    %v1943 = vpop.trf.xlu0
    %v1944 = vpop.trf.xlu0
    %v1945 = vpop.trf.xlu0
    %v1946 = vpop.trf.xlu0
    %v1947 = vpop.trf.xlu0
    %v1948 = vpop.trf.xlu0
    %v1949 = vpop.trf.xlu0
    %1952 = vrot.lane.b32.xlu0 %v1934, 32
    %v1953 = vpop.permute.xlu0 %1952
    %1954 = vrot.lane.b32.xlu0 %v1935, 32
    %v1955 = vpop.permute.xlu0 %1954
    %v1958 = vadd.f32 %v1603, %v1953
    %v1959 = vadd.f32 %v1606, %v1955
    %1960 = vrot.lane.b32.xlu0 %v217, 32
    %v1961 = vpop.permute.xlu0 %1960
    %1962 = vrot.lane.b32.xlu0 %v218, 32
    %v1963 = vpop.permute.xlu0 %1962
    %v1966 = vmul.f32 %v1958, %v1961
    %v1967 = vmul.f32 %v1959, %v1963
    %1968 = vrot.lane.b32.xlu0 %v1603, 80
    %v1969 = vpop.permute.xlu0 %1968
    %1970 = vrot.lane.b32.xlu0 %v1606, 80
    %v1971 = vpop.permute.xlu0 %1970
    %1974 = vxpose.xlu0.b32.start [1/16] %v1969, 128
    %1975 = vxpose.xlu0.b32.cont [2/16] %v1971, 128
    %1976 = vxpose.xlu0.b32.cont [3/16] 0.0, 128
    %1977 = vxpose.xlu0.b32.cont [4/16] 0.0, 128
    %1978 = vxpose.xlu0.b32.cont [5/16] 0.0, 128
    %1979 = vxpose.xlu0.b32.cont [6/16] 0.0, 128
    %1980 = vxpose.xlu0.b32.cont [7/16] 0.0, 128
    %1981 = vxpose.xlu0.b32.cont [8/16] 0.0, 128
    %1982 = vxpose.xlu0.b32.cont [9/16] 0.0, 128
    %1983 = vxpose.xlu0.b32.cont [10/16] 0.0, 128
    %1984 = vxpose.xlu0.b32.cont [11/16] 0.0, 128
    %1985 = vxpose.xlu0.b32.cont [12/16] 0.0, 128
    %1986 = vxpose.xlu0.b32.cont [13/16] 0.0, 128
    %1987 = vxpose.xlu0.b32.cont [14/16] 0.0, 128
    %1988 = vxpose.xlu0.b32.cont [15/16] 0.0, 128
    %1989 = vxpose.xlu0.b32.end [16/16] 0.0, 128
    %v1990 = vpop.trf.xlu0
    %v1991 = vpop.trf.xlu0
    %v1992 = vpop.trf.xlu0
    %v1993 = vpop.trf.xlu0
    %v1994 = vpop.trf.xlu0
    %v1995 = vpop.trf.xlu0
    %v1996 = vpop.trf.xlu0
    %v1997 = vpop.trf.xlu0
    %v1998 = vpop.trf.xlu0
    %v1999 = vpop.trf.xlu0
    %v2000 = vpop.trf.xlu0
    %v2001 = vpop.trf.xlu0
    %v2002 = vpop.trf.xlu0
    %v2003 = vpop.trf.xlu0
    %v2004 = vpop.trf.xlu0
    %v2005 = vpop.trf.xlu0
    %2008 = vrot.lane.b32.xlu0 %v1990, 48
    %v2009 = vpop.permute.xlu0 %2008
    %2010 = vrot.lane.b32.xlu0 %v1991, 48
    %v2011 = vpop.permute.xlu0 %2010
    %v2014 = vadd.f32 %v1603, %v2009
    %v2015 = vadd.f32 %v1606, %v2011
    %2016 = vrot.lane.b32.xlu0 %v217, 48
    %v2017 = vpop.permute.xlu0 %2016
    %2018 = vrot.lane.b32.xlu0 %v218, 48
    %v2019 = vpop.permute.xlu0 %2018
    %v2022 = vmul.f32 %v2014, %v2017
    %v2023 = vmul.f32 %v2015, %v2019
    %v2024 = vld [vmem:[%s33] sm:$0xff]
    %v2026 = vsel %vm477, %v1478, 0
    %v2029 = vsel %vm477, %v1479, 0
    %v2032 = vsel %vm477, %v1480, 0
    %v2035 = vsel %vm477, %v1481, 0
    %2037 = vmatpush.msra.mxu0 0.0
    %2038 = vmatpush.msra.mxu0 0.0
    %2039 = vmatpush.msra.mxu0 0.0
    %2040 = vmatpush.msra.mxu0 0.0
    %2041 = vmatpush.msra.mxu0 0.0
    %2042 = vmatpush.msra.mxu0 0.0
    %2043 = vmatpush.msra.mxu0 0.0
    %2044 = vmatpush.msra.mxu0 0.0
    %2045 = vmatpush.msra.mxu0 0.0
    %2046 = vmatpush.msra.mxu0 0.0
    %2047 = vmatpush.msra.mxu0 0.0
    %2048 = vmatpush.msra.mxu0 0.0
    %2049 = vmatpush.msra.mxu0 0.0
    %2050 = vmatpush.msra.mxu0 0.0
    %2051 = vmatpush.msra.mxu0 0.0
    %2052 = vmatpush.msra.mxu0 %v2024
    %2053 = vmatmul.f32.gmra.mxu0 %v2026
    %v2054 = vpop.f32.mrf.mxu0
    %v2055 = vadd.f32 0.0, %v2054
    %2056 = vmatmul.f32.gmra.mxu0 %v2029
    %v2057 = vpop.f32.mrf.mxu0
    %v2058 = vadd.f32 0.0, %v2057
    %2059 = vmatmul.f32.gmra.mxu0 %v2032
    %v2060 = vpop.f32.mrf.mxu0
    %v2061 = vadd.f32 0.0, %v2060
    %2062 = vmatmul.f32.gmra.mxu0 %v2035
    %v2063 = vpop.f32.mrf.mxu0
    %v2064 = vadd.f32 0.0, %v2063
    %2065 = vdwg.mxu0
    %v2066 = vld [vmem:[%s35] sm:$0x1]
    %v2067 = vmul.f32 %v1642, %v209
    %v2068 = vmul.f32 %v1643, %v210
    %v2069 = vadd.f32 %v2067, %v207
    %v2070 = vadd.f32 %v2068, %v208
    %v2071 = vsel %vm223, %v2069, 0.0
    %2072 = vadd.xlane.f32.xlu0 %v2071
    %v2073 = vpop.xlane.xlu0 %2072
    %v2074 = vsel %vm223, %v2070, 0.0
    %2075 = vadd.xlane.f32.xlu0 %v2074
    %v2076 = vpop.xlane.xlu0 %2075
    %v2077 = vmax.f32 %v2073, 1.0
    %v2078 = vmax.f32 %v2076, 1.0
    %v2079 = vrsqrt.pop %v2077
    %v2080 = vmul.f32 %v2079, %v2077
    %v2081 = vmul.f32 %v2080, %v2079
    %v2082 = vmul.f32 0.5, %v2081
    %v2083 = vsub.f32 1.5, %v2082
    %v2084 = vmul.f32 %v2079, %v2083
    %vm2085 = vweird.f32 %v2077
    %vm2086 = vweird.f32 %v2079
    %vm2087 = vmor %vm2085, %vm2086
    %v2088 = vsel %vm2087, %v2079, %v2084
    %v2089 = vrsqrt.pop %v2078
    %v2090 = vmul.f32 %v2089, %v2078
    %v2091 = vmul.f32 %v2090, %v2089
    %v2092 = vmul.f32 0.5, %v2091
    %v2093 = vsub.f32 1.5, %v2092
    %v2094 = vmul.f32 %v2089, %v2093
    %vm2095 = vweird.f32 %v2078
    %vm2096 = vweird.f32 %v2089
    %vm2097 = vmor %vm2095, %vm2096
    %v2098 = vsel %vm2097, %v2089, %v2094
    %v2099 = vmul.f32 %v2055, %v2088
    %v2100 = vmul.f32 %v2058, %v2098
    %v2102 = vsel %vm223, %v2069, 0
    %v2105 = vsel %vm223, %v2070, 0
    %2107 = vmatpush.msra.mxu0 0.0
    %2108 = vmatpush.msra.mxu0 0.0
    %2109 = vmatpush.msra.mxu0 0.0
    %2110 = vmatpush.msra.mxu0 0.0
    %2111 = vmatpush.msra.mxu0 0.0
    %2112 = vmatpush.msra.mxu0 0.0
    %2113 = vmatpush.msra.mxu0 0.0
    %2114 = vmatpush.msra.mxu0 0.0
    %2115 = vmatpush.msra.mxu0 0.0
    %2116 = vmatpush.msra.mxu0 0.0
    %2117 = vmatpush.msra.mxu0 0.0
    %2118 = vmatpush.msra.mxu0 0.0
    %2119 = vmatpush.msra.mxu0 0.0
    %2120 = vmatpush.msra.mxu0 0.0
    %2121 = vmatpush.msra.mxu0 %v2100
    %2122 = vmatpush.msra.mxu0 %v2099
    %2123 = vmatmul.f32.gmra.mxu0 %v2102
    %v2124 = vpop.f32.mrf.mxu0
    %v2125 = vadd.f32 0.0, %v2124
    %2126 = vmatmul.f32.gmra.mxu0 %v2105
    %v2127 = vpop.f32.mrf.mxu0
    %v2128 = vadd.f32 0.0, %v2127
    %2129 = vdwg.mxu0
    %v2130 = vmul.f32 %v2125, %v2088
    %v2131 = vmul.f32 %v2128, %v2098
    %v2133 = vperm.slane %v2066, 0
    %v2135 = vadd.f32 %v2130, %v2133
    %v2136 = vadd.f32 %v2131, %v2133
    %v2137 = vmul.f32 %v2135, %v431
    %v2138 = vmul.f32 %v2136, %v431
    %v2139 = vmul.f32 %v2135, %v437
    %v2140 = vmul.f32 %v2136, %v437
    %v2141 = vmul.f32 %v2135, %v443
    %v2142 = vmul.f32 %v2136, %v443
    %v2143 = vmul.f32 %v2135, %v449
    %v2144 = vmul.f32 %v2136, %v449
    %2153 = vrot.lane.b32.xlu0 %v2137, 120
    %v2154 = vpop.permute.xlu0 %2153
    %2155 = vrot.lane.b32.xlu0 %v2138, 120
    %v2156 = vpop.permute.xlu0 %2155
    %2157 = vrot.lane.b32.xlu0 %v2139, 120
    %v2158 = vpop.permute.xlu0 %2157
    %2159 = vrot.lane.b32.xlu0 %v2140, 120
    %v2160 = vpop.permute.xlu0 %2159
    %2161 = vrot.lane.b32.xlu0 %v2141, 120
    %v2162 = vpop.permute.xlu0 %2161
    %2163 = vrot.lane.b32.xlu0 %v2142, 120
    %v2164 = vpop.permute.xlu0 %2163
    %2165 = vrot.lane.b32.xlu0 %v2143, 120
    %v2166 = vpop.permute.xlu0 %2165
    %2167 = vrot.lane.b32.xlu0 %v2144, 120
    %v2168 = vpop.permute.xlu0 %2167
    %v2170 = vsel %vm477, %v2135, 0
    %v2173 = vsel %vm477, %v2136, 0
    %v2175 = vsel %vm477, %v2154, 0
    %v2177 = vsel %vm477, %v2156, 0
    %v2179 = vsel %vm477, %v2158, 0
    %v2181 = vsel %vm477, %v2160, 0
    %v2183 = vsel %vm477, %v2162, 0
    %v2185 = vsel %vm477, %v2164, 0
    %v2187 = vsel %vm477, %v2166, 0
    %v2189 = vsel %vm477, %v2168, 0
    %2191 = vmatpush.xpose.msra.mxu0 0.0
    %2192 = vmatpush.xpose.msra.mxu0 0.0
    %2193 = vmatpush.xpose.msra.mxu0 0.0
    %2194 = vmatpush.xpose.msra.mxu0 0.0
    %2195 = vmatpush.xpose.msra.mxu0 0.0
    %2196 = vmatpush.xpose.msra.mxu0 0.0
    %2197 = vmatpush.xpose.msra.mxu0 0.0
    %2198 = vmatpush.xpose.msra.mxu0 0.0
    %2199 = vmatpush.xpose.msra.mxu0 %v2189
    %2200 = vmatpush.xpose.msra.mxu0 %v2187
    %2201 = vmatpush.xpose.msra.mxu0 %v2185
    %2202 = vmatpush.xpose.msra.mxu0 %v2183
    %2203 = vmatpush.xpose.msra.mxu0 %v2181
    %2204 = vmatpush.xpose.msra.mxu0 %v2179
    %2205 = vmatpush.xpose.msra.mxu0 %v2177
    %2206 = vmatpush.xpose.msra.mxu0 %v2175
    %2207 = vmatmul.f32.gmra.mxu0 %v2170
    %v2208 = vpop.f32.mrf.mxu0
    %v2209 = vadd.f32 0.0, %v2208
    %2210 = vmatmul.f32.gmra.mxu0 %v2173
    %v2211 = vpop.f32.mrf.mxu0
    %v2212 = vadd.f32 0.0, %v2211
    %2213 = vdwg.mxu0
    %v2214 = vmul.f32 %v2209, 0.35355338
    %v2215 = vmul.f32 %v2212, 0.35355338
    %v2216 = vtanh.pop %v2214
    %v2217 = vtanh.pop %v2215
    %v2219 = vsel %vm527, %v2216, 0
    %v2222 = vsel %vm527, %v2217, 0
    %2224 = vmatpush.msra.mxu0 0.0
    %2225 = vmatpush.msra.mxu0 0.0
    %2226 = vmatpush.msra.mxu0 0.0
    %2227 = vmatpush.msra.mxu0 0.0
    %2228 = vmatpush.msra.mxu0 0.0
    %2229 = vmatpush.msra.mxu0 0.0
    %2230 = vmatpush.msra.mxu0 0.0
    %2231 = vmatpush.msra.mxu0 0.0
    %2232 = vmatpush.msra.mxu0 %v220
    %2233 = vmatpush.msra.mxu0 %v219
    %2234 = vmatpush.msra.mxu0 %v220
    %2235 = vmatpush.msra.mxu0 %v219
    %2236 = vmatpush.msra.mxu0 %v220
    %2237 = vmatpush.msra.mxu0 %v219
    %2238 = vmatpush.msra.mxu0 %v220
    %2239 = vmatpush.msra.mxu0 %v219
    %2240 = vmatmul.f32.gmra.mxu0 %v2219
    %v2241 = vpop.f32.mrf.mxu0
    %v2242 = vadd.f32 0.0, %v2241
    %2243 = vmatmul.f32.gmra.mxu0 %v2222
    %v2244 = vpop.f32.mrf.mxu0
    %v2245 = vadd.f32 0.0, %v2244
    %2246 = vdwg.mxu0
    %2247 = vxpose.xlu0.b32.start [1/16] %v2242, 128
    %2248 = vxpose.xlu0.b32.cont [2/16] %v2245, 128
    %2249 = vxpose.xlu0.b32.cont [3/16] 0.0, 128
    %2250 = vxpose.xlu0.b32.cont [4/16] 0.0, 128
    %2251 = vxpose.xlu0.b32.cont [5/16] 0.0, 128
    %2252 = vxpose.xlu0.b32.cont [6/16] 0.0, 128
    %2253 = vxpose.xlu0.b32.cont [7/16] 0.0, 128
    %2254 = vxpose.xlu0.b32.cont [8/16] 0.0, 128
    %2255 = vxpose.xlu0.b32.cont [9/16] 0.0, 128
    %2256 = vxpose.xlu0.b32.cont [10/16] 0.0, 128
    %2257 = vxpose.xlu0.b32.cont [11/16] 0.0, 128
    %2258 = vxpose.xlu0.b32.cont [12/16] 0.0, 128
    %2259 = vxpose.xlu0.b32.cont [13/16] 0.0, 128
    %2260 = vxpose.xlu0.b32.cont [14/16] 0.0, 128
    %2261 = vxpose.xlu0.b32.cont [15/16] 0.0, 128
    %2262 = vxpose.xlu0.b32.end [16/16] 0.0, 128
    %v2263 = vpop.trf.xlu0
    %v2264 = vpop.trf.xlu0
    %v2265 = vpop.trf.xlu0
    %v2266 = vpop.trf.xlu0
    %v2267 = vpop.trf.xlu0
    %v2268 = vpop.trf.xlu0
    %v2269 = vpop.trf.xlu0
    %v2270 = vpop.trf.xlu0
    %v2271 = vpop.trf.xlu0
    %v2272 = vpop.trf.xlu0
    %v2273 = vpop.trf.xlu0
    %v2274 = vpop.trf.xlu0
    %v2275 = vpop.trf.xlu0
    %v2276 = vpop.trf.xlu0
    %v2277 = vpop.trf.xlu0
    %v2278 = vpop.trf.xlu0
    %v2279 = vadd.f32 %v2242, %v2263
    %v2280 = vadd.f32 %v2245, %v2264
    %v2281 = vmul.f32 %v2279, 0.5
    %v2282 = vmul.f32 %v2280, 0.5
    %2285 = vrot.lane.b32.xlu0 %v209, 16
    %v2286 = vpop.permute.xlu0 %2285
    %2287 = vrot.lane.b32.xlu0 %v210, 16
    %v2288 = vpop.permute.xlu0 %2287
    %v2291 = vmul.f32 %v1702, %v2286
    %v2292 = vmul.f32 %v1703, %v2288
    %2295 = vrot.lane.b32.xlu0 %v207, 16
    %v2296 = vpop.permute.xlu0 %2295
    %2297 = vrot.lane.b32.xlu0 %v208, 16
    %v2298 = vpop.permute.xlu0 %2297
    %v2301 = vadd.f32 %v2291, %v2296
    %v2302 = vadd.f32 %v2292, %v2298
    %2305 = vrot.lane.b32.xlu0 %v2301, 112
    %v2306 = vpop.permute.xlu0 %2305
    %2307 = vrot.lane.b32.xlu0 %v2302, 112
    %v2308 = vpop.permute.xlu0 %2307
    %v2311 = vsel %vm223, %v2306, 0.0
    %2312 = vadd.xlane.f32.xlu0 %v2311
    %v2313 = vpop.xlane.xlu0 %2312
    %v2314 = vsel %vm223, %v2308, 0.0
    %2315 = vadd.xlane.f32.xlu0 %v2314
    %v2316 = vpop.xlane.xlu0 %2315
    %v2317 = vmax.f32 %v2313, 1.0
    %v2318 = vmax.f32 %v2316, 1.0
    %v2319 = vrsqrt.pop %v2317
    %v2320 = vmul.f32 %v2319, %v2317
    %v2321 = vmul.f32 %v2320, %v2319
    %v2322 = vmul.f32 0.5, %v2321
    %v2323 = vsub.f32 1.5, %v2322
    %v2324 = vmul.f32 %v2319, %v2323
    %vm2325 = vweird.f32 %v2317
    %vm2326 = vweird.f32 %v2319
    %vm2327 = vmor %vm2325, %vm2326
    %v2328 = vsel %vm2327, %v2319, %v2324
    %v2329 = vrsqrt.pop %v2318
    %v2330 = vmul.f32 %v2329, %v2318
    %v2331 = vmul.f32 %v2330, %v2329
    %v2332 = vmul.f32 0.5, %v2331
    %v2333 = vsub.f32 1.5, %v2332
    %v2334 = vmul.f32 %v2329, %v2333
    %vm2335 = vweird.f32 %v2318
    %vm2336 = vweird.f32 %v2329
    %vm2337 = vmor %vm2335, %vm2336
    %v2338 = vsel %vm2337, %v2329, %v2334
    %v2339 = vmul.f32 %v2055, %v2328
    %v2340 = vmul.f32 %v2058, %v2338
    %2343 = vrot.lane.b32.xlu0 %v2339, 104
    %v2344 = vpop.permute.xlu0 %2343
    %2345 = vrot.lane.b32.xlu0 %v2340, 104
    %v2346 = vpop.permute.xlu0 %2345
    %v2349 = vsel %vm223, %v2306, 0
    %v2351 = vsel %vm223, %v2308, 0
    %2353 = vmatpush.msra.mxu0 0.0
    %2354 = vmatpush.msra.mxu0 0.0
    %2355 = vmatpush.msra.mxu0 0.0
    %2356 = vmatpush.msra.mxu0 0.0
    %2357 = vmatpush.msra.mxu0 0.0
    %2358 = vmatpush.msra.mxu0 0.0
    %2359 = vmatpush.msra.mxu0 0.0
    %2360 = vmatpush.msra.mxu0 0.0
    %2361 = vmatpush.msra.mxu0 0.0
    %2362 = vmatpush.msra.mxu0 0.0
    %2363 = vmatpush.msra.mxu0 0.0
    %2364 = vmatpush.msra.mxu0 0.0
    %2365 = vmatpush.msra.mxu0 0.0
    %2366 = vmatpush.msra.mxu0 0.0
    %2367 = vmatpush.msra.mxu0 %v2346
    %2368 = vmatpush.msra.mxu0 %v2344
    %2369 = vmatmul.f32.gmra.mxu0 %v2349
    %v2370 = vpop.f32.mrf.mxu0
    %v2371 = vadd.f32 0.0, %v2370
    %2372 = vmatmul.f32.gmra.mxu0 %v2351
    %v2373 = vpop.f32.mrf.mxu0
    %v2374 = vadd.f32 0.0, %v2373
    %2375 = vdwg.mxu0
    %v2376 = vmul.f32 %v2371, %v2328
    %v2377 = vmul.f32 %v2374, %v2338
    %2378 = vrot.lane.b32.xlu0 %v2133, 104
    %v2379 = vpop.permute.xlu0 %2378
    %v2381 = vadd.f32 %v2376, %v2379
    %v2382 = vadd.f32 %v2377, %v2379
    %v2383 = vmul.f32 %v2381, %v431
    %v2384 = vmul.f32 %v2382, %v431
    %v2385 = vmul.f32 %v2381, %v437
    %v2386 = vmul.f32 %v2382, %v437
    %v2387 = vmul.f32 %v2381, %v443
    %v2388 = vmul.f32 %v2382, %v443
    %v2389 = vmul.f32 %v2381, %v449
    %v2390 = vmul.f32 %v2382, %v449
    %2399 = vrot.lane.b32.xlu0 %v2383, 120
    %v2400 = vpop.permute.xlu0 %2399
    %2401 = vrot.lane.b32.xlu0 %v2384, 120
    %v2402 = vpop.permute.xlu0 %2401
    %2403 = vrot.lane.b32.xlu0 %v2385, 120
    %v2404 = vpop.permute.xlu0 %2403
    %2405 = vrot.lane.b32.xlu0 %v2386, 120
    %v2406 = vpop.permute.xlu0 %2405
    %2407 = vrot.lane.b32.xlu0 %v2387, 120
    %v2408 = vpop.permute.xlu0 %2407
    %2409 = vrot.lane.b32.xlu0 %v2388, 120
    %v2410 = vpop.permute.xlu0 %2409
    %2411 = vrot.lane.b32.xlu0 %v2389, 120
    %v2412 = vpop.permute.xlu0 %2411
    %2413 = vrot.lane.b32.xlu0 %v2390, 120
    %v2414 = vpop.permute.xlu0 %2413
    %v2416 = vsel %vm477, %v2381, 0
    %v2419 = vsel %vm477, %v2382, 0
    %v2421 = vsel %vm477, %v2400, 0
    %v2423 = vsel %vm477, %v2402, 0
    %v2425 = vsel %vm477, %v2404, 0
    %v2427 = vsel %vm477, %v2406, 0
    %v2429 = vsel %vm477, %v2408, 0
    %v2431 = vsel %vm477, %v2410, 0
    %v2433 = vsel %vm477, %v2412, 0
    %v2435 = vsel %vm477, %v2414, 0
    %2437 = vmatpush.xpose.msra.mxu0 0.0
    %2438 = vmatpush.xpose.msra.mxu0 0.0
    %2439 = vmatpush.xpose.msra.mxu0 0.0
    %2440 = vmatpush.xpose.msra.mxu0 0.0
    %2441 = vmatpush.xpose.msra.mxu0 0.0
    %2442 = vmatpush.xpose.msra.mxu0 0.0
    %2443 = vmatpush.xpose.msra.mxu0 0.0
    %2444 = vmatpush.xpose.msra.mxu0 0.0
    %2445 = vmatpush.xpose.msra.mxu0 %v2435
    %2446 = vmatpush.xpose.msra.mxu0 %v2433
    %2447 = vmatpush.xpose.msra.mxu0 %v2431
    %2448 = vmatpush.xpose.msra.mxu0 %v2429
    %2449 = vmatpush.xpose.msra.mxu0 %v2427
    %2450 = vmatpush.xpose.msra.mxu0 %v2425
    %2451 = vmatpush.xpose.msra.mxu0 %v2423
    %2452 = vmatpush.xpose.msra.mxu0 %v2421
    %2453 = vmatmul.f32.gmra.mxu0 %v2416
    %v2454 = vpop.f32.mrf.mxu0
    %v2455 = vadd.f32 0.0, %v2454
    %2456 = vmatmul.f32.gmra.mxu0 %v2419
    %v2457 = vpop.f32.mrf.mxu0
    %v2458 = vadd.f32 0.0, %v2457
    %2459 = vdwg.mxu0
    %v2460 = vmul.f32 %v2455, 0.35355338
    %v2461 = vmul.f32 %v2458, 0.35355338
    %v2462 = vtanh.pop %v2460
    %v2463 = vtanh.pop %v2461
    %v2465 = vsel %vm527, %v2462, 0
    %v2468 = vsel %vm527, %v2463, 0
    %2470 = vmatpush.msra.mxu0 0.0
    %2471 = vmatpush.msra.mxu0 0.0
    %2472 = vmatpush.msra.mxu0 0.0
    %2473 = vmatpush.msra.mxu0 0.0
    %2474 = vmatpush.msra.mxu0 0.0
    %2475 = vmatpush.msra.mxu0 0.0
    %2476 = vmatpush.msra.mxu0 0.0
    %2477 = vmatpush.msra.mxu0 0.0
    %2478 = vmatpush.msra.mxu0 %v220
    %2479 = vmatpush.msra.mxu0 %v219
    %2480 = vmatpush.msra.mxu0 %v220
    %2481 = vmatpush.msra.mxu0 %v219
    %2482 = vmatpush.msra.mxu0 %v220
    %2483 = vmatpush.msra.mxu0 %v219
    %2484 = vmatpush.msra.mxu0 %v220
    %2485 = vmatpush.msra.mxu0 %v219
    %2486 = vmatmul.f32.gmra.mxu0 %v2465
    %v2487 = vpop.f32.mrf.mxu0
    %v2488 = vadd.f32 0.0, %v2487
    %2489 = vmatmul.f32.gmra.mxu0 %v2468
    %v2490 = vpop.f32.mrf.mxu0
    %v2491 = vadd.f32 0.0, %v2490
    %2492 = vdwg.mxu0
    %2493 = vxpose.xlu0.b32.start [1/16] %v2488, 128
    %2494 = vxpose.xlu0.b32.cont [2/16] %v2491, 128
    %2495 = vxpose.xlu0.b32.cont [3/16] 0.0, 128
    %2496 = vxpose.xlu0.b32.cont [4/16] 0.0, 128
    %2497 = vxpose.xlu0.b32.cont [5/16] 0.0, 128
    %2498 = vxpose.xlu0.b32.cont [6/16] 0.0, 128
    %2499 = vxpose.xlu0.b32.cont [7/16] 0.0, 128
    %2500 = vxpose.xlu0.b32.cont [8/16] 0.0, 128
    %2501 = vxpose.xlu0.b32.cont [9/16] 0.0, 128
    %2502 = vxpose.xlu0.b32.cont [10/16] 0.0, 128
    %2503 = vxpose.xlu0.b32.cont [11/16] 0.0, 128
    %2504 = vxpose.xlu0.b32.cont [12/16] 0.0, 128
    %2505 = vxpose.xlu0.b32.cont [13/16] 0.0, 128
    %2506 = vxpose.xlu0.b32.cont [14/16] 0.0, 128
    %2507 = vxpose.xlu0.b32.cont [15/16] 0.0, 128
    %2508 = vxpose.xlu0.b32.end [16/16] 0.0, 128
    %v2509 = vpop.trf.xlu0
    %v2510 = vpop.trf.xlu0
    %v2511 = vpop.trf.xlu0
    %v2512 = vpop.trf.xlu0
    %v2513 = vpop.trf.xlu0
    %v2514 = vpop.trf.xlu0
    %v2515 = vpop.trf.xlu0
    %v2516 = vpop.trf.xlu0
    %v2517 = vpop.trf.xlu0
    %v2518 = vpop.trf.xlu0
    %v2519 = vpop.trf.xlu0
    %v2520 = vpop.trf.xlu0
    %v2521 = vpop.trf.xlu0
    %v2522 = vpop.trf.xlu0
    %v2523 = vpop.trf.xlu0
    %v2524 = vpop.trf.xlu0
    %v2525 = vadd.f32 %v2488, %v2509
    %v2526 = vadd.f32 %v2491, %v2510
    %v2527 = vmul.f32 %v2525, 0.5
    %v2528 = vmul.f32 %v2526, 0.5
    %2529 = vrot.lane.b32.xlu0 %v209, 32
    %v2530 = vpop.permute.xlu0 %2529
    %2531 = vrot.lane.b32.xlu0 %v210, 32
    %v2532 = vpop.permute.xlu0 %2531
    %v2535 = vmul.f32 %v1758, %v2530
    %v2536 = vmul.f32 %v1759, %v2532
    %2537 = vrot.lane.b32.xlu0 %v207, 32
    %v2538 = vpop.permute.xlu0 %2537
    %2539 = vrot.lane.b32.xlu0 %v208, 32
    %v2540 = vpop.permute.xlu0 %2539
    %v2543 = vadd.f32 %v2535, %v2538
    %v2544 = vadd.f32 %v2536, %v2540
    %2547 = vrot.lane.b32.xlu0 %v2543, 96
    %v2548 = vpop.permute.xlu0 %2547
    %2549 = vrot.lane.b32.xlu0 %v2544, 96
    %v2550 = vpop.permute.xlu0 %2549
    %v2553 = vsel %vm223, %v2548, 0.0
    %2554 = vadd.xlane.f32.xlu0 %v2553
    %v2555 = vpop.xlane.xlu0 %2554
    %v2556 = vsel %vm223, %v2550, 0.0
    %2557 = vadd.xlane.f32.xlu0 %v2556
    %v2558 = vpop.xlane.xlu0 %2557
    %v2559 = vmax.f32 %v2555, 1.0
    %v2560 = vmax.f32 %v2558, 1.0
    %v2561 = vrsqrt.pop %v2559
    %v2562 = vmul.f32 %v2561, %v2559
    %v2563 = vmul.f32 %v2562, %v2561
    %v2564 = vmul.f32 0.5, %v2563
    %v2565 = vsub.f32 1.5, %v2564
    %v2566 = vmul.f32 %v2561, %v2565
    %vm2567 = vweird.f32 %v2559
    %vm2568 = vweird.f32 %v2561
    %vm2569 = vmor %vm2567, %vm2568
    %v2570 = vsel %vm2569, %v2561, %v2566
    %v2571 = vrsqrt.pop %v2560
    %v2572 = vmul.f32 %v2571, %v2560
    %v2573 = vmul.f32 %v2572, %v2571
    %v2574 = vmul.f32 0.5, %v2573
    %v2575 = vsub.f32 1.5, %v2574
    %v2576 = vmul.f32 %v2571, %v2575
    %vm2577 = vweird.f32 %v2560
    %vm2578 = vweird.f32 %v2571
    %vm2579 = vmor %vm2577, %vm2578
    %v2580 = vsel %vm2579, %v2571, %v2576
    %v2581 = vmul.f32 %v2055, %v2570
    %v2582 = vmul.f32 %v2058, %v2580
    %2585 = vrot.lane.b32.xlu0 %v2581, 80
    %v2586 = vpop.permute.xlu0 %2585
    %2587 = vrot.lane.b32.xlu0 %v2582, 80
    %v2588 = vpop.permute.xlu0 %2587
    %v2591 = vsel %vm223, %v2548, 0
    %v2593 = vsel %vm223, %v2550, 0
    %2595 = vmatpush.msra.mxu0 0.0
    %2596 = vmatpush.msra.mxu0 0.0
    %2597 = vmatpush.msra.mxu0 0.0
    %2598 = vmatpush.msra.mxu0 0.0
    %2599 = vmatpush.msra.mxu0 0.0
    %2600 = vmatpush.msra.mxu0 0.0
    %2601 = vmatpush.msra.mxu0 0.0
    %2602 = vmatpush.msra.mxu0 0.0
    %2603 = vmatpush.msra.mxu0 0.0
    %2604 = vmatpush.msra.mxu0 0.0
    %2605 = vmatpush.msra.mxu0 0.0
    %2606 = vmatpush.msra.mxu0 0.0
    %2607 = vmatpush.msra.mxu0 0.0
    %2608 = vmatpush.msra.mxu0 0.0
    %2609 = vmatpush.msra.mxu0 %v2588
    %2610 = vmatpush.msra.mxu0 %v2586
    %2611 = vmatmul.f32.gmra.mxu0 %v2591
    %v2612 = vpop.f32.mrf.mxu0
    %v2613 = vadd.f32 0.0, %v2612
    %2614 = vmatmul.f32.gmra.mxu0 %v2593
    %v2615 = vpop.f32.mrf.mxu0
    %v2616 = vadd.f32 0.0, %v2615
    %2617 = vdwg.mxu0
    %v2618 = vmul.f32 %v2613, %v2570
    %v2619 = vmul.f32 %v2616, %v2580
    %2620 = vrot.lane.b32.xlu0 %v2133, 80
    %v2621 = vpop.permute.xlu0 %2620
    %v2623 = vadd.f32 %v2618, %v2621
    %v2624 = vadd.f32 %v2619, %v2621
    %v2625 = vmul.f32 %v2623, %v431
    %v2626 = vmul.f32 %v2624, %v431
    %v2627 = vmul.f32 %v2623, %v437
    %v2628 = vmul.f32 %v2624, %v437
    %v2629 = vmul.f32 %v2623, %v443
    %v2630 = vmul.f32 %v2624, %v443
    %v2631 = vmul.f32 %v2623, %v449
    %v2632 = vmul.f32 %v2624, %v449
    %2641 = vrot.lane.b32.xlu0 %v2625, 120
    %v2642 = vpop.permute.xlu0 %2641
    %2643 = vrot.lane.b32.xlu0 %v2626, 120
    %v2644 = vpop.permute.xlu0 %2643
    %2645 = vrot.lane.b32.xlu0 %v2627, 120
    %v2646 = vpop.permute.xlu0 %2645
    %2647 = vrot.lane.b32.xlu0 %v2628, 120
    %v2648 = vpop.permute.xlu0 %2647
    %2649 = vrot.lane.b32.xlu0 %v2629, 120
    %v2650 = vpop.permute.xlu0 %2649
    %2651 = vrot.lane.b32.xlu0 %v2630, 120
    %v2652 = vpop.permute.xlu0 %2651
    %2653 = vrot.lane.b32.xlu0 %v2631, 120
    %v2654 = vpop.permute.xlu0 %2653
    %2655 = vrot.lane.b32.xlu0 %v2632, 120
    %v2656 = vpop.permute.xlu0 %2655
    %v2658 = vsel %vm477, %v2623, 0
    %v2661 = vsel %vm477, %v2624, 0
    %v2663 = vsel %vm477, %v2642, 0
    %v2665 = vsel %vm477, %v2644, 0
    %v2667 = vsel %vm477, %v2646, 0
    %v2669 = vsel %vm477, %v2648, 0
    %v2671 = vsel %vm477, %v2650, 0
    %v2673 = vsel %vm477, %v2652, 0
    %v2675 = vsel %vm477, %v2654, 0
    %v2677 = vsel %vm477, %v2656, 0
    %2679 = vmatpush.xpose.msra.mxu0 0.0
    %2680 = vmatpush.xpose.msra.mxu0 0.0
    %2681 = vmatpush.xpose.msra.mxu0 0.0
    %2682 = vmatpush.xpose.msra.mxu0 0.0
    %2683 = vmatpush.xpose.msra.mxu0 0.0
    %2684 = vmatpush.xpose.msra.mxu0 0.0
    %2685 = vmatpush.xpose.msra.mxu0 0.0
    %2686 = vmatpush.xpose.msra.mxu0 0.0
    %2687 = vmatpush.xpose.msra.mxu0 %v2677
    %2688 = vmatpush.xpose.msra.mxu0 %v2675
    %2689 = vmatpush.xpose.msra.mxu0 %v2673
    %2690 = vmatpush.xpose.msra.mxu0 %v2671
    %2691 = vmatpush.xpose.msra.mxu0 %v2669
    %2692 = vmatpush.xpose.msra.mxu0 %v2667
    %2693 = vmatpush.xpose.msra.mxu0 %v2665
    %2694 = vmatpush.xpose.msra.mxu0 %v2663
    %2695 = vmatmul.f32.gmra.mxu0 %v2658
    %v2696 = vpop.f32.mrf.mxu0
    %v2697 = vadd.f32 0.0, %v2696
    %2698 = vmatmul.f32.gmra.mxu0 %v2661
    %v2699 = vpop.f32.mrf.mxu0
    %v2700 = vadd.f32 0.0, %v2699
    %2701 = vdwg.mxu0
    %v2702 = vmul.f32 %v2697, 0.35355338
    %v2703 = vmul.f32 %v2700, 0.35355338
    %v2704 = vtanh.pop %v2702
    %v2705 = vtanh.pop %v2703
    %v2707 = vsel %vm527, %v2704, 0
    %v2710 = vsel %vm527, %v2705, 0
    %2712 = vmatpush.msra.mxu0 0.0
    %2713 = vmatpush.msra.mxu0 0.0
    %2714 = vmatpush.msra.mxu0 0.0
    %2715 = vmatpush.msra.mxu0 0.0
    %2716 = vmatpush.msra.mxu0 0.0
    %2717 = vmatpush.msra.mxu0 0.0
    %2718 = vmatpush.msra.mxu0 0.0
    %2719 = vmatpush.msra.mxu0 0.0
    %2720 = vmatpush.msra.mxu0 %v220
    %2721 = vmatpush.msra.mxu0 %v219
    %2722 = vmatpush.msra.mxu0 %v220
    %2723 = vmatpush.msra.mxu0 %v219
    %2724 = vmatpush.msra.mxu0 %v220
    %2725 = vmatpush.msra.mxu0 %v219
    %2726 = vmatpush.msra.mxu0 %v220
    %2727 = vmatpush.msra.mxu0 %v219
    %2728 = vmatmul.f32.gmra.mxu0 %v2707
    %v2729 = vpop.f32.mrf.mxu0
    %v2730 = vadd.f32 0.0, %v2729
    %2731 = vmatmul.f32.gmra.mxu0 %v2710
    %v2732 = vpop.f32.mrf.mxu0
    %v2733 = vadd.f32 0.0, %v2732
    %2734 = vdwg.mxu0
    %2735 = vxpose.xlu0.b32.start [1/16] %v2730, 128
    %2736 = vxpose.xlu0.b32.cont [2/16] %v2733, 128
    %2737 = vxpose.xlu0.b32.cont [3/16] 0.0, 128
    %2738 = vxpose.xlu0.b32.cont [4/16] 0.0, 128
    %2739 = vxpose.xlu0.b32.cont [5/16] 0.0, 128
    %2740 = vxpose.xlu0.b32.cont [6/16] 0.0, 128
    %2741 = vxpose.xlu0.b32.cont [7/16] 0.0, 128
    %2742 = vxpose.xlu0.b32.cont [8/16] 0.0, 128
    %2743 = vxpose.xlu0.b32.cont [9/16] 0.0, 128
    %2744 = vxpose.xlu0.b32.cont [10/16] 0.0, 128
    %2745 = vxpose.xlu0.b32.cont [11/16] 0.0, 128
    %2746 = vxpose.xlu0.b32.cont [12/16] 0.0, 128
    %2747 = vxpose.xlu0.b32.cont [13/16] 0.0, 128
    %2748 = vxpose.xlu0.b32.cont [14/16] 0.0, 128
    %2749 = vxpose.xlu0.b32.cont [15/16] 0.0, 128
    %2750 = vxpose.xlu0.b32.end [16/16] 0.0, 128
    %v2751 = vpop.trf.xlu0
    %v2752 = vpop.trf.xlu0
    %v2753 = vpop.trf.xlu0
    %v2754 = vpop.trf.xlu0
    %v2755 = vpop.trf.xlu0
    %v2756 = vpop.trf.xlu0
    %v2757 = vpop.trf.xlu0
    %v2758 = vpop.trf.xlu0
    %v2759 = vpop.trf.xlu0
    %v2760 = vpop.trf.xlu0
    %v2761 = vpop.trf.xlu0
    %v2762 = vpop.trf.xlu0
    %v2763 = vpop.trf.xlu0
    %v2764 = vpop.trf.xlu0
    %v2765 = vpop.trf.xlu0
    %v2766 = vpop.trf.xlu0
    %v2767 = vadd.f32 %v2730, %v2751
    %v2768 = vadd.f32 %v2733, %v2752
    %v2769 = vmul.f32 %v2767, 0.5
    %v2770 = vmul.f32 %v2768, 0.5
    %2771 = vrot.lane.b32.xlu0 %v209, 48
    %v2772 = vpop.permute.xlu0 %2771
    %2773 = vrot.lane.b32.xlu0 %v210, 48
    %v2774 = vpop.permute.xlu0 %2773
    %v2777 = vmul.f32 %v1814, %v2772
    %v2778 = vmul.f32 %v1815, %v2774
    %2779 = vrot.lane.b32.xlu0 %v207, 48
    %v2780 = vpop.permute.xlu0 %2779
    %2781 = vrot.lane.b32.xlu0 %v208, 48
    %v2782 = vpop.permute.xlu0 %2781
    %v2785 = vadd.f32 %v2777, %v2780
    %v2786 = vadd.f32 %v2778, %v2782
    %2789 = vrot.lane.b32.xlu0 %v2785, 80
    %v2790 = vpop.permute.xlu0 %2789
    %2791 = vrot.lane.b32.xlu0 %v2786, 80
    %v2792 = vpop.permute.xlu0 %2791
    %v2795 = vsel %vm223, %v2790, 0.0
    %2796 = vadd.xlane.f32.xlu0 %v2795
    %v2797 = vpop.xlane.xlu0 %2796
    %v2798 = vsel %vm223, %v2792, 0.0
    %2799 = vadd.xlane.f32.xlu0 %v2798
    %v2800 = vpop.xlane.xlu0 %2799
    %v2801 = vmax.f32 %v2797, 1.0
    %v2802 = vmax.f32 %v2800, 1.0
    %v2803 = vrsqrt.pop %v2801
    %v2804 = vmul.f32 %v2803, %v2801
    %v2805 = vmul.f32 %v2804, %v2803
    %v2806 = vmul.f32 0.5, %v2805
    %v2807 = vsub.f32 1.5, %v2806
    %v2808 = vmul.f32 %v2803, %v2807
    %vm2809 = vweird.f32 %v2801
    %vm2810 = vweird.f32 %v2803
    %vm2811 = vmor %vm2809, %vm2810
    %v2812 = vsel %vm2811, %v2803, %v2808
    %v2813 = vrsqrt.pop %v2802
    %v2814 = vmul.f32 %v2813, %v2802
    %v2815 = vmul.f32 %v2814, %v2813
    %v2816 = vmul.f32 0.5, %v2815
    %v2817 = vsub.f32 1.5, %v2816
    %v2818 = vmul.f32 %v2813, %v2817
    %vm2819 = vweird.f32 %v2802
    %vm2820 = vweird.f32 %v2813
    %vm2821 = vmor %vm2819, %vm2820
    %v2822 = vsel %vm2821, %v2813, %v2818
    %v2823 = vmul.f32 %v2055, %v2812
    %v2824 = vmul.f32 %v2058, %v2822
    %2827 = vrot.lane.b32.xlu0 %v2823, 56
    %v2828 = vpop.permute.xlu0 %2827
    %2829 = vrot.lane.b32.xlu0 %v2824, 56
    %v2830 = vpop.permute.xlu0 %2829
    %v2833 = vsel %vm223, %v2790, 0
    %v2835 = vsel %vm223, %v2792, 0
    %2837 = vmatpush.msra.mxu0 0.0
    %2838 = vmatpush.msra.mxu0 0.0
    %2839 = vmatpush.msra.mxu0 0.0
    %2840 = vmatpush.msra.mxu0 0.0
    %2841 = vmatpush.msra.mxu0 0.0
    %2842 = vmatpush.msra.mxu0 0.0
    %2843 = vmatpush.msra.mxu0 0.0
    %2844 = vmatpush.msra.mxu0 0.0
    %2845 = vmatpush.msra.mxu0 0.0
    %2846 = vmatpush.msra.mxu0 0.0
    %2847 = vmatpush.msra.mxu0 0.0
    %2848 = vmatpush.msra.mxu0 0.0
    %2849 = vmatpush.msra.mxu0 0.0
    %2850 = vmatpush.msra.mxu0 0.0
    %2851 = vmatpush.msra.mxu0 %v2830
    %2852 = vmatpush.msra.mxu0 %v2828
    %2853 = vmatmul.f32.gmra.mxu0 %v2833
    %v2854 = vpop.f32.mrf.mxu0
    %v2855 = vadd.f32 0.0, %v2854
    %2856 = vmatmul.f32.gmra.mxu0 %v2835
    %v2857 = vpop.f32.mrf.mxu0
    %v2858 = vadd.f32 0.0, %v2857
    %2859 = vdwg.mxu0
    %v2860 = vmul.f32 %v2855, %v2812
    %v2861 = vmul.f32 %v2858, %v2822
    %2862 = vrot.lane.b32.xlu0 %v2133, 56
    %v2863 = vpop.permute.xlu0 %2862
    %v2865 = vadd.f32 %v2860, %v2863
    %v2866 = vadd.f32 %v2861, %v2863
    %v2867 = vmul.f32 %v2865, %v431
    %v2868 = vmul.f32 %v2866, %v431
    %v2869 = vmul.f32 %v2865, %v437
    %v2870 = vmul.f32 %v2866, %v437
    %v2871 = vmul.f32 %v2865, %v443
    %v2872 = vmul.f32 %v2866, %v443
    %v2873 = vmul.f32 %v2865, %v449
    %v2874 = vmul.f32 %v2866, %v449
    %2883 = vrot.lane.b32.xlu0 %v2867, 120
    %v2884 = vpop.permute.xlu0 %2883
    %2885 = vrot.lane.b32.xlu0 %v2868, 120
    %v2886 = vpop.permute.xlu0 %2885
    %2887 = vrot.lane.b32.xlu0 %v2869, 120
    %v2888 = vpop.permute.xlu0 %2887
    %2889 = vrot.lane.b32.xlu0 %v2870, 120
    %v2890 = vpop.permute.xlu0 %2889
    %2891 = vrot.lane.b32.xlu0 %v2871, 120
    %v2892 = vpop.permute.xlu0 %2891
    %2893 = vrot.lane.b32.xlu0 %v2872, 120
    %v2894 = vpop.permute.xlu0 %2893
    %2895 = vrot.lane.b32.xlu0 %v2873, 120
    %v2896 = vpop.permute.xlu0 %2895
    %2897 = vrot.lane.b32.xlu0 %v2874, 120
    %v2898 = vpop.permute.xlu0 %2897
    %v2900 = vsel %vm477, %v2865, 0
    %v2903 = vsel %vm477, %v2866, 0
    %v2905 = vsel %vm477, %v2884, 0
    %v2907 = vsel %vm477, %v2886, 0
    %v2909 = vsel %vm477, %v2888, 0
    %v2911 = vsel %vm477, %v2890, 0
    %v2913 = vsel %vm477, %v2892, 0
    %v2915 = vsel %vm477, %v2894, 0
    %v2917 = vsel %vm477, %v2896, 0
    %v2919 = vsel %vm477, %v2898, 0
    %2921 = vmatpush.xpose.msra.mxu0 0.0
    %2922 = vmatpush.xpose.msra.mxu0 0.0
    %2923 = vmatpush.xpose.msra.mxu0 0.0
    %2924 = vmatpush.xpose.msra.mxu0 0.0
    %2925 = vmatpush.xpose.msra.mxu0 0.0
    %2926 = vmatpush.xpose.msra.mxu0 0.0
    %2927 = vmatpush.xpose.msra.mxu0 0.0
    %2928 = vmatpush.xpose.msra.mxu0 0.0
    %2929 = vmatpush.xpose.msra.mxu0 %v2919
    %2930 = vmatpush.xpose.msra.mxu0 %v2917
    %2931 = vmatpush.xpose.msra.mxu0 %v2915
    %2932 = vmatpush.xpose.msra.mxu0 %v2913
    %2933 = vmatpush.xpose.msra.mxu0 %v2911
    %2934 = vmatpush.xpose.msra.mxu0 %v2909
    %2935 = vmatpush.xpose.msra.mxu0 %v2907
    %2936 = vmatpush.xpose.msra.mxu0 %v2905
    %2937 = vmatmul.f32.gmra.mxu0 %v2900
    %v2938 = vpop.f32.mrf.mxu0
    %v2939 = vadd.f32 0.0, %v2938
    %2940 = vmatmul.f32.gmra.mxu0 %v2903
    %v2941 = vpop.f32.mrf.mxu0
    %v2942 = vadd.f32 0.0, %v2941
    %2943 = vdwg.mxu0
    %v2944 = vmul.f32 %v2939, 0.35355338
    %v2945 = vmul.f32 %v2942, 0.35355338
    %v2946 = vtanh.pop %v2944
    %v2947 = vtanh.pop %v2945
    %v2949 = vsel %vm527, %v2946, 0
    %v2952 = vsel %vm527, %v2947, 0
    %2954 = vmatpush.msra.mxu0 0.0
    %2955 = vmatpush.msra.mxu0 0.0
    %2956 = vmatpush.msra.mxu0 0.0
    %2957 = vmatpush.msra.mxu0 0.0
    %2958 = vmatpush.msra.mxu0 0.0
    %2959 = vmatpush.msra.mxu0 0.0
    %2960 = vmatpush.msra.mxu0 0.0
    %2961 = vmatpush.msra.mxu0 0.0
    %2962 = vmatpush.msra.mxu0 %v220
    %2963 = vmatpush.msra.mxu0 %v219
    %2964 = vmatpush.msra.mxu0 %v220
    %2965 = vmatpush.msra.mxu0 %v219
    %2966 = vmatpush.msra.mxu0 %v220
    %2967 = vmatpush.msra.mxu0 %v219
    %2968 = vmatpush.msra.mxu0 %v220
    %2969 = vmatpush.msra.mxu0 %v219
    %2970 = vmatmul.f32.gmra.mxu0 %v2949
    %v2971 = vpop.f32.mrf.mxu0
    %v2972 = vadd.f32 0.0, %v2971
    %2973 = vmatmul.f32.gmra.mxu0 %v2952
    %v2974 = vpop.f32.mrf.mxu0
    %v2975 = vadd.f32 0.0, %v2974
    %2976 = vdwg.mxu0
    %2977 = vxpose.xlu0.b32.start [1/16] %v2972, 128
    %2978 = vxpose.xlu0.b32.cont [2/16] %v2975, 128
    %2979 = vxpose.xlu0.b32.cont [3/16] 0.0, 128
    %2980 = vxpose.xlu0.b32.cont [4/16] 0.0, 128
    %2981 = vxpose.xlu0.b32.cont [5/16] 0.0, 128
    %2982 = vxpose.xlu0.b32.cont [6/16] 0.0, 128
    %2983 = vxpose.xlu0.b32.cont [7/16] 0.0, 128
    %2984 = vxpose.xlu0.b32.cont [8/16] 0.0, 128
    %2985 = vxpose.xlu0.b32.cont [9/16] 0.0, 128
    %2986 = vxpose.xlu0.b32.cont [10/16] 0.0, 128
    %2987 = vxpose.xlu0.b32.cont [11/16] 0.0, 128
    %2988 = vxpose.xlu0.b32.cont [12/16] 0.0, 128
    %2989 = vxpose.xlu0.b32.cont [13/16] 0.0, 128
    %2990 = vxpose.xlu0.b32.cont [14/16] 0.0, 128
    %2991 = vxpose.xlu0.b32.cont [15/16] 0.0, 128
    %2992 = vxpose.xlu0.b32.end [16/16] 0.0, 128
    %v2993 = vpop.trf.xlu0
    %v2994 = vpop.trf.xlu0
    %v2995 = vpop.trf.xlu0
    %v2996 = vpop.trf.xlu0
    %v2997 = vpop.trf.xlu0
    %v2998 = vpop.trf.xlu0
    %v2999 = vpop.trf.xlu0
    %v3000 = vpop.trf.xlu0
    %v3001 = vpop.trf.xlu0
    %v3002 = vpop.trf.xlu0
    %v3003 = vpop.trf.xlu0
    %v3004 = vpop.trf.xlu0
    %v3005 = vpop.trf.xlu0
    %v3006 = vpop.trf.xlu0
    %v3007 = vpop.trf.xlu0
    %v3008 = vpop.trf.xlu0
    %v3009 = vadd.f32 %v2972, %v2993
    %v3010 = vadd.f32 %v2975, %v2994
    %v3011 = vmul.f32 %v3009, 0.5
    %v3012 = vmul.f32 %v3010, 0.5
    %3013 = vrot.lane.b32.xlu0 %v2135, 112
    %v3014 = vpop.permute.xlu0 %3013
    %3015 = vrot.lane.b32.xlu0 %v2136, 112
    %v3016 = vpop.permute.xlu0 %3015
    %3019 = vrot.lane.b32.xlu0 %v2381, 120
    %v3020 = vpop.permute.xlu0 %3019
    %3021 = vrot.lane.b32.xlu0 %v2382, 120
    %v3022 = vpop.permute.xlu0 %3021
    %3025 = vrot.lane.b32.xlu0 %v2865, 8
    %v3026 = vpop.permute.xlu0 %3025
    %3027 = vrot.lane.b32.xlu0 %v2866, 8
    %v3028 = vpop.permute.xlu0 %3027
    %v3031 = vsel %vm477, %v3014, %v3020
    %v3032 = vsel %vm477, %v3016, %v3022
    %v3033 = vsel %vm223, %v3031, %v2623
    %v3034 = vsel %vm223, %v3032, %v2624
    %vm3035 = vcmask 195584
    %v3036 = vsel %vm3035, %v3033, %v3026
    %v3037 = vsel %vm3035, %v3034, %v3028
    %3040 = vrot.lane.b32.xlu0 %v2527, 16
    %v3041 = vpop.permute.xlu0 %3040
    %3042 = vrot.lane.b32.xlu0 %v2528, 16
    %v3043 = vpop.permute.xlu0 %3042
    %3048 = vrot.lane.b32.xlu0 %v2769, 32
    %v3049 = vpop.permute.xlu0 %3048
    %3050 = vrot.lane.b32.xlu0 %v2770, 32
    %v3051 = vpop.permute.xlu0 %3050
    %3056 = vrot.lane.b32.xlu0 %v3011, 48
    %v3057 = vpop.permute.xlu0 %3056
    %3058 = vrot.lane.b32.xlu0 %v3012, 48
    %v3059 = vpop.permute.xlu0 %3058
    %3064 = vrot.lane.b32.xlu0 %v1642, 64
    %v3065 = vpop.permute.xlu0 %3064
    %3066 = vrot.lane.b32.xlu0 %v1643, 64
    %v3067 = vpop.permute.xlu0 %3066
    %3072 = vrot.lane.b32.xlu0 %v1702, 64
    %v3073 = vpop.permute.xlu0 %3072
    %3074 = vrot.lane.b32.xlu0 %v1703, 64
    %v3075 = vpop.permute.xlu0 %3074
    %3080 = vrot.lane.b32.xlu0 %v1758, 64
    %v3081 = vpop.permute.xlu0 %3080
    %3082 = vrot.lane.b32.xlu0 %v1759, 64
    %v3083 = vpop.permute.xlu0 %3082
    %3088 = vrot.lane.b32.xlu0 %v1814, 64
    %v3089 = vpop.permute.xlu0 %3088
    %3090 = vrot.lane.b32.xlu0 %v1815, 64
    %v3091 = vpop.permute.xlu0 %3090
    %v3094 = vsel %vm223, %v2281, %v3041
    %v3095 = vsel %vm223, %v2282, %v3043
    %v3096 = vsel %vm855, %v3094, %v3049
    %v3097 = vsel %vm855, %v3095, %v3051
    %v3098 = vsel %vm858, %v3096, %v3057
    %v3099 = vsel %vm858, %v3097, %v3059
    %v3100 = vsel %vm527, %v3098, %v3065
    %v3101 = vsel %vm527, %v3099, %v3067
    %vm3102 = vcmask 654336
    %v3103 = vsel %vm3102, %v3100, %v3073
    %v3104 = vsel %vm3102, %v3101, %v3075
    %vm3105 = vcmask 785408
    %v3106 = vsel %vm3105, %v3103, %v3081
    %v3107 = vsel %vm3105, %v3104, %v3083
    %vm3108 = vcmask 916480
    %v3109 = vsel %vm3108, %v3106, %v3089
    %v3110 = vsel %vm3108, %v3107, %v3091
    %v3111 = vmul.f32 %v1850, %v209
    %v3112 = vmul.f32 %v1851, %v210
    %v3113 = vadd.f32 %v3111, %v207
    %v3114 = vadd.f32 %v3112, %v208
    %v3115 = vsel %vm223, %v3113, 0.0
    %3116 = vadd.xlane.f32.xlu0 %v3115
    %v3117 = vpop.xlane.xlu0 %3116
    %v3118 = vsel %vm223, %v3114, 0.0
    %3119 = vadd.xlane.f32.xlu0 %v3118
    %v3120 = vpop.xlane.xlu0 %3119
    %v3121 = vmax.f32 %v3117, 1.0
    %v3122 = vmax.f32 %v3120, 1.0
    %v3123 = vrsqrt.pop %v3121
    %v3124 = vmul.f32 %v3123, %v3121
    %v3125 = vmul.f32 %v3124, %v3123
    %v3126 = vmul.f32 0.5, %v3125
    %v3127 = vsub.f32 1.5, %v3126
    %v3128 = vmul.f32 %v3123, %v3127
    %vm3129 = vweird.f32 %v3121
    %vm3130 = vweird.f32 %v3123
    %vm3131 = vmor %vm3129, %vm3130
    %v3132 = vsel %vm3131, %v3123, %v3128
    %v3133 = vrsqrt.pop %v3122
    %v3134 = vmul.f32 %v3133, %v3122
    %v3135 = vmul.f32 %v3134, %v3133
    %v3136 = vmul.f32 0.5, %v3135
    %v3137 = vsub.f32 1.5, %v3136
    %v3138 = vmul.f32 %v3133, %v3137
    %vm3139 = vweird.f32 %v3122
    %vm3140 = vweird.f32 %v3133
    %vm3141 = vmor %vm3139, %vm3140
    %v3142 = vsel %vm3141, %v3133, %v3138
    %v3143 = vmul.f32 %v2061, %v3132
    %v3144 = vmul.f32 %v2064, %v3142
    %v3146 = vsel %vm223, %v3113, 0
    %v3149 = vsel %vm223, %v3114, 0
    %3151 = vmatpush.msra.mxu0 0.0
    %3152 = vmatpush.msra.mxu0 0.0
    %3153 = vmatpush.msra.mxu0 0.0
    %3154 = vmatpush.msra.mxu0 0.0
    %3155 = vmatpush.msra.mxu0 0.0
    %3156 = vmatpush.msra.mxu0 0.0
    %3157 = vmatpush.msra.mxu0 0.0
    %3158 = vmatpush.msra.mxu0 0.0
    %3159 = vmatpush.msra.mxu0 0.0
    %3160 = vmatpush.msra.mxu0 0.0
    %3161 = vmatpush.msra.mxu0 0.0
    %3162 = vmatpush.msra.mxu0 0.0
    %3163 = vmatpush.msra.mxu0 0.0
    %3164 = vmatpush.msra.mxu0 0.0
    %3165 = vmatpush.msra.mxu0 %v3144
    %3166 = vmatpush.msra.mxu0 %v3143
    %3167 = vmatmul.f32.gmra.mxu0 %v3146
    %v3168 = vpop.f32.mrf.mxu0
    %v3169 = vadd.f32 0.0, %v3168
    %3170 = vmatmul.f32.gmra.mxu0 %v3149
    %v3171 = vpop.f32.mrf.mxu0
    %v3172 = vadd.f32 0.0, %v3171
    %3173 = vdwg.mxu0
    %v3174 = vmul.f32 %v3169, %v3132
    %v3175 = vmul.f32 %v3172, %v3142
    %v3176 = vadd.f32 %v3174, %v2133
    %v3177 = vadd.f32 %v3175, %v2133
    %v3178 = vmul.f32 %v3176, %v431
    %v3179 = vmul.f32 %v3177, %v431
    %v3180 = vmul.f32 %v3176, %v437
    %v3181 = vmul.f32 %v3177, %v437
    %v3182 = vmul.f32 %v3176, %v443
    %v3183 = vmul.f32 %v3177, %v443
    %v3184 = vmul.f32 %v3176, %v449
    %v3185 = vmul.f32 %v3177, %v449
    %3194 = vrot.lane.b32.xlu0 %v3178, 120
    %v3195 = vpop.permute.xlu0 %3194
    %3196 = vrot.lane.b32.xlu0 %v3179, 120
    %v3197 = vpop.permute.xlu0 %3196
    %3198 = vrot.lane.b32.xlu0 %v3180, 120
    %v3199 = vpop.permute.xlu0 %3198
    %3200 = vrot.lane.b32.xlu0 %v3181, 120
    %v3201 = vpop.permute.xlu0 %3200
    %3202 = vrot.lane.b32.xlu0 %v3182, 120
    %v3203 = vpop.permute.xlu0 %3202
    %3204 = vrot.lane.b32.xlu0 %v3183, 120
    %v3205 = vpop.permute.xlu0 %3204
    %3206 = vrot.lane.b32.xlu0 %v3184, 120
    %v3207 = vpop.permute.xlu0 %3206
    %3208 = vrot.lane.b32.xlu0 %v3185, 120
    %v3209 = vpop.permute.xlu0 %3208
    %v3211 = vsel %vm477, %v3176, 0
    %v3214 = vsel %vm477, %v3177, 0
    %v3216 = vsel %vm477, %v3195, 0
    %v3218 = vsel %vm477, %v3197, 0
    %v3220 = vsel %vm477, %v3199, 0
    %v3222 = vsel %vm477, %v3201, 0
    %v3224 = vsel %vm477, %v3203, 0
    %v3226 = vsel %vm477, %v3205, 0
    %v3228 = vsel %vm477, %v3207, 0
    %v3230 = vsel %vm477, %v3209, 0
    %3232 = vmatpush.xpose.msra.mxu0 0.0
    %3233 = vmatpush.xpose.msra.mxu0 0.0
    %3234 = vmatpush.xpose.msra.mxu0 0.0
    %3235 = vmatpush.xpose.msra.mxu0 0.0
    %3236 = vmatpush.xpose.msra.mxu0 0.0
    %3237 = vmatpush.xpose.msra.mxu0 0.0
    %3238 = vmatpush.xpose.msra.mxu0 0.0
    %3239 = vmatpush.xpose.msra.mxu0 0.0
    %3240 = vmatpush.xpose.msra.mxu0 %v3230
    %3241 = vmatpush.xpose.msra.mxu0 %v3228
    %3242 = vmatpush.xpose.msra.mxu0 %v3226
    %3243 = vmatpush.xpose.msra.mxu0 %v3224
    %3244 = vmatpush.xpose.msra.mxu0 %v3222
    %3245 = vmatpush.xpose.msra.mxu0 %v3220
    %3246 = vmatpush.xpose.msra.mxu0 %v3218
    %3247 = vmatpush.xpose.msra.mxu0 %v3216
    %3248 = vmatmul.f32.gmra.mxu0 %v3211
    %v3249 = vpop.f32.mrf.mxu0
    %v3250 = vadd.f32 0.0, %v3249
    %3251 = vmatmul.f32.gmra.mxu0 %v3214
    %v3252 = vpop.f32.mrf.mxu0
    %v3253 = vadd.f32 0.0, %v3252
    %3254 = vdwg.mxu0
    %v3255 = vmul.f32 %v3250, 0.35355338
    %v3256 = vmul.f32 %v3253, 0.35355338
    %v3257 = vtanh.pop %v3255
    %v3258 = vtanh.pop %v3256
    %v3260 = vsel %vm527, %v3257, 0
    %v3263 = vsel %vm527, %v3258, 0
    %3265 = vmatpush.msra.mxu0 0.0
    %3266 = vmatpush.msra.mxu0 0.0
    %3267 = vmatpush.msra.mxu0 0.0
    %3268 = vmatpush.msra.mxu0 0.0
    %3269 = vmatpush.msra.mxu0 0.0
    %3270 = vmatpush.msra.mxu0 0.0
    %3271 = vmatpush.msra.mxu0 0.0
    %3272 = vmatpush.msra.mxu0 0.0
    %3273 = vmatpush.msra.mxu0 %v220
    %3274 = vmatpush.msra.mxu0 %v219
    %3275 = vmatpush.msra.mxu0 %v220
    %3276 = vmatpush.msra.mxu0 %v219
    %3277 = vmatpush.msra.mxu0 %v220
    %3278 = vmatpush.msra.mxu0 %v219
    %3279 = vmatpush.msra.mxu0 %v220
    %3280 = vmatpush.msra.mxu0 %v219
    %3281 = vmatmul.f32.gmra.mxu0 %v3260
    %v3282 = vpop.f32.mrf.mxu0
    %v3283 = vadd.f32 0.0, %v3282
    %3284 = vmatmul.f32.gmra.mxu0 %v3263
    %v3285 = vpop.f32.mrf.mxu0
    %v3286 = vadd.f32 0.0, %v3285
    %3287 = vdwg.mxu0
    %3288 = vxpose.xlu0.b32.start [1/16] %v3283, 128
    %3289 = vxpose.xlu0.b32.cont [2/16] %v3286, 128
    %3290 = vxpose.xlu0.b32.cont [3/16] 0.0, 128
    %3291 = vxpose.xlu0.b32.cont [4/16] 0.0, 128
    %3292 = vxpose.xlu0.b32.cont [5/16] 0.0, 128
    %3293 = vxpose.xlu0.b32.cont [6/16] 0.0, 128
    %3294 = vxpose.xlu0.b32.cont [7/16] 0.0, 128
    %3295 = vxpose.xlu0.b32.cont [8/16] 0.0, 128
    %3296 = vxpose.xlu0.b32.cont [9/16] 0.0, 128
    %3297 = vxpose.xlu0.b32.cont [10/16] 0.0, 128
    %3298 = vxpose.xlu0.b32.cont [11/16] 0.0, 128
    %3299 = vxpose.xlu0.b32.cont [12/16] 0.0, 128
    %3300 = vxpose.xlu0.b32.cont [13/16] 0.0, 128
    %3301 = vxpose.xlu0.b32.cont [14/16] 0.0, 128
    %3302 = vxpose.xlu0.b32.cont [15/16] 0.0, 128
    %3303 = vxpose.xlu0.b32.end [16/16] 0.0, 128
    %v3304 = vpop.trf.xlu0
    %v3305 = vpop.trf.xlu0
    %v3306 = vpop.trf.xlu0
    %v3307 = vpop.trf.xlu0
    %v3308 = vpop.trf.xlu0
    %v3309 = vpop.trf.xlu0
    %v3310 = vpop.trf.xlu0
    %v3311 = vpop.trf.xlu0
    %v3312 = vpop.trf.xlu0
    %v3313 = vpop.trf.xlu0
    %v3314 = vpop.trf.xlu0
    %v3315 = vpop.trf.xlu0
    %v3316 = vpop.trf.xlu0
    %v3317 = vpop.trf.xlu0
    %v3318 = vpop.trf.xlu0
    %v3319 = vpop.trf.xlu0
    %v3320 = vadd.f32 %v3283, %v3304
    %v3321 = vadd.f32 %v3286, %v3305
    %v3322 = vmul.f32 %v3320, 0.5
    %v3323 = vmul.f32 %v3321, 0.5
    %v3324 = vmul.f32 %v1910, %v2286
    %v3325 = vmul.f32 %v1911, %v2288
    %v3326 = vadd.f32 %v3324, %v2296
    %v3327 = vadd.f32 %v3325, %v2298
    %3330 = vrot.lane.b32.xlu0 %v3326, 112
    %v3331 = vpop.permute.xlu0 %3330
    %3332 = vrot.lane.b32.xlu0 %v3327, 112
    %v3333 = vpop.permute.xlu0 %3332
    %v3336 = vsel %vm223, %v3331, 0.0
    %3337 = vadd.xlane.f32.xlu0 %v3336
    %v3338 = vpop.xlane.xlu0 %3337
    %v3339 = vsel %vm223, %v3333, 0.0
    %3340 = vadd.xlane.f32.xlu0 %v3339
    %v3341 = vpop.xlane.xlu0 %3340
    %v3342 = vmax.f32 %v3338, 1.0
    %v3343 = vmax.f32 %v3341, 1.0
    %v3344 = vrsqrt.pop %v3342
    %v3345 = vmul.f32 %v3344, %v3342
    %v3346 = vmul.f32 %v3345, %v3344
    %v3347 = vmul.f32 0.5, %v3346
    %v3348 = vsub.f32 1.5, %v3347
    %v3349 = vmul.f32 %v3344, %v3348
    %vm3350 = vweird.f32 %v3342
    %vm3351 = vweird.f32 %v3344
    %vm3352 = vmor %vm3350, %vm3351
    %v3353 = vsel %vm3352, %v3344, %v3349
    %v3354 = vrsqrt.pop %v3343
    %v3355 = vmul.f32 %v3354, %v3343
    %v3356 = vmul.f32 %v3355, %v3354
    %v3357 = vmul.f32 0.5, %v3356
    %v3358 = vsub.f32 1.5, %v3357
    %v3359 = vmul.f32 %v3354, %v3358
    %vm3360 = vweird.f32 %v3343
    %vm3361 = vweird.f32 %v3354
    %vm3362 = vmor %vm3360, %vm3361
    %v3363 = vsel %vm3362, %v3354, %v3359
    %v3364 = vmul.f32 %v2061, %v3353
    %v3365 = vmul.f32 %v2064, %v3363
    %3368 = vrot.lane.b32.xlu0 %v3364, 104
    %v3369 = vpop.permute.xlu0 %3368
    %3370 = vrot.lane.b32.xlu0 %v3365, 104
    %v3371 = vpop.permute.xlu0 %3370
    %v3374 = vsel %vm223, %v3331, 0
    %v3376 = vsel %vm223, %v3333, 0
    %3378 = vmatpush.msra.mxu0 0.0
    %3379 = vmatpush.msra.mxu0 0.0
    %3380 = vmatpush.msra.mxu0 0.0
    %3381 = vmatpush.msra.mxu0 0.0
    %3382 = vmatpush.msra.mxu0 0.0
    %3383 = vmatpush.msra.mxu0 0.0
    %3384 = vmatpush.msra.mxu0 0.0
    %3385 = vmatpush.msra.mxu0 0.0
    %3386 = vmatpush.msra.mxu0 0.0
    %3387 = vmatpush.msra.mxu0 0.0
    %3388 = vmatpush.msra.mxu0 0.0
    %3389 = vmatpush.msra.mxu0 0.0
    %3390 = vmatpush.msra.mxu0 0.0
    %3391 = vmatpush.msra.mxu0 0.0
    %3392 = vmatpush.msra.mxu0 %v3371
    %3393 = vmatpush.msra.mxu0 %v3369
    %3394 = vmatmul.f32.gmra.mxu0 %v3374
    %v3395 = vpop.f32.mrf.mxu0
    %v3396 = vadd.f32 0.0, %v3395
    %3397 = vmatmul.f32.gmra.mxu0 %v3376
    %v3398 = vpop.f32.mrf.mxu0
    %v3399 = vadd.f32 0.0, %v3398
    %3400 = vdwg.mxu0
    %v3401 = vmul.f32 %v3396, %v3353
    %v3402 = vmul.f32 %v3399, %v3363
    %v3403 = vadd.f32 %v3401, %v2379
    %v3404 = vadd.f32 %v3402, %v2379
    %v3405 = vmul.f32 %v3403, %v431
    %v3406 = vmul.f32 %v3404, %v431
    %v3407 = vmul.f32 %v3403, %v437
    %v3408 = vmul.f32 %v3404, %v437
    %v3409 = vmul.f32 %v3403, %v443
    %v3410 = vmul.f32 %v3404, %v443
    %v3411 = vmul.f32 %v3403, %v449
    %v3412 = vmul.f32 %v3404, %v449
    %3421 = vrot.lane.b32.xlu0 %v3405, 120
    %v3422 = vpop.permute.xlu0 %3421
    %3423 = vrot.lane.b32.xlu0 %v3406, 120
    %v3424 = vpop.permute.xlu0 %3423
    %3425 = vrot.lane.b32.xlu0 %v3407, 120
    %v3426 = vpop.permute.xlu0 %3425
    %3427 = vrot.lane.b32.xlu0 %v3408, 120
    %v3428 = vpop.permute.xlu0 %3427
    %3429 = vrot.lane.b32.xlu0 %v3409, 120
    %v3430 = vpop.permute.xlu0 %3429
    %3431 = vrot.lane.b32.xlu0 %v3410, 120
    %v3432 = vpop.permute.xlu0 %3431
    %3433 = vrot.lane.b32.xlu0 %v3411, 120
    %v3434 = vpop.permute.xlu0 %3433
    %3435 = vrot.lane.b32.xlu0 %v3412, 120
    %v3436 = vpop.permute.xlu0 %3435
    %v3438 = vsel %vm477, %v3403, 0
    %v3441 = vsel %vm477, %v3404, 0
    %v3443 = vsel %vm477, %v3422, 0
    %v3445 = vsel %vm477, %v3424, 0
    %v3447 = vsel %vm477, %v3426, 0
    %v3449 = vsel %vm477, %v3428, 0
    %v3451 = vsel %vm477, %v3430, 0
    %v3453 = vsel %vm477, %v3432, 0
    %v3455 = vsel %vm477, %v3434, 0
    %v3457 = vsel %vm477, %v3436, 0
    %3459 = vmatpush.xpose.msra.mxu0 0.0
    %3460 = vmatpush.xpose.msra.mxu0 0.0
    %3461 = vmatpush.xpose.msra.mxu0 0.0
    %3462 = vmatpush.xpose.msra.mxu0 0.0
    %3463 = vmatpush.xpose.msra.mxu0 0.0
    %3464 = vmatpush.xpose.msra.mxu0 0.0
    %3465 = vmatpush.xpose.msra.mxu0 0.0
    %3466 = vmatpush.xpose.msra.mxu0 0.0
    %3467 = vmatpush.xpose.msra.mxu0 %v3457
    %3468 = vmatpush.xpose.msra.mxu0 %v3455
    %3469 = vmatpush.xpose.msra.mxu0 %v3453
    %3470 = vmatpush.xpose.msra.mxu0 %v3451
    %3471 = vmatpush.xpose.msra.mxu0 %v3449
    %3472 = vmatpush.xpose.msra.mxu0 %v3447
    %3473 = vmatpush.xpose.msra.mxu0 %v3445
    %3474 = vmatpush.xpose.msra.mxu0 %v3443
    %3475 = vmatmul.f32.gmra.mxu0 %v3438
    %v3476 = vpop.f32.mrf.mxu0
    %v3477 = vadd.f32 0.0, %v3476
    %3478 = vmatmul.f32.gmra.mxu0 %v3441
    %v3479 = vpop.f32.mrf.mxu0
    %v3480 = vadd.f32 0.0, %v3479
    %3481 = vdwg.mxu0
    %v3482 = vmul.f32 %v3477, 0.35355338
    %v3483 = vmul.f32 %v3480, 0.35355338
    %v3484 = vtanh.pop %v3482
    %v3485 = vtanh.pop %v3483
    %v3487 = vsel %vm527, %v3484, 0
    %v3490 = vsel %vm527, %v3485, 0
    %3492 = vmatpush.msra.mxu0 0.0
    %3493 = vmatpush.msra.mxu0 0.0
    %3494 = vmatpush.msra.mxu0 0.0
    %3495 = vmatpush.msra.mxu0 0.0
    %3496 = vmatpush.msra.mxu0 0.0
    %3497 = vmatpush.msra.mxu0 0.0
    %3498 = vmatpush.msra.mxu0 0.0
    %3499 = vmatpush.msra.mxu0 0.0
    %3500 = vmatpush.msra.mxu0 %v220
    %3501 = vmatpush.msra.mxu0 %v219
    %3502 = vmatpush.msra.mxu0 %v220
    %3503 = vmatpush.msra.mxu0 %v219
    %3504 = vmatpush.msra.mxu0 %v220
    %3505 = vmatpush.msra.mxu0 %v219
    %3506 = vmatpush.msra.mxu0 %v220
    %3507 = vmatpush.msra.mxu0 %v219
    %3508 = vmatmul.f32.gmra.mxu0 %v3487
    %v3509 = vpop.f32.mrf.mxu0
    %v3510 = vadd.f32 0.0, %v3509
    %3511 = vmatmul.f32.gmra.mxu0 %v3490
    %v3512 = vpop.f32.mrf.mxu0
    %v3513 = vadd.f32 0.0, %v3512
    %3514 = vdwg.mxu0
    %3515 = vxpose.xlu0.b32.start [1/16] %v3510, 128
    %3516 = vxpose.xlu0.b32.cont [2/16] %v3513, 128
    %3517 = vxpose.xlu0.b32.cont [3/16] 0.0, 128
    %3518 = vxpose.xlu0.b32.cont [4/16] 0.0, 128
    %3519 = vxpose.xlu0.b32.cont [5/16] 0.0, 128
    %3520 = vxpose.xlu0.b32.cont [6/16] 0.0, 128
    %3521 = vxpose.xlu0.b32.cont [7/16] 0.0, 128
    %3522 = vxpose.xlu0.b32.cont [8/16] 0.0, 128
    %3523 = vxpose.xlu0.b32.cont [9/16] 0.0, 128
    %3524 = vxpose.xlu0.b32.cont [10/16] 0.0, 128
    %3525 = vxpose.xlu0.b32.cont [11/16] 0.0, 128
    %3526 = vxpose.xlu0.b32.cont [12/16] 0.0, 128
    %3527 = vxpose.xlu0.b32.cont [13/16] 0.0, 128
    %3528 = vxpose.xlu0.b32.cont [14/16] 0.0, 128
    %3529 = vxpose.xlu0.b32.cont [15/16] 0.0, 128
    %3530 = vxpose.xlu0.b32.end [16/16] 0.0, 128
    %v3531 = vpop.trf.xlu0
    %v3532 = vpop.trf.xlu0
    %v3533 = vpop.trf.xlu0
    %v3534 = vpop.trf.xlu0
    %v3535 = vpop.trf.xlu0
    %v3536 = vpop.trf.xlu0
    %v3537 = vpop.trf.xlu0
    %v3538 = vpop.trf.xlu0
    %v3539 = vpop.trf.xlu0
    %v3540 = vpop.trf.xlu0
    %v3541 = vpop.trf.xlu0
    %v3542 = vpop.trf.xlu0
    %v3543 = vpop.trf.xlu0
    %v3544 = vpop.trf.xlu0
    %v3545 = vpop.trf.xlu0
    %v3546 = vpop.trf.xlu0
    %v3547 = vadd.f32 %v3510, %v3531
    %v3548 = vadd.f32 %v3513, %v3532
    %v3549 = vmul.f32 %v3547, 0.5
    %v3550 = vmul.f32 %v3548, 0.5
    %v3551 = vmul.f32 %v1966, %v2530
    %v3552 = vmul.f32 %v1967, %v2532
    %v3553 = vadd.f32 %v3551, %v2538
    %v3554 = vadd.f32 %v3552, %v2540
    %3557 = vrot.lane.b32.xlu0 %v3553, 96
    %v3558 = vpop.permute.xlu0 %3557
    %3559 = vrot.lane.b32.xlu0 %v3554, 96
    %v3560 = vpop.permute.xlu0 %3559
    %v3563 = vsel %vm223, %v3558, 0.0
    %3564 = vadd.xlane.f32.xlu0 %v3563
    %v3565 = vpop.xlane.xlu0 %3564
    %v3566 = vsel %vm223, %v3560, 0.0
    %3567 = vadd.xlane.f32.xlu0 %v3566
    %v3568 = vpop.xlane.xlu0 %3567
    %v3569 = vmax.f32 %v3565, 1.0
    %v3570 = vmax.f32 %v3568, 1.0
    %v3571 = vrsqrt.pop %v3569
    %v3572 = vmul.f32 %v3571, %v3569
    %v3573 = vmul.f32 %v3572, %v3571
    %v3574 = vmul.f32 0.5, %v3573
    %v3575 = vsub.f32 1.5, %v3574
    %v3576 = vmul.f32 %v3571, %v3575
    %vm3577 = vweird.f32 %v3569
    %vm3578 = vweird.f32 %v3571
    %vm3579 = vmor %vm3577, %vm3578
    %v3580 = vsel %vm3579, %v3571, %v3576
    %v3581 = vrsqrt.pop %v3570
    %v3582 = vmul.f32 %v3581, %v3570
    %v3583 = vmul.f32 %v3582, %v3581
    %v3584 = vmul.f32 0.5, %v3583
    %v3585 = vsub.f32 1.5, %v3584
    %v3586 = vmul.f32 %v3581, %v3585
    %vm3587 = vweird.f32 %v3570
    %vm3588 = vweird.f32 %v3581
    %vm3589 = vmor %vm3587, %vm3588
    %v3590 = vsel %vm3589, %v3581, %v3586
    %v3591 = vmul.f32 %v2061, %v3580
    %v3592 = vmul.f32 %v2064, %v3590
    %3595 = vrot.lane.b32.xlu0 %v3591, 80
    %v3596 = vpop.permute.xlu0 %3595
    %3597 = vrot.lane.b32.xlu0 %v3592, 80
    %v3598 = vpop.permute.xlu0 %3597
    %v3601 = vsel %vm223, %v3558, 0
    %v3603 = vsel %vm223, %v3560, 0
    %3605 = vmatpush.msra.mxu0 0.0
    %3606 = vmatpush.msra.mxu0 0.0
    %3607 = vmatpush.msra.mxu0 0.0
    %3608 = vmatpush.msra.mxu0 0.0
    %3609 = vmatpush.msra.mxu0 0.0
    %3610 = vmatpush.msra.mxu0 0.0
    %3611 = vmatpush.msra.mxu0 0.0
    %3612 = vmatpush.msra.mxu0 0.0
    %3613 = vmatpush.msra.mxu0 0.0
    %3614 = vmatpush.msra.mxu0 0.0
    %3615 = vmatpush.msra.mxu0 0.0
    %3616 = vmatpush.msra.mxu0 0.0
    %3617 = vmatpush.msra.mxu0 0.0
    %3618 = vmatpush.msra.mxu0 0.0
    %3619 = vmatpush.msra.mxu0 %v3598
    %3620 = vmatpush.msra.mxu0 %v3596
    %3621 = vmatmul.f32.gmra.mxu0 %v3601
    %v3622 = vpop.f32.mrf.mxu0
    %v3623 = vadd.f32 0.0, %v3622
    %3624 = vmatmul.f32.gmra.mxu0 %v3603
    %v3625 = vpop.f32.mrf.mxu0
    %v3626 = vadd.f32 0.0, %v3625
    %3627 = vdwg.mxu0
    %v3628 = vmul.f32 %v3623, %v3580
    %v3629 = vmul.f32 %v3626, %v3590
    %v3630 = vadd.f32 %v3628, %v2621
    %v3631 = vadd.f32 %v3629, %v2621
    %v3632 = vmul.f32 %v3630, %v431
    %v3633 = vmul.f32 %v3631, %v431
    %v3634 = vmul.f32 %v3630, %v437
    %v3635 = vmul.f32 %v3631, %v437
    %v3636 = vmul.f32 %v3630, %v443
    %v3637 = vmul.f32 %v3631, %v443
    %v3638 = vmul.f32 %v3630, %v449
    %v3639 = vmul.f32 %v3631, %v449
    %3648 = vrot.lane.b32.xlu0 %v3632, 120
    %v3649 = vpop.permute.xlu0 %3648
    %3650 = vrot.lane.b32.xlu0 %v3633, 120
    %v3651 = vpop.permute.xlu0 %3650
    %3652 = vrot.lane.b32.xlu0 %v3634, 120
    %v3653 = vpop.permute.xlu0 %3652
    %3654 = vrot.lane.b32.xlu0 %v3635, 120
    %v3655 = vpop.permute.xlu0 %3654
    %3656 = vrot.lane.b32.xlu0 %v3636, 120
    %v3657 = vpop.permute.xlu0 %3656
    %3658 = vrot.lane.b32.xlu0 %v3637, 120
    %v3659 = vpop.permute.xlu0 %3658
    %3660 = vrot.lane.b32.xlu0 %v3638, 120
    %v3661 = vpop.permute.xlu0 %3660
    %3662 = vrot.lane.b32.xlu0 %v3639, 120
    %v3663 = vpop.permute.xlu0 %3662
    %v3665 = vsel %vm477, %v3630, 0
    %v3668 = vsel %vm477, %v3631, 0
    %v3670 = vsel %vm477, %v3649, 0
    %v3672 = vsel %vm477, %v3651, 0
    %v3674 = vsel %vm477, %v3653, 0
    %v3676 = vsel %vm477, %v3655, 0
    %v3678 = vsel %vm477, %v3657, 0
    %v3680 = vsel %vm477, %v3659, 0
    %v3682 = vsel %vm477, %v3661, 0
    %v3684 = vsel %vm477, %v3663, 0
    %3686 = vmatpush.xpose.msra.mxu0 0.0
    %3687 = vmatpush.xpose.msra.mxu0 0.0
    %3688 = vmatpush.xpose.msra.mxu0 0.0
    %3689 = vmatpush.xpose.msra.mxu0 0.0
    %3690 = vmatpush.xpose.msra.mxu0 0.0
    %3691 = vmatpush.xpose.msra.mxu0 0.0
    %3692 = vmatpush.xpose.msra.mxu0 0.0
    %3693 = vmatpush.xpose.msra.mxu0 0.0
    %3694 = vmatpush.xpose.msra.mxu0 %v3684
    %3695 = vmatpush.xpose.msra.mxu0 %v3682
    %3696 = vmatpush.xpose.msra.mxu0 %v3680
    %3697 = vmatpush.xpose.msra.mxu0 %v3678
    %3698 = vmatpush.xpose.msra.mxu0 %v3676
    %3699 = vmatpush.xpose.msra.mxu0 %v3674
    %3700 = vmatpush.xpose.msra.mxu0 %v3672
    %3701 = vmatpush.xpose.msra.mxu0 %v3670
    %3702 = vmatmul.f32.gmra.mxu0 %v3665
    %v3703 = vpop.f32.mrf.mxu0
    %v3704 = vadd.f32 0.0, %v3703
    %3705 = vmatmul.f32.gmra.mxu0 %v3668
    %v3706 = vpop.f32.mrf.mxu0
    %v3707 = vadd.f32 0.0, %v3706
    %3708 = vdwg.mxu0
    %v3709 = vmul.f32 %v3704, 0.35355338
    %v3710 = vmul.f32 %v3707, 0.35355338
    %v3711 = vtanh.pop %v3709
    %v3712 = vtanh.pop %v3710
    %v3714 = vsel %vm527, %v3711, 0
    %v3717 = vsel %vm527, %v3712, 0
    %3719 = vmatpush.msra.mxu0 0.0
    %3720 = vmatpush.msra.mxu0 0.0
    %3721 = vmatpush.msra.mxu0 0.0
    %3722 = vmatpush.msra.mxu0 0.0
    %3723 = vmatpush.msra.mxu0 0.0
    %3724 = vmatpush.msra.mxu0 0.0
    %3725 = vmatpush.msra.mxu0 0.0
    %3726 = vmatpush.msra.mxu0 0.0
    %3727 = vmatpush.msra.mxu0 %v220
    %3728 = vmatpush.msra.mxu0 %v219
    %3729 = vmatpush.msra.mxu0 %v220
    %3730 = vmatpush.msra.mxu0 %v219
    %3731 = vmatpush.msra.mxu0 %v220
    %3732 = vmatpush.msra.mxu0 %v219
    %3733 = vmatpush.msra.mxu0 %v220
    %3734 = vmatpush.msra.mxu0 %v219
    %3735 = vmatmul.f32.gmra.mxu0 %v3714
    %v3736 = vpop.f32.mrf.mxu0
    %v3737 = vadd.f32 0.0, %v3736
    %3738 = vmatmul.f32.gmra.mxu0 %v3717
    %v3739 = vpop.f32.mrf.mxu0
    %v3740 = vadd.f32 0.0, %v3739
    %3741 = vdwg.mxu0
    %3742 = vxpose.xlu0.b32.start [1/16] %v3737, 128
    %3743 = vxpose.xlu0.b32.cont [2/16] %v3740, 128
    %3744 = vxpose.xlu0.b32.cont [3/16] 0.0, 128
    %3745 = vxpose.xlu0.b32.cont [4/16] 0.0, 128
    %3746 = vxpose.xlu0.b32.cont [5/16] 0.0, 128
    %3747 = vxpose.xlu0.b32.cont [6/16] 0.0, 128
    %3748 = vxpose.xlu0.b32.cont [7/16] 0.0, 128
    %3749 = vxpose.xlu0.b32.cont [8/16] 0.0, 128
    %3750 = vxpose.xlu0.b32.cont [9/16] 0.0, 128
    %3751 = vxpose.xlu0.b32.cont [10/16] 0.0, 128
    %3752 = vxpose.xlu0.b32.cont [11/16] 0.0, 128
    %3753 = vxpose.xlu0.b32.cont [12/16] 0.0, 128
    %3754 = vxpose.xlu0.b32.cont [13/16] 0.0, 128
    %3755 = vxpose.xlu0.b32.cont [14/16] 0.0, 128
    %3756 = vxpose.xlu0.b32.cont [15/16] 0.0, 128
    %3757 = vxpose.xlu0.b32.end [16/16] 0.0, 128
    %v3758 = vpop.trf.xlu0
    %v3759 = vpop.trf.xlu0
    %v3760 = vpop.trf.xlu0
    %v3761 = vpop.trf.xlu0
    %v3762 = vpop.trf.xlu0
    %v3763 = vpop.trf.xlu0
    %v3764 = vpop.trf.xlu0
    %v3765 = vpop.trf.xlu0
    %v3766 = vpop.trf.xlu0
    %v3767 = vpop.trf.xlu0
    %v3768 = vpop.trf.xlu0
    %v3769 = vpop.trf.xlu0
    %v3770 = vpop.trf.xlu0
    %v3771 = vpop.trf.xlu0
    %v3772 = vpop.trf.xlu0
    %v3773 = vpop.trf.xlu0
    %v3774 = vadd.f32 %v3737, %v3758
    %v3775 = vadd.f32 %v3740, %v3759
    %v3776 = vmul.f32 %v3774, 0.5
    %v3777 = vmul.f32 %v3775, 0.5
    %v3778 = vmul.f32 %v2022, %v2772
    %v3779 = vmul.f32 %v2023, %v2774
    %v3780 = vadd.f32 %v3778, %v2780
    %v3781 = vadd.f32 %v3779, %v2782
    %3784 = vrot.lane.b32.xlu0 %v3780, 80
    %v3785 = vpop.permute.xlu0 %3784
    %3786 = vrot.lane.b32.xlu0 %v3781, 80
    %v3787 = vpop.permute.xlu0 %3786
    %v3790 = vsel %vm223, %v3785, 0.0
    %3791 = vadd.xlane.f32.xlu0 %v3790
    %v3792 = vpop.xlane.xlu0 %3791
    %v3793 = vsel %vm223, %v3787, 0.0
    %3794 = vadd.xlane.f32.xlu0 %v3793
    %v3795 = vpop.xlane.xlu0 %3794
    %v3796 = vmax.f32 %v3792, 1.0
    %v3797 = vmax.f32 %v3795, 1.0
    %v3798 = vrsqrt.pop %v3796
    %v3799 = vmul.f32 %v3798, %v3796
    %v3800 = vmul.f32 %v3799, %v3798
    %v3801 = vmul.f32 0.5, %v3800
    %v3802 = vsub.f32 1.5, %v3801
    %v3803 = vmul.f32 %v3798, %v3802
    %vm3804 = vweird.f32 %v3796
    %vm3805 = vweird.f32 %v3798
    %vm3806 = vmor %vm3804, %vm3805
    %v3807 = vsel %vm3806, %v3798, %v3803
    %v3808 = vrsqrt.pop %v3797
    %v3809 = vmul.f32 %v3808, %v3797
    %v3810 = vmul.f32 %v3809, %v3808
    %v3811 = vmul.f32 0.5, %v3810
    %v3812 = vsub.f32 1.5, %v3811
    %v3813 = vmul.f32 %v3808, %v3812
    %vm3814 = vweird.f32 %v3797
    %vm3815 = vweird.f32 %v3808
    %vm3816 = vmor %vm3814, %vm3815
    %v3817 = vsel %vm3816, %v3808, %v3813
    %v3818 = vmul.f32 %v2061, %v3807
    %v3819 = vmul.f32 %v2064, %v3817
    %3822 = vrot.lane.b32.xlu0 %v3818, 56
    %v3823 = vpop.permute.xlu0 %3822
    %3824 = vrot.lane.b32.xlu0 %v3819, 56
    %v3825 = vpop.permute.xlu0 %3824
    %v3828 = vsel %vm223, %v3785, 0
    %v3830 = vsel %vm223, %v3787, 0
    %3832 = vmatpush.msra.mxu0 0.0
    %3833 = vmatpush.msra.mxu0 0.0
    %3834 = vmatpush.msra.mxu0 0.0
    %3835 = vmatpush.msra.mxu0 0.0
    %3836 = vmatpush.msra.mxu0 0.0
    %3837 = vmatpush.msra.mxu0 0.0
    %3838 = vmatpush.msra.mxu0 0.0
    %3839 = vmatpush.msra.mxu0 0.0
    %3840 = vmatpush.msra.mxu0 0.0
    %3841 = vmatpush.msra.mxu0 0.0
    %3842 = vmatpush.msra.mxu0 0.0
    %3843 = vmatpush.msra.mxu0 0.0
    %3844 = vmatpush.msra.mxu0 0.0
    %3845 = vmatpush.msra.mxu0 0.0
    %3846 = vmatpush.msra.mxu0 %v3825
    %3847 = vmatpush.msra.mxu0 %v3823
    %3848 = vmatmul.f32.gmra.mxu0 %v3828
    %v3849 = vpop.f32.mrf.mxu0
    %v3850 = vadd.f32 0.0, %v3849
    %3851 = vmatmul.f32.gmra.mxu0 %v3830
    %v3852 = vpop.f32.mrf.mxu0
    %v3853 = vadd.f32 0.0, %v3852
    %3854 = vdwg.mxu0
    %v3855 = vmul.f32 %v3850, %v3807
    %v3856 = vmul.f32 %v3853, %v3817
    %v3857 = vadd.f32 %v3855, %v2863
    %v3858 = vadd.f32 %v3856, %v2863
    %v3859 = vmul.f32 %v3857, %v431
    %v3860 = vmul.f32 %v3858, %v431
    %v3861 = vmul.f32 %v3857, %v437
    %v3862 = vmul.f32 %v3858, %v437
    %v3863 = vmul.f32 %v3857, %v443
    %v3864 = vmul.f32 %v3858, %v443
    %v3865 = vmul.f32 %v3857, %v449
    %v3866 = vmul.f32 %v3858, %v449
    %3875 = vrot.lane.b32.xlu0 %v3859, 120
    %v3876 = vpop.permute.xlu0 %3875
    %3877 = vrot.lane.b32.xlu0 %v3860, 120
    %v3878 = vpop.permute.xlu0 %3877
    %3879 = vrot.lane.b32.xlu0 %v3861, 120
    %v3880 = vpop.permute.xlu0 %3879
    %3881 = vrot.lane.b32.xlu0 %v3862, 120
    %v3882 = vpop.permute.xlu0 %3881
    %3883 = vrot.lane.b32.xlu0 %v3863, 120
    %v3884 = vpop.permute.xlu0 %3883
    %3885 = vrot.lane.b32.xlu0 %v3864, 120
    %v3886 = vpop.permute.xlu0 %3885
    %3887 = vrot.lane.b32.xlu0 %v3865, 120
    %v3888 = vpop.permute.xlu0 %3887
    %3889 = vrot.lane.b32.xlu0 %v3866, 120
    %v3890 = vpop.permute.xlu0 %3889
    %v3892 = vsel %vm477, %v3857, 0
    %v3895 = vsel %vm477, %v3858, 0
    %v3897 = vsel %vm477, %v3876, 0
    %v3899 = vsel %vm477, %v3878, 0
    %v3901 = vsel %vm477, %v3880, 0
    %v3903 = vsel %vm477, %v3882, 0
    %v3905 = vsel %vm477, %v3884, 0
    %v3907 = vsel %vm477, %v3886, 0
    %v3909 = vsel %vm477, %v3888, 0
    %v3911 = vsel %vm477, %v3890, 0
    %3913 = vmatpush.xpose.msra.mxu0 0.0
    %3914 = vmatpush.xpose.msra.mxu0 0.0
    %3915 = vmatpush.xpose.msra.mxu0 0.0
    %3916 = vmatpush.xpose.msra.mxu0 0.0
    %3917 = vmatpush.xpose.msra.mxu0 0.0
    %3918 = vmatpush.xpose.msra.mxu0 0.0
    %3919 = vmatpush.xpose.msra.mxu0 0.0
    %3920 = vmatpush.xpose.msra.mxu0 0.0
    %3921 = vmatpush.xpose.msra.mxu0 %v3911
    %3922 = vmatpush.xpose.msra.mxu0 %v3909
    %3923 = vmatpush.xpose.msra.mxu0 %v3907
    %3924 = vmatpush.xpose.msra.mxu0 %v3905
    %3925 = vmatpush.xpose.msra.mxu0 %v3903
    %3926 = vmatpush.xpose.msra.mxu0 %v3901
    %3927 = vmatpush.xpose.msra.mxu0 %v3899
    %3928 = vmatpush.xpose.msra.mxu0 %v3897
    %3929 = vmatmul.f32.gmra.mxu0 %v3892
    %v3930 = vpop.f32.mrf.mxu0
    %v3931 = vadd.f32 0.0, %v3930
    %3932 = vmatmul.f32.gmra.mxu0 %v3895
    %v3933 = vpop.f32.mrf.mxu0
    %v3934 = vadd.f32 0.0, %v3933
    %3935 = vdwg.mxu0
    %v3936 = vmul.f32 %v3931, 0.35355338
    %v3937 = vmul.f32 %v3934, 0.35355338
    %v3938 = vtanh.pop %v3936
    %v3939 = vtanh.pop %v3937
    %v3941 = vsel %vm527, %v3938, 0
    %v3944 = vsel %vm527, %v3939, 0
    %3946 = vmatpush.msra.mxu0 0.0
    %3947 = vmatpush.msra.mxu0 0.0
    %3948 = vmatpush.msra.mxu0 0.0
    %3949 = vmatpush.msra.mxu0 0.0
    %3950 = vmatpush.msra.mxu0 0.0
    %3951 = vmatpush.msra.mxu0 0.0
    %3952 = vmatpush.msra.mxu0 0.0
    %3953 = vmatpush.msra.mxu0 0.0
    %3954 = vmatpush.msra.mxu0 %v220
    %3955 = vmatpush.msra.mxu0 %v219
    %3956 = vmatpush.msra.mxu0 %v220
    %3957 = vmatpush.msra.mxu0 %v219
    %3958 = vmatpush.msra.mxu0 %v220
    %3959 = vmatpush.msra.mxu0 %v219
    %3960 = vmatpush.msra.mxu0 %v220
    %3961 = vmatpush.msra.mxu0 %v219
    %3962 = vmatmul.f32.gmra.mxu0 %v3941
    %v3963 = vpop.f32.mrf.mxu0
    %v3964 = vadd.f32 0.0, %v3963
    %3965 = vmatmul.f32.gmra.mxu0 %v3944
    %v3966 = vpop.f32.mrf.mxu0
    %v3967 = vadd.f32 0.0, %v3966
    %3968 = vdwg.mxu0
    %3969 = vxpose.xlu0.b32.start [1/16] %v3964, 128
    %3970 = vxpose.xlu0.b32.cont [2/16] %v3967, 128
    %3971 = vxpose.xlu0.b32.cont [3/16] 0.0, 128
    %3972 = vxpose.xlu0.b32.cont [4/16] 0.0, 128
    %3973 = vxpose.xlu0.b32.cont [5/16] 0.0, 128
    %3974 = vxpose.xlu0.b32.cont [6/16] 0.0, 128
    %3975 = vxpose.xlu0.b32.cont [7/16] 0.0, 128
    %3976 = vxpose.xlu0.b32.cont [8/16] 0.0, 128
    %3977 = vxpose.xlu0.b32.cont [9/16] 0.0, 128
    %3978 = vxpose.xlu0.b32.cont [10/16] 0.0, 128
    %3979 = vxpose.xlu0.b32.cont [11/16] 0.0, 128
    %3980 = vxpose.xlu0.b32.cont [12/16] 0.0, 128
    %3981 = vxpose.xlu0.b32.cont [13/16] 0.0, 128
    %3982 = vxpose.xlu0.b32.cont [14/16] 0.0, 128
    %3983 = vxpose.xlu0.b32.cont [15/16] 0.0, 128
    %3984 = vxpose.xlu0.b32.end [16/16] 0.0, 128
    %v3985 = vpop.trf.xlu0
    %v3986 = vpop.trf.xlu0
    %v3987 = vpop.trf.xlu0
    %v3988 = vpop.trf.xlu0
    %v3989 = vpop.trf.xlu0
    %v3990 = vpop.trf.xlu0
    %v3991 = vpop.trf.xlu0
    %v3992 = vpop.trf.xlu0
    %v3993 = vpop.trf.xlu0
    %v3994 = vpop.trf.xlu0
    %v3995 = vpop.trf.xlu0
    %v3996 = vpop.trf.xlu0
    %v3997 = vpop.trf.xlu0
    %v3998 = vpop.trf.xlu0
    %v3999 = vpop.trf.xlu0
    %v4000 = vpop.trf.xlu0
    %v4001 = vadd.f32 %v3964, %v3985
    %v4002 = vadd.f32 %v3967, %v3986
    %v4003 = vmul.f32 %v4001, 0.5
    %v4004 = vmul.f32 %v4002, 0.5
    %4005 = vrot.lane.b32.xlu0 %v3176, 112
    %v4006 = vpop.permute.xlu0 %4005
    %4007 = vrot.lane.b32.xlu0 %v3177, 112
    %v4008 = vpop.permute.xlu0 %4007
    %4011 = vrot.lane.b32.xlu0 %v3403, 120
    %v4012 = vpop.permute.xlu0 %4011
    %4013 = vrot.lane.b32.xlu0 %v3404, 120
    %v4014 = vpop.permute.xlu0 %4013
    %4017 = vrot.lane.b32.xlu0 %v3857, 8
    %v4018 = vpop.permute.xlu0 %4017
    %4019 = vrot.lane.b32.xlu0 %v3858, 8
    %v4020 = vpop.permute.xlu0 %4019
    %v4023 = vsel %vm477, %v4006, %v4012
    %v4024 = vsel %vm477, %v4008, %v4014
    %v4025 = vsel %vm223, %v4023, %v3630
    %v4026 = vsel %vm223, %v4024, %v3631
    %v4027 = vsel %vm3035, %v4025, %v4018
    %v4028 = vsel %vm3035, %v4026, %v4020
    %4031 = vrot.lane.b32.xlu0 %v3549, 16
    %v4032 = vpop.permute.xlu0 %4031
    %4033 = vrot.lane.b32.xlu0 %v3550, 16
    %v4034 = vpop.permute.xlu0 %4033
    %4039 = vrot.lane.b32.xlu0 %v3776, 32
    %v4040 = vpop.permute.xlu0 %4039
    %4041 = vrot.lane.b32.xlu0 %v3777, 32
    %v4042 = vpop.permute.xlu0 %4041
    %4047 = vrot.lane.b32.xlu0 %v4003, 48
    %v4048 = vpop.permute.xlu0 %4047
    %4049 = vrot.lane.b32.xlu0 %v4004, 48
    %v4050 = vpop.permute.xlu0 %4049
    %4055 = vrot.lane.b32.xlu0 %v1850, 64
    %v4056 = vpop.permute.xlu0 %4055
    %4057 = vrot.lane.b32.xlu0 %v1851, 64
    %v4058 = vpop.permute.xlu0 %4057
    %4063 = vrot.lane.b32.xlu0 %v1910, 64
    %v4064 = vpop.permute.xlu0 %4063
    %4065 = vrot.lane.b32.xlu0 %v1911, 64
    %v4066 = vpop.permute.xlu0 %4065
    %4071 = vrot.lane.b32.xlu0 %v1966, 64
    %v4072 = vpop.permute.xlu0 %4071
    %4073 = vrot.lane.b32.xlu0 %v1967, 64
    %v4074 = vpop.permute.xlu0 %4073
    %4079 = vrot.lane.b32.xlu0 %v2022, 64
    %v4080 = vpop.permute.xlu0 %4079
    %4081 = vrot.lane.b32.xlu0 %v2023, 64
    %v4082 = vpop.permute.xlu0 %4081
    %v4085 = vsel %vm223, %v3322, %v4032
    %v4086 = vsel %vm223, %v3323, %v4034
    %v4087 = vsel %vm855, %v4085, %v4040
    %v4088 = vsel %vm855, %v4086, %v4042
    %v4089 = vsel %vm858, %v4087, %v4048
    %v4090 = vsel %vm858, %v4088, %v4050
    %v4091 = vsel %vm527, %v4089, %v4056
    %v4092 = vsel %vm527, %v4090, %v4058
    %v4093 = vsel %vm3102, %v4091, %v4064
    %v4094 = vsel %vm3102, %v4092, %v4066
    %v4095 = vsel %vm3105, %v4093, %v4072
    %v4096 = vsel %vm3105, %v4094, %v4074
    %v4097 = vsel %vm3108, %v4095, %v4080
    %v4098 = vsel %vm3108, %v4096, %v4082
    %v4099 = vld [vmem:[%s37] sm:$0xff]
    %v4100 = vld [vmem:[%s37 + $0x8] sm:$0xff]
    %v4101 = vld [vmem:[%s37 + $0x10] sm:$0xff]
    %v4102 = vld [vmem:[%s37 + $0x18] sm:$0xff]
    %v4103 = vld [vmem:[%s41] sm:$0x1]
    %v4105 = vperm.slane %v4103, 0
    %v4108 = vsel %vm855, %v3036, 0
    %v4111 = vsel %vm855, %v3037, 0
    %v4114 = vsel %vm855, %v4027, 0
    %v4117 = vsel %vm855, %v4028, 0
    %4119 = vmatpush.msra.mxu0 0.0
    %4120 = vmatpush.msra.mxu0 0.0
    %4121 = vmatpush.msra.mxu0 0.0
    %4122 = vmatpush.msra.mxu0 0.0
    %4123 = vmatpush.msra.mxu0 0.0
    %4124 = vmatpush.msra.mxu0 0.0
    %4125 = vmatpush.msra.mxu0 0.0
    %4126 = vmatpush.msra.mxu0 0.0
    %4127 = vmatpush.msra.mxu0 0.0
    %4128 = vmatpush.msra.mxu0 0.0
    %4129 = vmatpush.msra.mxu0 0.0
    %4130 = vmatpush.msra.mxu0 0.0
    %4131 = vmatpush.msra.mxu0 %v4102
    %4132 = vmatpush.msra.mxu0 %v4101
    %4133 = vmatpush.msra.mxu0 %v4100
    %4134 = vmatpush.msra.mxu0 %v4099
    %4135 = vmatmul.f32.gmra.mxu0 %v4108
    %v4136 = vpop.f32.mrf.mxu0
    %v4137 = vadd.f32 %v4105, %v4136
    %4138 = vmatmul.f32.gmra.mxu0 %v4111
    %v4139 = vpop.f32.mrf.mxu0
    %v4140 = vadd.f32 %v4105, %v4139
    %4141 = vmatmul.f32.gmra.mxu0 %v4114
    %v4142 = vpop.f32.mrf.mxu0
    %v4143 = vadd.f32 %v4105, %v4142
    %4144 = vmatmul.f32.gmra.mxu0 %v4117
    %v4145 = vpop.f32.mrf.mxu0
    %v4146 = vadd.f32 %v4105, %v4145
    %4147 = vdwg.mxu0
    %vm4148 = vcmp.gt.f32.partialorder %v4137, 0.0
    %vm4149 = vcmp.gt.f32.partialorder %v4140, 0.0
    %vm4150 = vcmp.gt.f32.partialorder %v4143, 0.0
    %vm4151 = vcmp.gt.f32.partialorder %v4146, 0.0
    %v4152 = vmin.f32 %v4137, 0.0
    %v4153 = vmin.f32 %v4140, 0.0
    %v4154 = vmin.f32 %v4143, 0.0
    %v4155 = vmin.f32 %v4146, 0.0
    %v4156 = vmul.f32 %v4152, 1.442695
    %v4157 = vpow.pop %v4156
    %v4158 = vmul.f32 %v4153, 1.442695
    %v4159 = vpow.pop %v4158
    %v4160 = vmul.f32 %v4154, 1.442695
    %v4161 = vpow.pop %v4160
    %v4162 = vmul.f32 %v4155, 1.442695
    %v4163 = vpow.pop %v4162
    %v4164 = vsub.f32 %v4157, 1.0
    %v4165 = vsub.f32 %v4159, 1.0
    %v4166 = vsub.f32 %v4161, 1.0
    %v4167 = vsub.f32 %v4163, 1.0
    %v4168 = vsel %vm4148, %v4137, %v4164
    %v4169 = vsel %vm4149, %v4140, %v4165
    %v4170 = vsel %vm4150, %v4143, %v4166
    %v4171 = vsel %vm4151, %v4146, %v4167
    %v4172 = vld [vmem:[%s39] sm:$0xff]
    %v4173 = vld [vmem:[%s43] sm:$0x1]
    %v4175 = vperm.slane %v4173, 0
    %v4178 = vsel %vm477, %v4168, 0
    %v4181 = vsel %vm477, %v4169, 0
    %v4184 = vsel %vm477, %v4170, 0
    %v4187 = vsel %vm477, %v4171, 0
    %4189 = vmatpush.msra.mxu0 0.0
    %4190 = vmatpush.msra.mxu0 0.0
    %4191 = vmatpush.msra.mxu0 0.0
    %4192 = vmatpush.msra.mxu0 0.0
    %4193 = vmatpush.msra.mxu0 0.0
    %4194 = vmatpush.msra.mxu0 0.0
    %4195 = vmatpush.msra.mxu0 0.0
    %4196 = vmatpush.msra.mxu0 0.0
    %4197 = vmatpush.msra.mxu0 0.0
    %4198 = vmatpush.msra.mxu0 0.0
    %4199 = vmatpush.msra.mxu0 0.0
    %4200 = vmatpush.msra.mxu0 0.0
    %4201 = vmatpush.msra.mxu0 0.0
    %4202 = vmatpush.msra.mxu0 0.0
    %4203 = vmatpush.msra.mxu0 0.0
    %4204 = vmatpush.msra.mxu0 %v4172
    %4205 = vmatmul.f32.gmra.mxu0 %v4178
    %v4206 = vpop.f32.mrf.mxu0
    %v4207 = vadd.f32 %v4175, %v4206
    %4208 = vmatmul.f32.gmra.mxu0 %v4181
    %v4209 = vpop.f32.mrf.mxu0
    %v4210 = vadd.f32 %v4175, %v4209
    %4211 = vmatmul.f32.gmra.mxu0 %v4184
    %v4212 = vpop.f32.mrf.mxu0
    %v4213 = vadd.f32 %v4175, %v4212
    %4214 = vmatmul.f32.gmra.mxu0 %v4187
    %v4215 = vpop.f32.mrf.mxu0
    %v4216 = vadd.f32 %v4175, %v4215
    %4217 = vdwg.mxu0
    %v4218 = vmul.f32 %v4207, %v1457
    %v4219 = vmul.f32 %v4210, %v1462
    %v4220 = vmul.f32 %v4213, %v1467
    %v4221 = vmul.f32 %v4216, %v1472
    %v4222 = vtanh.pop %v4218
    %v4223 = vtanh.pop %v4219
    %v4224 = vtanh.pop %v4220
    %v4225 = vtanh.pop %v4221
    %v4226 = vld [vmem:[%s45] sm:$0xff]
    %v4227 = vld [vmem:[%s45 + $0x8] sm:$0xff]
    %v4228 = vld [vmem:[%s45 + $0x10] sm:$0xff]
    %v4229 = vld [vmem:[%s45 + $0x18] sm:$0xff]
    %v4230 = vld [vmem:[%s45 + $0x20] sm:$0xff]
    %v4231 = vld [vmem:[%s45 + $0x28] sm:$0xff]
    %v4232 = vld [vmem:[%s45 + $0x30] sm:$0xff]
    %v4233 = vld [vmem:[%s45 + $0x38] sm:$0xff]
    %v4234 = vld [vmem:[%s45 + $0x40] sm:$0xff]
    %v4235 = vld [vmem:[%s45 + $0x48] sm:$0xff]
    %v4236 = vld [vmem:[%s45 + $0x50] sm:$0xff]
    %v4237 = vld [vmem:[%s45 + $0x58] sm:$0xff]
    %v4238 = vld [vmem:[%s45 + $0x60] sm:$0xff]
    %v4239 = vld [vmem:[%s45 + $0x68] sm:$0xff]
    %v4240 = vld [vmem:[%s45 + $0x70] sm:$0xff]
    %v4241 = vld [vmem:[%s45 + $0x78] sm:$0xff]
    %v4242 = vld [vmem:[%s49] sm:$0x1]
    %v4244 = vperm.slane %v4242, 0
    %4246 = vmatpush.msra.mxu0 %v4241
    %4247 = vmatpush.msra.mxu0 %v4240
    %4248 = vmatpush.msra.mxu0 %v4239
    %4249 = vmatpush.msra.mxu0 %v4238
    %4250 = vmatpush.msra.mxu0 %v4237
    %4251 = vmatpush.msra.mxu0 %v4236
    %4252 = vmatpush.msra.mxu0 %v4235
    %4253 = vmatpush.msra.mxu0 %v4234
    %4254 = vmatpush.msra.mxu0 %v4233
    %4255 = vmatpush.msra.mxu0 %v4232
    %4256 = vmatpush.msra.mxu0 %v4231
    %4257 = vmatpush.msra.mxu0 %v4230
    %4258 = vmatpush.msra.mxu0 %v4229
    %4259 = vmatpush.msra.mxu0 %v4228
    %4260 = vmatpush.msra.mxu0 %v4227
    %4261 = vmatpush.msra.mxu0 %v4226
    %4262 = vmatmul.f32.gmra.mxu0 %v3109
    %v4263 = vpop.f32.mrf.mxu0
    %v4264 = vadd.f32 %v4244, %v4263
    %4265 = vmatmul.f32.gmra.mxu0 %v3110
    %v4266 = vpop.f32.mrf.mxu0
    %v4267 = vadd.f32 %v4244, %v4266
    %4268 = vmatmul.f32.gmra.mxu0 %v4097
    %v4269 = vpop.f32.mrf.mxu0
    %v4270 = vadd.f32 %v4244, %v4269
    %4271 = vmatmul.f32.gmra.mxu0 %v4098
    %v4272 = vpop.f32.mrf.mxu0
    %v4273 = vadd.f32 %v4244, %v4272
    %4274 = vdwg.mxu0
    %vm4275 = vcmp.gt.f32.partialorder %v4264, 0.0
    %vm4276 = vcmp.gt.f32.partialorder %v4267, 0.0
    %vm4277 = vcmp.gt.f32.partialorder %v4270, 0.0
    %vm4278 = vcmp.gt.f32.partialorder %v4273, 0.0
    %v4279 = vmin.f32 %v4264, 0.0
    %v4280 = vmin.f32 %v4267, 0.0
    %v4281 = vmin.f32 %v4270, 0.0
    %v4282 = vmin.f32 %v4273, 0.0
    %v4283 = vmul.f32 %v4279, 1.442695
    %v4284 = vpow.pop %v4283
    %v4285 = vmul.f32 %v4280, 1.442695
    %v4286 = vpow.pop %v4285
    %v4287 = vmul.f32 %v4281, 1.442695
    %v4288 = vpow.pop %v4287
    %v4289 = vmul.f32 %v4282, 1.442695
    %v4290 = vpow.pop %v4289
    %v4291 = vsub.f32 %v4284, 1.0
    %v4292 = vsub.f32 %v4286, 1.0
    %v4293 = vsub.f32 %v4288, 1.0
    %v4294 = vsub.f32 %v4290, 1.0
    %v4295 = vsel %vm4275, %v4264, %v4291
    %v4296 = vsel %vm4276, %v4267, %v4292
    %v4297 = vsel %vm4277, %v4270, %v4293
    %v4298 = vsel %vm4278, %v4273, %v4294
    %v4299 = vld [vmem:[%s47] sm:$0xff]
    %v4300 = vld [vmem:[%s47 + $0x8] sm:$0xff]
    %v4301 = vld [vmem:[%s47 + $0x10] sm:$0xff]
    %v4302 = vld [vmem:[%s47 + $0x18] sm:$0xff]
    %v4303 = vld [vmem:[%s47 + $0x20] sm:$0xff]
    %v4304 = vld [vmem:[%s47 + $0x28] sm:$0xff]
    %v4305 = vld [vmem:[%s47 + $0x30] sm:$0xff]
    %v4306 = vld [vmem:[%s47 + $0x38] sm:$0xff]
    %v4307 = vld [vmem:[%s47 + $0x40] sm:$0xff]
    %v4308 = vld [vmem:[%s47 + $0x48] sm:$0xff]
    %v4309 = vld [vmem:[%s47 + $0x50] sm:$0xff]
    %v4310 = vld [vmem:[%s47 + $0x58] sm:$0xff]
    %v4311 = vld [vmem:[%s47 + $0x60] sm:$0xff]
    %v4312 = vld [vmem:[%s47 + $0x68] sm:$0xff]
    %v4313 = vld [vmem:[%s47 + $0x70] sm:$0xff]
    %v4314 = vld [vmem:[%s47 + $0x78] sm:$0xff]
    %v4315 = vld [vmem:[%s51] sm:$0x1]
    %v4317 = vperm.slane %v4315, 0
    %4319 = vmatpush.msra.mxu0 %v4314
    %4320 = vmatpush.msra.mxu0 %v4313
    %4321 = vmatpush.msra.mxu0 %v4312
    %4322 = vmatpush.msra.mxu0 %v4311
    %4323 = vmatpush.msra.mxu0 %v4310
    %4324 = vmatpush.msra.mxu0 %v4309
    %4325 = vmatpush.msra.mxu0 %v4308
    %4326 = vmatpush.msra.mxu0 %v4307
    %4327 = vmatpush.msra.mxu0 %v4306
    %4328 = vmatpush.msra.mxu0 %v4305
    %4329 = vmatpush.msra.mxu0 %v4304
    %4330 = vmatpush.msra.mxu0 %v4303
    %4331 = vmatpush.msra.mxu0 %v4302
    %4332 = vmatpush.msra.mxu0 %v4301
    %4333 = vmatpush.msra.mxu0 %v4300
    %4334 = vmatpush.msra.mxu0 %v4299
    %4335 = vmatmul.f32.gmra.mxu0 %v4295
    %v4336 = vpop.f32.mrf.mxu0
    %v4337 = vadd.f32 %v4317, %v4336
    %4338 = vmatmul.f32.gmra.mxu0 %v4296
    %v4339 = vpop.f32.mrf.mxu0
    %v4340 = vadd.f32 %v4317, %v4339
    %4341 = vmatmul.f32.gmra.mxu0 %v4297
    %v4342 = vpop.f32.mrf.mxu0
    %v4343 = vadd.f32 %v4317, %v4342
    %4344 = vmatmul.f32.gmra.mxu0 %v4298
    %v4345 = vpop.f32.mrf.mxu0
    %v4346 = vadd.f32 %v4317, %v4345
    %4347 = vdwg.mxu0
    %4348 = vxpose.xlu0.b32.start [1/16] %v4337, 128
    %4349 = vxpose.xlu0.b32.cont [2/16] %v4340, 128
    %4350 = vxpose.xlu0.b32.cont [3/16] 0.0, 128
    %4351 = vxpose.xlu0.b32.cont [4/16] 0.0, 128
    %4352 = vxpose.xlu0.b32.cont [5/16] 0.0, 128
    %4353 = vxpose.xlu0.b32.cont [6/16] 0.0, 128
    %4354 = vxpose.xlu0.b32.cont [7/16] 0.0, 128
    %4355 = vxpose.xlu0.b32.cont [8/16] 0.0, 128
    %4356 = vxpose.xlu0.b32.cont [9/16] 0.0, 128
    %4357 = vxpose.xlu0.b32.cont [10/16] 0.0, 128
    %4358 = vxpose.xlu0.b32.cont [11/16] 0.0, 128
    %4359 = vxpose.xlu0.b32.cont [12/16] 0.0, 128
    %4360 = vxpose.xlu0.b32.cont [13/16] 0.0, 128
    %4361 = vxpose.xlu0.b32.cont [14/16] 0.0, 128
    %4362 = vxpose.xlu0.b32.cont [15/16] 0.0, 128
    %4363 = vxpose.xlu0.b32.end [16/16] 0.0, 128
    %v4364 = vpop.trf.xlu0
    %v4365 = vpop.trf.xlu0
    %v4366 = vpop.trf.xlu0
    %v4367 = vpop.trf.xlu0
    %v4368 = vpop.trf.xlu0
    %v4369 = vpop.trf.xlu0
    %v4370 = vpop.trf.xlu0
    %v4371 = vpop.trf.xlu0
    %v4372 = vpop.trf.xlu0
    %v4373 = vpop.trf.xlu0
    %v4374 = vpop.trf.xlu0
    %v4375 = vpop.trf.xlu0
    %v4376 = vpop.trf.xlu0
    %v4377 = vpop.trf.xlu0
    %v4378 = vpop.trf.xlu0
    %v4379 = vpop.trf.xlu0
    %v4380 = vadd.f32 %v4337, %v4364
    %v4381 = vadd.f32 %v4340, %v4365
    %v4382 = vmul.f32 %v4380, %v215
    %v4383 = vmul.f32 %v4381, %v216
    %4386 = vrot.lane.b32.xlu0 %v4337, 112
    %v4387 = vpop.permute.xlu0 %4386
    %4388 = vrot.lane.b32.xlu0 %v4340, 112
    %v4389 = vpop.permute.xlu0 %4388
    %4392 = vxpose.xlu0.b32.start [1/16] %v4387, 128
    %4393 = vxpose.xlu0.b32.cont [2/16] %v4389, 128
    %4394 = vxpose.xlu0.b32.cont [3/16] 0.0, 128
    %4395 = vxpose.xlu0.b32.cont [4/16] 0.0, 128
    %4396 = vxpose.xlu0.b32.cont [5/16] 0.0, 128
    %4397 = vxpose.xlu0.b32.cont [6/16] 0.0, 128
    %4398 = vxpose.xlu0.b32.cont [7/16] 0.0, 128
    %4399 = vxpose.xlu0.b32.cont [8/16] 0.0, 128
    %4400 = vxpose.xlu0.b32.cont [9/16] 0.0, 128
    %4401 = vxpose.xlu0.b32.cont [10/16] 0.0, 128
    %4402 = vxpose.xlu0.b32.cont [11/16] 0.0, 128
    %4403 = vxpose.xlu0.b32.cont [12/16] 0.0, 128
    %4404 = vxpose.xlu0.b32.cont [13/16] 0.0, 128
    %4405 = vxpose.xlu0.b32.cont [14/16] 0.0, 128
    %4406 = vxpose.xlu0.b32.cont [15/16] 0.0, 128
    %4407 = vxpose.xlu0.b32.end [16/16] 0.0, 128
    %v4408 = vpop.trf.xlu0
    %v4409 = vpop.trf.xlu0
    %v4410 = vpop.trf.xlu0
    %v4411 = vpop.trf.xlu0
    %v4412 = vpop.trf.xlu0
    %v4413 = vpop.trf.xlu0
    %v4414 = vpop.trf.xlu0
    %v4415 = vpop.trf.xlu0
    %v4416 = vpop.trf.xlu0
    %v4417 = vpop.trf.xlu0
    %v4418 = vpop.trf.xlu0
    %v4419 = vpop.trf.xlu0
    %v4420 = vpop.trf.xlu0
    %v4421 = vpop.trf.xlu0
    %v4422 = vpop.trf.xlu0
    %v4423 = vpop.trf.xlu0
    %4426 = vrot.lane.b32.xlu0 %v4408, 16
    %v4427 = vpop.permute.xlu0 %4426
    %4428 = vrot.lane.b32.xlu0 %v4409, 16
    %v4429 = vpop.permute.xlu0 %4428
    %v4432 = vadd.f32 %v4337, %v4427
    %v4433 = vadd.f32 %v4340, %v4429
    %v4434 = vmul.f32 %v4432, %v1697
    %v4435 = vmul.f32 %v4433, %v1699
    %4436 = vrot.lane.b32.xlu0 %v4337, 96
    %v4437 = vpop.permute.xlu0 %4436
    %4438 = vrot.lane.b32.xlu0 %v4340, 96
    %v4439 = vpop.permute.xlu0 %4438
    %4442 = vxpose.xlu0.b32.start [1/16] %v4437, 128
    %4443 = vxpose.xlu0.b32.cont [2/16] %v4439, 128
    %4444 = vxpose.xlu0.b32.cont [3/16] 0.0, 128
    %4445 = vxpose.xlu0.b32.cont [4/16] 0.0, 128
    %4446 = vxpose.xlu0.b32.cont [5/16] 0.0, 128
    %4447 = vxpose.xlu0.b32.cont [6/16] 0.0, 128
    %4448 = vxpose.xlu0.b32.cont [7/16] 0.0, 128
    %4449 = vxpose.xlu0.b32.cont [8/16] 0.0, 128
    %4450 = vxpose.xlu0.b32.cont [9/16] 0.0, 128
    %4451 = vxpose.xlu0.b32.cont [10/16] 0.0, 128
    %4452 = vxpose.xlu0.b32.cont [11/16] 0.0, 128
    %4453 = vxpose.xlu0.b32.cont [12/16] 0.0, 128
    %4454 = vxpose.xlu0.b32.cont [13/16] 0.0, 128
    %4455 = vxpose.xlu0.b32.cont [14/16] 0.0, 128
    %4456 = vxpose.xlu0.b32.cont [15/16] 0.0, 128
    %4457 = vxpose.xlu0.b32.end [16/16] 0.0, 128
    %v4458 = vpop.trf.xlu0
    %v4459 = vpop.trf.xlu0
    %v4460 = vpop.trf.xlu0
    %v4461 = vpop.trf.xlu0
    %v4462 = vpop.trf.xlu0
    %v4463 = vpop.trf.xlu0
    %v4464 = vpop.trf.xlu0
    %v4465 = vpop.trf.xlu0
    %v4466 = vpop.trf.xlu0
    %v4467 = vpop.trf.xlu0
    %v4468 = vpop.trf.xlu0
    %v4469 = vpop.trf.xlu0
    %v4470 = vpop.trf.xlu0
    %v4471 = vpop.trf.xlu0
    %v4472 = vpop.trf.xlu0
    %v4473 = vpop.trf.xlu0
    %4476 = vrot.lane.b32.xlu0 %v4458, 32
    %v4477 = vpop.permute.xlu0 %4476
    %4478 = vrot.lane.b32.xlu0 %v4459, 32
    %v4479 = vpop.permute.xlu0 %4478
    %v4482 = vadd.f32 %v4337, %v4477
    %v4483 = vadd.f32 %v4340, %v4479
    %v4484 = vmul.f32 %v4482, %v1753
    %v4485 = vmul.f32 %v4483, %v1755
    %4486 = vrot.lane.b32.xlu0 %v4337, 80
    %v4487 = vpop.permute.xlu0 %4486
    %4488 = vrot.lane.b32.xlu0 %v4340, 80
    %v4489 = vpop.permute.xlu0 %4488
    %4492 = vxpose.xlu0.b32.start [1/16] %v4487, 128
    %4493 = vxpose.xlu0.b32.cont [2/16] %v4489, 128
    %4494 = vxpose.xlu0.b32.cont [3/16] 0.0, 128
    %4495 = vxpose.xlu0.b32.cont [4/16] 0.0, 128
    %4496 = vxpose.xlu0.b32.cont [5/16] 0.0, 128
    %4497 = vxpose.xlu0.b32.cont [6/16] 0.0, 128
    %4498 = vxpose.xlu0.b32.cont [7/16] 0.0, 128
    %4499 = vxpose.xlu0.b32.cont [8/16] 0.0, 128
    %4500 = vxpose.xlu0.b32.cont [9/16] 0.0, 128
    %4501 = vxpose.xlu0.b32.cont [10/16] 0.0, 128
    %4502 = vxpose.xlu0.b32.cont [11/16] 0.0, 128
    %4503 = vxpose.xlu0.b32.cont [12/16] 0.0, 128
    %4504 = vxpose.xlu0.b32.cont [13/16] 0.0, 128
    %4505 = vxpose.xlu0.b32.cont [14/16] 0.0, 128
    %4506 = vxpose.xlu0.b32.cont [15/16] 0.0, 128
    %4507 = vxpose.xlu0.b32.end [16/16] 0.0, 128
    %v4508 = vpop.trf.xlu0
    %v4509 = vpop.trf.xlu0
    %v4510 = vpop.trf.xlu0
    %v4511 = vpop.trf.xlu0
    %v4512 = vpop.trf.xlu0
    %v4513 = vpop.trf.xlu0
    %v4514 = vpop.trf.xlu0
    %v4515 = vpop.trf.xlu0
    %v4516 = vpop.trf.xlu0
    %v4517 = vpop.trf.xlu0
    %v4518 = vpop.trf.xlu0
    %v4519 = vpop.trf.xlu0
    %v4520 = vpop.trf.xlu0
    %v4521 = vpop.trf.xlu0
    %v4522 = vpop.trf.xlu0
    %v4523 = vpop.trf.xlu0
    %4526 = vrot.lane.b32.xlu0 %v4508, 48
    %v4527 = vpop.permute.xlu0 %4526
    %4528 = vrot.lane.b32.xlu0 %v4509, 48
    %v4529 = vpop.permute.xlu0 %4528
    %v4532 = vadd.f32 %v4337, %v4527
    %v4533 = vadd.f32 %v4340, %v4529
    %v4534 = vmul.f32 %v4532, %v1809
    %v4535 = vmul.f32 %v4533, %v1811
    %4536 = vxpose.xlu0.b32.start [1/16] %v4343, 128
    %4537 = vxpose.xlu0.b32.cont [2/16] %v4346, 128
    %4538 = vxpose.xlu0.b32.cont [3/16] 0.0, 128
    %4539 = vxpose.xlu0.b32.cont [4/16] 0.0, 128
    %4540 = vxpose.xlu0.b32.cont [5/16] 0.0, 128
    %4541 = vxpose.xlu0.b32.cont [6/16] 0.0, 128
    %4542 = vxpose.xlu0.b32.cont [7/16] 0.0, 128
    %4543 = vxpose.xlu0.b32.cont [8/16] 0.0, 128
    %4544 = vxpose.xlu0.b32.cont [9/16] 0.0, 128
    %4545 = vxpose.xlu0.b32.cont [10/16] 0.0, 128
    %4546 = vxpose.xlu0.b32.cont [11/16] 0.0, 128
    %4547 = vxpose.xlu0.b32.cont [12/16] 0.0, 128
    %4548 = vxpose.xlu0.b32.cont [13/16] 0.0, 128
    %4549 = vxpose.xlu0.b32.cont [14/16] 0.0, 128
    %4550 = vxpose.xlu0.b32.cont [15/16] 0.0, 128
    %4551 = vxpose.xlu0.b32.end [16/16] 0.0, 128
    %v4552 = vpop.trf.xlu0
    %v4553 = vpop.trf.xlu0
    %v4554 = vpop.trf.xlu0
    %v4555 = vpop.trf.xlu0
    %v4556 = vpop.trf.xlu0
    %v4557 = vpop.trf.xlu0
    %v4558 = vpop.trf.xlu0
    %v4559 = vpop.trf.xlu0
    %v4560 = vpop.trf.xlu0
    %v4561 = vpop.trf.xlu0
    %v4562 = vpop.trf.xlu0
    %v4563 = vpop.trf.xlu0
    %v4564 = vpop.trf.xlu0
    %v4565 = vpop.trf.xlu0
    %v4566 = vpop.trf.xlu0
    %v4567 = vpop.trf.xlu0
    %v4568 = vadd.f32 %v4343, %v4552
    %v4569 = vadd.f32 %v4346, %v4553
    %v4570 = vmul.f32 %v4568, %v217
    %v4571 = vmul.f32 %v4569, %v218
    %4574 = vrot.lane.b32.xlu0 %v4343, 112
    %v4575 = vpop.permute.xlu0 %4574
    %4576 = vrot.lane.b32.xlu0 %v4346, 112
    %v4577 = vpop.permute.xlu0 %4576
    %4580 = vxpose.xlu0.b32.start [1/16] %v4575, 128
    %4581 = vxpose.xlu0.b32.cont [2/16] %v4577, 128
    %4582 = vxpose.xlu0.b32.cont [3/16] 0.0, 128
    %4583 = vxpose.xlu0.b32.cont [4/16] 0.0, 128
    %4584 = vxpose.xlu0.b32.cont [5/16] 0.0, 128
    %4585 = vxpose.xlu0.b32.cont [6/16] 0.0, 128
    %4586 = vxpose.xlu0.b32.cont [7/16] 0.0, 128
    %4587 = vxpose.xlu0.b32.cont [8/16] 0.0, 128
    %4588 = vxpose.xlu0.b32.cont [9/16] 0.0, 128
    %4589 = vxpose.xlu0.b32.cont [10/16] 0.0, 128
    %4590 = vxpose.xlu0.b32.cont [11/16] 0.0, 128
    %4591 = vxpose.xlu0.b32.cont [12/16] 0.0, 128
    %4592 = vxpose.xlu0.b32.cont [13/16] 0.0, 128
    %4593 = vxpose.xlu0.b32.cont [14/16] 0.0, 128
    %4594 = vxpose.xlu0.b32.cont [15/16] 0.0, 128
    %4595 = vxpose.xlu0.b32.end [16/16] 0.0, 128
    %v4596 = vpop.trf.xlu0
    %v4597 = vpop.trf.xlu0
    %v4598 = vpop.trf.xlu0
    %v4599 = vpop.trf.xlu0
    %v4600 = vpop.trf.xlu0
    %v4601 = vpop.trf.xlu0
    %v4602 = vpop.trf.xlu0
    %v4603 = vpop.trf.xlu0
    %v4604 = vpop.trf.xlu0
    %v4605 = vpop.trf.xlu0
    %v4606 = vpop.trf.xlu0
    %v4607 = vpop.trf.xlu0
    %v4608 = vpop.trf.xlu0
    %v4609 = vpop.trf.xlu0
    %v4610 = vpop.trf.xlu0
    %v4611 = vpop.trf.xlu0
    %4614 = vrot.lane.b32.xlu0 %v4596, 16
    %v4615 = vpop.permute.xlu0 %4614
    %4616 = vrot.lane.b32.xlu0 %v4597, 16
    %v4617 = vpop.permute.xlu0 %4616
    %v4620 = vadd.f32 %v4343, %v4615
    %v4621 = vadd.f32 %v4346, %v4617
    %v4622 = vmul.f32 %v4620, %v1905
    %v4623 = vmul.f32 %v4621, %v1907
    %4624 = vrot.lane.b32.xlu0 %v4343, 96
    %v4625 = vpop.permute.xlu0 %4624
    %4626 = vrot.lane.b32.xlu0 %v4346, 96
    %v4627 = vpop.permute.xlu0 %4626
    %4630 = vxpose.xlu0.b32.start [1/16] %v4625, 128
    %4631 = vxpose.xlu0.b32.cont [2/16] %v4627, 128
    %4632 = vxpose.xlu0.b32.cont [3/16] 0.0, 128
    %4633 = vxpose.xlu0.b32.cont [4/16] 0.0, 128
    %4634 = vxpose.xlu0.b32.cont [5/16] 0.0, 128
    %4635 = vxpose.xlu0.b32.cont [6/16] 0.0, 128
    %4636 = vxpose.xlu0.b32.cont [7/16] 0.0, 128
    %4637 = vxpose.xlu0.b32.cont [8/16] 0.0, 128
    %4638 = vxpose.xlu0.b32.cont [9/16] 0.0, 128
    %4639 = vxpose.xlu0.b32.cont [10/16] 0.0, 128
    %4640 = vxpose.xlu0.b32.cont [11/16] 0.0, 128
    %4641 = vxpose.xlu0.b32.cont [12/16] 0.0, 128
    %4642 = vxpose.xlu0.b32.cont [13/16] 0.0, 128
    %4643 = vxpose.xlu0.b32.cont [14/16] 0.0, 128
    %4644 = vxpose.xlu0.b32.cont [15/16] 0.0, 128
    %4645 = vxpose.xlu0.b32.end [16/16] 0.0, 128
    %v4646 = vpop.trf.xlu0
    %v4647 = vpop.trf.xlu0
    %v4648 = vpop.trf.xlu0
    %v4649 = vpop.trf.xlu0
    %v4650 = vpop.trf.xlu0
    %v4651 = vpop.trf.xlu0
    %v4652 = vpop.trf.xlu0
    %v4653 = vpop.trf.xlu0
    %v4654 = vpop.trf.xlu0
    %v4655 = vpop.trf.xlu0
    %v4656 = vpop.trf.xlu0
    %v4657 = vpop.trf.xlu0
    %v4658 = vpop.trf.xlu0
    %v4659 = vpop.trf.xlu0
    %v4660 = vpop.trf.xlu0
    %v4661 = vpop.trf.xlu0
    %4664 = vrot.lane.b32.xlu0 %v4646, 32
    %v4665 = vpop.permute.xlu0 %4664
    %4666 = vrot.lane.b32.xlu0 %v4647, 32
    %v4667 = vpop.permute.xlu0 %4666
    %v4670 = vadd.f32 %v4343, %v4665
    %v4671 = vadd.f32 %v4346, %v4667
    %v4672 = vmul.f32 %v4670, %v1961
    %v4673 = vmul.f32 %v4671, %v1963
    %4674 = vrot.lane.b32.xlu0 %v4343, 80
    %v4675 = vpop.permute.xlu0 %4674
    %4676 = vrot.lane.b32.xlu0 %v4346, 80
    %v4677 = vpop.permute.xlu0 %4676
    %4680 = vxpose.xlu0.b32.start [1/16] %v4675, 128
    %4681 = vxpose.xlu0.b32.cont [2/16] %v4677, 128
    %4682 = vxpose.xlu0.b32.cont [3/16] 0.0, 128
    %4683 = vxpose.xlu0.b32.cont [4/16] 0.0, 128
    %4684 = vxpose.xlu0.b32.cont [5/16] 0.0, 128
    %4685 = vxpose.xlu0.b32.cont [6/16] 0.0, 128
    %4686 = vxpose.xlu0.b32.cont [7/16] 0.0, 128
    %4687 = vxpose.xlu0.b32.cont [8/16] 0.0, 128
    %4688 = vxpose.xlu0.b32.cont [9/16] 0.0, 128
    %4689 = vxpose.xlu0.b32.cont [10/16] 0.0, 128
    %4690 = vxpose.xlu0.b32.cont [11/16] 0.0, 128
    %4691 = vxpose.xlu0.b32.cont [12/16] 0.0, 128
    %4692 = vxpose.xlu0.b32.cont [13/16] 0.0, 128
    %4693 = vxpose.xlu0.b32.cont [14/16] 0.0, 128
    %4694 = vxpose.xlu0.b32.cont [15/16] 0.0, 128
    %4695 = vxpose.xlu0.b32.end [16/16] 0.0, 128
    %v4696 = vpop.trf.xlu0
    %v4697 = vpop.trf.xlu0
    %v4698 = vpop.trf.xlu0
    %v4699 = vpop.trf.xlu0
    %v4700 = vpop.trf.xlu0
    %v4701 = vpop.trf.xlu0
    %v4702 = vpop.trf.xlu0
    %v4703 = vpop.trf.xlu0
    %v4704 = vpop.trf.xlu0
    %v4705 = vpop.trf.xlu0
    %v4706 = vpop.trf.xlu0
    %v4707 = vpop.trf.xlu0
    %v4708 = vpop.trf.xlu0
    %v4709 = vpop.trf.xlu0
    %v4710 = vpop.trf.xlu0
    %v4711 = vpop.trf.xlu0
    %4714 = vrot.lane.b32.xlu0 %v4696, 48
    %v4715 = vpop.permute.xlu0 %4714
    %4716 = vrot.lane.b32.xlu0 %v4697, 48
    %v4717 = vpop.permute.xlu0 %4716
    %v4720 = vadd.f32 %v4343, %v4715
    %v4721 = vadd.f32 %v4346, %v4717
    %v4722 = vmul.f32 %v4720, %v2017
    %v4723 = vmul.f32 %v4721, %v2019
    %v4724 = vld [vmem:[%s53] sm:$0xff]
    %v4726 = vsel %vm477, %v4222, 0
    %v4729 = vsel %vm477, %v4223, 0
    %v4732 = vsel %vm477, %v4224, 0
    %v4735 = vsel %vm477, %v4225, 0
    %4737 = vmatpush.msra.mxu0 0.0
    %4738 = vmatpush.msra.mxu0 0.0
    %4739 = vmatpush.msra.mxu0 0.0
    %4740 = vmatpush.msra.mxu0 0.0
    %4741 = vmatpush.msra.mxu0 0.0
    %4742 = vmatpush.msra.mxu0 0.0
    %4743 = vmatpush.msra.mxu0 0.0
    %4744 = vmatpush.msra.mxu0 0.0
    %4745 = vmatpush.msra.mxu0 0.0
    %4746 = vmatpush.msra.mxu0 0.0
    %4747 = vmatpush.msra.mxu0 0.0
    %4748 = vmatpush.msra.mxu0 0.0
    %4749 = vmatpush.msra.mxu0 0.0
    %4750 = vmatpush.msra.mxu0 0.0
    %4751 = vmatpush.msra.mxu0 0.0
    %4752 = vmatpush.msra.mxu0 %v4724
    %4753 = vmatmul.f32.gmra.mxu0 %v4726
    %v4754 = vpop.f32.mrf.mxu0
    %v4755 = vadd.f32 0.0, %v4754
    %4756 = vmatmul.f32.gmra.mxu0 %v4729
    %v4757 = vpop.f32.mrf.mxu0
    %v4758 = vadd.f32 0.0, %v4757
    %4759 = vmatmul.f32.gmra.mxu0 %v4732
    %v4760 = vpop.f32.mrf.mxu0
    %v4761 = vadd.f32 0.0, %v4760
    %4762 = vmatmul.f32.gmra.mxu0 %v4735
    %v4763 = vpop.f32.mrf.mxu0
    %v4764 = vadd.f32 0.0, %v4763
    %4765 = vdwg.mxu0
    %v4766 = vld [vmem:[%s55] sm:$0x1]
    %v4767 = vmul.f32 %v4382, %v209
    %v4768 = vmul.f32 %v4383, %v210
    %v4769 = vadd.f32 %v4767, %v207
    %v4770 = vadd.f32 %v4768, %v208
    %v4771 = vsel %vm223, %v4769, 0.0
    %4772 = vadd.xlane.f32.xlu0 %v4771
    %v4773 = vpop.xlane.xlu0 %4772
    %v4774 = vsel %vm223, %v4770, 0.0
    %4775 = vadd.xlane.f32.xlu0 %v4774
    %v4776 = vpop.xlane.xlu0 %4775
    %v4777 = vmax.f32 %v4773, 1.0
    %v4778 = vmax.f32 %v4776, 1.0
    %v4779 = vrsqrt.pop %v4777
    %v4780 = vmul.f32 %v4779, %v4777
    %v4781 = vmul.f32 %v4780, %v4779
    %v4782 = vmul.f32 0.5, %v4781
    %v4783 = vsub.f32 1.5, %v4782
    %v4784 = vmul.f32 %v4779, %v4783
    %vm4785 = vweird.f32 %v4777
    %vm4786 = vweird.f32 %v4779
    %vm4787 = vmor %vm4785, %vm4786
    %v4788 = vsel %vm4787, %v4779, %v4784
    %v4789 = vrsqrt.pop %v4778
    %v4790 = vmul.f32 %v4789, %v4778
    %v4791 = vmul.f32 %v4790, %v4789
    %v4792 = vmul.f32 0.5, %v4791
    %v4793 = vsub.f32 1.5, %v4792
    %v4794 = vmul.f32 %v4789, %v4793
    %vm4795 = vweird.f32 %v4778
    %vm4796 = vweird.f32 %v4789
    %vm4797 = vmor %vm4795, %vm4796
    %v4798 = vsel %vm4797, %v4789, %v4794
    %v4799 = vmul.f32 %v4755, %v4788
    %v4800 = vmul.f32 %v4758, %v4798
    %v4802 = vsel %vm223, %v4769, 0
    %v4805 = vsel %vm223, %v4770, 0
    %4807 = vmatpush.msra.mxu0 0.0
    %4808 = vmatpush.msra.mxu0 0.0
    %4809 = vmatpush.msra.mxu0 0.0
    %4810 = vmatpush.msra.mxu0 0.0
    %4811 = vmatpush.msra.mxu0 0.0
    %4812 = vmatpush.msra.mxu0 0.0
    %4813 = vmatpush.msra.mxu0 0.0
    %4814 = vmatpush.msra.mxu0 0.0
    %4815 = vmatpush.msra.mxu0 0.0
    %4816 = vmatpush.msra.mxu0 0.0
    %4817 = vmatpush.msra.mxu0 0.0
    %4818 = vmatpush.msra.mxu0 0.0
    %4819 = vmatpush.msra.mxu0 0.0
    %4820 = vmatpush.msra.mxu0 0.0
    %4821 = vmatpush.msra.mxu0 %v4800
    %4822 = vmatpush.msra.mxu0 %v4799
    %4823 = vmatmul.f32.gmra.mxu0 %v4802
    %v4824 = vpop.f32.mrf.mxu0
    %v4825 = vadd.f32 0.0, %v4824
    %4826 = vmatmul.f32.gmra.mxu0 %v4805
    %v4827 = vpop.f32.mrf.mxu0
    %v4828 = vadd.f32 0.0, %v4827
    %4829 = vdwg.mxu0
    %v4830 = vmul.f32 %v4825, %v4788
    %v4831 = vmul.f32 %v4828, %v4798
    %v4833 = vperm.slane %v4766, 0
    %v4835 = vadd.f32 %v4830, %v4833
    %v4836 = vadd.f32 %v4831, %v4833
    %v4837 = vmul.f32 %v4835, %v431
    %v4838 = vmul.f32 %v4836, %v431
    %v4839 = vmul.f32 %v4835, %v437
    %v4840 = vmul.f32 %v4836, %v437
    %v4841 = vmul.f32 %v4835, %v443
    %v4842 = vmul.f32 %v4836, %v443
    %v4843 = vmul.f32 %v4835, %v449
    %v4844 = vmul.f32 %v4836, %v449
    %4853 = vrot.lane.b32.xlu0 %v4837, 120
    %v4854 = vpop.permute.xlu0 %4853
    %4855 = vrot.lane.b32.xlu0 %v4838, 120
    %v4856 = vpop.permute.xlu0 %4855
    %4857 = vrot.lane.b32.xlu0 %v4839, 120
    %v4858 = vpop.permute.xlu0 %4857
    %4859 = vrot.lane.b32.xlu0 %v4840, 120
    %v4860 = vpop.permute.xlu0 %4859
    %4861 = vrot.lane.b32.xlu0 %v4841, 120
    %v4862 = vpop.permute.xlu0 %4861
    %4863 = vrot.lane.b32.xlu0 %v4842, 120
    %v4864 = vpop.permute.xlu0 %4863
    %4865 = vrot.lane.b32.xlu0 %v4843, 120
    %v4866 = vpop.permute.xlu0 %4865
    %4867 = vrot.lane.b32.xlu0 %v4844, 120
    %v4868 = vpop.permute.xlu0 %4867
    %v4870 = vsel %vm477, %v4835, 0
    %v4873 = vsel %vm477, %v4836, 0
    %v4875 = vsel %vm477, %v4854, 0
    %v4877 = vsel %vm477, %v4856, 0
    %v4879 = vsel %vm477, %v4858, 0
    %v4881 = vsel %vm477, %v4860, 0
    %v4883 = vsel %vm477, %v4862, 0
    %v4885 = vsel %vm477, %v4864, 0
    %v4887 = vsel %vm477, %v4866, 0
    %v4889 = vsel %vm477, %v4868, 0
    %4891 = vmatpush.xpose.msra.mxu0 0.0
    %4892 = vmatpush.xpose.msra.mxu0 0.0
    %4893 = vmatpush.xpose.msra.mxu0 0.0
    %4894 = vmatpush.xpose.msra.mxu0 0.0
    %4895 = vmatpush.xpose.msra.mxu0 0.0
    %4896 = vmatpush.xpose.msra.mxu0 0.0
    %4897 = vmatpush.xpose.msra.mxu0 0.0
    %4898 = vmatpush.xpose.msra.mxu0 0.0
    %4899 = vmatpush.xpose.msra.mxu0 %v4889
    %4900 = vmatpush.xpose.msra.mxu0 %v4887
    %4901 = vmatpush.xpose.msra.mxu0 %v4885
    %4902 = vmatpush.xpose.msra.mxu0 %v4883
    %4903 = vmatpush.xpose.msra.mxu0 %v4881
    %4904 = vmatpush.xpose.msra.mxu0 %v4879
    %4905 = vmatpush.xpose.msra.mxu0 %v4877
    %4906 = vmatpush.xpose.msra.mxu0 %v4875
    %4907 = vmatmul.f32.gmra.mxu0 %v4870
    %v4908 = vpop.f32.mrf.mxu0
    %v4909 = vadd.f32 0.0, %v4908
    %4910 = vmatmul.f32.gmra.mxu0 %v4873
    %v4911 = vpop.f32.mrf.mxu0
    %v4912 = vadd.f32 0.0, %v4911
    %4913 = vdwg.mxu0
    %v4914 = vmul.f32 %v4909, 0.35355338
    %v4915 = vmul.f32 %v4912, 0.35355338
    %v4916 = vtanh.pop %v4914
    %v4917 = vtanh.pop %v4915
    %v4919 = vsel %vm527, %v4916, 0
    %v4922 = vsel %vm527, %v4917, 0
    %4924 = vmatpush.msra.mxu0 0.0
    %4925 = vmatpush.msra.mxu0 0.0
    %4926 = vmatpush.msra.mxu0 0.0
    %4927 = vmatpush.msra.mxu0 0.0
    %4928 = vmatpush.msra.mxu0 0.0
    %4929 = vmatpush.msra.mxu0 0.0
    %4930 = vmatpush.msra.mxu0 0.0
    %4931 = vmatpush.msra.mxu0 0.0
    %4932 = vmatpush.msra.mxu0 %v220
    %4933 = vmatpush.msra.mxu0 %v219
    %4934 = vmatpush.msra.mxu0 %v220
    %4935 = vmatpush.msra.mxu0 %v219
    %4936 = vmatpush.msra.mxu0 %v220
    %4937 = vmatpush.msra.mxu0 %v219
    %4938 = vmatpush.msra.mxu0 %v220
    %4939 = vmatpush.msra.mxu0 %v219
    %4940 = vmatmul.f32.gmra.mxu0 %v4919
    %v4941 = vpop.f32.mrf.mxu0
    %v4942 = vadd.f32 0.0, %v4941
    %4943 = vmatmul.f32.gmra.mxu0 %v4922
    %v4944 = vpop.f32.mrf.mxu0
    %v4945 = vadd.f32 0.0, %v4944
    %4946 = vdwg.mxu0
    %4947 = vxpose.xlu0.b32.start [1/16] %v4942, 128
    %4948 = vxpose.xlu0.b32.cont [2/16] %v4945, 128
    %4949 = vxpose.xlu0.b32.cont [3/16] 0.0, 128
    %4950 = vxpose.xlu0.b32.cont [4/16] 0.0, 128
    %4951 = vxpose.xlu0.b32.cont [5/16] 0.0, 128
    %4952 = vxpose.xlu0.b32.cont [6/16] 0.0, 128
    %4953 = vxpose.xlu0.b32.cont [7/16] 0.0, 128
    %4954 = vxpose.xlu0.b32.cont [8/16] 0.0, 128
    %4955 = vxpose.xlu0.b32.cont [9/16] 0.0, 128
    %4956 = vxpose.xlu0.b32.cont [10/16] 0.0, 128
    %4957 = vxpose.xlu0.b32.cont [11/16] 0.0, 128
    %4958 = vxpose.xlu0.b32.cont [12/16] 0.0, 128
    %4959 = vxpose.xlu0.b32.cont [13/16] 0.0, 128
    %4960 = vxpose.xlu0.b32.cont [14/16] 0.0, 128
    %4961 = vxpose.xlu0.b32.cont [15/16] 0.0, 128
    %4962 = vxpose.xlu0.b32.end [16/16] 0.0, 128
    %v4963 = vpop.trf.xlu0
    %v4964 = vpop.trf.xlu0
    %v4965 = vpop.trf.xlu0
    %v4966 = vpop.trf.xlu0
    %v4967 = vpop.trf.xlu0
    %v4968 = vpop.trf.xlu0
    %v4969 = vpop.trf.xlu0
    %v4970 = vpop.trf.xlu0
    %v4971 = vpop.trf.xlu0
    %v4972 = vpop.trf.xlu0
    %v4973 = vpop.trf.xlu0
    %v4974 = vpop.trf.xlu0
    %v4975 = vpop.trf.xlu0
    %v4976 = vpop.trf.xlu0
    %v4977 = vpop.trf.xlu0
    %v4978 = vpop.trf.xlu0
    %v4979 = vadd.f32 %v4942, %v4963
    %v4980 = vadd.f32 %v4945, %v4964
    %v4981 = vmul.f32 %v4979, 0.5
    %v4982 = vmul.f32 %v4980, 0.5
    %v4983 = vmul.f32 %v4434, %v2286
    %v4984 = vmul.f32 %v4435, %v2288
    %v4985 = vadd.f32 %v4983, %v2296
    %v4986 = vadd.f32 %v4984, %v2298
    %4989 = vrot.lane.b32.xlu0 %v4985, 112
    %v4990 = vpop.permute.xlu0 %4989
    %4991 = vrot.lane.b32.xlu0 %v4986, 112
    %v4992 = vpop.permute.xlu0 %4991
    %v4995 = vsel %vm223, %v4990, 0.0
    %4996 = vadd.xlane.f32.xlu0 %v4995
    %v4997 = vpop.xlane.xlu0 %4996
    %v4998 = vsel %vm223, %v4992, 0.0
    %4999 = vadd.xlane.f32.xlu0 %v4998
    %v5000 = vpop.xlane.xlu0 %4999
    %v5001 = vmax.f32 %v4997, 1.0
    %v5002 = vmax.f32 %v5000, 1.0
    %v5003 = vrsqrt.pop %v5001
    %v5004 = vmul.f32 %v5003, %v5001
    %v5005 = vmul.f32 %v5004, %v5003
    %v5006 = vmul.f32 0.5, %v5005
    %v5007 = vsub.f32 1.5, %v5006
    %v5008 = vmul.f32 %v5003, %v5007
    %vm5009 = vweird.f32 %v5001
    %vm5010 = vweird.f32 %v5003
    %vm5011 = vmor %vm5009, %vm5010
    %v5012 = vsel %vm5011, %v5003, %v5008
    %v5013 = vrsqrt.pop %v5002
    %v5014 = vmul.f32 %v5013, %v5002
    %v5015 = vmul.f32 %v5014, %v5013
    %v5016 = vmul.f32 0.5, %v5015
    %v5017 = vsub.f32 1.5, %v5016
    %v5018 = vmul.f32 %v5013, %v5017
    %vm5019 = vweird.f32 %v5002
    %vm5020 = vweird.f32 %v5013
    %vm5021 = vmor %vm5019, %vm5020
    %v5022 = vsel %vm5021, %v5013, %v5018
    %v5023 = vmul.f32 %v4755, %v5012
    %v5024 = vmul.f32 %v4758, %v5022
    %5027 = vrot.lane.b32.xlu0 %v5023, 104
    %v5028 = vpop.permute.xlu0 %5027
    %5029 = vrot.lane.b32.xlu0 %v5024, 104
    %v5030 = vpop.permute.xlu0 %5029
    %v5033 = vsel %vm223, %v4990, 0
    %v5035 = vsel %vm223, %v4992, 0
    %5037 = vmatpush.msra.mxu0 0.0
    %5038 = vmatpush.msra.mxu0 0.0
    %5039 = vmatpush.msra.mxu0 0.0
    %5040 = vmatpush.msra.mxu0 0.0
    %5041 = vmatpush.msra.mxu0 0.0
    %5042 = vmatpush.msra.mxu0 0.0
    %5043 = vmatpush.msra.mxu0 0.0
    %5044 = vmatpush.msra.mxu0 0.0
    %5045 = vmatpush.msra.mxu0 0.0
    %5046 = vmatpush.msra.mxu0 0.0
    %5047 = vmatpush.msra.mxu0 0.0
    %5048 = vmatpush.msra.mxu0 0.0
    %5049 = vmatpush.msra.mxu0 0.0
    %5050 = vmatpush.msra.mxu0 0.0
    %5051 = vmatpush.msra.mxu0 %v5030
    %5052 = vmatpush.msra.mxu0 %v5028
    %5053 = vmatmul.f32.gmra.mxu0 %v5033
    %v5054 = vpop.f32.mrf.mxu0
    %v5055 = vadd.f32 0.0, %v5054
    %5056 = vmatmul.f32.gmra.mxu0 %v5035
    %v5057 = vpop.f32.mrf.mxu0
    %v5058 = vadd.f32 0.0, %v5057
    %5059 = vdwg.mxu0
    %v5060 = vmul.f32 %v5055, %v5012
    %v5061 = vmul.f32 %v5058, %v5022
    %5062 = vrot.lane.b32.xlu0 %v4833, 104
    %v5063 = vpop.permute.xlu0 %5062
    %v5065 = vadd.f32 %v5060, %v5063
    %v5066 = vadd.f32 %v5061, %v5063
    %v5067 = vmul.f32 %v5065, %v431
    %v5068 = vmul.f32 %v5066, %v431
    %v5069 = vmul.f32 %v5065, %v437
    %v5070 = vmul.f32 %v5066, %v437
    %v5071 = vmul.f32 %v5065, %v443
    %v5072 = vmul.f32 %v5066, %v443
    %v5073 = vmul.f32 %v5065, %v449
    %v5074 = vmul.f32 %v5066, %v449
    %5083 = vrot.lane.b32.xlu0 %v5067, 120
    %v5084 = vpop.permute.xlu0 %5083
    %5085 = vrot.lane.b32.xlu0 %v5068, 120
    %v5086 = vpop.permute.xlu0 %5085
    %5087 = vrot.lane.b32.xlu0 %v5069, 120
    %v5088 = vpop.permute.xlu0 %5087
    %5089 = vrot.lane.b32.xlu0 %v5070, 120
    %v5090 = vpop.permute.xlu0 %5089
    %5091 = vrot.lane.b32.xlu0 %v5071, 120
    %v5092 = vpop.permute.xlu0 %5091
    %5093 = vrot.lane.b32.xlu0 %v5072, 120
    %v5094 = vpop.permute.xlu0 %5093
    %5095 = vrot.lane.b32.xlu0 %v5073, 120
    %v5096 = vpop.permute.xlu0 %5095
    %5097 = vrot.lane.b32.xlu0 %v5074, 120
    %v5098 = vpop.permute.xlu0 %5097
    %v5100 = vsel %vm477, %v5065, 0
    %v5103 = vsel %vm477, %v5066, 0
    %v5105 = vsel %vm477, %v5084, 0
    %v5107 = vsel %vm477, %v5086, 0
    %v5109 = vsel %vm477, %v5088, 0
    %v5111 = vsel %vm477, %v5090, 0
    %v5113 = vsel %vm477, %v5092, 0
    %v5115 = vsel %vm477, %v5094, 0
    %v5117 = vsel %vm477, %v5096, 0
    %v5119 = vsel %vm477, %v5098, 0
    %5121 = vmatpush.xpose.msra.mxu0 0.0
    %5122 = vmatpush.xpose.msra.mxu0 0.0
    %5123 = vmatpush.xpose.msra.mxu0 0.0
    %5124 = vmatpush.xpose.msra.mxu0 0.0
    %5125 = vmatpush.xpose.msra.mxu0 0.0
    %5126 = vmatpush.xpose.msra.mxu0 0.0
    %5127 = vmatpush.xpose.msra.mxu0 0.0
    %5128 = vmatpush.xpose.msra.mxu0 0.0
    %5129 = vmatpush.xpose.msra.mxu0 %v5119
    %5130 = vmatpush.xpose.msra.mxu0 %v5117
    %5131 = vmatpush.xpose.msra.mxu0 %v5115
    %5132 = vmatpush.xpose.msra.mxu0 %v5113
    %5133 = vmatpush.xpose.msra.mxu0 %v5111
    %5134 = vmatpush.xpose.msra.mxu0 %v5109
    %5135 = vmatpush.xpose.msra.mxu0 %v5107
    %5136 = vmatpush.xpose.msra.mxu0 %v5105
    %5137 = vmatmul.f32.gmra.mxu0 %v5100
    %v5138 = vpop.f32.mrf.mxu0
    %v5139 = vadd.f32 0.0, %v5138
    %5140 = vmatmul.f32.gmra.mxu0 %v5103
    %v5141 = vpop.f32.mrf.mxu0
    %v5142 = vadd.f32 0.0, %v5141
    %5143 = vdwg.mxu0
    %v5144 = vmul.f32 %v5139, 0.35355338
    %v5145 = vmul.f32 %v5142, 0.35355338
    %v5146 = vtanh.pop %v5144
    %v5147 = vtanh.pop %v5145
    %v5149 = vsel %vm527, %v5146, 0
    %v5152 = vsel %vm527, %v5147, 0
    %5154 = vmatpush.msra.mxu0 0.0
    %5155 = vmatpush.msra.mxu0 0.0
    %5156 = vmatpush.msra.mxu0 0.0
    %5157 = vmatpush.msra.mxu0 0.0
    %5158 = vmatpush.msra.mxu0 0.0
    %5159 = vmatpush.msra.mxu0 0.0
    %5160 = vmatpush.msra.mxu0 0.0
    %5161 = vmatpush.msra.mxu0 0.0
    %5162 = vmatpush.msra.mxu0 %v220
    %5163 = vmatpush.msra.mxu0 %v219
    %5164 = vmatpush.msra.mxu0 %v220
    %5165 = vmatpush.msra.mxu0 %v219
    %5166 = vmatpush.msra.mxu0 %v220
    %5167 = vmatpush.msra.mxu0 %v219
    %5168 = vmatpush.msra.mxu0 %v220
    %5169 = vmatpush.msra.mxu0 %v219
    %5170 = vmatmul.f32.gmra.mxu0 %v5149
    %v5171 = vpop.f32.mrf.mxu0
    %v5172 = vadd.f32 0.0, %v5171
    %5173 = vmatmul.f32.gmra.mxu0 %v5152
    %v5174 = vpop.f32.mrf.mxu0
    %v5175 = vadd.f32 0.0, %v5174
    %5176 = vdwg.mxu0
    %5177 = vxpose.xlu0.b32.start [1/16] %v5172, 128
    %5178 = vxpose.xlu0.b32.cont [2/16] %v5175, 128
    %5179 = vxpose.xlu0.b32.cont [3/16] 0.0, 128
    %5180 = vxpose.xlu0.b32.cont [4/16] 0.0, 128
    %5181 = vxpose.xlu0.b32.cont [5/16] 0.0, 128
    %5182 = vxpose.xlu0.b32.cont [6/16] 0.0, 128
    %5183 = vxpose.xlu0.b32.cont [7/16] 0.0, 128
    %5184 = vxpose.xlu0.b32.cont [8/16] 0.0, 128
    %5185 = vxpose.xlu0.b32.cont [9/16] 0.0, 128
    %5186 = vxpose.xlu0.b32.cont [10/16] 0.0, 128
    %5187 = vxpose.xlu0.b32.cont [11/16] 0.0, 128
    %5188 = vxpose.xlu0.b32.cont [12/16] 0.0, 128
    %5189 = vxpose.xlu0.b32.cont [13/16] 0.0, 128
    %5190 = vxpose.xlu0.b32.cont [14/16] 0.0, 128
    %5191 = vxpose.xlu0.b32.cont [15/16] 0.0, 128
    %5192 = vxpose.xlu0.b32.end [16/16] 0.0, 128
    %v5193 = vpop.trf.xlu0
    %v5194 = vpop.trf.xlu0
    %v5195 = vpop.trf.xlu0
    %v5196 = vpop.trf.xlu0
    %v5197 = vpop.trf.xlu0
    %v5198 = vpop.trf.xlu0
    %v5199 = vpop.trf.xlu0
    %v5200 = vpop.trf.xlu0
    %v5201 = vpop.trf.xlu0
    %v5202 = vpop.trf.xlu0
    %v5203 = vpop.trf.xlu0
    %v5204 = vpop.trf.xlu0
    %v5205 = vpop.trf.xlu0
    %v5206 = vpop.trf.xlu0
    %v5207 = vpop.trf.xlu0
    %v5208 = vpop.trf.xlu0
    %v5209 = vadd.f32 %v5172, %v5193
    %v5210 = vadd.f32 %v5175, %v5194
    %v5211 = vmul.f32 %v5209, 0.5
    %v5212 = vmul.f32 %v5210, 0.5
    %v5213 = vmul.f32 %v4484, %v2530
    %v5214 = vmul.f32 %v4485, %v2532
    %v5215 = vadd.f32 %v5213, %v2538
    %v5216 = vadd.f32 %v5214, %v2540
    %5219 = vrot.lane.b32.xlu0 %v5215, 96
    %v5220 = vpop.permute.xlu0 %5219
    %5221 = vrot.lane.b32.xlu0 %v5216, 96
    %v5222 = vpop.permute.xlu0 %5221
    %v5225 = vsel %vm223, %v5220, 0.0
    %5226 = vadd.xlane.f32.xlu0 %v5225
    %v5227 = vpop.xlane.xlu0 %5226
    %v5228 = vsel %vm223, %v5222, 0.0
    %5229 = vadd.xlane.f32.xlu0 %v5228
    %v5230 = vpop.xlane.xlu0 %5229
    %v5231 = vmax.f32 %v5227, 1.0
    %v5232 = vmax.f32 %v5230, 1.0
    %v5233 = vrsqrt.pop %v5231
    %v5234 = vmul.f32 %v5233, %v5231
    %v5235 = vmul.f32 %v5234, %v5233
    %v5236 = vmul.f32 0.5, %v5235
    %v5237 = vsub.f32 1.5, %v5236
    %v5238 = vmul.f32 %v5233, %v5237
    %vm5239 = vweird.f32 %v5231
    %vm5240 = vweird.f32 %v5233
    %vm5241 = vmor %vm5239, %vm5240
    %v5242 = vsel %vm5241, %v5233, %v5238
    %v5243 = vrsqrt.pop %v5232
    %v5244 = vmul.f32 %v5243, %v5232
    %v5245 = vmul.f32 %v5244, %v5243
    %v5246 = vmul.f32 0.5, %v5245
    %v5247 = vsub.f32 1.5, %v5246
    %v5248 = vmul.f32 %v5243, %v5247
    %vm5249 = vweird.f32 %v5232
    %vm5250 = vweird.f32 %v5243
    %vm5251 = vmor %vm5249, %vm5250
    %v5252 = vsel %vm5251, %v5243, %v5248
    %v5253 = vmul.f32 %v4755, %v5242
    %v5254 = vmul.f32 %v4758, %v5252
    %5257 = vrot.lane.b32.xlu0 %v5253, 80
    %v5258 = vpop.permute.xlu0 %5257
    %5259 = vrot.lane.b32.xlu0 %v5254, 80
    %v5260 = vpop.permute.xlu0 %5259
    %v5263 = vsel %vm223, %v5220, 0
    %v5265 = vsel %vm223, %v5222, 0
    %5267 = vmatpush.msra.mxu0 0.0
    %5268 = vmatpush.msra.mxu0 0.0
    %5269 = vmatpush.msra.mxu0 0.0
    %5270 = vmatpush.msra.mxu0 0.0
    %5271 = vmatpush.msra.mxu0 0.0
    %5272 = vmatpush.msra.mxu0 0.0
    %5273 = vmatpush.msra.mxu0 0.0
    %5274 = vmatpush.msra.mxu0 0.0
    %5275 = vmatpush.msra.mxu0 0.0
    %5276 = vmatpush.msra.mxu0 0.0
    %5277 = vmatpush.msra.mxu0 0.0
    %5278 = vmatpush.msra.mxu0 0.0
    %5279 = vmatpush.msra.mxu0 0.0
    %5280 = vmatpush.msra.mxu0 0.0
    %5281 = vmatpush.msra.mxu0 %v5260
    %5282 = vmatpush.msra.mxu0 %v5258
    %5283 = vmatmul.f32.gmra.mxu0 %v5263
    %v5284 = vpop.f32.mrf.mxu0
    %v5285 = vadd.f32 0.0, %v5284
    %5286 = vmatmul.f32.gmra.mxu0 %v5265
    %v5287 = vpop.f32.mrf.mxu0
    %v5288 = vadd.f32 0.0, %v5287
    %5289 = vdwg.mxu0
    %v5290 = vmul.f32 %v5285, %v5242
    %v5291 = vmul.f32 %v5288, %v5252
    %5292 = vrot.lane.b32.xlu0 %v4833, 80
    %v5293 = vpop.permute.xlu0 %5292
    %v5295 = vadd.f32 %v5290, %v5293
    %v5296 = vadd.f32 %v5291, %v5293
    %v5297 = vmul.f32 %v5295, %v431
    %v5298 = vmul.f32 %v5296, %v431
    %v5299 = vmul.f32 %v5295, %v437
    %v5300 = vmul.f32 %v5296, %v437
    %v5301 = vmul.f32 %v5295, %v443
    %v5302 = vmul.f32 %v5296, %v443
    %v5303 = vmul.f32 %v5295, %v449
    %v5304 = vmul.f32 %v5296, %v449
    %5313 = vrot.lane.b32.xlu0 %v5297, 120
    %v5314 = vpop.permute.xlu0 %5313
    %5315 = vrot.lane.b32.xlu0 %v5298, 120
    %v5316 = vpop.permute.xlu0 %5315
    %5317 = vrot.lane.b32.xlu0 %v5299, 120
    %v5318 = vpop.permute.xlu0 %5317
    %5319 = vrot.lane.b32.xlu0 %v5300, 120
    %v5320 = vpop.permute.xlu0 %5319
    %5321 = vrot.lane.b32.xlu0 %v5301, 120
    %v5322 = vpop.permute.xlu0 %5321
    %5323 = vrot.lane.b32.xlu0 %v5302, 120
    %v5324 = vpop.permute.xlu0 %5323
    %5325 = vrot.lane.b32.xlu0 %v5303, 120
    %v5326 = vpop.permute.xlu0 %5325
    %5327 = vrot.lane.b32.xlu0 %v5304, 120
    %v5328 = vpop.permute.xlu0 %5327
    %v5330 = vsel %vm477, %v5295, 0
    %v5333 = vsel %vm477, %v5296, 0
    %v5335 = vsel %vm477, %v5314, 0
    %v5337 = vsel %vm477, %v5316, 0
    %v5339 = vsel %vm477, %v5318, 0
    %v5341 = vsel %vm477, %v5320, 0
    %v5343 = vsel %vm477, %v5322, 0
    %v5345 = vsel %vm477, %v5324, 0
    %v5347 = vsel %vm477, %v5326, 0
    %v5349 = vsel %vm477, %v5328, 0
    %5351 = vmatpush.xpose.msra.mxu0 0.0
    %5352 = vmatpush.xpose.msra.mxu0 0.0
    %5353 = vmatpush.xpose.msra.mxu0 0.0
    %5354 = vmatpush.xpose.msra.mxu0 0.0
    %5355 = vmatpush.xpose.msra.mxu0 0.0
    %5356 = vmatpush.xpose.msra.mxu0 0.0
    %5357 = vmatpush.xpose.msra.mxu0 0.0
    %5358 = vmatpush.xpose.msra.mxu0 0.0
    %5359 = vmatpush.xpose.msra.mxu0 %v5349
    %5360 = vmatpush.xpose.msra.mxu0 %v5347
    %5361 = vmatpush.xpose.msra.mxu0 %v5345
    %5362 = vmatpush.xpose.msra.mxu0 %v5343
    %5363 = vmatpush.xpose.msra.mxu0 %v5341
    %5364 = vmatpush.xpose.msra.mxu0 %v5339
    %5365 = vmatpush.xpose.msra.mxu0 %v5337
    %5366 = vmatpush.xpose.msra.mxu0 %v5335
    %5367 = vmatmul.f32.gmra.mxu0 %v5330
    %v5368 = vpop.f32.mrf.mxu0
    %v5369 = vadd.f32 0.0, %v5368
    %5370 = vmatmul.f32.gmra.mxu0 %v5333
    %v5371 = vpop.f32.mrf.mxu0
    %v5372 = vadd.f32 0.0, %v5371
    %5373 = vdwg.mxu0
    %v5374 = vmul.f32 %v5369, 0.35355338
    %v5375 = vmul.f32 %v5372, 0.35355338
    %v5376 = vtanh.pop %v5374
    %v5377 = vtanh.pop %v5375
    %v5379 = vsel %vm527, %v5376, 0
    %v5382 = vsel %vm527, %v5377, 0
    %5384 = vmatpush.msra.mxu0 0.0
    %5385 = vmatpush.msra.mxu0 0.0
    %5386 = vmatpush.msra.mxu0 0.0
    %5387 = vmatpush.msra.mxu0 0.0
    %5388 = vmatpush.msra.mxu0 0.0
    %5389 = vmatpush.msra.mxu0 0.0
    %5390 = vmatpush.msra.mxu0 0.0
    %5391 = vmatpush.msra.mxu0 0.0
    %5392 = vmatpush.msra.mxu0 %v220
    %5393 = vmatpush.msra.mxu0 %v219
    %5394 = vmatpush.msra.mxu0 %v220
    %5395 = vmatpush.msra.mxu0 %v219
    %5396 = vmatpush.msra.mxu0 %v220
    %5397 = vmatpush.msra.mxu0 %v219
    %5398 = vmatpush.msra.mxu0 %v220
    %5399 = vmatpush.msra.mxu0 %v219
    %5400 = vmatmul.f32.gmra.mxu0 %v5379
    %v5401 = vpop.f32.mrf.mxu0
    %v5402 = vadd.f32 0.0, %v5401
    %5403 = vmatmul.f32.gmra.mxu0 %v5382
    %v5404 = vpop.f32.mrf.mxu0
    %v5405 = vadd.f32 0.0, %v5404
    %5406 = vdwg.mxu0
    %5407 = vxpose.xlu0.b32.start [1/16] %v5402, 128
    %5408 = vxpose.xlu0.b32.cont [2/16] %v5405, 128
    %5409 = vxpose.xlu0.b32.cont [3/16] 0.0, 128
    %5410 = vxpose.xlu0.b32.cont [4/16] 0.0, 128
    %5411 = vxpose.xlu0.b32.cont [5/16] 0.0, 128
    %5412 = vxpose.xlu0.b32.cont [6/16] 0.0, 128
    %5413 = vxpose.xlu0.b32.cont [7/16] 0.0, 128
    %5414 = vxpose.xlu0.b32.cont [8/16] 0.0, 128
    %5415 = vxpose.xlu0.b32.cont [9/16] 0.0, 128
    %5416 = vxpose.xlu0.b32.cont [10/16] 0.0, 128
    %5417 = vxpose.xlu0.b32.cont [11/16] 0.0, 128
    %5418 = vxpose.xlu0.b32.cont [12/16] 0.0, 128
    %5419 = vxpose.xlu0.b32.cont [13/16] 0.0, 128
    %5420 = vxpose.xlu0.b32.cont [14/16] 0.0, 128
    %5421 = vxpose.xlu0.b32.cont [15/16] 0.0, 128
    %5422 = vxpose.xlu0.b32.end [16/16] 0.0, 128
    %v5423 = vpop.trf.xlu0
    %v5424 = vpop.trf.xlu0
    %v5425 = vpop.trf.xlu0
    %v5426 = vpop.trf.xlu0
    %v5427 = vpop.trf.xlu0
    %v5428 = vpop.trf.xlu0
    %v5429 = vpop.trf.xlu0
    %v5430 = vpop.trf.xlu0
    %v5431 = vpop.trf.xlu0
    %v5432 = vpop.trf.xlu0
    %v5433 = vpop.trf.xlu0
    %v5434 = vpop.trf.xlu0
    %v5435 = vpop.trf.xlu0
    %v5436 = vpop.trf.xlu0
    %v5437 = vpop.trf.xlu0
    %v5438 = vpop.trf.xlu0
    %v5439 = vadd.f32 %v5402, %v5423
    %v5440 = vadd.f32 %v5405, %v5424
    %v5441 = vmul.f32 %v5439, 0.5
    %v5442 = vmul.f32 %v5440, 0.5
    %v5443 = vmul.f32 %v4534, %v2772
    %v5444 = vmul.f32 %v4535, %v2774
    %v5445 = vadd.f32 %v5443, %v2780
    %v5446 = vadd.f32 %v5444, %v2782
    %5449 = vrot.lane.b32.xlu0 %v5445, 80
    %v5450 = vpop.permute.xlu0 %5449
    %5451 = vrot.lane.b32.xlu0 %v5446, 80
    %v5452 = vpop.permute.xlu0 %5451
    %v5455 = vsel %vm223, %v5450, 0.0
    %5456 = vadd.xlane.f32.xlu0 %v5455
    %v5457 = vpop.xlane.xlu0 %5456
    %v5458 = vsel %vm223, %v5452, 0.0
    %5459 = vadd.xlane.f32.xlu0 %v5458
    %v5460 = vpop.xlane.xlu0 %5459
    %v5461 = vmax.f32 %v5457, 1.0
    %v5462 = vmax.f32 %v5460, 1.0
    %v5463 = vrsqrt.pop %v5461
    %v5464 = vmul.f32 %v5463, %v5461
    %v5465 = vmul.f32 %v5464, %v5463
    %v5466 = vmul.f32 0.5, %v5465
    %v5467 = vsub.f32 1.5, %v5466
    %v5468 = vmul.f32 %v5463, %v5467
    %vm5469 = vweird.f32 %v5461
    %vm5470 = vweird.f32 %v5463
    %vm5471 = vmor %vm5469, %vm5470
    %v5472 = vsel %vm5471, %v5463, %v5468
    %v5473 = vrsqrt.pop %v5462
    %v5474 = vmul.f32 %v5473, %v5462
    %v5475 = vmul.f32 %v5474, %v5473
    %v5476 = vmul.f32 0.5, %v5475
    %v5477 = vsub.f32 1.5, %v5476
    %v5478 = vmul.f32 %v5473, %v5477
    %vm5479 = vweird.f32 %v5462
    %vm5480 = vweird.f32 %v5473
    %vm5481 = vmor %vm5479, %vm5480
    %v5482 = vsel %vm5481, %v5473, %v5478
    %v5483 = vmul.f32 %v4755, %v5472
    %v5484 = vmul.f32 %v4758, %v5482
    %5487 = vrot.lane.b32.xlu0 %v5483, 56
    %v5488 = vpop.permute.xlu0 %5487
    %5489 = vrot.lane.b32.xlu0 %v5484, 56
    %v5490 = vpop.permute.xlu0 %5489
    %v5493 = vsel %vm223, %v5450, 0
    %v5495 = vsel %vm223, %v5452, 0
    %5497 = vmatpush.msra.mxu0 0.0
    %5498 = vmatpush.msra.mxu0 0.0
    %5499 = vmatpush.msra.mxu0 0.0
    %5500 = vmatpush.msra.mxu0 0.0
    %5501 = vmatpush.msra.mxu0 0.0
    %5502 = vmatpush.msra.mxu0 0.0
    %5503 = vmatpush.msra.mxu0 0.0
    %5504 = vmatpush.msra.mxu0 0.0
    %5505 = vmatpush.msra.mxu0 0.0
    %5506 = vmatpush.msra.mxu0 0.0
    %5507 = vmatpush.msra.mxu0 0.0
    %5508 = vmatpush.msra.mxu0 0.0
    %5509 = vmatpush.msra.mxu0 0.0
    %5510 = vmatpush.msra.mxu0 0.0
    %5511 = vmatpush.msra.mxu0 %v5490
    %5512 = vmatpush.msra.mxu0 %v5488
    %5513 = vmatmul.f32.gmra.mxu0 %v5493
    %v5514 = vpop.f32.mrf.mxu0
    %v5515 = vadd.f32 0.0, %v5514
    %5516 = vmatmul.f32.gmra.mxu0 %v5495
    %v5517 = vpop.f32.mrf.mxu0
    %v5518 = vadd.f32 0.0, %v5517
    %5519 = vdwg.mxu0
    %v5520 = vmul.f32 %v5515, %v5472
    %v5521 = vmul.f32 %v5518, %v5482
    %5522 = vrot.lane.b32.xlu0 %v4833, 56
    %v5523 = vpop.permute.xlu0 %5522
    %v5525 = vadd.f32 %v5520, %v5523
    %v5526 = vadd.f32 %v5521, %v5523
    %v5527 = vmul.f32 %v5525, %v431
    %v5528 = vmul.f32 %v5526, %v431
    %v5529 = vmul.f32 %v5525, %v437
    %v5530 = vmul.f32 %v5526, %v437
    %v5531 = vmul.f32 %v5525, %v443
    %v5532 = vmul.f32 %v5526, %v443
    %v5533 = vmul.f32 %v5525, %v449
    %v5534 = vmul.f32 %v5526, %v449
    %5543 = vrot.lane.b32.xlu0 %v5527, 120
    %v5544 = vpop.permute.xlu0 %5543
    %5545 = vrot.lane.b32.xlu0 %v5528, 120
    %v5546 = vpop.permute.xlu0 %5545
    %5547 = vrot.lane.b32.xlu0 %v5529, 120
    %v5548 = vpop.permute.xlu0 %5547
    %5549 = vrot.lane.b32.xlu0 %v5530, 120
    %v5550 = vpop.permute.xlu0 %5549
    %5551 = vrot.lane.b32.xlu0 %v5531, 120
    %v5552 = vpop.permute.xlu0 %5551
    %5553 = vrot.lane.b32.xlu0 %v5532, 120
    %v5554 = vpop.permute.xlu0 %5553
    %5555 = vrot.lane.b32.xlu0 %v5533, 120
    %v5556 = vpop.permute.xlu0 %5555
    %5557 = vrot.lane.b32.xlu0 %v5534, 120
    %v5558 = vpop.permute.xlu0 %5557
    %v5560 = vsel %vm477, %v5525, 0
    %v5563 = vsel %vm477, %v5526, 0
    %v5565 = vsel %vm477, %v5544, 0
    %v5567 = vsel %vm477, %v5546, 0
    %v5569 = vsel %vm477, %v5548, 0
    %v5571 = vsel %vm477, %v5550, 0
    %v5573 = vsel %vm477, %v5552, 0
    %v5575 = vsel %vm477, %v5554, 0
    %v5577 = vsel %vm477, %v5556, 0
    %v5579 = vsel %vm477, %v5558, 0
    %5581 = vmatpush.xpose.msra.mxu0 0.0
    %5582 = vmatpush.xpose.msra.mxu0 0.0
    %5583 = vmatpush.xpose.msra.mxu0 0.0
    %5584 = vmatpush.xpose.msra.mxu0 0.0
    %5585 = vmatpush.xpose.msra.mxu0 0.0
    %5586 = vmatpush.xpose.msra.mxu0 0.0
    %5587 = vmatpush.xpose.msra.mxu0 0.0
    %5588 = vmatpush.xpose.msra.mxu0 0.0
    %5589 = vmatpush.xpose.msra.mxu0 %v5579
    %5590 = vmatpush.xpose.msra.mxu0 %v5577
    %5591 = vmatpush.xpose.msra.mxu0 %v5575
    %5592 = vmatpush.xpose.msra.mxu0 %v5573
    %5593 = vmatpush.xpose.msra.mxu0 %v5571
    %5594 = vmatpush.xpose.msra.mxu0 %v5569
    %5595 = vmatpush.xpose.msra.mxu0 %v5567
    %5596 = vmatpush.xpose.msra.mxu0 %v5565
    %5597 = vmatmul.f32.gmra.mxu0 %v5560
    %v5598 = vpop.f32.mrf.mxu0
    %v5599 = vadd.f32 0.0, %v5598
    %5600 = vmatmul.f32.gmra.mxu0 %v5563
    %v5601 = vpop.f32.mrf.mxu0
    %v5602 = vadd.f32 0.0, %v5601
    %5603 = vdwg.mxu0
    %v5604 = vmul.f32 %v5599, 0.35355338
    %v5605 = vmul.f32 %v5602, 0.35355338
    %v5606 = vtanh.pop %v5604
    %v5607 = vtanh.pop %v5605
    %v5609 = vsel %vm527, %v5606, 0
    %v5612 = vsel %vm527, %v5607, 0
    %5614 = vmatpush.msra.mxu0 0.0
    %5615 = vmatpush.msra.mxu0 0.0
    %5616 = vmatpush.msra.mxu0 0.0
    %5617 = vmatpush.msra.mxu0 0.0
    %5618 = vmatpush.msra.mxu0 0.0
    %5619 = vmatpush.msra.mxu0 0.0
    %5620 = vmatpush.msra.mxu0 0.0
    %5621 = vmatpush.msra.mxu0 0.0
    %5622 = vmatpush.msra.mxu0 %v220
    %5623 = vmatpush.msra.mxu0 %v219
    %5624 = vmatpush.msra.mxu0 %v220
    %5625 = vmatpush.msra.mxu0 %v219
    %5626 = vmatpush.msra.mxu0 %v220
    %5627 = vmatpush.msra.mxu0 %v219
    %5628 = vmatpush.msra.mxu0 %v220
    %5629 = vmatpush.msra.mxu0 %v219
    %5630 = vmatmul.f32.gmra.mxu0 %v5609
    %v5631 = vpop.f32.mrf.mxu0
    %v5632 = vadd.f32 0.0, %v5631
    %5633 = vmatmul.f32.gmra.mxu0 %v5612
    %v5634 = vpop.f32.mrf.mxu0
    %v5635 = vadd.f32 0.0, %v5634
    %5636 = vdwg.mxu0
    %5637 = vxpose.xlu0.b32.start [1/16] %v5632, 128
    %5638 = vxpose.xlu0.b32.cont [2/16] %v5635, 128
    %5639 = vxpose.xlu0.b32.cont [3/16] 0.0, 128
    %5640 = vxpose.xlu0.b32.cont [4/16] 0.0, 128
    %5641 = vxpose.xlu0.b32.cont [5/16] 0.0, 128
    %5642 = vxpose.xlu0.b32.cont [6/16] 0.0, 128
    %5643 = vxpose.xlu0.b32.cont [7/16] 0.0, 128
    %5644 = vxpose.xlu0.b32.cont [8/16] 0.0, 128
    %5645 = vxpose.xlu0.b32.cont [9/16] 0.0, 128
    %5646 = vxpose.xlu0.b32.cont [10/16] 0.0, 128
    %5647 = vxpose.xlu0.b32.cont [11/16] 0.0, 128
    %5648 = vxpose.xlu0.b32.cont [12/16] 0.0, 128
    %5649 = vxpose.xlu0.b32.cont [13/16] 0.0, 128
    %5650 = vxpose.xlu0.b32.cont [14/16] 0.0, 128
    %5651 = vxpose.xlu0.b32.cont [15/16] 0.0, 128
    %5652 = vxpose.xlu0.b32.end [16/16] 0.0, 128
    %v5653 = vpop.trf.xlu0
    %v5654 = vpop.trf.xlu0
    %v5655 = vpop.trf.xlu0
    %v5656 = vpop.trf.xlu0
    %v5657 = vpop.trf.xlu0
    %v5658 = vpop.trf.xlu0
    %v5659 = vpop.trf.xlu0
    %v5660 = vpop.trf.xlu0
    %v5661 = vpop.trf.xlu0
    %v5662 = vpop.trf.xlu0
    %v5663 = vpop.trf.xlu0
    %v5664 = vpop.trf.xlu0
    %v5665 = vpop.trf.xlu0
    %v5666 = vpop.trf.xlu0
    %v5667 = vpop.trf.xlu0
    %v5668 = vpop.trf.xlu0
    %v5669 = vadd.f32 %v5632, %v5653
    %v5670 = vadd.f32 %v5635, %v5654
    %v5671 = vmul.f32 %v5669, 0.5
    %v5672 = vmul.f32 %v5670, 0.5
    %5675 = vrot.lane.b32.xlu0 %v5211, 16
    %v5676 = vpop.permute.xlu0 %5675
    %5677 = vrot.lane.b32.xlu0 %v5212, 16
    %v5678 = vpop.permute.xlu0 %5677
    %5683 = vrot.lane.b32.xlu0 %v5441, 32
    %v5684 = vpop.permute.xlu0 %5683
    %5685 = vrot.lane.b32.xlu0 %v5442, 32
    %v5686 = vpop.permute.xlu0 %5685
    %5691 = vrot.lane.b32.xlu0 %v5671, 48
    %v5692 = vpop.permute.xlu0 %5691
    %5693 = vrot.lane.b32.xlu0 %v5672, 48
    %v5694 = vpop.permute.xlu0 %5693
    %5699 = vrot.lane.b32.xlu0 %v4382, 64
    %v5700 = vpop.permute.xlu0 %5699
    %5701 = vrot.lane.b32.xlu0 %v4383, 64
    %v5702 = vpop.permute.xlu0 %5701
    %5707 = vrot.lane.b32.xlu0 %v4434, 64
    %v5708 = vpop.permute.xlu0 %5707
    %5709 = vrot.lane.b32.xlu0 %v4435, 64
    %v5710 = vpop.permute.xlu0 %5709
    %5715 = vrot.lane.b32.xlu0 %v4484, 64
    %v5716 = vpop.permute.xlu0 %5715
    %5717 = vrot.lane.b32.xlu0 %v4485, 64
    %v5718 = vpop.permute.xlu0 %5717
    %5723 = vrot.lane.b32.xlu0 %v4534, 64
    %v5724 = vpop.permute.xlu0 %5723
    %5725 = vrot.lane.b32.xlu0 %v4535, 64
    %v5726 = vpop.permute.xlu0 %5725
    %v5729 = vsel %vm223, %v4981, %v5676
    %v5730 = vsel %vm223, %v4982, %v5678
    %v5731 = vsel %vm855, %v5729, %v5684
    %v5732 = vsel %vm855, %v5730, %v5686
    %v5733 = vsel %vm858, %v5731, %v5692
    %v5734 = vsel %vm858, %v5732, %v5694
    %v5735 = vsel %vm527, %v5733, %v5700
    %v5736 = vsel %vm527, %v5734, %v5702
    %v5737 = vsel %vm3102, %v5735, %v5708
    %v5738 = vsel %vm3102, %v5736, %v5710
    %v5739 = vsel %vm3105, %v5737, %v5716
    %v5740 = vsel %vm3105, %v5738, %v5718
    %v5741 = vsel %vm3108, %v5739, %v5724
    %v5742 = vsel %vm3108, %v5740, %v5726
    %v5743 = vmul.f32 %v4570, %v209
    %v5744 = vmul.f32 %v4571, %v210
    %v5745 = vadd.f32 %v5743, %v207
    %v5746 = vadd.f32 %v5744, %v208
    %v5747 = vsel %vm223, %v5745, 0.0
    %5748 = vadd.xlane.f32.xlu0 %v5747
    %v5749 = vpop.xlane.xlu0 %5748
    %v5750 = vsel %vm223, %v5746, 0.0
    %5751 = vadd.xlane.f32.xlu0 %v5750
    %v5752 = vpop.xlane.xlu0 %5751
    %v5753 = vmax.f32 %v5749, 1.0
    %v5754 = vmax.f32 %v5752, 1.0
    %v5755 = vrsqrt.pop %v5753
    %v5756 = vmul.f32 %v5755, %v5753
    %v5757 = vmul.f32 %v5756, %v5755
    %v5758 = vmul.f32 0.5, %v5757
    %v5759 = vsub.f32 1.5, %v5758
    %v5760 = vmul.f32 %v5755, %v5759
    %vm5761 = vweird.f32 %v5753
    %vm5762 = vweird.f32 %v5755
    %vm5763 = vmor %vm5761, %vm5762
    %v5764 = vsel %vm5763, %v5755, %v5760
    %v5765 = vrsqrt.pop %v5754
    %v5766 = vmul.f32 %v5765, %v5754
    %v5767 = vmul.f32 %v5766, %v5765
    %v5768 = vmul.f32 0.5, %v5767
    %v5769 = vsub.f32 1.5, %v5768
    %v5770 = vmul.f32 %v5765, %v5769
    %vm5771 = vweird.f32 %v5754
    %vm5772 = vweird.f32 %v5765
    %vm5773 = vmor %vm5771, %vm5772
    %v5774 = vsel %vm5773, %v5765, %v5770
    %v5775 = vmul.f32 %v4761, %v5764
    %v5776 = vmul.f32 %v4764, %v5774
    %v5778 = vsel %vm223, %v5745, 0
    %v5781 = vsel %vm223, %v5746, 0
    %5783 = vmatpush.msra.mxu0 0.0
    %5784 = vmatpush.msra.mxu0 0.0
    %5785 = vmatpush.msra.mxu0 0.0
    %5786 = vmatpush.msra.mxu0 0.0
    %5787 = vmatpush.msra.mxu0 0.0
    %5788 = vmatpush.msra.mxu0 0.0
    %5789 = vmatpush.msra.mxu0 0.0
    %5790 = vmatpush.msra.mxu0 0.0
    %5791 = vmatpush.msra.mxu0 0.0
    %5792 = vmatpush.msra.mxu0 0.0
    %5793 = vmatpush.msra.mxu0 0.0
    %5794 = vmatpush.msra.mxu0 0.0
    %5795 = vmatpush.msra.mxu0 0.0
    %5796 = vmatpush.msra.mxu0 0.0
    %5797 = vmatpush.msra.mxu0 %v5776
    %5798 = vmatpush.msra.mxu0 %v5775
    %5799 = vmatmul.f32.gmra.mxu0 %v5778
    %v5800 = vpop.f32.mrf.mxu0
    %v5801 = vadd.f32 0.0, %v5800
    %5802 = vmatmul.f32.gmra.mxu0 %v5781
    %v5803 = vpop.f32.mrf.mxu0
    %v5804 = vadd.f32 0.0, %v5803
    %5805 = vdwg.mxu0
    %v5806 = vmul.f32 %v5801, %v5764
    %v5807 = vmul.f32 %v5804, %v5774
    %v5808 = vadd.f32 %v5806, %v4833
    %v5809 = vadd.f32 %v5807, %v4833
    %v5810 = vmul.f32 %v5808, %v431
    %v5811 = vmul.f32 %v5809, %v431
    %v5812 = vmul.f32 %v5808, %v437
    %v5813 = vmul.f32 %v5809, %v437
    %v5814 = vmul.f32 %v5808, %v443
    %v5815 = vmul.f32 %v5809, %v443
    %v5816 = vmul.f32 %v5808, %v449
    %v5817 = vmul.f32 %v5809, %v449
    %5826 = vrot.lane.b32.xlu0 %v5810, 120
    %v5827 = vpop.permute.xlu0 %5826
    %5828 = vrot.lane.b32.xlu0 %v5811, 120
    %v5829 = vpop.permute.xlu0 %5828
    %5830 = vrot.lane.b32.xlu0 %v5812, 120
    %v5831 = vpop.permute.xlu0 %5830
    %5832 = vrot.lane.b32.xlu0 %v5813, 120
    %v5833 = vpop.permute.xlu0 %5832
    %5834 = vrot.lane.b32.xlu0 %v5814, 120
    %v5835 = vpop.permute.xlu0 %5834
    %5836 = vrot.lane.b32.xlu0 %v5815, 120
    %v5837 = vpop.permute.xlu0 %5836
    %5838 = vrot.lane.b32.xlu0 %v5816, 120
    %v5839 = vpop.permute.xlu0 %5838
    %5840 = vrot.lane.b32.xlu0 %v5817, 120
    %v5841 = vpop.permute.xlu0 %5840
    %v5843 = vsel %vm477, %v5808, 0
    %v5846 = vsel %vm477, %v5809, 0
    %v5848 = vsel %vm477, %v5827, 0
    %v5850 = vsel %vm477, %v5829, 0
    %v5852 = vsel %vm477, %v5831, 0
    %v5854 = vsel %vm477, %v5833, 0
    %v5856 = vsel %vm477, %v5835, 0
    %v5858 = vsel %vm477, %v5837, 0
    %v5860 = vsel %vm477, %v5839, 0
    %v5862 = vsel %vm477, %v5841, 0
    %5864 = vmatpush.xpose.msra.mxu0 0.0
    %5865 = vmatpush.xpose.msra.mxu0 0.0
    %5866 = vmatpush.xpose.msra.mxu0 0.0
    %5867 = vmatpush.xpose.msra.mxu0 0.0
    %5868 = vmatpush.xpose.msra.mxu0 0.0
    %5869 = vmatpush.xpose.msra.mxu0 0.0
    %5870 = vmatpush.xpose.msra.mxu0 0.0
    %5871 = vmatpush.xpose.msra.mxu0 0.0
    %5872 = vmatpush.xpose.msra.mxu0 %v5862
    %5873 = vmatpush.xpose.msra.mxu0 %v5860
    %5874 = vmatpush.xpose.msra.mxu0 %v5858
    %5875 = vmatpush.xpose.msra.mxu0 %v5856
    %5876 = vmatpush.xpose.msra.mxu0 %v5854
    %5877 = vmatpush.xpose.msra.mxu0 %v5852
    %5878 = vmatpush.xpose.msra.mxu0 %v5850
    %5879 = vmatpush.xpose.msra.mxu0 %v5848
    %5880 = vmatmul.f32.gmra.mxu0 %v5843
    %v5881 = vpop.f32.mrf.mxu0
    %v5882 = vadd.f32 0.0, %v5881
    %5883 = vmatmul.f32.gmra.mxu0 %v5846
    %v5884 = vpop.f32.mrf.mxu0
    %v5885 = vadd.f32 0.0, %v5884
    %5886 = vdwg.mxu0
    %v5887 = vmul.f32 %v5882, 0.35355338
    %v5888 = vmul.f32 %v5885, 0.35355338
    %v5889 = vtanh.pop %v5887
    %v5890 = vtanh.pop %v5888
    %v5892 = vsel %vm527, %v5889, 0
    %v5895 = vsel %vm527, %v5890, 0
    %5897 = vmatpush.msra.mxu0 0.0
    %5898 = vmatpush.msra.mxu0 0.0
    %5899 = vmatpush.msra.mxu0 0.0
    %5900 = vmatpush.msra.mxu0 0.0
    %5901 = vmatpush.msra.mxu0 0.0
    %5902 = vmatpush.msra.mxu0 0.0
    %5903 = vmatpush.msra.mxu0 0.0
    %5904 = vmatpush.msra.mxu0 0.0
    %5905 = vmatpush.msra.mxu0 %v220
    %5906 = vmatpush.msra.mxu0 %v219
    %5907 = vmatpush.msra.mxu0 %v220
    %5908 = vmatpush.msra.mxu0 %v219
    %5909 = vmatpush.msra.mxu0 %v220
    %5910 = vmatpush.msra.mxu0 %v219
    %5911 = vmatpush.msra.mxu0 %v220
    %5912 = vmatpush.msra.mxu0 %v219
    %5913 = vmatmul.f32.gmra.mxu0 %v5892
    %v5914 = vpop.f32.mrf.mxu0
    %v5915 = vadd.f32 0.0, %v5914
    %5916 = vmatmul.f32.gmra.mxu0 %v5895
    %v5917 = vpop.f32.mrf.mxu0
    %v5918 = vadd.f32 0.0, %v5917
    %5919 = vdwg.mxu0
    %5920 = vxpose.xlu0.b32.start [1/16] %v5915, 128
    %5921 = vxpose.xlu0.b32.cont [2/16] %v5918, 128
    %5922 = vxpose.xlu0.b32.cont [3/16] 0.0, 128
    %5923 = vxpose.xlu0.b32.cont [4/16] 0.0, 128
    %5924 = vxpose.xlu0.b32.cont [5/16] 0.0, 128
    %5925 = vxpose.xlu0.b32.cont [6/16] 0.0, 128
    %5926 = vxpose.xlu0.b32.cont [7/16] 0.0, 128
    %5927 = vxpose.xlu0.b32.cont [8/16] 0.0, 128
    %5928 = vxpose.xlu0.b32.cont [9/16] 0.0, 128
    %5929 = vxpose.xlu0.b32.cont [10/16] 0.0, 128
    %5930 = vxpose.xlu0.b32.cont [11/16] 0.0, 128
    %5931 = vxpose.xlu0.b32.cont [12/16] 0.0, 128
    %5932 = vxpose.xlu0.b32.cont [13/16] 0.0, 128
    %5933 = vxpose.xlu0.b32.cont [14/16] 0.0, 128
    %5934 = vxpose.xlu0.b32.cont [15/16] 0.0, 128
    %5935 = vxpose.xlu0.b32.end [16/16] 0.0, 128
    %v5936 = vpop.trf.xlu0
    %v5937 = vpop.trf.xlu0
    %v5938 = vpop.trf.xlu0
    %v5939 = vpop.trf.xlu0
    %v5940 = vpop.trf.xlu0
    %v5941 = vpop.trf.xlu0
    %v5942 = vpop.trf.xlu0
    %v5943 = vpop.trf.xlu0
    %v5944 = vpop.trf.xlu0
    %v5945 = vpop.trf.xlu0
    %v5946 = vpop.trf.xlu0
    %v5947 = vpop.trf.xlu0
    %v5948 = vpop.trf.xlu0
    %v5949 = vpop.trf.xlu0
    %v5950 = vpop.trf.xlu0
    %v5951 = vpop.trf.xlu0
    %v5952 = vadd.f32 %v5915, %v5936
    %v5953 = vadd.f32 %v5918, %v5937
    %v5954 = vmul.f32 %v5952, 0.5
    %v5955 = vmul.f32 %v5953, 0.5
    %v5956 = vmul.f32 %v4622, %v2286
    %v5957 = vmul.f32 %v4623, %v2288
    %v5958 = vadd.f32 %v5956, %v2296
    %v5959 = vadd.f32 %v5957, %v2298
    %5962 = vrot.lane.b32.xlu0 %v5958, 112
    %v5963 = vpop.permute.xlu0 %5962
    %5964 = vrot.lane.b32.xlu0 %v5959, 112
    %v5965 = vpop.permute.xlu0 %5964
    %v5968 = vsel %vm223, %v5963, 0.0
    %5969 = vadd.xlane.f32.xlu0 %v5968
    %v5970 = vpop.xlane.xlu0 %5969
    %v5971 = vsel %vm223, %v5965, 0.0
    %5972 = vadd.xlane.f32.xlu0 %v5971
    %v5973 = vpop.xlane.xlu0 %5972
    %v5974 = vmax.f32 %v5970, 1.0
    %v5975 = vmax.f32 %v5973, 1.0
    %v5976 = vrsqrt.pop %v5974
    %v5977 = vmul.f32 %v5976, %v5974
    %v5978 = vmul.f32 %v5977, %v5976
    %v5979 = vmul.f32 0.5, %v5978
    %v5980 = vsub.f32 1.5, %v5979
    %v5981 = vmul.f32 %v5976, %v5980
    %vm5982 = vweird.f32 %v5974
    %vm5983 = vweird.f32 %v5976
    %vm5984 = vmor %vm5982, %vm5983
    %v5985 = vsel %vm5984, %v5976, %v5981
    %v5986 = vrsqrt.pop %v5975
    %v5987 = vmul.f32 %v5986, %v5975
    %v5988 = vmul.f32 %v5987, %v5986
    %v5989 = vmul.f32 0.5, %v5988
    %v5990 = vsub.f32 1.5, %v5989
    %v5991 = vmul.f32 %v5986, %v5990
    %vm5992 = vweird.f32 %v5975
    %vm5993 = vweird.f32 %v5986
    %vm5994 = vmor %vm5992, %vm5993
    %v5995 = vsel %vm5994, %v5986, %v5991
    %v5996 = vmul.f32 %v4761, %v5985
    %v5997 = vmul.f32 %v4764, %v5995
    %6000 = vrot.lane.b32.xlu0 %v5996, 104
    %v6001 = vpop.permute.xlu0 %6000
    %6002 = vrot.lane.b32.xlu0 %v5997, 104
    %v6003 = vpop.permute.xlu0 %6002
    %v6006 = vsel %vm223, %v5963, 0
    %v6008 = vsel %vm223, %v5965, 0
    %6010 = vmatpush.msra.mxu0 0.0
    %6011 = vmatpush.msra.mxu0 0.0
    %6012 = vmatpush.msra.mxu0 0.0
    %6013 = vmatpush.msra.mxu0 0.0
    %6014 = vmatpush.msra.mxu0 0.0
    %6015 = vmatpush.msra.mxu0 0.0
    %6016 = vmatpush.msra.mxu0 0.0
    %6017 = vmatpush.msra.mxu0 0.0
    %6018 = vmatpush.msra.mxu0 0.0
    %6019 = vmatpush.msra.mxu0 0.0
    %6020 = vmatpush.msra.mxu0 0.0
    %6021 = vmatpush.msra.mxu0 0.0
    %6022 = vmatpush.msra.mxu0 0.0
    %6023 = vmatpush.msra.mxu0 0.0
    %6024 = vmatpush.msra.mxu0 %v6003
    %6025 = vmatpush.msra.mxu0 %v6001
    %6026 = vmatmul.f32.gmra.mxu0 %v6006
    %v6027 = vpop.f32.mrf.mxu0
    %v6028 = vadd.f32 0.0, %v6027
    %6029 = vmatmul.f32.gmra.mxu0 %v6008
    %v6030 = vpop.f32.mrf.mxu0
    %v6031 = vadd.f32 0.0, %v6030
    %6032 = vdwg.mxu0
    %v6033 = vmul.f32 %v6028, %v5985
    %v6034 = vmul.f32 %v6031, %v5995
    %v6035 = vadd.f32 %v6033, %v5063
    %v6036 = vadd.f32 %v6034, %v5063
    %v6037 = vmul.f32 %v6035, %v431
    %v6038 = vmul.f32 %v6036, %v431
    %v6039 = vmul.f32 %v6035, %v437
    %v6040 = vmul.f32 %v6036, %v437
    %v6041 = vmul.f32 %v6035, %v443
    %v6042 = vmul.f32 %v6036, %v443
    %v6043 = vmul.f32 %v6035, %v449
    %v6044 = vmul.f32 %v6036, %v449
    %6053 = vrot.lane.b32.xlu0 %v6037, 120
    %v6054 = vpop.permute.xlu0 %6053
    %6055 = vrot.lane.b32.xlu0 %v6038, 120
    %v6056 = vpop.permute.xlu0 %6055
    %6057 = vrot.lane.b32.xlu0 %v6039, 120
    %v6058 = vpop.permute.xlu0 %6057
    %6059 = vrot.lane.b32.xlu0 %v6040, 120
    %v6060 = vpop.permute.xlu0 %6059
    %6061 = vrot.lane.b32.xlu0 %v6041, 120
    %v6062 = vpop.permute.xlu0 %6061
    %6063 = vrot.lane.b32.xlu0 %v6042, 120
    %v6064 = vpop.permute.xlu0 %6063
    %6065 = vrot.lane.b32.xlu0 %v6043, 120
    %v6066 = vpop.permute.xlu0 %6065
    %6067 = vrot.lane.b32.xlu0 %v6044, 120
    %v6068 = vpop.permute.xlu0 %6067
    %v6070 = vsel %vm477, %v6035, 0
    %v6073 = vsel %vm477, %v6036, 0
    %v6075 = vsel %vm477, %v6054, 0
    %v6077 = vsel %vm477, %v6056, 0
    %v6079 = vsel %vm477, %v6058, 0
    %v6081 = vsel %vm477, %v6060, 0
    %v6083 = vsel %vm477, %v6062, 0
    %v6085 = vsel %vm477, %v6064, 0
    %v6087 = vsel %vm477, %v6066, 0
    %v6089 = vsel %vm477, %v6068, 0
    %6091 = vmatpush.xpose.msra.mxu0 0.0
    %6092 = vmatpush.xpose.msra.mxu0 0.0
    %6093 = vmatpush.xpose.msra.mxu0 0.0
    %6094 = vmatpush.xpose.msra.mxu0 0.0
    %6095 = vmatpush.xpose.msra.mxu0 0.0
    %6096 = vmatpush.xpose.msra.mxu0 0.0
    %6097 = vmatpush.xpose.msra.mxu0 0.0
    %6098 = vmatpush.xpose.msra.mxu0 0.0
    %6099 = vmatpush.xpose.msra.mxu0 %v6089
    %6100 = vmatpush.xpose.msra.mxu0 %v6087
    %6101 = vmatpush.xpose.msra.mxu0 %v6085
    %6102 = vmatpush.xpose.msra.mxu0 %v6083
    %6103 = vmatpush.xpose.msra.mxu0 %v6081
    %6104 = vmatpush.xpose.msra.mxu0 %v6079
    %6105 = vmatpush.xpose.msra.mxu0 %v6077
    %6106 = vmatpush.xpose.msra.mxu0 %v6075
    %6107 = vmatmul.f32.gmra.mxu0 %v6070
    %v6108 = vpop.f32.mrf.mxu0
    %v6109 = vadd.f32 0.0, %v6108
    %6110 = vmatmul.f32.gmra.mxu0 %v6073
    %v6111 = vpop.f32.mrf.mxu0
    %v6112 = vadd.f32 0.0, %v6111
    %6113 = vdwg.mxu0
    %v6114 = vmul.f32 %v6109, 0.35355338
    %v6115 = vmul.f32 %v6112, 0.35355338
    %v6116 = vtanh.pop %v6114
    %v6117 = vtanh.pop %v6115
    %v6119 = vsel %vm527, %v6116, 0
    %v6122 = vsel %vm527, %v6117, 0
    %6124 = vmatpush.msra.mxu0 0.0
    %6125 = vmatpush.msra.mxu0 0.0
    %6126 = vmatpush.msra.mxu0 0.0
    %6127 = vmatpush.msra.mxu0 0.0
    %6128 = vmatpush.msra.mxu0 0.0
    %6129 = vmatpush.msra.mxu0 0.0
    %6130 = vmatpush.msra.mxu0 0.0
    %6131 = vmatpush.msra.mxu0 0.0
    %6132 = vmatpush.msra.mxu0 %v220
    %6133 = vmatpush.msra.mxu0 %v219
    %6134 = vmatpush.msra.mxu0 %v220
    %6135 = vmatpush.msra.mxu0 %v219
    %6136 = vmatpush.msra.mxu0 %v220
    %6137 = vmatpush.msra.mxu0 %v219
    %6138 = vmatpush.msra.mxu0 %v220
    %6139 = vmatpush.msra.mxu0 %v219
    %6140 = vmatmul.f32.gmra.mxu0 %v6119
    %v6141 = vpop.f32.mrf.mxu0
    %v6142 = vadd.f32 0.0, %v6141
    %6143 = vmatmul.f32.gmra.mxu0 %v6122
    %v6144 = vpop.f32.mrf.mxu0
    %v6145 = vadd.f32 0.0, %v6144
    %6146 = vdwg.mxu0
    %6147 = vxpose.xlu0.b32.start [1/16] %v6142, 128
    %6148 = vxpose.xlu0.b32.cont [2/16] %v6145, 128
    %6149 = vxpose.xlu0.b32.cont [3/16] 0.0, 128
    %6150 = vxpose.xlu0.b32.cont [4/16] 0.0, 128
    %6151 = vxpose.xlu0.b32.cont [5/16] 0.0, 128
    %6152 = vxpose.xlu0.b32.cont [6/16] 0.0, 128
    %6153 = vxpose.xlu0.b32.cont [7/16] 0.0, 128
    %6154 = vxpose.xlu0.b32.cont [8/16] 0.0, 128
    %6155 = vxpose.xlu0.b32.cont [9/16] 0.0, 128
    %6156 = vxpose.xlu0.b32.cont [10/16] 0.0, 128
    %6157 = vxpose.xlu0.b32.cont [11/16] 0.0, 128
    %6158 = vxpose.xlu0.b32.cont [12/16] 0.0, 128
    %6159 = vxpose.xlu0.b32.cont [13/16] 0.0, 128
    %6160 = vxpose.xlu0.b32.cont [14/16] 0.0, 128
    %6161 = vxpose.xlu0.b32.cont [15/16] 0.0, 128
    %6162 = vxpose.xlu0.b32.end [16/16] 0.0, 128
    %v6163 = vpop.trf.xlu0
    %v6164 = vpop.trf.xlu0
    %v6165 = vpop.trf.xlu0
    %v6166 = vpop.trf.xlu0
    %v6167 = vpop.trf.xlu0
    %v6168 = vpop.trf.xlu0
    %v6169 = vpop.trf.xlu0
    %v6170 = vpop.trf.xlu0
    %v6171 = vpop.trf.xlu0
    %v6172 = vpop.trf.xlu0
    %v6173 = vpop.trf.xlu0
    %v6174 = vpop.trf.xlu0
    %v6175 = vpop.trf.xlu0
    %v6176 = vpop.trf.xlu0
    %v6177 = vpop.trf.xlu0
    %v6178 = vpop.trf.xlu0
    %v6179 = vadd.f32 %v6142, %v6163
    %v6180 = vadd.f32 %v6145, %v6164
    %v6181 = vmul.f32 %v6179, 0.5
    %v6182 = vmul.f32 %v6180, 0.5
    %v6183 = vmul.f32 %v4672, %v2530
    %v6184 = vmul.f32 %v4673, %v2532
    %v6185 = vadd.f32 %v6183, %v2538
    %v6186 = vadd.f32 %v6184, %v2540
    %6189 = vrot.lane.b32.xlu0 %v6185, 96
    %v6190 = vpop.permute.xlu0 %6189
    %6191 = vrot.lane.b32.xlu0 %v6186, 96
    %v6192 = vpop.permute.xlu0 %6191
    %v6195 = vsel %vm223, %v6190, 0.0
    %6196 = vadd.xlane.f32.xlu0 %v6195
    %v6197 = vpop.xlane.xlu0 %6196
    %v6198 = vsel %vm223, %v6192, 0.0
    %6199 = vadd.xlane.f32.xlu0 %v6198
    %v6200 = vpop.xlane.xlu0 %6199
    %v6201 = vmax.f32 %v6197, 1.0
    %v6202 = vmax.f32 %v6200, 1.0
    %v6203 = vrsqrt.pop %v6201
    %v6204 = vmul.f32 %v6203, %v6201
    %v6205 = vmul.f32 %v6204, %v6203
    %v6206 = vmul.f32 0.5, %v6205
    %v6207 = vsub.f32 1.5, %v6206
    %v6208 = vmul.f32 %v6203, %v6207
    %vm6209 = vweird.f32 %v6201
    %vm6210 = vweird.f32 %v6203
    %vm6211 = vmor %vm6209, %vm6210
    %v6212 = vsel %vm6211, %v6203, %v6208
    %v6213 = vrsqrt.pop %v6202
    %v6214 = vmul.f32 %v6213, %v6202
    %v6215 = vmul.f32 %v6214, %v6213
    %v6216 = vmul.f32 0.5, %v6215
    %v6217 = vsub.f32 1.5, %v6216
    %v6218 = vmul.f32 %v6213, %v6217
    %vm6219 = vweird.f32 %v6202
    %vm6220 = vweird.f32 %v6213
    %vm6221 = vmor %vm6219, %vm6220
    %v6222 = vsel %vm6221, %v6213, %v6218
    %v6223 = vmul.f32 %v4761, %v6212
    %v6224 = vmul.f32 %v4764, %v6222
    %6227 = vrot.lane.b32.xlu0 %v6223, 80
    %v6228 = vpop.permute.xlu0 %6227
    %6229 = vrot.lane.b32.xlu0 %v6224, 80
    %v6230 = vpop.permute.xlu0 %6229
    %v6233 = vsel %vm223, %v6190, 0
    %v6235 = vsel %vm223, %v6192, 0
    %6237 = vmatpush.msra.mxu0 0.0
    %6238 = vmatpush.msra.mxu0 0.0
    %6239 = vmatpush.msra.mxu0 0.0
    %6240 = vmatpush.msra.mxu0 0.0
    %6241 = vmatpush.msra.mxu0 0.0
    %6242 = vmatpush.msra.mxu0 0.0
    %6243 = vmatpush.msra.mxu0 0.0
    %6244 = vmatpush.msra.mxu0 0.0
    %6245 = vmatpush.msra.mxu0 0.0
    %6246 = vmatpush.msra.mxu0 0.0
    %6247 = vmatpush.msra.mxu0 0.0
    %6248 = vmatpush.msra.mxu0 0.0
    %6249 = vmatpush.msra.mxu0 0.0
    %6250 = vmatpush.msra.mxu0 0.0
    %6251 = vmatpush.msra.mxu0 %v6230
    %6252 = vmatpush.msra.mxu0 %v6228
    %6253 = vmatmul.f32.gmra.mxu0 %v6233
    %v6254 = vpop.f32.mrf.mxu0
    %v6255 = vadd.f32 0.0, %v6254
    %6256 = vmatmul.f32.gmra.mxu0 %v6235
    %v6257 = vpop.f32.mrf.mxu0
    %v6258 = vadd.f32 0.0, %v6257
    %6259 = vdwg.mxu0
    %v6260 = vmul.f32 %v6255, %v6212
    %v6261 = vmul.f32 %v6258, %v6222
    %v6262 = vadd.f32 %v6260, %v5293
    %v6263 = vadd.f32 %v6261, %v5293
    %v6264 = vmul.f32 %v6262, %v431
    %v6265 = vmul.f32 %v6263, %v431
    %v6266 = vmul.f32 %v6262, %v437
    %v6267 = vmul.f32 %v6263, %v437
    %v6268 = vmul.f32 %v6262, %v443
    %v6269 = vmul.f32 %v6263, %v443
    %v6270 = vmul.f32 %v6262, %v449
    %v6271 = vmul.f32 %v6263, %v449
    %6280 = vrot.lane.b32.xlu0 %v6264, 120
    %v6281 = vpop.permute.xlu0 %6280
    %6282 = vrot.lane.b32.xlu0 %v6265, 120
    %v6283 = vpop.permute.xlu0 %6282
    %6284 = vrot.lane.b32.xlu0 %v6266, 120
    %v6285 = vpop.permute.xlu0 %6284
    %6286 = vrot.lane.b32.xlu0 %v6267, 120
    %v6287 = vpop.permute.xlu0 %6286
    %6288 = vrot.lane.b32.xlu0 %v6268, 120
    %v6289 = vpop.permute.xlu0 %6288
    %6290 = vrot.lane.b32.xlu0 %v6269, 120
    %v6291 = vpop.permute.xlu0 %6290
    %6292 = vrot.lane.b32.xlu0 %v6270, 120
    %v6293 = vpop.permute.xlu0 %6292
    %6294 = vrot.lane.b32.xlu0 %v6271, 120
    %v6295 = vpop.permute.xlu0 %6294
    %v6297 = vsel %vm477, %v6262, 0
    %v6300 = vsel %vm477, %v6263, 0
    %v6302 = vsel %vm477, %v6281, 0
    %v6304 = vsel %vm477, %v6283, 0
    %v6306 = vsel %vm477, %v6285, 0
    %v6308 = vsel %vm477, %v6287, 0
    %v6310 = vsel %vm477, %v6289, 0
    %v6312 = vsel %vm477, %v6291, 0
    %v6314 = vsel %vm477, %v6293, 0
    %v6316 = vsel %vm477, %v6295, 0
    %6318 = vmatpush.xpose.msra.mxu0 0.0
    %6319 = vmatpush.xpose.msra.mxu0 0.0
    %6320 = vmatpush.xpose.msra.mxu0 0.0
    %6321 = vmatpush.xpose.msra.mxu0 0.0
    %6322 = vmatpush.xpose.msra.mxu0 0.0
    %6323 = vmatpush.xpose.msra.mxu0 0.0
    %6324 = vmatpush.xpose.msra.mxu0 0.0
    %6325 = vmatpush.xpose.msra.mxu0 0.0
    %6326 = vmatpush.xpose.msra.mxu0 %v6316
    %6327 = vmatpush.xpose.msra.mxu0 %v6314
    %6328 = vmatpush.xpose.msra.mxu0 %v6312
    %6329 = vmatpush.xpose.msra.mxu0 %v6310
    %6330 = vmatpush.xpose.msra.mxu0 %v6308
    %6331 = vmatpush.xpose.msra.mxu0 %v6306
    %6332 = vmatpush.xpose.msra.mxu0 %v6304
    %6333 = vmatpush.xpose.msra.mxu0 %v6302
    %6334 = vmatmul.f32.gmra.mxu0 %v6297
    %v6335 = vpop.f32.mrf.mxu0
    %v6336 = vadd.f32 0.0, %v6335
    %6337 = vmatmul.f32.gmra.mxu0 %v6300
    %v6338 = vpop.f32.mrf.mxu0
    %v6339 = vadd.f32 0.0, %v6338
    %6340 = vdwg.mxu0
    %v6341 = vmul.f32 %v6336, 0.35355338
    %v6342 = vmul.f32 %v6339, 0.35355338
    %v6343 = vtanh.pop %v6341
    %v6344 = vtanh.pop %v6342
    %v6346 = vsel %vm527, %v6343, 0
    %v6349 = vsel %vm527, %v6344, 0
    %6351 = vmatpush.msra.mxu0 0.0
    %6352 = vmatpush.msra.mxu0 0.0
    %6353 = vmatpush.msra.mxu0 0.0
    %6354 = vmatpush.msra.mxu0 0.0
    %6355 = vmatpush.msra.mxu0 0.0
    %6356 = vmatpush.msra.mxu0 0.0
    %6357 = vmatpush.msra.mxu0 0.0
    %6358 = vmatpush.msra.mxu0 0.0
    %6359 = vmatpush.msra.mxu0 %v220
    %6360 = vmatpush.msra.mxu0 %v219
    %6361 = vmatpush.msra.mxu0 %v220
    %6362 = vmatpush.msra.mxu0 %v219
    %6363 = vmatpush.msra.mxu0 %v220
    %6364 = vmatpush.msra.mxu0 %v219
    %6365 = vmatpush.msra.mxu0 %v220
    %6366 = vmatpush.msra.mxu0 %v219
    %6367 = vmatmul.f32.gmra.mxu0 %v6346
    %v6368 = vpop.f32.mrf.mxu0
    %v6369 = vadd.f32 0.0, %v6368
    %6370 = vmatmul.f32.gmra.mxu0 %v6349
    %v6371 = vpop.f32.mrf.mxu0
    %v6372 = vadd.f32 0.0, %v6371
    %6373 = vdwg.mxu0
    %6374 = vxpose.xlu0.b32.start [1/16] %v6369, 128
    %6375 = vxpose.xlu0.b32.cont [2/16] %v6372, 128
    %6376 = vxpose.xlu0.b32.cont [3/16] 0.0, 128
    %6377 = vxpose.xlu0.b32.cont [4/16] 0.0, 128
    %6378 = vxpose.xlu0.b32.cont [5/16] 0.0, 128
    %6379 = vxpose.xlu0.b32.cont [6/16] 0.0, 128
    %6380 = vxpose.xlu0.b32.cont [7/16] 0.0, 128
    %6381 = vxpose.xlu0.b32.cont [8/16] 0.0, 128
    %6382 = vxpose.xlu0.b32.cont [9/16] 0.0, 128
    %6383 = vxpose.xlu0.b32.cont [10/16] 0.0, 128
    %6384 = vxpose.xlu0.b32.cont [11/16] 0.0, 128
    %6385 = vxpose.xlu0.b32.cont [12/16] 0.0, 128
    %6386 = vxpose.xlu0.b32.cont [13/16] 0.0, 128
    %6387 = vxpose.xlu0.b32.cont [14/16] 0.0, 128
    %6388 = vxpose.xlu0.b32.cont [15/16] 0.0, 128
    %6389 = vxpose.xlu0.b32.end [16/16] 0.0, 128
    %v6390 = vpop.trf.xlu0
    %v6391 = vpop.trf.xlu0
    %v6392 = vpop.trf.xlu0
    %v6393 = vpop.trf.xlu0
    %v6394 = vpop.trf.xlu0
    %v6395 = vpop.trf.xlu0
    %v6396 = vpop.trf.xlu0
    %v6397 = vpop.trf.xlu0
    %v6398 = vpop.trf.xlu0
    %v6399 = vpop.trf.xlu0
    %v6400 = vpop.trf.xlu0
    %v6401 = vpop.trf.xlu0
    %v6402 = vpop.trf.xlu0
    %v6403 = vpop.trf.xlu0
    %v6404 = vpop.trf.xlu0
    %v6405 = vpop.trf.xlu0
    %v6406 = vadd.f32 %v6369, %v6390
    %v6407 = vadd.f32 %v6372, %v6391
    %v6408 = vmul.f32 %v6406, 0.5
    %v6409 = vmul.f32 %v6407, 0.5
    %v6410 = vmul.f32 %v4722, %v2772
    %v6411 = vmul.f32 %v4723, %v2774
    %v6412 = vadd.f32 %v6410, %v2780
    %v6413 = vadd.f32 %v6411, %v2782
    %6416 = vrot.lane.b32.xlu0 %v6412, 80
    %v6417 = vpop.permute.xlu0 %6416
    %6418 = vrot.lane.b32.xlu0 %v6413, 80
    %v6419 = vpop.permute.xlu0 %6418
    %v6422 = vsel %vm223, %v6417, 0.0
    %6423 = vadd.xlane.f32.xlu0 %v6422
    %v6424 = vpop.xlane.xlu0 %6423
    %v6425 = vsel %vm223, %v6419, 0.0
    %6426 = vadd.xlane.f32.xlu0 %v6425
    %v6427 = vpop.xlane.xlu0 %6426
    %v6428 = vmax.f32 %v6424, 1.0
    %v6429 = vmax.f32 %v6427, 1.0
    %v6430 = vrsqrt.pop %v6428
    %v6431 = vmul.f32 %v6430, %v6428
    %v6432 = vmul.f32 %v6431, %v6430
    %v6433 = vmul.f32 0.5, %v6432
    %v6434 = vsub.f32 1.5, %v6433
    %v6435 = vmul.f32 %v6430, %v6434
    %vm6436 = vweird.f32 %v6428
    %vm6437 = vweird.f32 %v6430
    %vm6438 = vmor %vm6436, %vm6437
    %v6439 = vsel %vm6438, %v6430, %v6435
    %v6440 = vrsqrt.pop %v6429
    %v6441 = vmul.f32 %v6440, %v6429
    %v6442 = vmul.f32 %v6441, %v6440
    %v6443 = vmul.f32 0.5, %v6442
    %v6444 = vsub.f32 1.5, %v6443
    %v6445 = vmul.f32 %v6440, %v6444
    %vm6446 = vweird.f32 %v6429
    %vm6447 = vweird.f32 %v6440
    %vm6448 = vmor %vm6446, %vm6447
    %v6449 = vsel %vm6448, %v6440, %v6445
    %v6450 = vmul.f32 %v4761, %v6439
    %v6451 = vmul.f32 %v4764, %v6449
    %6454 = vrot.lane.b32.xlu0 %v6450, 56
    %v6455 = vpop.permute.xlu0 %6454
    %6456 = vrot.lane.b32.xlu0 %v6451, 56
    %v6457 = vpop.permute.xlu0 %6456
    %v6460 = vsel %vm223, %v6417, 0
    %v6462 = vsel %vm223, %v6419, 0
    %6464 = vmatpush.msra.mxu0 0.0
    %6465 = vmatpush.msra.mxu0 0.0
    %6466 = vmatpush.msra.mxu0 0.0
    %6467 = vmatpush.msra.mxu0 0.0
    %6468 = vmatpush.msra.mxu0 0.0
    %6469 = vmatpush.msra.mxu0 0.0
    %6470 = vmatpush.msra.mxu0 0.0
    %6471 = vmatpush.msra.mxu0 0.0
    %6472 = vmatpush.msra.mxu0 0.0
    %6473 = vmatpush.msra.mxu0 0.0
    %6474 = vmatpush.msra.mxu0 0.0
    %6475 = vmatpush.msra.mxu0 0.0
    %6476 = vmatpush.msra.mxu0 0.0
    %6477 = vmatpush.msra.mxu0 0.0
    %6478 = vmatpush.msra.mxu0 %v6457
    %6479 = vmatpush.msra.mxu0 %v6455
    %6480 = vmatmul.f32.gmra.mxu0 %v6460
    %v6481 = vpop.f32.mrf.mxu0
    %v6482 = vadd.f32 0.0, %v6481
    %6483 = vmatmul.f32.gmra.mxu0 %v6462
    %v6484 = vpop.f32.mrf.mxu0
    %v6485 = vadd.f32 0.0, %v6484
    %6486 = vdwg.mxu0
    %v6487 = vmul.f32 %v6482, %v6439
    %v6488 = vmul.f32 %v6485, %v6449
    %v6489 = vadd.f32 %v6487, %v5523
    %v6490 = vadd.f32 %v6488, %v5523
    %v6491 = vmul.f32 %v6489, %v431
    %v6492 = vmul.f32 %v6490, %v431
    %v6493 = vmul.f32 %v6489, %v437
    %v6494 = vmul.f32 %v6490, %v437
    %v6495 = vmul.f32 %v6489, %v443
    %v6496 = vmul.f32 %v6490, %v443
    %v6497 = vmul.f32 %v6489, %v449
    %v6498 = vmul.f32 %v6490, %v449
    %6507 = vrot.lane.b32.xlu0 %v6491, 120
    %v6508 = vpop.permute.xlu0 %6507
    %6509 = vrot.lane.b32.xlu0 %v6492, 120
    %v6510 = vpop.permute.xlu0 %6509
    %6511 = vrot.lane.b32.xlu0 %v6493, 120
    %v6512 = vpop.permute.xlu0 %6511
    %6513 = vrot.lane.b32.xlu0 %v6494, 120
    %v6514 = vpop.permute.xlu0 %6513
    %6515 = vrot.lane.b32.xlu0 %v6495, 120
    %v6516 = vpop.permute.xlu0 %6515
    %6517 = vrot.lane.b32.xlu0 %v6496, 120
    %v6518 = vpop.permute.xlu0 %6517
    %6519 = vrot.lane.b32.xlu0 %v6497, 120
    %v6520 = vpop.permute.xlu0 %6519
    %6521 = vrot.lane.b32.xlu0 %v6498, 120
    %v6522 = vpop.permute.xlu0 %6521
    %v6524 = vsel %vm477, %v6489, 0
    %v6527 = vsel %vm477, %v6490, 0
    %v6529 = vsel %vm477, %v6508, 0
    %v6531 = vsel %vm477, %v6510, 0
    %v6533 = vsel %vm477, %v6512, 0
    %v6535 = vsel %vm477, %v6514, 0
    %v6537 = vsel %vm477, %v6516, 0
    %v6539 = vsel %vm477, %v6518, 0
    %v6541 = vsel %vm477, %v6520, 0
    %v6543 = vsel %vm477, %v6522, 0
    %6545 = vmatpush.xpose.msra.mxu0 0.0
    %6546 = vmatpush.xpose.msra.mxu0 0.0
    %6547 = vmatpush.xpose.msra.mxu0 0.0
    %6548 = vmatpush.xpose.msra.mxu0 0.0
    %6549 = vmatpush.xpose.msra.mxu0 0.0
    %6550 = vmatpush.xpose.msra.mxu0 0.0
    %6551 = vmatpush.xpose.msra.mxu0 0.0
    %6552 = vmatpush.xpose.msra.mxu0 0.0
    %6553 = vmatpush.xpose.msra.mxu0 %v6543
    %6554 = vmatpush.xpose.msra.mxu0 %v6541
    %6555 = vmatpush.xpose.msra.mxu0 %v6539
    %6556 = vmatpush.xpose.msra.mxu0 %v6537
    %6557 = vmatpush.xpose.msra.mxu0 %v6535
    %6558 = vmatpush.xpose.msra.mxu0 %v6533
    %6559 = vmatpush.xpose.msra.mxu0 %v6531
    %6560 = vmatpush.xpose.msra.mxu0 %v6529
    %6561 = vmatmul.f32.gmra.mxu0 %v6524
    %v6562 = vpop.f32.mrf.mxu0
    %v6563 = vadd.f32 0.0, %v6562
    %6564 = vmatmul.f32.gmra.mxu0 %v6527
    %v6565 = vpop.f32.mrf.mxu0
    %v6566 = vadd.f32 0.0, %v6565
    %6567 = vdwg.mxu0
    %v6568 = vmul.f32 %v6563, 0.35355338
    %v6569 = vmul.f32 %v6566, 0.35355338
    %v6570 = vtanh.pop %v6568
    %v6571 = vtanh.pop %v6569
    %v6573 = vsel %vm527, %v6570, 0
    %v6576 = vsel %vm527, %v6571, 0
    %6578 = vmatpush.msra.mxu0 0.0
    %6579 = vmatpush.msra.mxu0 0.0
    %6580 = vmatpush.msra.mxu0 0.0
    %6581 = vmatpush.msra.mxu0 0.0
    %6582 = vmatpush.msra.mxu0 0.0
    %6583 = vmatpush.msra.mxu0 0.0
    %6584 = vmatpush.msra.mxu0 0.0
    %6585 = vmatpush.msra.mxu0 0.0
    %6586 = vmatpush.msra.mxu0 %v220
    %6587 = vmatpush.msra.mxu0 %v219
    %6588 = vmatpush.msra.mxu0 %v220
    %6589 = vmatpush.msra.mxu0 %v219
    %6590 = vmatpush.msra.mxu0 %v220
    %6591 = vmatpush.msra.mxu0 %v219
    %6592 = vmatpush.msra.mxu0 %v220
    %6593 = vmatpush.msra.mxu0 %v219
    %6594 = vmatmul.f32.gmra.mxu0 %v6573
    %v6595 = vpop.f32.mrf.mxu0
    %v6596 = vadd.f32 0.0, %v6595
    %6597 = vmatmul.f32.gmra.mxu0 %v6576
    %v6598 = vpop.f32.mrf.mxu0
    %v6599 = vadd.f32 0.0, %v6598
    %6600 = vdwg.mxu0
    %6601 = vxpose.xlu0.b32.start [1/16] %v6596, 128
    %6602 = vxpose.xlu0.b32.cont [2/16] %v6599, 128
    %6603 = vxpose.xlu0.b32.cont [3/16] 0.0, 128
    %6604 = vxpose.xlu0.b32.cont [4/16] 0.0, 128
    %6605 = vxpose.xlu0.b32.cont [5/16] 0.0, 128
    %6606 = vxpose.xlu0.b32.cont [6/16] 0.0, 128
    %6607 = vxpose.xlu0.b32.cont [7/16] 0.0, 128
    %6608 = vxpose.xlu0.b32.cont [8/16] 0.0, 128
    %6609 = vxpose.xlu0.b32.cont [9/16] 0.0, 128
    %6610 = vxpose.xlu0.b32.cont [10/16] 0.0, 128
    %6611 = vxpose.xlu0.b32.cont [11/16] 0.0, 128
    %6612 = vxpose.xlu0.b32.cont [12/16] 0.0, 128
    %6613 = vxpose.xlu0.b32.cont [13/16] 0.0, 128
    %6614 = vxpose.xlu0.b32.cont [14/16] 0.0, 128
    %6615 = vxpose.xlu0.b32.cont [15/16] 0.0, 128
    %6616 = vxpose.xlu0.b32.end [16/16] 0.0, 128
    %v6617 = vpop.trf.xlu0
    %v6618 = vpop.trf.xlu0
    %v6619 = vpop.trf.xlu0
    %v6620 = vpop.trf.xlu0
    %v6621 = vpop.trf.xlu0
    %v6622 = vpop.trf.xlu0
    %v6623 = vpop.trf.xlu0
    %v6624 = vpop.trf.xlu0
    %v6625 = vpop.trf.xlu0
    %v6626 = vpop.trf.xlu0
    %v6627 = vpop.trf.xlu0
    %v6628 = vpop.trf.xlu0
    %v6629 = vpop.trf.xlu0
    %v6630 = vpop.trf.xlu0
    %v6631 = vpop.trf.xlu0
    %v6632 = vpop.trf.xlu0
    %v6633 = vadd.f32 %v6596, %v6617
    %v6634 = vadd.f32 %v6599, %v6618
    %v6635 = vmul.f32 %v6633, 0.5
    %v6636 = vmul.f32 %v6634, 0.5
    %6639 = vrot.lane.b32.xlu0 %v6181, 16
    %v6640 = vpop.permute.xlu0 %6639
    %6641 = vrot.lane.b32.xlu0 %v6182, 16
    %v6642 = vpop.permute.xlu0 %6641
    %6647 = vrot.lane.b32.xlu0 %v6408, 32
    %v6648 = vpop.permute.xlu0 %6647
    %6649 = vrot.lane.b32.xlu0 %v6409, 32
    %v6650 = vpop.permute.xlu0 %6649
    %6655 = vrot.lane.b32.xlu0 %v6635, 48
    %v6656 = vpop.permute.xlu0 %6655
    %6657 = vrot.lane.b32.xlu0 %v6636, 48
    %v6658 = vpop.permute.xlu0 %6657
    %6663 = vrot.lane.b32.xlu0 %v4570, 64
    %v6664 = vpop.permute.xlu0 %6663
    %6665 = vrot.lane.b32.xlu0 %v4571, 64
    %v6666 = vpop.permute.xlu0 %6665
    %6671 = vrot.lane.b32.xlu0 %v4622, 64
    %v6672 = vpop.permute.xlu0 %6671
    %6673 = vrot.lane.b32.xlu0 %v4623, 64
    %v6674 = vpop.permute.xlu0 %6673
    %6679 = vrot.lane.b32.xlu0 %v4672, 64
    %v6680 = vpop.permute.xlu0 %6679
    %6681 = vrot.lane.b32.xlu0 %v4673, 64
    %v6682 = vpop.permute.xlu0 %6681
    %6687 = vrot.lane.b32.xlu0 %v4722, 64
    %v6688 = vpop.permute.xlu0 %6687
    %6689 = vrot.lane.b32.xlu0 %v4723, 64
    %v6690 = vpop.permute.xlu0 %6689
    %v6693 = vsel %vm223, %v5954, %v6640
    %v6694 = vsel %vm223, %v5955, %v6642
    %v6695 = vsel %vm855, %v6693, %v6648
    %v6696 = vsel %vm855, %v6694, %v6650
    %v6697 = vsel %vm858, %v6695, %v6656
    %v6698 = vsel %vm858, %v6696, %v6658
    %v6699 = vsel %vm527, %v6697, %v6664
    %v6700 = vsel %vm527, %v6698, %v6666
    %v6701 = vsel %vm3102, %v6699, %v6672
    %v6702 = vsel %vm3102, %v6700, %v6674
    %v6703 = vsel %vm3105, %v6701, %v6680
    %v6704 = vsel %vm3105, %v6702, %v6682
    %v6705 = vsel %vm3108, %v6703, %v6688
    %v6706 = vsel %vm3108, %v6704, %v6690
    %v6707 = vld [vmem:[%s65] sm:$0xff]
    %v6708 = vld [vmem:[%s65 + $0x8] sm:$0xff]
    %v6709 = vld [vmem:[%s65 + $0x10] sm:$0xff]
    %v6710 = vld [vmem:[%s65 + $0x18] sm:$0xff]
    %v6711 = vld [vmem:[%s65 + $0x20] sm:$0xff]
    %v6712 = vld [vmem:[%s65 + $0x28] sm:$0xff]
    %v6713 = vld [vmem:[%s65 + $0x30] sm:$0xff]
    %v6714 = vld [vmem:[%s65 + $0x38] sm:$0xff]
    %v6715 = vld [vmem:[%s65 + $0x40] sm:$0xff]
    %v6716 = vld [vmem:[%s65 + $0x48] sm:$0xff]
    %v6717 = vld [vmem:[%s65 + $0x50] sm:$0xff]
    %v6718 = vld [vmem:[%s65 + $0x58] sm:$0xff]
    %v6719 = vld [vmem:[%s65 + $0x60] sm:$0xff]
    %v6720 = vld [vmem:[%s65 + $0x68] sm:$0xff]
    %v6721 = vld [vmem:[%s65 + $0x70] sm:$0xff]
    %v6722 = vld [vmem:[%s65 + $0x78] sm:$0xff]
    %v6723 = vld [vmem:[%s69] sm:$0x1]
    %v6725 = vperm.slane %v6723, 0
    %6727 = vmatpush.msra.mxu0 %v6722
    %6728 = vmatpush.msra.mxu0 %v6721
    %6729 = vmatpush.msra.mxu0 %v6720
    %6730 = vmatpush.msra.mxu0 %v6719
    %6731 = vmatpush.msra.mxu0 %v6718
    %6732 = vmatpush.msra.mxu0 %v6717
    %6733 = vmatpush.msra.mxu0 %v6716
    %6734 = vmatpush.msra.mxu0 %v6715
    %6735 = vmatpush.msra.mxu0 %v6714
    %6736 = vmatpush.msra.mxu0 %v6713
    %6737 = vmatpush.msra.mxu0 %v6712
    %6738 = vmatpush.msra.mxu0 %v6711
    %6739 = vmatpush.msra.mxu0 %v6710
    %6740 = vmatpush.msra.mxu0 %v6709
    %6741 = vmatpush.msra.mxu0 %v6708
    %6742 = vmatpush.msra.mxu0 %v6707
    %6743 = vmatmul.f32.gmra.mxu0 %v5741
    %v6744 = vpop.f32.mrf.mxu0
    %v6745 = vadd.f32 %v6725, %v6744
    %6746 = vmatmul.f32.gmra.mxu0 %v5742
    %v6747 = vpop.f32.mrf.mxu0
    %v6748 = vadd.f32 %v6725, %v6747
    %6749 = vmatmul.f32.gmra.mxu0 %v6705
    %v6750 = vpop.f32.mrf.mxu0
    %v6751 = vadd.f32 %v6725, %v6750
    %6752 = vmatmul.f32.gmra.mxu0 %v6706
    %v6753 = vpop.f32.mrf.mxu0
    %v6754 = vadd.f32 %v6725, %v6753
    %6755 = vdwg.mxu0
    %vm6756 = vcmp.gt.f32.partialorder %v6745, 0.0
    %vm6757 = vcmp.gt.f32.partialorder %v6748, 0.0
    %vm6758 = vcmp.gt.f32.partialorder %v6751, 0.0
    %vm6759 = vcmp.gt.f32.partialorder %v6754, 0.0
    %v6760 = vmin.f32 %v6745, 0.0
    %v6761 = vmin.f32 %v6748, 0.0
    %v6762 = vmin.f32 %v6751, 0.0
    %v6763 = vmin.f32 %v6754, 0.0
    %v6764 = vmul.f32 %v6760, 1.442695
    %v6765 = vpow.pop %v6764
    %v6766 = vmul.f32 %v6761, 1.442695
    %v6767 = vpow.pop %v6766
    %v6768 = vmul.f32 %v6762, 1.442695
    %v6769 = vpow.pop %v6768
    %v6770 = vmul.f32 %v6763, 1.442695
    %v6771 = vpow.pop %v6770
    %v6772 = vsub.f32 %v6765, 1.0
    %v6773 = vsub.f32 %v6767, 1.0
    %v6774 = vsub.f32 %v6769, 1.0
    %v6775 = vsub.f32 %v6771, 1.0
    %v6776 = vsel %vm6756, %v6745, %v6772
    %v6777 = vsel %vm6757, %v6748, %v6773
    %v6778 = vsel %vm6758, %v6751, %v6774
    %v6779 = vsel %vm6759, %v6754, %v6775
    %v6780 = vld [vmem:[%s67] sm:$0xff]
    %v6781 = vld [vmem:[%s67 + $0x8] sm:$0xff]
    %v6782 = vld [vmem:[%s67 + $0x10] sm:$0xff]
    %v6783 = vld [vmem:[%s67 + $0x18] sm:$0xff]
    %v6784 = vld [vmem:[%s67 + $0x20] sm:$0xff]
    %v6785 = vld [vmem:[%s67 + $0x28] sm:$0xff]
    %v6786 = vld [vmem:[%s67 + $0x30] sm:$0xff]
    %v6787 = vld [vmem:[%s67 + $0x38] sm:$0xff]
    %v6788 = vld [vmem:[%s67 + $0x40] sm:$0xff]
    %v6789 = vld [vmem:[%s67 + $0x48] sm:$0xff]
    %v6790 = vld [vmem:[%s67 + $0x50] sm:$0xff]
    %v6791 = vld [vmem:[%s67 + $0x58] sm:$0xff]
    %v6792 = vld [vmem:[%s67 + $0x60] sm:$0xff]
    %v6793 = vld [vmem:[%s67 + $0x68] sm:$0xff]
    %v6794 = vld [vmem:[%s67 + $0x70] sm:$0xff]
    %v6795 = vld [vmem:[%s67 + $0x78] sm:$0xff]
    %v6796 = vld [vmem:[%s71] sm:$0x1]
    %v6798 = vperm.slane %v6796, 0
    %6800 = vmatpush.msra.mxu0 %v6795
    %6801 = vmatpush.msra.mxu0 %v6794
    %6802 = vmatpush.msra.mxu0 %v6793
    %6803 = vmatpush.msra.mxu0 %v6792
    %6804 = vmatpush.msra.mxu0 %v6791
    %6805 = vmatpush.msra.mxu0 %v6790
    %6806 = vmatpush.msra.mxu0 %v6789
    %6807 = vmatpush.msra.mxu0 %v6788
    %6808 = vmatpush.msra.mxu0 %v6787
    %6809 = vmatpush.msra.mxu0 %v6786
    %6810 = vmatpush.msra.mxu0 %v6785
    %6811 = vmatpush.msra.mxu0 %v6784
    %6812 = vmatpush.msra.mxu0 %v6783
    %6813 = vmatpush.msra.mxu0 %v6782
    %6814 = vmatpush.msra.mxu0 %v6781
    %6815 = vmatpush.msra.mxu0 %v6780
    %6816 = vmatmul.f32.gmra.mxu0 %v6776
    %v6817 = vpop.f32.mrf.mxu0
    %v6818 = vadd.f32 %v6798, %v6817
    %6819 = vmatmul.f32.gmra.mxu0 %v6777
    %v6820 = vpop.f32.mrf.mxu0
    %v6821 = vadd.f32 %v6798, %v6820
    %6822 = vmatmul.f32.gmra.mxu0 %v6778
    %v6823 = vpop.f32.mrf.mxu0
    %v6824 = vadd.f32 %v6798, %v6823
    %6825 = vmatmul.f32.gmra.mxu0 %v6779
    %v6826 = vpop.f32.mrf.mxu0
    %v6827 = vadd.f32 %v6798, %v6826
    %6828 = vdwg.mxu0
    %6829 = vxpose.xlu0.b32.start [1/16] %v6818, 128
    %6830 = vxpose.xlu0.b32.cont [2/16] %v6821, 128
    %6831 = vxpose.xlu0.b32.cont [3/16] 0.0, 128
    %6832 = vxpose.xlu0.b32.cont [4/16] 0.0, 128
    %6833 = vxpose.xlu0.b32.cont [5/16] 0.0, 128
    %6834 = vxpose.xlu0.b32.cont [6/16] 0.0, 128
    %6835 = vxpose.xlu0.b32.cont [7/16] 0.0, 128
    %6836 = vxpose.xlu0.b32.cont [8/16] 0.0, 128
    %6837 = vxpose.xlu0.b32.cont [9/16] 0.0, 128
    %6838 = vxpose.xlu0.b32.cont [10/16] 0.0, 128
    %6839 = vxpose.xlu0.b32.cont [11/16] 0.0, 128
    %6840 = vxpose.xlu0.b32.cont [12/16] 0.0, 128
    %6841 = vxpose.xlu0.b32.cont [13/16] 0.0, 128
    %6842 = vxpose.xlu0.b32.cont [14/16] 0.0, 128
    %6843 = vxpose.xlu0.b32.cont [15/16] 0.0, 128
    %6844 = vxpose.xlu0.b32.end [16/16] 0.0, 128
    %v6845 = vpop.trf.xlu0
    %v6846 = vpop.trf.xlu0
    %v6847 = vpop.trf.xlu0
    %v6848 = vpop.trf.xlu0
    %v6849 = vpop.trf.xlu0
    %v6850 = vpop.trf.xlu0
    %v6851 = vpop.trf.xlu0
    %v6852 = vpop.trf.xlu0
    %v6853 = vpop.trf.xlu0
    %v6854 = vpop.trf.xlu0
    %v6855 = vpop.trf.xlu0
    %v6856 = vpop.trf.xlu0
    %v6857 = vpop.trf.xlu0
    %v6858 = vpop.trf.xlu0
    %v6859 = vpop.trf.xlu0
    %v6860 = vpop.trf.xlu0
    %v6861 = vadd.f32 %v6818, %v6845
    %v6862 = vadd.f32 %v6821, %v6846
    %v6863 = vmul.f32 %v6861, %v215
    %v6864 = vmul.f32 %v6862, %v216
    %6867 = vrot.lane.b32.xlu0 %v6818, 112
    %v6868 = vpop.permute.xlu0 %6867
    %6869 = vrot.lane.b32.xlu0 %v6821, 112
    %v6870 = vpop.permute.xlu0 %6869
    %6873 = vxpose.xlu0.b32.start [1/16] %v6868, 128
    %6874 = vxpose.xlu0.b32.cont [2/16] %v6870, 128
    %6875 = vxpose.xlu0.b32.cont [3/16] 0.0, 128
    %6876 = vxpose.xlu0.b32.cont [4/16] 0.0, 128
    %6877 = vxpose.xlu0.b32.cont [5/16] 0.0, 128
    %6878 = vxpose.xlu0.b32.cont [6/16] 0.0, 128
    %6879 = vxpose.xlu0.b32.cont [7/16] 0.0, 128
    %6880 = vxpose.xlu0.b32.cont [8/16] 0.0, 128
    %6881 = vxpose.xlu0.b32.cont [9/16] 0.0, 128
    %6882 = vxpose.xlu0.b32.cont [10/16] 0.0, 128
    %6883 = vxpose.xlu0.b32.cont [11/16] 0.0, 128
    %6884 = vxpose.xlu0.b32.cont [12/16] 0.0, 128
    %6885 = vxpose.xlu0.b32.cont [13/16] 0.0, 128
    %6886 = vxpose.xlu0.b32.cont [14/16] 0.0, 128
    %6887 = vxpose.xlu0.b32.cont [15/16] 0.0, 128
    %6888 = vxpose.xlu0.b32.end [16/16] 0.0, 128
    %v6889 = vpop.trf.xlu0
    %v6890 = vpop.trf.xlu0
    %v6891 = vpop.trf.xlu0
    %v6892 = vpop.trf.xlu0
    %v6893 = vpop.trf.xlu0
    %v6894 = vpop.trf.xlu0
    %v6895 = vpop.trf.xlu0
    %v6896 = vpop.trf.xlu0
    %v6897 = vpop.trf.xlu0
    %v6898 = vpop.trf.xlu0
    %v6899 = vpop.trf.xlu0
    %v6900 = vpop.trf.xlu0
    %v6901 = vpop.trf.xlu0
    %v6902 = vpop.trf.xlu0
    %v6903 = vpop.trf.xlu0
    %v6904 = vpop.trf.xlu0
    %6907 = vrot.lane.b32.xlu0 %v6889, 16
    %v6908 = vpop.permute.xlu0 %6907
    %6909 = vrot.lane.b32.xlu0 %v6890, 16
    %v6910 = vpop.permute.xlu0 %6909
    %v6913 = vadd.f32 %v6818, %v6908
    %v6914 = vadd.f32 %v6821, %v6910
    %v6915 = vmul.f32 %v6913, %v1697
    %v6916 = vmul.f32 %v6914, %v1699
    %6917 = vxpose.xlu0.b32.start [1/16] %v6824, 128
    %6918 = vxpose.xlu0.b32.cont [2/16] %v6827, 128
    %6919 = vxpose.xlu0.b32.cont [3/16] 0.0, 128
    %6920 = vxpose.xlu0.b32.cont [4/16] 0.0, 128
    %6921 = vxpose.xlu0.b32.cont [5/16] 0.0, 128
    %6922 = vxpose.xlu0.b32.cont [6/16] 0.0, 128
    %6923 = vxpose.xlu0.b32.cont [7/16] 0.0, 128
    %6924 = vxpose.xlu0.b32.cont [8/16] 0.0, 128
    %6925 = vxpose.xlu0.b32.cont [9/16] 0.0, 128
    %6926 = vxpose.xlu0.b32.cont [10/16] 0.0, 128
    %6927 = vxpose.xlu0.b32.cont [11/16] 0.0, 128
    %6928 = vxpose.xlu0.b32.cont [12/16] 0.0, 128
    %6929 = vxpose.xlu0.b32.cont [13/16] 0.0, 128
    %6930 = vxpose.xlu0.b32.cont [14/16] 0.0, 128
    %6931 = vxpose.xlu0.b32.cont [15/16] 0.0, 128
    %6932 = vxpose.xlu0.b32.end [16/16] 0.0, 128
    %v6933 = vpop.trf.xlu0
    %v6934 = vpop.trf.xlu0
    %v6935 = vpop.trf.xlu0
    %v6936 = vpop.trf.xlu0
    %v6937 = vpop.trf.xlu0
    %v6938 = vpop.trf.xlu0
    %v6939 = vpop.trf.xlu0
    %v6940 = vpop.trf.xlu0
    %v6941 = vpop.trf.xlu0
    %v6942 = vpop.trf.xlu0
    %v6943 = vpop.trf.xlu0
    %v6944 = vpop.trf.xlu0
    %v6945 = vpop.trf.xlu0
    %v6946 = vpop.trf.xlu0
    %v6947 = vpop.trf.xlu0
    %v6948 = vpop.trf.xlu0
    %v6949 = vadd.f32 %v6824, %v6933
    %v6950 = vadd.f32 %v6827, %v6934
    %v6951 = vmul.f32 %v6949, %v217
    %v6952 = vmul.f32 %v6950, %v218
    %6955 = vrot.lane.b32.xlu0 %v6824, 112
    %v6956 = vpop.permute.xlu0 %6955
    %6957 = vrot.lane.b32.xlu0 %v6827, 112
    %v6958 = vpop.permute.xlu0 %6957
    %6961 = vxpose.xlu0.b32.start [1/16] %v6956, 128
    %6962 = vxpose.xlu0.b32.cont [2/16] %v6958, 128
    %6963 = vxpose.xlu0.b32.cont [3/16] 0.0, 128
    %6964 = vxpose.xlu0.b32.cont [4/16] 0.0, 128
    %6965 = vxpose.xlu0.b32.cont [5/16] 0.0, 128
    %6966 = vxpose.xlu0.b32.cont [6/16] 0.0, 128
    %6967 = vxpose.xlu0.b32.cont [7/16] 0.0, 128
    %6968 = vxpose.xlu0.b32.cont [8/16] 0.0, 128
    %6969 = vxpose.xlu0.b32.cont [9/16] 0.0, 128
    %6970 = vxpose.xlu0.b32.cont [10/16] 0.0, 128
    %6971 = vxpose.xlu0.b32.cont [11/16] 0.0, 128
    %6972 = vxpose.xlu0.b32.cont [12/16] 0.0, 128
    %6973 = vxpose.xlu0.b32.cont [13/16] 0.0, 128
    %6974 = vxpose.xlu0.b32.cont [14/16] 0.0, 128
    %6975 = vxpose.xlu0.b32.cont [15/16] 0.0, 128
    %6976 = vxpose.xlu0.b32.end [16/16] 0.0, 128
    %v6977 = vpop.trf.xlu0
    %v6978 = vpop.trf.xlu0
    %v6979 = vpop.trf.xlu0
    %v6980 = vpop.trf.xlu0
    %v6981 = vpop.trf.xlu0
    %v6982 = vpop.trf.xlu0
    %v6983 = vpop.trf.xlu0
    %v6984 = vpop.trf.xlu0
    %v6985 = vpop.trf.xlu0
    %v6986 = vpop.trf.xlu0
    %v6987 = vpop.trf.xlu0
    %v6988 = vpop.trf.xlu0
    %v6989 = vpop.trf.xlu0
    %v6990 = vpop.trf.xlu0
    %v6991 = vpop.trf.xlu0
    %v6992 = vpop.trf.xlu0
    %6995 = vrot.lane.b32.xlu0 %v6977, 16
    %v6996 = vpop.permute.xlu0 %6995
    %6997 = vrot.lane.b32.xlu0 %v6978, 16
    %v6998 = vpop.permute.xlu0 %6997
    %v7001 = vadd.f32 %v6824, %v6996
    %v7002 = vadd.f32 %v6827, %v6998
    %v7003 = vmul.f32 %v7001, %v1905
    %v7004 = vmul.f32 %v7002, %v1907
    %7005 = vrot.lane.b32.xlu0 %v248, 16
    %v7006 = vpop.permute.xlu0 %7005
    %7007 = vrot.lane.b32.xlu0 %v251, 16
    %v7008 = vpop.permute.xlu0 %7007
    %7011 = vrot.lane.b32.xlu0 %v1642, 32
    %v7012 = vpop.permute.xlu0 %7011
    %7013 = vrot.lane.b32.xlu0 %v1643, 32
    %v7014 = vpop.permute.xlu0 %7013
    %7017 = vrot.lane.b32.xlu0 %v1702, 32
    %v7018 = vpop.permute.xlu0 %7017
    %7019 = vrot.lane.b32.xlu0 %v1703, 32
    %v7020 = vpop.permute.xlu0 %7019
    %7023 = vrot.lane.b32.xlu0 %v1758, 32
    %v7024 = vpop.permute.xlu0 %7023
    %7025 = vrot.lane.b32.xlu0 %v1759, 32
    %v7026 = vpop.permute.xlu0 %7025
    %7029 = vrot.lane.b32.xlu0 %v1814, 32
    %v7030 = vpop.permute.xlu0 %7029
    %7031 = vrot.lane.b32.xlu0 %v1815, 32
    %v7032 = vpop.permute.xlu0 %7031
    %7035 = vrot.lane.b32.xlu0 %v4382, 96
    %v7036 = vpop.permute.xlu0 %7035
    %7037 = vrot.lane.b32.xlu0 %v4383, 96
    %v7038 = vpop.permute.xlu0 %7037
    %7041 = vrot.lane.b32.xlu0 %v4434, 96
    %v7042 = vpop.permute.xlu0 %7041
    %7043 = vrot.lane.b32.xlu0 %v4435, 96
    %v7044 = vpop.permute.xlu0 %7043
    %7047 = vrot.lane.b32.xlu0 %v4484, 96
    %v7048 = vpop.permute.xlu0 %7047
    %7049 = vrot.lane.b32.xlu0 %v4485, 96
    %v7050 = vpop.permute.xlu0 %7049
    %7053 = vrot.lane.b32.xlu0 %v4534, 96
    %v7054 = vpop.permute.xlu0 %7053
    %7055 = vrot.lane.b32.xlu0 %v4535, 96
    %v7056 = vpop.permute.xlu0 %7055
    %7061 = vrot.lane.b32.xlu0 %v6863, 32
    %v7062 = vpop.permute.xlu0 %7061
    %7063 = vrot.lane.b32.xlu0 %v6864, 32
    %v7064 = vpop.permute.xlu0 %7063
    %7069 = vrot.lane.b32.xlu0 %v6915, 32
    %v7070 = vpop.permute.xlu0 %7069
    %7071 = vrot.lane.b32.xlu0 %v6916, 32
    %v7072 = vpop.permute.xlu0 %7071
    %v7075 = vsel %vm223, %v221, %v7006
    %v7076 = vsel %vm223, %v222, %v7008
    %v7077 = vsel %vm855, %v7075, %v7012
    %v7078 = vsel %vm855, %v7076, %v7014
    %v7079 = vsel %vm858, %v7077, %v7018
    %v7080 = vsel %vm858, %v7078, %v7020
    %v7081 = vsel %vm527, %v7079, %v7024
    %v7082 = vsel %vm527, %v7080, %v7026
    %v7083 = vsel %vm3102, %v7081, %v7030
    %v7084 = vsel %vm3102, %v7082, %v7032
    %v7085 = vsel %vm3105, %v7083, %v7036
    %v7086 = vsel %vm3105, %v7084, %v7038
    %v7087 = vsel %vm3108, %v7085, %v7042
    %v7088 = vsel %vm3108, %v7086, %v7044
    %v7089 = vsel %vm223, %v7048, %v7054
    %v7090 = vsel %vm223, %v7050, %v7056
    %v7091 = vsel %vm855, %v7089, %v7062
    %v7092 = vsel %vm855, %v7090, %v7064
    %v7093 = vsel %vm858, %v7091, %v7070
    %v7094 = vsel %vm858, %v7092, %v7072
    %7095 = vrot.lane.b32.xlu0 %v280, 16
    %v7096 = vpop.permute.xlu0 %7095
    %7097 = vrot.lane.b32.xlu0 %v283, 16
    %v7098 = vpop.permute.xlu0 %7097
    %7101 = vrot.lane.b32.xlu0 %v1850, 32
    %v7102 = vpop.permute.xlu0 %7101
    %7103 = vrot.lane.b32.xlu0 %v1851, 32
    %v7104 = vpop.permute.xlu0 %7103
    %7107 = vrot.lane.b32.xlu0 %v1910, 32
    %v7108 = vpop.permute.xlu0 %7107
    %7109 = vrot.lane.b32.xlu0 %v1911, 32
    %v7110 = vpop.permute.xlu0 %7109
    %7113 = vrot.lane.b32.xlu0 %v1966, 32
    %v7114 = vpop.permute.xlu0 %7113
    %7115 = vrot.lane.b32.xlu0 %v1967, 32
    %v7116 = vpop.permute.xlu0 %7115
    %7119 = vrot.lane.b32.xlu0 %v2022, 32
    %v7120 = vpop.permute.xlu0 %7119
    %7121 = vrot.lane.b32.xlu0 %v2023, 32
    %v7122 = vpop.permute.xlu0 %7121
    %7125 = vrot.lane.b32.xlu0 %v4570, 96
    %v7126 = vpop.permute.xlu0 %7125
    %7127 = vrot.lane.b32.xlu0 %v4571, 96
    %v7128 = vpop.permute.xlu0 %7127
    %7131 = vrot.lane.b32.xlu0 %v4622, 96
    %v7132 = vpop.permute.xlu0 %7131
    %7133 = vrot.lane.b32.xlu0 %v4623, 96
    %v7134 = vpop.permute.xlu0 %7133
    %7137 = vrot.lane.b32.xlu0 %v4672, 96
    %v7138 = vpop.permute.xlu0 %7137
    %7139 = vrot.lane.b32.xlu0 %v4673, 96
    %v7140 = vpop.permute.xlu0 %7139
    %7143 = vrot.lane.b32.xlu0 %v4722, 96
    %v7144 = vpop.permute.xlu0 %7143
    %7145 = vrot.lane.b32.xlu0 %v4723, 96
    %v7146 = vpop.permute.xlu0 %7145
    %7151 = vrot.lane.b32.xlu0 %v6951, 32
    %v7152 = vpop.permute.xlu0 %7151
    %7153 = vrot.lane.b32.xlu0 %v6952, 32
    %v7154 = vpop.permute.xlu0 %7153
    %7159 = vrot.lane.b32.xlu0 %v7003, 32
    %v7160 = vpop.permute.xlu0 %7159
    %7161 = vrot.lane.b32.xlu0 %v7004, 32
    %v7162 = vpop.permute.xlu0 %7161
    %v7165 = vsel %vm223, %v254, %v7096
    %v7166 = vsel %vm223, %v255, %v7098
    %v7167 = vsel %vm855, %v7165, %v7102
    %v7168 = vsel %vm855, %v7166, %v7104
    %v7169 = vsel %vm858, %v7167, %v7108
    %v7170 = vsel %vm858, %v7168, %v7110
    %v7171 = vsel %vm527, %v7169, %v7114
    %v7172 = vsel %vm527, %v7170, %v7116
    %v7173 = vsel %vm3102, %v7171, %v7120
    %v7174 = vsel %vm3102, %v7172, %v7122
    %v7175 = vsel %vm3105, %v7173, %v7126
    %v7176 = vsel %vm3105, %v7174, %v7128
    %v7177 = vsel %vm3108, %v7175, %v7132
    %v7178 = vsel %vm3108, %v7176, %v7134
    %v7179 = vsel %vm223, %v7138, %v7144
    %v7180 = vsel %vm223, %v7140, %v7146
    %v7181 = vsel %vm855, %v7179, %v7152
    %v7182 = vsel %vm855, %v7180, %v7154
    %v7183 = vsel %vm858, %v7181, %v7160
    %v7184 = vsel %vm858, %v7182, %v7162
    %v7185 = vld [vmem:[#allocation2] sm:$0xff]
    %v7186 = vld [vmem:[#allocation2 + $0x8] sm:$0xff]
    %v7187 = vld [vmem:[#allocation2 + $0x10] sm:$0xff]
    %v7188 = vld [vmem:[#allocation2 + $0x18] sm:$0xff]
    %v7189 = vld [vmem:[#allocation2 + $0x20] sm:$0xff]
    %v7190 = vld [vmem:[#allocation2 + $0x28] sm:$0xff]
    %v7191 = vld [vmem:[#allocation2 + $0x30] sm:$0xff]
    %v7192 = vld [vmem:[#allocation2 + $0x38] sm:$0xff]
    %v7193 = vld [vmem:[#allocation2 + $0x40] sm:$0xff]
    %v7194 = vld [vmem:[#allocation2 + $0x48] sm:$0xff]
    %v7195 = vld [vmem:[#allocation2 + $0x50] sm:$0xff]
    %v7196 = vld [vmem:[#allocation2 + $0x58] sm:$0xff]
    %v7197 = vld [vmem:[#allocation2 + $0x60] sm:$0xff]
    %v7198 = vld [vmem:[#allocation2 + $0x68] sm:$0xff]
    %v7199 = vld [vmem:[#allocation2 + $0x70] sm:$0xff]
    %v7200 = vld [vmem:[#allocation2 + $0x78] sm:$0xff]
    %v7201 = vld [vmem:[#allocation2 + $0x80] sm:$0xff]
    %v7202 = vld [vmem:[#allocation2 + $0x88] sm:$0xff]
    %v7203 = vld [vmem:[#allocation2 + $0x90] sm:$0xff]
    %v7204 = vld [vmem:[#allocation2 + $0x98] sm:$0xff]
    %v7205 = vld [vmem:[#allocation2 + $0xa0] sm:$0xff]
    %v7206 = vld [vmem:[#allocation2 + $0xa8] sm:$0xff]
    %v7207 = vld [vmem:[#allocation2 + $0xb0] sm:$0xff]
    %v7208 = vld [vmem:[#allocation2 + $0xb8] sm:$0xff]
    %v7209 = vld [vmem:[#allocation2 + $0xc0] sm:$0xff]
    %v7210 = vld [vmem:[#allocation2 + $0xc8] sm:$0xff]
    %v7211 = vld [vmem:[#allocation2 + $0xd0] sm:$0xff]
    %v7212 = vld [vmem:[#allocation2 + $0xd8] sm:$0xff]
    %v7213 = vld [vmem:[#allocation2 + $0xe0] sm:$0xff]
    %v7214 = vld [vmem:[#allocation2 + $0xe8] sm:$0xff]
    %v7215 = vld [vmem:[#allocation2 + $0xf0] sm:$0xff]
    %v7216 = vld [vmem:[#allocation2 + $0xf8] sm:$0xff]
    %v7217 = vld [vmem:[#allocation2 + $0x100] sm:$0xff]
    %v7218 = vld [vmem:[#allocation2 + $0x108] sm:$0xff]
    %v7219 = vld [vmem:[#allocation2 + $0x110] sm:$0xff]
    %v7220 = vld [vmem:[#allocation2 + $0x118] sm:$0xff]
    %v7221 = vld [vmem:[#allocation2 + $0x120] sm:$0xff]
    %v7222 = vld [vmem:[#allocation2 + $0x128] sm:$0xff]
    %v7223 = vld [vmem:[#allocation2 + $0x130] sm:$0xff]
    %v7224 = vld [vmem:[#allocation2 + $0x138] sm:$0xff]
    %v7225 = vld [vmem:[#allocation2 + $0x140] sm:$0xff]
    %v7226 = vld [vmem:[#allocation2 + $0x148] sm:$0xff]
    %v7227 = vld [vmem:[#allocation2 + $0x150] sm:$0xff]
    %v7228 = vld [vmem:[#allocation2 + $0x158] sm:$0xff]
    %v7229 = vld [vmem:[#allocation2 + $0x160] sm:$0xff]
    %v7230 = vld [vmem:[#allocation2 + $0x168] sm:$0xff]
    %v7231 = vld [vmem:[#allocation2 + $0x170] sm:$0xff]
    %v7232 = vld [vmem:[#allocation2 + $0x178] sm:$0xff]
    %v7233 = vld [vmem:[#allocation2 + $0x180] sm:$0xff]
    %v7234 = vld [vmem:[#allocation2 + $0x188] sm:$0xff]
    %v7235 = vld [vmem:[#allocation2 + $0x190] sm:$0xff]
    %v7236 = vld [vmem:[#allocation2 + $0x198] sm:$0xff]
    %v7237 = vld [vmem:[#allocation2 + $0x1a0] sm:$0xff]
    %v7238 = vld [vmem:[#allocation2 + $0x1a8] sm:$0xff]
    %v7239 = vld [vmem:[#allocation2 + $0x1b0] sm:$0xff]
    %v7240 = vld [vmem:[#allocation2 + $0x1b8] sm:$0xff]
    %v7241 = vld [vmem:[#allocation2 + $0x1c0] sm:$0xff]
    %v7242 = vld [vmem:[#allocation2 + $0x1c8] sm:$0xff]
    %v7243 = vld [vmem:[#allocation2 + $0x1d0] sm:$0xff]
    %v7244 = vld [vmem:[#allocation2 + $0x1d8] sm:$0xff]
    %v7245 = vld [vmem:[#allocation2 + $0x1e0] sm:$0xff]
    %v7246 = vld [vmem:[#allocation2 + $0x1e8] sm:$0xff]
    %v7247 = vld [vmem:[#allocation2 + $0x1f0] sm:$0xff]
    %v7248 = vld [vmem:[#allocation2 + $0x1f8] sm:$0xff]
    %v7249 = vld [vmem:[#allocation2 + $0x200] sm:$0xff]
    %v7250 = vld [vmem:[#allocation2 + $0x208] sm:$0xff]
    %v7251 = vld [vmem:[#allocation2 + $0x210] sm:$0xff]
    %v7252 = vld [vmem:[#allocation2 + $0x218] sm:$0xff]
    %v7253 = vld [vmem:[#allocation2 + $0x220] sm:$0xff]
    %v7254 = vld [vmem:[#allocation2 + $0x228] sm:$0xff]
    %v7255 = vld [vmem:[#allocation2 + $0x230] sm:$0xff]
    %v7256 = vld [vmem:[#allocation2 + $0x238] sm:$0xff]
    %v7257 = vld [vmem:[%s79] sm:$0x7]
    %v7259 = vperm.slane %v7257, 0
    %v7260 = vperm.slane %v7257, 1
    %v7261 = vperm.slane %v7257, 2
    %v7266 = vsel %vm527, %v7093, 0
    %v7269 = vsel %vm527, %v7094, 0
    %v7272 = vsel %vm527, %v7183, 0
    %v7275 = vsel %vm527, %v7184, 0
    %7277 = vmatpush.msra.mxu0 %v7230
    %7278 = vmatpush.msra.mxu0 %v7227
    %7279 = vmatpush.msra.mxu0 %v7224
    %7280 = vmatpush.msra.mxu0 %v7221
    %7281 = vmatpush.msra.mxu0 %v7218
    %7282 = vmatpush.msra.mxu0 %v7215
    %7283 = vmatpush.msra.mxu0 %v7212
    %7284 = vmatpush.msra.mxu0 %v7209
    %7285 = vmatpush.msra.mxu0 %v7206
    %7286 = vmatpush.msra.mxu0 %v7203
    %7287 = vmatpush.msra.mxu0 %v7200
    %7288 = vmatpush.msra.mxu0 %v7197
    %7289 = vmatpush.msra.mxu0 %v7194
    %7290 = vmatpush.msra.mxu0 %v7191
    %7291 = vmatpush.msra.mxu0 %v7188
    %7292 = vmatpush.msra.mxu0 %v7185
    %7293 = vmatmul.f32.gmra.mxu0 %v7087
    %v7294 = vpop.f32.mrf.mxu0
    %v7295 = vadd.f32 %v7259, %v7294
    %7296 = vmatmul.f32.gmra.mxu0 %v7088
    %v7297 = vpop.f32.mrf.mxu0
    %v7298 = vadd.f32 %v7259, %v7297
    %7299 = vmatmul.f32.gmra.mxu0 %v7177
    %v7300 = vpop.f32.mrf.mxu0
    %v7301 = vadd.f32 %v7259, %v7300
    %7302 = vmatmul.f32.gmra.mxu0 %v7178
    %v7303 = vpop.f32.mrf.mxu0
    %v7304 = vadd.f32 %v7259, %v7303
    %7305 = vdwg.mxu0
    %7306 = vmatpush.msra.mxu0 0.0
    %7307 = vmatpush.msra.mxu0 0.0
    %7308 = vmatpush.msra.mxu0 0.0
    %7309 = vmatpush.msra.mxu0 0.0
    %7310 = vmatpush.msra.mxu0 0.0
    %7311 = vmatpush.msra.mxu0 0.0
    %7312 = vmatpush.msra.mxu0 0.0
    %7313 = vmatpush.msra.mxu0 0.0
    %7314 = vmatpush.msra.mxu0 %v7254
    %7315 = vmatpush.msra.mxu0 %v7251
    %7316 = vmatpush.msra.mxu0 %v7248
    %7317 = vmatpush.msra.mxu0 %v7245
    %7318 = vmatpush.msra.mxu0 %v7242
    %7319 = vmatpush.msra.mxu0 %v7239
    %7320 = vmatpush.msra.mxu0 %v7236
    %7321 = vmatpush.msra.mxu0 %v7233
    %7322 = vmatmul.f32.gmra.mxu0 %v7266
    %v7323 = vpop.f32.mrf.mxu0
    %v7324 = vadd.f32 %v7295, %v7323
    %7325 = vmatmul.f32.gmra.mxu0 %v7269
    %v7326 = vpop.f32.mrf.mxu0
    %v7327 = vadd.f32 %v7298, %v7326
    %7328 = vmatmul.f32.gmra.mxu0 %v7272
    %v7329 = vpop.f32.mrf.mxu0
    %v7330 = vadd.f32 %v7301, %v7329
    %7331 = vmatmul.f32.gmra.mxu0 %v7275
    %v7332 = vpop.f32.mrf.mxu0
    %v7333 = vadd.f32 %v7304, %v7332
    %7334 = vdwg.mxu0
    %7335 = vmatpush.msra.mxu0 %v7231
    %7336 = vmatpush.msra.mxu0 %v7228
    %7337 = vmatpush.msra.mxu0 %v7225
    %7338 = vmatpush.msra.mxu0 %v7222
    %7339 = vmatpush.msra.mxu0 %v7219
    %7340 = vmatpush.msra.mxu0 %v7216
    %7341 = vmatpush.msra.mxu0 %v7213
    %7342 = vmatpush.msra.mxu0 %v7210
    %7343 = vmatpush.msra.mxu0 %v7207
    %7344 = vmatpush.msra.mxu0 %v7204
    %7345 = vmatpush.msra.mxu0 %v7201
    %7346 = vmatpush.msra.mxu0 %v7198
    %7347 = vmatpush.msra.mxu0 %v7195
    %7348 = vmatpush.msra.mxu0 %v7192
    %7349 = vmatpush.msra.mxu0 %v7189
    %7350 = vmatpush.msra.mxu0 %v7186
    %7351 = vmatmul.f32.gmra.mxu0 %v7087
    %v7352 = vpop.f32.mrf.mxu0
    %v7353 = vadd.f32 %v7260, %v7352
    %7354 = vmatmul.f32.gmra.mxu0 %v7088
    %v7355 = vpop.f32.mrf.mxu0
    %v7356 = vadd.f32 %v7260, %v7355
    %7357 = vmatmul.f32.gmra.mxu0 %v7177
    %v7358 = vpop.f32.mrf.mxu0
    %v7359 = vadd.f32 %v7260, %v7358
    %7360 = vmatmul.f32.gmra.mxu0 %v7178
    %v7361 = vpop.f32.mrf.mxu0
    %v7362 = vadd.f32 %v7260, %v7361
    %7363 = vdwg.mxu0
    %7364 = vmatpush.msra.mxu0 0.0
    %7365 = vmatpush.msra.mxu0 0.0
    %7366 = vmatpush.msra.mxu0 0.0
    %7367 = vmatpush.msra.mxu0 0.0
    %7368 = vmatpush.msra.mxu0 0.0
    %7369 = vmatpush.msra.mxu0 0.0
    %7370 = vmatpush.msra.mxu0 0.0
    %7371 = vmatpush.msra.mxu0 0.0
    %7372 = vmatpush.msra.mxu0 %v7255
    %7373 = vmatpush.msra.mxu0 %v7252
    %7374 = vmatpush.msra.mxu0 %v7249
    %7375 = vmatpush.msra.mxu0 %v7246
    %7376 = vmatpush.msra.mxu0 %v7243
    %7377 = vmatpush.msra.mxu0 %v7240
    %7378 = vmatpush.msra.mxu0 %v7237
    %7379 = vmatpush.msra.mxu0 %v7234
    %7380 = vmatmul.f32.gmra.mxu0 %v7266
    %v7381 = vpop.f32.mrf.mxu0
    %v7382 = vadd.f32 %v7353, %v7381
    %7383 = vmatmul.f32.gmra.mxu0 %v7269
    %v7384 = vpop.f32.mrf.mxu0
    %v7385 = vadd.f32 %v7356, %v7384
    %7386 = vmatmul.f32.gmra.mxu0 %v7272
    %v7387 = vpop.f32.mrf.mxu0
    %v7388 = vadd.f32 %v7359, %v7387
    %7389 = vmatmul.f32.gmra.mxu0 %v7275
    %v7390 = vpop.f32.mrf.mxu0
    %v7391 = vadd.f32 %v7362, %v7390
    %7392 = vdwg.mxu0
    %7393 = vmatpush.msra.mxu0 %v7232
    %7394 = vmatpush.msra.mxu0 %v7229
    %7395 = vmatpush.msra.mxu0 %v7226
    %7396 = vmatpush.msra.mxu0 %v7223
    %7397 = vmatpush.msra.mxu0 %v7220
    %7398 = vmatpush.msra.mxu0 %v7217
    %7399 = vmatpush.msra.mxu0 %v7214
    %7400 = vmatpush.msra.mxu0 %v7211
    %7401 = vmatpush.msra.mxu0 %v7208
    %7402 = vmatpush.msra.mxu0 %v7205
    %7403 = vmatpush.msra.mxu0 %v7202
    %7404 = vmatpush.msra.mxu0 %v7199
    %7405 = vmatpush.msra.mxu0 %v7196
    %7406 = vmatpush.msra.mxu0 %v7193
    %7407 = vmatpush.msra.mxu0 %v7190
    %7408 = vmatpush.msra.mxu0 %v7187
    %7409 = vmatmul.f32.gmra.mxu0 %v7087
    %v7410 = vpop.f32.mrf.mxu0
    %v7411 = vadd.f32 %v7261, %v7410
    %7412 = vmatmul.f32.gmra.mxu0 %v7088
    %v7413 = vpop.f32.mrf.mxu0
    %v7414 = vadd.f32 %v7261, %v7413
    %7415 = vmatmul.f32.gmra.mxu0 %v7177
    %v7416 = vpop.f32.mrf.mxu0
    %v7417 = vadd.f32 %v7261, %v7416
    %7418 = vmatmul.f32.gmra.mxu0 %v7178
    %v7419 = vpop.f32.mrf.mxu0
    %v7420 = vadd.f32 %v7261, %v7419
    %7421 = vdwg.mxu0
    %7422 = vmatpush.msra.mxu0 0.0
    %7423 = vmatpush.msra.mxu0 0.0
    %7424 = vmatpush.msra.mxu0 0.0
    %7425 = vmatpush.msra.mxu0 0.0
    %7426 = vmatpush.msra.mxu0 0.0
    %7427 = vmatpush.msra.mxu0 0.0
    %7428 = vmatpush.msra.mxu0 0.0
    %7429 = vmatpush.msra.mxu0 0.0
    %7430 = vmatpush.msra.mxu0 %v7256
    %7431 = vmatpush.msra.mxu0 %v7253
    %7432 = vmatpush.msra.mxu0 %v7250
    %7433 = vmatpush.msra.mxu0 %v7247
    %7434 = vmatpush.msra.mxu0 %v7244
    %7435 = vmatpush.msra.mxu0 %v7241
    %7436 = vmatpush.msra.mxu0 %v7238
    %7437 = vmatpush.msra.mxu0 %v7235
    %7438 = vmatmul.f32.gmra.mxu0 %v7266
    %v7439 = vpop.f32.mrf.mxu0
    %v7440 = vadd.f32 %v7411, %v7439
    %7441 = vmatmul.f32.gmra.mxu0 %v7269
    %v7442 = vpop.f32.mrf.mxu0
    %v7443 = vadd.f32 %v7414, %v7442
    %7444 = vmatmul.f32.gmra.mxu0 %v7272
    %v7445 = vpop.f32.mrf.mxu0
    %v7446 = vadd.f32 %v7417, %v7445
    %7447 = vmatmul.f32.gmra.mxu0 %v7275
    %v7448 = vpop.f32.mrf.mxu0
    %v7449 = vadd.f32 %v7420, %v7448
    %7450 = vdwg.mxu0
    %vm7451 = vcmp.gt.f32.partialorder %v7324, 0.0
    %vm7452 = vcmp.gt.f32.partialorder %v7382, 0.0
    %vm7453 = vcmp.gt.f32.partialorder %v7440, 0.0
    %vm7454 = vcmp.gt.f32.partialorder %v7327, 0.0
    %vm7455 = vcmp.gt.f32.partialorder %v7385, 0.0
    %vm7456 = vcmp.gt.f32.partialorder %v7443, 0.0
    %vm7457 = vcmp.gt.f32.partialorder %v7330, 0.0
    %vm7458 = vcmp.gt.f32.partialorder %v7388, 0.0
    %vm7459 = vcmp.gt.f32.partialorder %v7446, 0.0
    %vm7460 = vcmp.gt.f32.partialorder %v7333, 0.0
    %vm7461 = vcmp.gt.f32.partialorder %v7391, 0.0
    %vm7462 = vcmp.gt.f32.partialorder %v7449, 0.0
    %v7463 = vmin.f32 %v7324, 0.0
    %v7464 = vmin.f32 %v7382, 0.0
    %v7465 = vmin.f32 %v7440, 0.0
    %v7466 = vmin.f32 %v7327, 0.0
    %v7467 = vmin.f32 %v7385, 0.0
    %v7468 = vmin.f32 %v7443, 0.0
    %v7469 = vmin.f32 %v7330, 0.0
    %v7470 = vmin.f32 %v7388, 0.0
    %v7471 = vmin.f32 %v7446, 0.0
    %v7472 = vmin.f32 %v7333, 0.0
    %v7473 = vmin.f32 %v7391, 0.0
    %v7474 = vmin.f32 %v7449, 0.0
    %v7475 = vmul.f32 %v7463, 1.442695
    %v7476 = vpow.pop %v7475
    %v7477 = vmul.f32 %v7464, 1.442695
    %v7478 = vpow.pop %v7477
    %v7479 = vmul.f32 %v7465, 1.442695
    %v7480 = vpow.pop %v7479
    %v7481 = vmul.f32 %v7466, 1.442695
    %v7482 = vpow.pop %v7481
    %v7483 = vmul.f32 %v7467, 1.442695
    %v7484 = vpow.pop %v7483
    %v7485 = vmul.f32 %v7468, 1.442695
    %v7486 = vpow.pop %v7485
    %v7487 = vmul.f32 %v7469, 1.442695
    %v7488 = vpow.pop %v7487
    %v7489 = vmul.f32 %v7470, 1.442695
    %v7490 = vpow.pop %v7489
    %v7491 = vmul.f32 %v7471, 1.442695
    %v7492 = vpow.pop %v7491
    %v7493 = vmul.f32 %v7472, 1.442695
    %v7494 = vpow.pop %v7493
    %v7495 = vmul.f32 %v7473, 1.442695
    %v7496 = vpow.pop %v7495
    %v7497 = vmul.f32 %v7474, 1.442695
    %v7498 = vpow.pop %v7497
    %v7499 = vsub.f32 %v7476, 1.0
    %v7500 = vsub.f32 %v7478, 1.0
    %v7501 = vsub.f32 %v7480, 1.0
    %v7502 = vsub.f32 %v7482, 1.0
    %v7503 = vsub.f32 %v7484, 1.0
    %v7504 = vsub.f32 %v7486, 1.0
    %v7505 = vsub.f32 %v7488, 1.0
    %v7506 = vsub.f32 %v7490, 1.0
    %v7507 = vsub.f32 %v7492, 1.0
    %v7508 = vsub.f32 %v7494, 1.0
    %v7509 = vsub.f32 %v7496, 1.0
    %v7510 = vsub.f32 %v7498, 1.0
    %v7511 = vsel %vm7451, %v7324, %v7499
    %v7512 = vsel %vm7452, %v7382, %v7500
    %v7513 = vsel %vm7453, %v7440, %v7501
    %v7514 = vsel %vm7454, %v7327, %v7502
    %v7515 = vsel %vm7455, %v7385, %v7503
    %v7516 = vsel %vm7456, %v7443, %v7504
    %v7517 = vsel %vm7457, %v7330, %v7505
    %v7518 = vsel %vm7458, %v7388, %v7506
    %v7519 = vsel %vm7459, %v7446, %v7507
    %v7520 = vsel %vm7460, %v7333, %v7508
    %v7521 = vsel %vm7461, %v7391, %v7509
    %v7522 = vsel %vm7462, %v7449, %v7510
    %v7523 = vld [vmem:[#allocation5] sm:$0xff]
    %v7524 = vld [vmem:[#allocation5 + $0x8] sm:$0xff]
    %v7525 = vld [vmem:[#allocation5 + $0x10] sm:$0xff]
    %v7526 = vld [vmem:[#allocation5 + $0x18] sm:$0xff]
    %v7527 = vld [vmem:[#allocation5 + $0x20] sm:$0xff]
    %v7528 = vld [vmem:[#allocation5 + $0x28] sm:$0xff]
    %v7529 = vld [vmem:[#allocation5 + $0x30] sm:$0xff]
    %v7530 = vld [vmem:[#allocation5 + $0x38] sm:$0xff]
    %v7531 = vld [vmem:[#allocation5 + $0x40] sm:$0xff]
    %v7532 = vld [vmem:[#allocation5 + $0x48] sm:$0xff]
    %v7533 = vld [vmem:[#allocation5 + $0x50] sm:$0xff]
    %v7534 = vld [vmem:[#allocation5 + $0x58] sm:$0xff]
    %v7535 = vld [vmem:[#allocation5 + $0x60] sm:$0xff]
    %v7536 = vld [vmem:[#allocation5 + $0x68] sm:$0xff]
    %v7537 = vld [vmem:[#allocation5 + $0x70] sm:$0xff]
    %v7538 = vld [vmem:[#allocation5 + $0x78] sm:$0xff]
    %v7539 = vld [vmem:[#allocation5 + $0x80] sm:$0xff]
    %v7540 = vld [vmem:[#allocation5 + $0x88] sm:$0xff]
    %v7541 = vld [vmem:[#allocation5 + $0x90] sm:$0xff]
    %v7542 = vld [vmem:[#allocation5 + $0x98] sm:$0xff]
    %v7543 = vld [vmem:[#allocation5 + $0xa0] sm:$0xff]
    %v7544 = vld [vmem:[#allocation5 + $0xa8] sm:$0xff]
    %v7545 = vld [vmem:[#allocation5 + $0xb0] sm:$0xff]
    %v7546 = vld [vmem:[#allocation5 + $0xb8] sm:$0xff]
    %v7547 = vld [vmem:[#allocation5 + $0xc0] sm:$0xff]
    %v7548 = vld [vmem:[#allocation5 + $0xc8] sm:$0xff]
    %v7549 = vld [vmem:[#allocation5 + $0xd0] sm:$0xff]
    %v7550 = vld [vmem:[#allocation5 + $0xd8] sm:$0xff]
    %v7551 = vld [vmem:[#allocation5 + $0xe0] sm:$0xff]
    %v7552 = vld [vmem:[#allocation5 + $0xe8] sm:$0xff]
    %v7553 = vld [vmem:[#allocation5 + $0xf0] sm:$0xff]
    %v7554 = vld [vmem:[#allocation5 + $0xf8] sm:$0xff]
    %v7555 = vld [vmem:[#allocation5 + $0x100] sm:$0xff]
    %v7556 = vld [vmem:[#allocation5 + $0x108] sm:$0xff]
    %v7557 = vld [vmem:[#allocation5 + $0x110] sm:$0xff]
    %v7558 = vld [vmem:[#allocation5 + $0x118] sm:$0xff]
    %v7559 = vld [vmem:[#allocation5 + $0x120] sm:$0xff]
    %v7560 = vld [vmem:[#allocation5 + $0x128] sm:$0xff]
    %v7561 = vld [vmem:[#allocation5 + $0x130] sm:$0xff]
    %v7562 = vld [vmem:[#allocation5 + $0x138] sm:$0xff]
    %v7563 = vld [vmem:[#allocation5 + $0x140] sm:$0xff]
    %v7564 = vld [vmem:[#allocation5 + $0x148] sm:$0xff]
    %v7565 = vld [vmem:[#allocation5 + $0x150] sm:$0xff]
    %v7566 = vld [vmem:[#allocation5 + $0x158] sm:$0xff]
    %v7567 = vld [vmem:[#allocation5 + $0x160] sm:$0xff]
    %v7568 = vld [vmem:[#allocation5 + $0x168] sm:$0xff]
    %v7569 = vld [vmem:[#allocation5 + $0x170] sm:$0xff]
    %v7570 = vld [vmem:[#allocation5 + $0x178] sm:$0xff]
    %v7571 = vld [vmem:[#allocation5 + $0x180] sm:$0xff]
    %v7572 = vld [vmem:[#allocation5 + $0x188] sm:$0xff]
    %v7573 = vld [vmem:[#allocation5 + $0x190] sm:$0xff]
    %v7574 = vld [vmem:[#allocation5 + $0x198] sm:$0xff]
    %v7575 = vld [vmem:[#allocation5 + $0x1a0] sm:$0xff]
    %v7576 = vld [vmem:[#allocation5 + $0x1a8] sm:$0xff]
    %v7577 = vld [vmem:[#allocation5 + $0x1b0] sm:$0xff]
    %v7578 = vld [vmem:[#allocation5 + $0x1b8] sm:$0xff]
    %v7579 = vld [vmem:[#allocation5 + $0x1c0] sm:$0xff]
    %v7580 = vld [vmem:[#allocation5 + $0x1c8] sm:$0xff]
    %v7581 = vld [vmem:[#allocation5 + $0x1d0] sm:$0xff]
    %v7582 = vld [vmem:[#allocation5 + $0x1d8] sm:$0xff]
    %v7583 = vld [vmem:[#allocation5 + $0x1e0] sm:$0xff]
    %v7584 = vld [vmem:[#allocation5 + $0x1e8] sm:$0xff]
    %v7585 = vld [vmem:[#allocation5 + $0x1f0] sm:$0xff]
    %v7586 = vld [vmem:[#allocation5 + $0x1f8] sm:$0xff]
    %v7587 = vld [vmem:[#allocation5 + $0x200] sm:$0xff]
    %v7588 = vld [vmem:[#allocation5 + $0x208] sm:$0xff]
    %v7589 = vld [vmem:[#allocation5 + $0x210] sm:$0xff]
    %v7590 = vld [vmem:[#allocation5 + $0x218] sm:$0xff]
    %v7591 = vld [vmem:[#allocation5 + $0x220] sm:$0xff]
    %v7592 = vld [vmem:[#allocation5 + $0x228] sm:$0xff]
    %v7593 = vld [vmem:[#allocation5 + $0x230] sm:$0xff]
    %v7594 = vld [vmem:[#allocation5 + $0x238] sm:$0xff]
    %v7595 = vld [vmem:[#allocation5 + $0x240] sm:$0xff]
    %v7596 = vld [vmem:[#allocation5 + $0x248] sm:$0xff]
    %v7597 = vld [vmem:[#allocation5 + $0x250] sm:$0xff]
    %v7598 = vld [vmem:[#allocation5 + $0x258] sm:$0xff]
    %v7599 = vld [vmem:[#allocation5 + $0x260] sm:$0xff]
    %v7600 = vld [vmem:[#allocation5 + $0x268] sm:$0xff]
    %v7601 = vld [vmem:[#allocation5 + $0x270] sm:$0xff]
    %v7602 = vld [vmem:[#allocation5 + $0x278] sm:$0xff]
    %v7603 = vld [vmem:[#allocation5 + $0x280] sm:$0xff]
    %v7604 = vld [vmem:[#allocation5 + $0x288] sm:$0xff]
    %v7605 = vld [vmem:[#allocation5 + $0x290] sm:$0xff]
    %v7606 = vld [vmem:[#allocation5 + $0x298] sm:$0xff]
    %v7607 = vld [vmem:[#allocation5 + $0x2a0] sm:$0xff]
    %v7608 = vld [vmem:[#allocation5 + $0x2a8] sm:$0xff]
    %v7609 = vld [vmem:[#allocation5 + $0x2b0] sm:$0xff]
    %v7610 = vld [vmem:[#allocation5 + $0x2b8] sm:$0xff]
    %v7611 = vld [vmem:[#allocation5 + $0x2c0] sm:$0xff]
    %v7612 = vld [vmem:[#allocation5 + $0x2c8] sm:$0xff]
    %v7613 = vld [vmem:[#allocation5 + $0x2d0] sm:$0xff]
    %v7614 = vld [vmem:[#allocation5 + $0x2d8] sm:$0xff]
    %v7615 = vld [vmem:[#allocation5 + $0x2e0] sm:$0xff]
    %v7616 = vld [vmem:[#allocation5 + $0x2e8] sm:$0xff]
    %v7617 = vld [vmem:[#allocation5 + $0x2f0] sm:$0xff]
    %v7618 = vld [vmem:[#allocation5 + $0x2f8] sm:$0xff]
    %v7619 = vld [vmem:[#allocation5 + $0x300] sm:$0xff]
    %v7620 = vld [vmem:[#allocation5 + $0x308] sm:$0xff]
    %v7621 = vld [vmem:[#allocation5 + $0x310] sm:$0xff]
    %v7622 = vld [vmem:[#allocation5 + $0x318] sm:$0xff]
    %v7623 = vld [vmem:[#allocation5 + $0x320] sm:$0xff]
    %v7624 = vld [vmem:[#allocation5 + $0x328] sm:$0xff]
    %v7625 = vld [vmem:[#allocation5 + $0x330] sm:$0xff]
    %v7626 = vld [vmem:[#allocation5 + $0x338] sm:$0xff]
    %v7627 = vld [vmem:[#allocation5 + $0x340] sm:$0xff]
    %v7628 = vld [vmem:[#allocation5 + $0x348] sm:$0xff]
    %v7629 = vld [vmem:[#allocation5 + $0x350] sm:$0xff]
    %v7630 = vld [vmem:[#allocation5 + $0x358] sm:$0xff]
    %v7631 = vld [vmem:[#allocation5 + $0x360] sm:$0xff]
    %v7632 = vld [vmem:[#allocation5 + $0x368] sm:$0xff]
    %v7633 = vld [vmem:[#allocation5 + $0x370] sm:$0xff]
    %v7634 = vld [vmem:[#allocation5 + $0x378] sm:$0xff]
    %v7635 = vld [vmem:[#allocation5 + $0x380] sm:$0xff]
    %v7636 = vld [vmem:[#allocation5 + $0x388] sm:$0xff]
    %v7637 = vld [vmem:[#allocation5 + $0x390] sm:$0xff]
    %v7638 = vld [vmem:[#allocation5 + $0x398] sm:$0xff]
    %v7639 = vld [vmem:[#allocation5 + $0x3a0] sm:$0xff]
    %v7640 = vld [vmem:[#allocation5 + $0x3a8] sm:$0xff]
    %v7641 = vld [vmem:[#allocation5 + $0x3b0] sm:$0xff]
    %v7642 = vld [vmem:[#allocation5 + $0x3b8] sm:$0xff]
    %v7643 = vld [vmem:[#allocation5 + $0x3c0] sm:$0xff]
    %v7644 = vld [vmem:[#allocation5 + $0x3c8] sm:$0xff]
    %v7645 = vld [vmem:[#allocation5 + $0x3d0] sm:$0xff]
    %v7646 = vld [vmem:[#allocation5 + $0x3d8] sm:$0xff]
    %v7647 = vld [vmem:[#allocation5 + $0x3e0] sm:$0xff]
    %v7648 = vld [vmem:[#allocation5 + $0x3e8] sm:$0xff]
    %v7649 = vld [vmem:[#allocation5 + $0x3f0] sm:$0xff]
    %v7650 = vld [vmem:[#allocation5 + $0x3f8] sm:$0xff]
    %v7651 = vld [vmem:[#allocation5 + $0x400] sm:$0xff]
    %v7652 = vld [vmem:[#allocation5 + $0x408] sm:$0xff]
    %v7653 = vld [vmem:[#allocation5 + $0x410] sm:$0xff]
    %v7654 = vld [vmem:[#allocation5 + $0x418] sm:$0xff]
    %v7655 = vld [vmem:[#allocation5 + $0x420] sm:$0xff]
    %v7656 = vld [vmem:[#allocation5 + $0x428] sm:$0xff]
    %v7657 = vld [vmem:[#allocation5 + $0x430] sm:$0xff]
    %v7658 = vld [vmem:[#allocation5 + $0x438] sm:$0xff]
    %v7659 = vld [vmem:[#allocation5 + $0x440] sm:$0xff]
    %v7660 = vld [vmem:[#allocation5 + $0x448] sm:$0xff]
    %v7661 = vld [vmem:[#allocation5 + $0x450] sm:$0xff]
    %v7662 = vld [vmem:[#allocation5 + $0x458] sm:$0xff]
    %v7663 = vld [vmem:[#allocation5 + $0x460] sm:$0xff]
    %v7664 = vld [vmem:[#allocation5 + $0x468] sm:$0xff]
    %v7665 = vld [vmem:[#allocation5 + $0x470] sm:$0xff]
    %v7666 = vld [vmem:[#allocation5 + $0x478] sm:$0xff]
    %v7667 = vld [vmem:[%s81] sm:$0x7]
    %v7669 = vperm.slane %v7667, 0
    %v7670 = vperm.slane %v7667, 1
    %v7671 = vperm.slane %v7667, 2
    %7675 = vmatpush.msra.mxu0 %v7568
    %7676 = vmatpush.msra.mxu0 %v7565
    %7677 = vmatpush.msra.mxu0 %v7562
    %7678 = vmatpush.msra.mxu0 %v7559
    %7679 = vmatpush.msra.mxu0 %v7556
    %7680 = vmatpush.msra.mxu0 %v7553
    %7681 = vmatpush.msra.mxu0 %v7550
    %7682 = vmatpush.msra.mxu0 %v7547
    %7683 = vmatpush.msra.mxu0 %v7544
    %7684 = vmatpush.msra.mxu0 %v7541
    %7685 = vmatpush.msra.mxu0 %v7538
    %7686 = vmatpush.msra.mxu0 %v7535
    %7687 = vmatpush.msra.mxu0 %v7532
    %7688 = vmatpush.msra.mxu0 %v7529
    %7689 = vmatpush.msra.mxu0 %v7526
    %7690 = vmatpush.msra.mxu0 %v7523
    %7691 = vmatmul.f32.gmra.mxu0 %v7511
    %v7692 = vpop.f32.mrf.mxu0
    %v7693 = vadd.f32 %v7669, %v7692
    %7694 = vmatmul.f32.gmra.mxu0 %v7514
    %v7695 = vpop.f32.mrf.mxu0
    %v7696 = vadd.f32 %v7669, %v7695
    %7697 = vmatmul.f32.gmra.mxu0 %v7517
    %v7698 = vpop.f32.mrf.mxu0
    %v7699 = vadd.f32 %v7669, %v7698
    %7700 = vmatmul.f32.gmra.mxu0 %v7520
    %v7701 = vpop.f32.mrf.mxu0
    %v7702 = vadd.f32 %v7669, %v7701
    %7703 = vdwg.mxu0
    %7704 = vmatpush.msra.mxu0 %v7616
    %7705 = vmatpush.msra.mxu0 %v7613
    %7706 = vmatpush.msra.mxu0 %v7610
    %7707 = vmatpush.msra.mxu0 %v7607
    %7708 = vmatpush.msra.mxu0 %v7604
    %7709 = vmatpush.msra.mxu0 %v7601
    %7710 = vmatpush.msra.mxu0 %v7598
    %7711 = vmatpush.msra.mxu0 %v7595
    %7712 = vmatpush.msra.mxu0 %v7592
    %7713 = vmatpush.msra.mxu0 %v7589
    %7714 = vmatpush.msra.mxu0 %v7586
    %7715 = vmatpush.msra.mxu0 %v7583
    %7716 = vmatpush.msra.mxu0 %v7580
    %7717 = vmatpush.msra.mxu0 %v7577
    %7718 = vmatpush.msra.mxu0 %v7574
    %7719 = vmatpush.msra.mxu0 %v7571
    %7720 = vmatmul.f32.gmra.mxu0 %v7512
    %v7721 = vpop.f32.mrf.mxu0
    %v7722 = vadd.f32 %v7693, %v7721
    %7723 = vmatmul.f32.gmra.mxu0 %v7515
    %v7724 = vpop.f32.mrf.mxu0
    %v7725 = vadd.f32 %v7696, %v7724
    %7726 = vmatmul.f32.gmra.mxu0 %v7518
    %v7727 = vpop.f32.mrf.mxu0
    %v7728 = vadd.f32 %v7699, %v7727
    %7729 = vmatmul.f32.gmra.mxu0 %v7521
    %v7730 = vpop.f32.mrf.mxu0
    %v7731 = vadd.f32 %v7702, %v7730
    %7732 = vdwg.mxu0
    %7733 = vmatpush.msra.mxu0 %v7664
    %7734 = vmatpush.msra.mxu0 %v7661
    %7735 = vmatpush.msra.mxu0 %v7658
    %7736 = vmatpush.msra.mxu0 %v7655
    %7737 = vmatpush.msra.mxu0 %v7652
    %7738 = vmatpush.msra.mxu0 %v7649
    %7739 = vmatpush.msra.mxu0 %v7646
    %7740 = vmatpush.msra.mxu0 %v7643
    %7741 = vmatpush.msra.mxu0 %v7640
    %7742 = vmatpush.msra.mxu0 %v7637
    %7743 = vmatpush.msra.mxu0 %v7634
    %7744 = vmatpush.msra.mxu0 %v7631
    %7745 = vmatpush.msra.mxu0 %v7628
    %7746 = vmatpush.msra.mxu0 %v7625
    %7747 = vmatpush.msra.mxu0 %v7622
    %7748 = vmatpush.msra.mxu0 %v7619
    %7749 = vmatmul.f32.gmra.mxu0 %v7513
    %v7750 = vpop.f32.mrf.mxu0
    %v7751 = vadd.f32 %v7722, %v7750
    %7752 = vmatmul.f32.gmra.mxu0 %v7516
    %v7753 = vpop.f32.mrf.mxu0
    %v7754 = vadd.f32 %v7725, %v7753
    %7755 = vmatmul.f32.gmra.mxu0 %v7519
    %v7756 = vpop.f32.mrf.mxu0
    %v7757 = vadd.f32 %v7728, %v7756
    %7758 = vmatmul.f32.gmra.mxu0 %v7522
    %v7759 = vpop.f32.mrf.mxu0
    %v7760 = vadd.f32 %v7731, %v7759
    %7761 = vdwg.mxu0
    %7762 = vmatpush.msra.mxu0 %v7569
    %7763 = vmatpush.msra.mxu0 %v7566
    %7764 = vmatpush.msra.mxu0 %v7563
    %7765 = vmatpush.msra.mxu0 %v7560
    %7766 = vmatpush.msra.mxu0 %v7557
    %7767 = vmatpush.msra.mxu0 %v7554
    %7768 = vmatpush.msra.mxu0 %v7551
    %7769 = vmatpush.msra.mxu0 %v7548
    %7770 = vmatpush.msra.mxu0 %v7545
    %7771 = vmatpush.msra.mxu0 %v7542
    %7772 = vmatpush.msra.mxu0 %v7539
    %7773 = vmatpush.msra.mxu0 %v7536
    %7774 = vmatpush.msra.mxu0 %v7533
    %7775 = vmatpush.msra.mxu0 %v7530
    %7776 = vmatpush.msra.mxu0 %v7527
    %7777 = vmatpush.msra.mxu0 %v7524
    %7778 = vmatmul.f32.gmra.mxu0 %v7511
    %v7779 = vpop.f32.mrf.mxu0
    %v7780 = vadd.f32 %v7670, %v7779
    %7781 = vmatmul.f32.gmra.mxu0 %v7514
    %v7782 = vpop.f32.mrf.mxu0
    %v7783 = vadd.f32 %v7670, %v7782
    %7784 = vmatmul.f32.gmra.mxu0 %v7517
    %v7785 = vpop.f32.mrf.mxu0
    %v7786 = vadd.f32 %v7670, %v7785
    %7787 = vmatmul.f32.gmra.mxu0 %v7520
    %v7788 = vpop.f32.mrf.mxu0
    %v7789 = vadd.f32 %v7670, %v7788
    %7790 = vdwg.mxu0
    %7791 = vmatpush.msra.mxu0 %v7617
    %7792 = vmatpush.msra.mxu0 %v7614
    %7793 = vmatpush.msra.mxu0 %v7611
    %7794 = vmatpush.msra.mxu0 %v7608
    %7795 = vmatpush.msra.mxu0 %v7605
    %7796 = vmatpush.msra.mxu0 %v7602
    %7797 = vmatpush.msra.mxu0 %v7599
    %7798 = vmatpush.msra.mxu0 %v7596
    %7799 = vmatpush.msra.mxu0 %v7593
    %7800 = vmatpush.msra.mxu0 %v7590
    %7801 = vmatpush.msra.mxu0 %v7587
    %7802 = vmatpush.msra.mxu0 %v7584
    %7803 = vmatpush.msra.mxu0 %v7581
    %7804 = vmatpush.msra.mxu0 %v7578
    %7805 = vmatpush.msra.mxu0 %v7575
    %7806 = vmatpush.msra.mxu0 %v7572
    %7807 = vmatmul.f32.gmra.mxu0 %v7512
    %v7808 = vpop.f32.mrf.mxu0
    %v7809 = vadd.f32 %v7780, %v7808
    %7810 = vmatmul.f32.gmra.mxu0 %v7515
    %v7811 = vpop.f32.mrf.mxu0
    %v7812 = vadd.f32 %v7783, %v7811
    %7813 = vmatmul.f32.gmra.mxu0 %v7518
    %v7814 = vpop.f32.mrf.mxu0
    %v7815 = vadd.f32 %v7786, %v7814
    %7816 = vmatmul.f32.gmra.mxu0 %v7521
    %v7817 = vpop.f32.mrf.mxu0
    %v7818 = vadd.f32 %v7789, %v7817
    %7819 = vdwg.mxu0
    %7820 = vmatpush.msra.mxu0 %v7665
    %7821 = vmatpush.msra.mxu0 %v7662
    %7822 = vmatpush.msra.mxu0 %v7659
    %7823 = vmatpush.msra.mxu0 %v7656
    %7824 = vmatpush.msra.mxu0 %v7653
    %7825 = vmatpush.msra.mxu0 %v7650
    %7826 = vmatpush.msra.mxu0 %v7647
    %7827 = vmatpush.msra.mxu0 %v7644
    %7828 = vmatpush.msra.mxu0 %v7641
    %7829 = vmatpush.msra.mxu0 %v7638
    %7830 = vmatpush.msra.mxu0 %v7635
    %7831 = vmatpush.msra.mxu0 %v7632
    %7832 = vmatpush.msra.mxu0 %v7629
    %7833 = vmatpush.msra.mxu0 %v7626
    %7834 = vmatpush.msra.mxu0 %v7623
    %7835 = vmatpush.msra.mxu0 %v7620
    %7836 = vmatmul.f32.gmra.mxu0 %v7513
    %v7837 = vpop.f32.mrf.mxu0
    %v7838 = vadd.f32 %v7809, %v7837
    %7839 = vmatmul.f32.gmra.mxu0 %v7516
    %v7840 = vpop.f32.mrf.mxu0
    %v7841 = vadd.f32 %v7812, %v7840
    %7842 = vmatmul.f32.gmra.mxu0 %v7519
    %v7843 = vpop.f32.mrf.mxu0
    %v7844 = vadd.f32 %v7815, %v7843
    %7845 = vmatmul.f32.gmra.mxu0 %v7522
    %v7846 = vpop.f32.mrf.mxu0
    %v7847 = vadd.f32 %v7818, %v7846
    %7848 = vdwg.mxu0
    %7849 = vmatpush.msra.mxu0 %v7570
    %7850 = vmatpush.msra.mxu0 %v7567
    %7851 = vmatpush.msra.mxu0 %v7564
    %7852 = vmatpush.msra.mxu0 %v7561
    %7853 = vmatpush.msra.mxu0 %v7558
    %7854 = vmatpush.msra.mxu0 %v7555
    %7855 = vmatpush.msra.mxu0 %v7552
    %7856 = vmatpush.msra.mxu0 %v7549
    %7857 = vmatpush.msra.mxu0 %v7546
    %7858 = vmatpush.msra.mxu0 %v7543
    %7859 = vmatpush.msra.mxu0 %v7540
    %7860 = vmatpush.msra.mxu0 %v7537
    %7861 = vmatpush.msra.mxu0 %v7534
    %7862 = vmatpush.msra.mxu0 %v7531
    %7863 = vmatpush.msra.mxu0 %v7528
    %7864 = vmatpush.msra.mxu0 %v7525
    %7865 = vmatmul.f32.gmra.mxu0 %v7511
    %v7866 = vpop.f32.mrf.mxu0
    %v7867 = vadd.f32 %v7671, %v7866
    %7868 = vmatmul.f32.gmra.mxu0 %v7514
    %v7869 = vpop.f32.mrf.mxu0
    %v7870 = vadd.f32 %v7671, %v7869
    %7871 = vmatmul.f32.gmra.mxu0 %v7517
    %v7872 = vpop.f32.mrf.mxu0
    %v7873 = vadd.f32 %v7671, %v7872
    %7874 = vmatmul.f32.gmra.mxu0 %v7520
    %v7875 = vpop.f32.mrf.mxu0
    %v7876 = vadd.f32 %v7671, %v7875
    %7877 = vdwg.mxu0
    %7878 = vmatpush.msra.mxu0 %v7618
    %7879 = vmatpush.msra.mxu0 %v7615
    %7880 = vmatpush.msra.mxu0 %v7612
    %7881 = vmatpush.msra.mxu0 %v7609
    %7882 = vmatpush.msra.mxu0 %v7606
    %7883 = vmatpush.msra.mxu0 %v7603
    %7884 = vmatpush.msra.mxu0 %v7600
    %7885 = vmatpush.msra.mxu0 %v7597
    %7886 = vmatpush.msra.mxu0 %v7594
    %7887 = vmatpush.msra.mxu0 %v7591
    %7888 = vmatpush.msra.mxu0 %v7588
    %7889 = vmatpush.msra.mxu0 %v7585
    %7890 = vmatpush.msra.mxu0 %v7582
    %7891 = vmatpush.msra.mxu0 %v7579
    %7892 = vmatpush.msra.mxu0 %v7576
    %7893 = vmatpush.msra.mxu0 %v7573
    %7894 = vmatmul.f32.gmra.mxu0 %v7512
    %v7895 = vpop.f32.mrf.mxu0
    %v7896 = vadd.f32 %v7867, %v7895
    %7897 = vmatmul.f32.gmra.mxu0 %v7515
    %v7898 = vpop.f32.mrf.mxu0
    %v7899 = vadd.f32 %v7870, %v7898
    %7900 = vmatmul.f32.gmra.mxu0 %v7518
    %v7901 = vpop.f32.mrf.mxu0
    %v7902 = vadd.f32 %v7873, %v7901
    %7903 = vmatmul.f32.gmra.mxu0 %v7521
    %v7904 = vpop.f32.mrf.mxu0
    %v7905 = vadd.f32 %v7876, %v7904
    %7906 = vdwg.mxu0
    %7907 = vmatpush.msra.mxu0 %v7666
    %7908 = vmatpush.msra.mxu0 %v7663
    %7909 = vmatpush.msra.mxu0 %v7660
    %7910 = vmatpush.msra.mxu0 %v7657
    %7911 = vmatpush.msra.mxu0 %v7654
    %7912 = vmatpush.msra.mxu0 %v7651
    %7913 = vmatpush.msra.mxu0 %v7648
    %7914 = vmatpush.msra.mxu0 %v7645
    %7915 = vmatpush.msra.mxu0 %v7642
    %7916 = vmatpush.msra.mxu0 %v7639
    %7917 = vmatpush.msra.mxu0 %v7636
    %7918 = vmatpush.msra.mxu0 %v7633
    %7919 = vmatpush.msra.mxu0 %v7630
    %7920 = vmatpush.msra.mxu0 %v7627
    %7921 = vmatpush.msra.mxu0 %v7624
    %7922 = vmatpush.msra.mxu0 %v7621
    %7923 = vmatmul.f32.gmra.mxu0 %v7513
    %v7924 = vpop.f32.mrf.mxu0
    %v7925 = vadd.f32 %v7896, %v7924
    %7926 = vmatmul.f32.gmra.mxu0 %v7516
    %v7927 = vpop.f32.mrf.mxu0
    %v7928 = vadd.f32 %v7899, %v7927
    %7929 = vmatmul.f32.gmra.mxu0 %v7519
    %v7930 = vpop.f32.mrf.mxu0
    %v7931 = vadd.f32 %v7902, %v7930
    %7932 = vmatmul.f32.gmra.mxu0 %v7522
    %v7933 = vpop.f32.mrf.mxu0
    %v7934 = vadd.f32 %v7905, %v7933
    %7935 = vdwg.mxu0
    %vm7936 = vcmp.gt.f32.partialorder %v7751, 0.0
    %vm7937 = vcmp.gt.f32.partialorder %v7838, 0.0
    %vm7938 = vcmp.gt.f32.partialorder %v7925, 0.0
    %vm7939 = vcmp.gt.f32.partialorder %v7754, 0.0
    %vm7940 = vcmp.gt.f32.partialorder %v7841, 0.0
    %vm7941 = vcmp.gt.f32.partialorder %v7928, 0.0
    %vm7942 = vcmp.gt.f32.partialorder %v7757, 0.0
    %vm7943 = vcmp.gt.f32.partialorder %v7844, 0.0
    %vm7944 = vcmp.gt.f32.partialorder %v7931, 0.0
    %vm7945 = vcmp.gt.f32.partialorder %v7760, 0.0
    %vm7946 = vcmp.gt.f32.partialorder %v7847, 0.0
    %vm7947 = vcmp.gt.f32.partialorder %v7934, 0.0
    %v7948 = vmin.f32 %v7751, 0.0
    %v7949 = vmin.f32 %v7838, 0.0
    %v7950 = vmin.f32 %v7925, 0.0
    %v7951 = vmin.f32 %v7754, 0.0
    %v7952 = vmin.f32 %v7841, 0.0
    %v7953 = vmin.f32 %v7928, 0.0
    %v7954 = vmin.f32 %v7757, 0.0
    %v7955 = vmin.f32 %v7844, 0.0
    %v7956 = vmin.f32 %v7931, 0.0
    %v7957 = vmin.f32 %v7760, 0.0
    %v7958 = vmin.f32 %v7847, 0.0
    %v7959 = vmin.f32 %v7934, 0.0
    %v7960 = vmul.f32 %v7948, 1.442695
    %v7961 = vpow.pop %v7960
    %v7962 = vmul.f32 %v7949, 1.442695
    %v7963 = vpow.pop %v7962
    %v7964 = vmul.f32 %v7950, 1.442695
    %v7965 = vpow.pop %v7964
    %v7966 = vmul.f32 %v7951, 1.442695
    %v7967 = vpow.pop %v7966
    %v7968 = vmul.f32 %v7952, 1.442695
    %v7969 = vpow.pop %v7968
    %v7970 = vmul.f32 %v7953, 1.442695
    %v7971 = vpow.pop %v7970
    %v7972 = vmul.f32 %v7954, 1.442695
    %v7973 = vpow.pop %v7972
    %v7974 = vmul.f32 %v7955, 1.442695
    %v7975 = vpow.pop %v7974
    %v7976 = vmul.f32 %v7956, 1.442695
    %v7977 = vpow.pop %v7976
    %v7978 = vmul.f32 %v7957, 1.442695
    %v7979 = vpow.pop %v7978
    %v7980 = vmul.f32 %v7958, 1.442695
    %v7981 = vpow.pop %v7980
    %v7982 = vmul.f32 %v7959, 1.442695
    %v7983 = vpow.pop %v7982
    %v7984 = vsub.f32 %v7961, 1.0
    %v7985 = vsub.f32 %v7963, 1.0
    %v7986 = vsub.f32 %v7965, 1.0
    %v7987 = vsub.f32 %v7967, 1.0
    %v7988 = vsub.f32 %v7969, 1.0
    %v7989 = vsub.f32 %v7971, 1.0
    %v7990 = vsub.f32 %v7973, 1.0
    %v7991 = vsub.f32 %v7975, 1.0
    %v7992 = vsub.f32 %v7977, 1.0
    %v7993 = vsub.f32 %v7979, 1.0
    %v7994 = vsub.f32 %v7981, 1.0
    %v7995 = vsub.f32 %v7983, 1.0
    %v7996 = vsel %vm7936, %v7751, %v7984
    %v7997 = vsel %vm7937, %v7838, %v7985
    %v7998 = vsel %vm7938, %v7925, %v7986
    %v7999 = vsel %vm7939, %v7754, %v7987
    %v8000 = vsel %vm7940, %v7841, %v7988
    %v8001 = vsel %vm7941, %v7928, %v7989
    %v8002 = vsel %vm7942, %v7757, %v7990
    %v8003 = vsel %vm7943, %v7844, %v7991
    %v8004 = vsel %vm7944, %v7931, %v7992
    %v8005 = vsel %vm7945, %v7760, %v7993
    %v8006 = vsel %vm7946, %v7847, %v7994
    %v8007 = vsel %vm7947, %v7934, %v7995
    %v8008 = vld [vmem:[%s77] sm:$0xff]
    %v8009 = vld [vmem:[%s77 + $0x8] sm:$0xff]
    %v8010 = vld [vmem:[%s77 + $0x10] sm:$0xff]
    %v8011 = vld [vmem:[%s77 + $0x18] sm:$0xff]
    %v8012 = vld [vmem:[%s77 + $0x20] sm:$0xff]
    %v8013 = vld [vmem:[%s77 + $0x28] sm:$0xff]
    %v8014 = vld [vmem:[%s77 + $0x30] sm:$0xff]
    %v8015 = vld [vmem:[%s77 + $0x38] sm:$0xff]
    %v8016 = vld [vmem:[%s77 + $0x40] sm:$0xff]
    %v8017 = vld [vmem:[%s77 + $0x48] sm:$0xff]
    %v8018 = vld [vmem:[%s77 + $0x50] sm:$0xff]
    %v8019 = vld [vmem:[%s77 + $0x58] sm:$0xff]
    %v8020 = vld [vmem:[%s77 + $0x60] sm:$0xff]
    %v8021 = vld [vmem:[%s77 + $0x68] sm:$0xff]
    %v8022 = vld [vmem:[%s77 + $0x70] sm:$0xff]
    %v8023 = vld [vmem:[%s77 + $0x78] sm:$0xff]
    %v8024 = vld [vmem:[%s77 + $0x80] sm:$0xff]
    %v8025 = vld [vmem:[%s77 + $0x88] sm:$0xff]
    %v8026 = vld [vmem:[%s77 + $0x90] sm:$0xff]
    %v8027 = vld [vmem:[%s77 + $0x98] sm:$0xff]
    %v8028 = vld [vmem:[%s77 + $0xa0] sm:$0xff]
    %v8029 = vld [vmem:[%s77 + $0xa8] sm:$0xff]
    %v8030 = vld [vmem:[%s77 + $0xb0] sm:$0xff]
    %v8031 = vld [vmem:[%s77 + $0xb8] sm:$0xff]
    %v8032 = vld [vmem:[%s77 + $0xc0] sm:$0xff]
    %v8033 = vld [vmem:[%s77 + $0xc8] sm:$0xff]
    %v8034 = vld [vmem:[%s77 + $0xd0] sm:$0xff]
    %v8035 = vld [vmem:[%s77 + $0xd8] sm:$0xff]
    %v8036 = vld [vmem:[%s77 + $0xe0] sm:$0xff]
    %v8037 = vld [vmem:[%s77 + $0xe8] sm:$0xff]
    %v8038 = vld [vmem:[%s77 + $0xf0] sm:$0xff]
    %v8039 = vld [vmem:[%s77 + $0xf8] sm:$0xff]
    %v8040 = vld [vmem:[%s77 + $0x100] sm:$0xff]
    %v8041 = vld [vmem:[%s77 + $0x108] sm:$0xff]
    %v8042 = vld [vmem:[%s77 + $0x110] sm:$0xff]
    %v8043 = vld [vmem:[%s77 + $0x118] sm:$0xff]
    %v8044 = vld [vmem:[%s77 + $0x120] sm:$0xff]
    %v8045 = vld [vmem:[%s77 + $0x128] sm:$0xff]
    %v8046 = vld [vmem:[%s77 + $0x130] sm:$0xff]
    %v8047 = vld [vmem:[%s77 + $0x138] sm:$0xff]
    %v8048 = vld [vmem:[%s77 + $0x140] sm:$0xff]
    %v8049 = vld [vmem:[%s77 + $0x148] sm:$0xff]
    %v8050 = vld [vmem:[%s77 + $0x150] sm:$0xff]
    %v8051 = vld [vmem:[%s77 + $0x158] sm:$0xff]
    %v8052 = vld [vmem:[%s77 + $0x160] sm:$0xff]
    %v8053 = vld [vmem:[%s77 + $0x168] sm:$0xff]
    %v8054 = vld [vmem:[%s77 + $0x170] sm:$0xff]
    %v8055 = vld [vmem:[%s77 + $0x178] sm:$0xff]
    %v8056 = vld [vmem:[%s83] sm:$0x1]
    %v8058 = vperm.slane %v8056, 0
    %8060 = vmatpush.msra.mxu0 %v8023
    %8061 = vmatpush.msra.mxu0 %v8022
    %8062 = vmatpush.msra.mxu0 %v8021
    %8063 = vmatpush.msra.mxu0 %v8020
    %8064 = vmatpush.msra.mxu0 %v8019
    %8065 = vmatpush.msra.mxu0 %v8018
    %8066 = vmatpush.msra.mxu0 %v8017
    %8067 = vmatpush.msra.mxu0 %v8016
    %8068 = vmatpush.msra.mxu0 %v8015
    %8069 = vmatpush.msra.mxu0 %v8014
    %8070 = vmatpush.msra.mxu0 %v8013
    %8071 = vmatpush.msra.mxu0 %v8012
    %8072 = vmatpush.msra.mxu0 %v8011
    %8073 = vmatpush.msra.mxu0 %v8010
    %8074 = vmatpush.msra.mxu0 %v8009
    %8075 = vmatpush.msra.mxu0 %v8008
    %8076 = vmatmul.f32.gmra.mxu0 %v7996
    %v8077 = vpop.f32.mrf.mxu0
    %v8078 = vadd.f32 %v8058, %v8077
    %8079 = vmatmul.f32.gmra.mxu0 %v7999
    %v8080 = vpop.f32.mrf.mxu0
    %v8081 = vadd.f32 %v8058, %v8080
    %8082 = vmatmul.f32.gmra.mxu0 %v8002
    %v8083 = vpop.f32.mrf.mxu0
    %v8084 = vadd.f32 %v8058, %v8083
    %8085 = vmatmul.f32.gmra.mxu0 %v8005
    %v8086 = vpop.f32.mrf.mxu0
    %v8087 = vadd.f32 %v8058, %v8086
    %8088 = vdwg.mxu0
    %8089 = vmatpush.msra.mxu0 %v8039
    %8090 = vmatpush.msra.mxu0 %v8038
    %8091 = vmatpush.msra.mxu0 %v8037
    %8092 = vmatpush.msra.mxu0 %v8036
    %8093 = vmatpush.msra.mxu0 %v8035
    %8094 = vmatpush.msra.mxu0 %v8034
    %8095 = vmatpush.msra.mxu0 %v8033
    %8096 = vmatpush.msra.mxu0 %v8032
    %8097 = vmatpush.msra.mxu0 %v8031
    %8098 = vmatpush.msra.mxu0 %v8030
    %8099 = vmatpush.msra.mxu0 %v8029
    %8100 = vmatpush.msra.mxu0 %v8028
    %8101 = vmatpush.msra.mxu0 %v8027
    %8102 = vmatpush.msra.mxu0 %v8026
    %8103 = vmatpush.msra.mxu0 %v8025
    %8104 = vmatpush.msra.mxu0 %v8024
    %8105 = vmatmul.f32.gmra.mxu0 %v7997
    %v8106 = vpop.f32.mrf.mxu0
    %v8107 = vadd.f32 %v8078, %v8106
    %8108 = vmatmul.f32.gmra.mxu0 %v8000
    %v8109 = vpop.f32.mrf.mxu0
    %v8110 = vadd.f32 %v8081, %v8109
    %8111 = vmatmul.f32.gmra.mxu0 %v8003
    %v8112 = vpop.f32.mrf.mxu0
    %v8113 = vadd.f32 %v8084, %v8112
    %8114 = vmatmul.f32.gmra.mxu0 %v8006
    %v8115 = vpop.f32.mrf.mxu0
    %v8116 = vadd.f32 %v8087, %v8115
    %8117 = vdwg.mxu0
    %8118 = vmatpush.msra.mxu0 %v8055
    %8119 = vmatpush.msra.mxu0 %v8054
    %8120 = vmatpush.msra.mxu0 %v8053
    %8121 = vmatpush.msra.mxu0 %v8052
    %8122 = vmatpush.msra.mxu0 %v8051
    %8123 = vmatpush.msra.mxu0 %v8050
    %8124 = vmatpush.msra.mxu0 %v8049
    %8125 = vmatpush.msra.mxu0 %v8048
    %8126 = vmatpush.msra.mxu0 %v8047
    %8127 = vmatpush.msra.mxu0 %v8046
    %8128 = vmatpush.msra.mxu0 %v8045
    %8129 = vmatpush.msra.mxu0 %v8044
    %8130 = vmatpush.msra.mxu0 %v8043
    %8131 = vmatpush.msra.mxu0 %v8042
    %8132 = vmatpush.msra.mxu0 %v8041
    %8133 = vmatpush.msra.mxu0 %v8040
    %8134 = vmatmul.f32.gmra.mxu0 %v7998
    %v8135 = vpop.f32.mrf.mxu0
    %v8136 = vadd.f32 %v8107, %v8135
    %8137 = vmatmul.f32.gmra.mxu0 %v8001
    %v8138 = vpop.f32.mrf.mxu0
    %v8139 = vadd.f32 %v8110, %v8138
    %8140 = vmatmul.f32.gmra.mxu0 %v8004
    %v8141 = vpop.f32.mrf.mxu0
    %v8142 = vadd.f32 %v8113, %v8141
    %8143 = vmatmul.f32.gmra.mxu0 %v8007
    %v8144 = vpop.f32.mrf.mxu0
    %v8145 = vadd.f32 %v8116, %v8144
    %8146 = vdwg.mxu0
    %v8147 = vld [vmem:[%s11] sm:$0xff]
    %v8148 = vld [vmem:[%s11 + $0x8] sm:$0xff]
    %v8149 = vld [vmem:[%s11 + $0x10] sm:$0xff]
    %v8150 = vld [vmem:[%s11 + $0x18] sm:$0xff]
    %v8151 = vmul.f32 %v8136, %v8147
    %v8152 = vmul.f32 %v8139, %v8148
    %v8153 = vmul.f32 %v8142, %v8149
    %v8154 = vmul.f32 %v8145, %v8150
    %8155 = vst.msk [vmem:[#allocation7] sm:$0xff] %vm223, %v8151
    %8156 = vst.msk [vmem:[#allocation7 + $0x8] sm:$0xff] %vm223, %v8152
    %8157 = vst.msk [vmem:[#allocation7 + $0x10] sm:$0xff] %vm223, %v8153
    %8158 = vst.msk [vmem:[#allocation7 + $0x18] sm:$0xff] %vm223, %v8154
    // Predicated region
    $region178: #{_lambda_.1} parent=1 // pred_check
      _
    $region179: #{_lambda_.1} parent=1 // pred_check_branch
      %8160 = sbr.rel (0) target = $region181
    $region180: #{_lambda_.1} parent=1 // pred_region
      %8162 = vsyncadd [#allocation4], 0
      %s8163 = sshll.u32 [#allocation7], 4
      %s8164 = int_to_ptr.vmem [resolvable:$true] %s8163
      %s8165 = sshll.u32 %s85, 4
      %s8166 = int_to_ptr.hbm [resolvable:$true] %s8165
      %8171 = dma.vmem_to_hbm [thread:$0]  %s8164, 512, %s8166, [#allocation4], 128, 128, 8
    $region181: #{_lambda_.1} parent=1 // pred_fallthru
      _
    // Predicated region
    $region182: #{_lambda_.1} parent=1 // pred_check
      _
    $region183: #{_lambda_.1} parent=1 // pred_check_branch
      %8173 = sbr.rel (0) target = $region185
    $region184: #{_lambda_.1} parent=1 // pred_region
      %8175 = dma.done [#allocation4], 512
    $region185: #{_lambda_.1} parent=1 // pred_fallthru
      _
    %8176 = vsyncpa [#allocation3], 1
    %8177 = vsyncpa [#allocation6], 1
    %8178 = vsyncpa [#allocation4], 1

</llo_original>
